<compile_context>
chip_gen: v6e
topology: v6e:2x2x1
jax: 0.10.0
libtpu: 0.0.40
codegen_flags: <defaults>
</compile_context>

<pallas_src>
import functools
import math

import jax
import jax.numpy as jnp
from jax.experimental import pallas as pl
from jax.experimental.pallas import tpu as pltpu

F32 = jnp.float32
BF16 = jnp.bfloat16
_BN_EPS = 1e-5
_REVIN_EPS = 1e-5


# ----------------------------------------------------------------------------
# In-kernel math helpers
# ----------------------------------------------------------------------------
def _erf(x):
    # Abramowitz–Stegun 7.1.26, |abs err| < 1.5e-7 — uses only exp / mul / add,
    # all of which lower natively in Mosaic (EUP exp, VPU arithmetic).
    p = 0.3275911
    a1, a2, a3, a4, a5 = (0.254829592, -0.284496736, 1.421413741,
                          -1.453152027, 1.061405429)
    sgn = jnp.where(x < 0.0, -1.0, 1.0)
    ax = jnp.abs(x)
    t = 1.0 / (1.0 + p * ax)
    poly = ((((a5 * t + a4) * t + a3) * t + a2) * t + a1) * t
    return sgn * (1.0 - poly * jnp.exp(-ax * ax))


def _gelu(x):
    # exact (erf) GELU, matching torch nn.GELU() default to ~1e-7.
    return 0.5 * x * (1.0 + _erf(x * 0.7071067811865476))


# ----------------------------------------------------------------------------
# Pallas kernels
# ----------------------------------------------------------------------------
def _linear_kernel(x_ref, w_ref, b_ref, o_ref):
    # x: (M, K) f32, w: (K, N) bf16, b: (1, N) f32 -> o: (M, N) f32
    o_ref[...] = (
        jnp.dot(x_ref[...].astype(BF16), w_ref[...], preferred_element_type=F32)
        + b_ref[...]
    )


def _qkv_kernel(x_ref, w_ref, b_ref, o_ref):
    # per batch: (Nc, d) @ (d, 3*dm) + b  (fused Q|K|V)
    x = x_ref[0].astype(BF16)
    o_ref[0] = jnp.dot(x, w_ref[...], preferred_element_type=F32) + b_ref[...]


def _mo_qkv_kernel(r_ref, et_ref, w_ref, b_ref, o_ref):
    # per batch: z = E^T @ r ; qkv = z @ Wqkv + b     (compression fused in)
    r = r_ref[0].astype(BF16)                               # (N, dm)
    z = jnp.dot(et_ref[...], r, preferred_element_type=F32)  # (Nc, dm)
    o_ref[0] = (
        jnp.dot(z.astype(BF16), w_ref[...], preferred_element_type=F32)
        + b_ref[...]
    )


def _out_ffn_kernel(ctx_ref, wo_ref, bo_ref, sA_ref, bA_ref,
                    w1_ref, b1_ref, w2_ref, b2_ref, sF_ref, bF_ref, o_ref):
    # per batch:
    #   x1  = ctx @ Wo + bo                      (attention out-projection)
    #   x1  = x1 * sA + bA                       (folded eval-mode BatchNorm1d)
    #   h   = gelu(x1 @ W1 + b1)
    #   y   = h @ W2 + b2 + x1                   (dropout = identity, eval)
    #   out = y * sF + bF                        (folded eval-mode BatchNorm1d)
    ctx = ctx_ref[0].astype(BF16)                            # (Nc, dm)
    x1 = jnp.dot(ctx, wo_ref[...], preferred_element_type=F32) + bo_ref[...]
    x1 = x1 * sA_ref[...] + bA_ref[...]
    h = _gelu(jnp.dot(x1.astype(BF16), w1_ref[...],
                      preferred_element_type=F32) + b1_ref[...])
    y = (jnp.dot(h.astype(BF16), w2_ref[...], preferred_element_type=F32)
         + b2_ref[...] + x1)
    o_ref[0] = y * sF_ref[...] + bF_ref[...]


def _dec_block_kernel(x_ref, w1_ref, b1_ref, w2_ref, b2_ref, w3_ref, b3_ref,
                      o_ref):
    # per batch: Linear -> Linear -> (Dropout=id) -> GELU -> Linear
    x = x_ref[0].astype(BF16)
    h = jnp.dot(x, w1_ref[...], preferred_element_type=F32) + b1_ref[...]
    h = jnp.dot(h.astype(BF16), w2_ref[...], preferred_element_type=F32) + b2_ref[...]
    h = _gelu(h)
    o_ref[0] = (jnp.dot(h.astype(BF16), w3_ref[...], preferred_element_type=F32)
                + b3_ref[...])


def _residual_kernel(m_ref, e_ref, r_ref, o_ref):
    # per batch: res = m - E @ r     (the (B,N,D)->(B,D,N) transpose stays in
    # XLA glue; these tensors are tiny and it avoids risky in-kernel layouts)
    er = jnp.dot(e_ref[...].astype(BF16), r_ref[0].astype(BF16),
                 preferred_element_type=F32)
    o_ref[0] = m_ref[0] - er


def _head_kernel(y_ref, wr_ref, br_ref, lw_ref, o_ref):
    # per batch: fuse real_predictor + permute + level_weight:
    #   y_hat[v, p] = sum_l lw[l] * (Y1[l] @ Wr + br)[v, p]
    L = y_ref.shape[1]
    lw = lw_ref[...]                                         # (L, P) broadcast table
    acc = None
    for l in range(L):                                       # static unrolled loop
        yt = (jnp.dot(y_ref[0, l].astype(BF16), wr_ref[...],
                      preferred_element_type=F32) + br_ref[...])
        term = yt * lw[l:l + 1, :]
        acc = term if acc is None else acc + term
    o_ref[0] = acc                                           # (V, P)


# ----------------------------------------------------------------------------
# Kernel wrappers (no padding; full-extent blocks; batch grid marked parallel)
# ----------------------------------------------------------------------------
_PAR1 = pltpu.CompilerParams(dimension_semantics=("parallel",))


def pallas_linear(x, w_bf16, b_row):
    """y = x @ w + b for small slabs; single full-extent block, no padding."""
    shp = x.shape
    K = shp[-1]
    N = w_bf16.shape[1]
    x2 = x.reshape(-1, K)
    M = x2.shape[0]
    out = pl.pallas_call(
        _linear_kernel,
        out_shape=jax.ShapeDtypeStruct((M, N), F32),
    )(x2, w_bf16, b_row)
    return out.reshape(*shp[:-1], N)


def qkv_call(x, wqkv, bqkv):
    B, Nc, d = x.shape
    N3 = wqkv.shape[1]
    return pl.pallas_call(
        _qkv_kernel,
        out_shape=jax.ShapeDtypeStruct((B, Nc, N3), F32),
        grid=(B,),
        in_specs=[pl.BlockSpec((1, Nc, d), lambda b: (b, 0, 0)),
                  pl.BlockSpec(wqkv.shape, lambda b: (0, 0)),
                  pl.BlockSpec(bqkv.shape, lambda b: (0, 0))],
        out_specs=pl.BlockSpec((1, Nc, N3), lambda b: (b, 0, 0)),
        compiler_params=_PAR1,
    )(x, wqkv, bqkv)


def mo_qkv_call(r, e_t, wqkv, bqkv):
    B, N, dm = r.shape
    Nc = e_t.shape[0]
    N3 = wqkv.shape[1]
    return pl.pallas_call(
        _mo_qkv_kernel,
        out_shape=jax.ShapeDtypeStruct((B, Nc, N3), F32),
        grid=(B,),
        in_specs=[pl.BlockSpec((1, N, dm), lambda b: (b, 0, 0)),
                  pl.BlockSpec((Nc, N), lambda b: (0, 0)),
                  pl.BlockSpec(wqkv.shape, lambda b: (0, 0)),
                  pl.BlockSpec(bqkv.shape, lambda b: (0, 0))],
        out_specs=pl.BlockSpec((1, Nc, N3), lambda b: (b, 0, 0)),
        compiler_params=_PAR1,
    )(r, e_t, wqkv, bqkv)


def out_ffn_call(ctx, bp):
    B, Nc, dm = ctx.shape
    d = bp["wo"].shape[1]
    dff = bp["w1"].shape[1]
    flops = B * Nc * 2 * (dm * d + d * dff + dff * d)
    bytes_acc = (4 * B * Nc * (dm + d)
                 + 2 * (dm * d + d * dff + dff * d) + 16 * Nc)
    return pl.pallas_call(
        _out_ffn_kernel,
        out_shape=jax.ShapeDtypeStruct((B, Nc, d), F32),
        grid=(B,),
        in_specs=[
            pl.BlockSpec((1, Nc, dm), lambda b: (b, 0, 0)),
            pl.BlockSpec(bp["wo"].shape, lambda b: (0, 0)),
            pl.BlockSpec(bp["bo"].shape, lambda b: (0, 0)),
            pl.BlockSpec(bp["bnA_s"].shape, lambda b: (0, 0)),
            pl.BlockSpec(bp["bnA_b"].shape, lambda b: (0, 0)),
            pl.BlockSpec(bp["w1"].shape, lambda b: (0, 0)),
            pl.BlockSpec(bp["b1"].shape, lambda b: (0, 0)),
            pl.BlockSpec(bp["w2"].shape, lambda b: (0, 0)),
            pl.BlockSpec(bp["b2"].shape, lambda b: (0, 0)),
            pl.BlockSpec(bp["bnF_s"].shape, lambda b: (0, 0)),
            pl.BlockSpec(bp["bnF_b"].shape, lambda b: (0, 0)),
        ],
        out_specs=pl.BlockSpec((1, Nc, d), lambda b: (b, 0, 0)),
        compiler_params=_PAR1,
        cost_estimate=pl.CostEstimate(flops=flops,
                                      transcendentals=B * Nc * dff,
                                      bytes_accessed=bytes_acc),
    )(ctx, bp["wo"], bp["bo"], bp["bnA_s"], bp["bnA_b"],
      bp["w1"], bp["b1"], bp["w2"], bp["b2"], bp["bnF_s"], bp["bnF_b"])


def dec_block_call(x, bp):
    B, rows, d_in = x.shape
    dff = bp["w1"].shape[1]
    d_out = bp["w3"].shape[1]
    flops = B * rows * 2 * (d_in * dff + dff * dff + dff * d_out)
    bytes_acc = (4 * B * rows * (d_in + d_out)
                 + 2 * (d_in * dff + dff * dff + dff * d_out))
    return pl.pallas_call(
        _dec_block_kernel,
        out_shape=jax.ShapeDtypeStruct((B, rows, d_out), F32),
        grid=(B,),
        in_specs=[
            pl.BlockSpec((1, rows, d_in), lambda b: (b, 0, 0)),
            pl.BlockSpec(bp["w1"].shape, lambda b: (0, 0)),
            pl.BlockSpec(bp["b1"].shape, lambda b: (0, 0)),
            pl.BlockSpec(bp["w2"].shape, lambda b: (0, 0)),
            pl.BlockSpec(bp["b2"].shape, lambda b: (0, 0)),
            pl.BlockSpec(bp["w3"].shape, lambda b: (0, 0)),
            pl.BlockSpec(bp["b3"].shape, lambda b: (0, 0)),
        ],
        out_specs=pl.BlockSpec((1, rows, d_out), lambda b: (b, 0, 0)),
        compiler_params=_PAR1,
        cost_estimate=pl.CostEstimate(flops=flops,
                                      transcendentals=B * rows * dff,
                                      bytes_accessed=bytes_acc),
    )(x, bp["w1"], bp["b1"], bp["w2"], bp["b2"], bp["w3"], bp["b3"])


def residual_call(m, r, e):
    """res = m.transpose(1,2) - r.transpose(1,2) @ e.T  -> (B, D, N)."""
    B, N, D = m.shape
    Nc = r.shape[1]
    out = pl.pallas_call(
        _residual_kernel,
        out_shape=jax.ShapeDtypeStruct((B, N, D), F32),
        grid=(B,),
        in_specs=[pl.BlockSpec((1, N, D), lambda b: (b, 0, 0)),
                  pl.BlockSpec((N, Nc), lambda b: (0, 0)),
                  pl.BlockSpec((1, Nc, D), lambda b: (b, 0, 0))],
        out_specs=pl.BlockSpec((1, N, D), lambda b: (b, 0, 0)),
        compiler_params=_PAR1,
    )(m, e, r)
    return jnp.transpose(out, (0, 2, 1))


def head_call(y1, wr, br, lw_bcast):
    # fuses real_predictor + permute(0,3,2,1) + level_weight (+ squeeze)
    B, L, V, P = y1.shape
    out = pl.pallas_call(
        _head_kernel,
        out_shape=jax.ShapeDtypeStruct((B, V, P), F32),
        grid=(B,),
        in_specs=[pl.BlockSpec((1, L, V, P), lambda b: (b, 0, 0, 0)),
                  pl.BlockSpec(wr.shape, lambda b: (0, 0)),
                  pl.BlockSpec(br.shape, lambda b: (0, 0)),
                  pl.BlockSpec(lw_bcast.shape, lambda b: (0, 0))],
        out_specs=pl.BlockSpec((1, V, P), lambda b: (b, 0, 0)),
        compiler_params=_PAR1,
    )(y1, wr, br, lw_bcast)
    return jnp.transpose(out, (0, 2, 1))            # (B, pred_len, V)


# ----------------------------------------------------------------------------
# Plain-JAX glue (RevIN, softmax attention core, shape plumbing)
# ----------------------------------------------------------------------------
def revin_norm(x, w, b, eps=_REVIN_EPS):
    mean = jnp.mean(x, axis=1, keepdims=True)
    stdev = jnp.sqrt(jnp.var(x, axis=1, keepdims=True) + eps)
    return (x - mean) / stdev * w + b, mean, stdev


def revin_denorm(y, w, b, mean, stdev, eps=_REVIN_EPS):
    # matches official RevIN denorm: (y - b) / (w + eps^2) * stdev + mean
    return (y - b) / (w + eps * eps) * stdev + mean


def _mha_core(q, k, v, n_heads):
    # TODO(synk): FullAttention/AttentionLayer source not provided; standard
    # scaled-dot multi-head attention is used as a shape-faithful substitute.
    B, Nq, dm = q.shape
    dh = dm // n_heads

    def split(t):
        return t.reshape(B, -1, n_heads, dh).transpose(0, 2, 1, 3)

    qh, kh, vh = split(q), split(k), split(v)
    scores = jnp.einsum("bhqd,bhkd->bhqk", qh, kh) / jnp.sqrt(dh)
    attn = jax.nn.softmax(scores, axis=-1)
    ctx = jnp.einsum("bhqk,bhkd->bhqd", attn, vh)
    return ctx.transpose(0, 2, 1, 3).reshape(B, Nq, dm)


def trans_block_mmo(r, bp, n_heads):
    # TODO(synk): MoAttention source not provided; synthetic substitute:
    # learned compression E + MHA + out-proj (fused with BN/FFN below).
    qkv = mo_qkv_call(r, bp["E_T"], bp["wqkv"], bp["bqkv"])
    dm = qkv.shape[-1] // 3
    q, k, v = qkv[..., :dm], qkv[..., dm:2 * dm], qkv[..., 2 * dm:]
    ctx = _mha_core(q, k, v, n_heads)
    x2 = out_ffn_call(ctx, bp)
    return x2, None, bp["E"]


def trans_block_normal(x, bp, n_heads):
    qkv = qkv_call(x, bp["wqkv"], bp["bqkv"])
    dm = qkv.shape[-1] // 3
    q, k, v = qkv[..., :dm], qkv[..., dm:2 * dm], qkv[..., 2 * dm:]
    ctx = _mha_core(q, k, v, n_heads)
    x2 = out_ffn_call(ctx, bp)
    return x2, None


def cap_encoder(xn, x4, p, cfg, noise_key):
    B = xn.shape[0]
    T, L, V = cfg["d_inputs"]
    T_c, L_c, V_c = cfg["d_compress"]
    n_heads = cfg["n_heads"]
    k1, k2, k3 = jax.random.split(noise_key, 3)

    # ---- mode 1 ----
    m_1 = x4.reshape(B, T, V * L)                       # kept for store / residual
    # proj1 folded over the L-fold repeat (exact): m_1 @ W1 == xn @ W1_folded
    r_1 = pallas_linear(xn, p["proj1_wf"], p["proj1_b"])
    if cfg["add_noise"]:
        r_1 = r_1 + jax.random.normal(k1, r_1.shape, F32)
    r_1 = r_1 + p["pos_emb"]                            # dropout = identity (eval)
    r_1, attn_1, e_1 = trans_block_mmo(r_1, p["mo1"], n_heads)
    for tp in p["tunnel1"]:
        r_1, attn_1 = trans_block_normal(r_1, tp, n_heads)

    # ---- mode 2 ----
    m_2 = jnp.transpose(r_1.reshape(B, T_c, V, L), (0, 3, 2, 1)).reshape(B, L, -1)
    r_2 = pallas_linear(m_2, p["proj2_w"], p["proj2_b"])
    if cfg["add_noise"]:
        r_2 = r_2 + jax.random.normal(k2, r_2.shape, F32)
    r_2, attn_2, e_2 = trans_block_mmo(r_2, p["mo2"], n_heads)
    for tp in p["tunnel2"]:
        r_2, attn_2 = trans_block_normal(r_2, tp, n_heads)

    # ---- mode 3 ----
    m_3 = jnp.transpose(r_2.reshape(B, L_c, T_c, V), (0, 3, 2, 1)).reshape(B, V, -1)
    r_3 = pallas_linear(m_3, p["proj3_w"], p["proj3_b"])
    if cfg["add_noise"]:
        r_3 = r_3 + jax.random.normal(k3, r_3.shape, F32)
    r_3, attn_3, e_3 = trans_block_mmo(r_3, p["mo3"], n_heads)
    for tp in p["tunnel3"]:
        r_3, attn_3 = trans_block_normal(r_3, tp, n_heads)

    assert r_3.shape == (B, V_c, T_c * L_c)

    store = {
        "ms": [m_1, m_2, m_3],
        "rs": [r_1, r_2, r_3],
        "attns": [attn_1, attn_2, attn_3],
        "es": [e_1, e_2, e_3],
    }
    capsule_x = jnp.transpose(r_3.reshape(B, V_c, L_c, T_c), (0, 3, 2, 1))
    return capsule_x, store


def cap_decoder(y_tilde, residuals, p, cfg):
    B, T_c, L_c, V_c = y_tilde.shape
    T, L, V = cfg["d_inputs"]
    pred_len = cfg["pred_len"]

    y_3 = dec_block_call(
        jnp.concatenate([y_tilde.reshape(B, -1, V_c), residuals[2]], axis=-1),
        p["r3"]).reshape(B, T_c, L_c, V)

    y_2 = dec_block_call(
        jnp.concatenate(
            [jnp.transpose(y_3, (0, 1, 3, 2)).reshape(B, -1, L_c), residuals[1]],
            axis=-1),
        p["r2"]).reshape(B, T_c, V, L)

    y_1 = dec_block_call(
        jnp.concatenate(
            [jnp.transpose(y_2, (0, 3, 2, 1)).reshape(B, -1, T_c), residuals[0]],
            axis=-1),
        p["r1"]).reshape(B, L, V, pred_len)

    return [y_3, y_2, y_1]


def model_forward(x, params, cfg, noise_key):
    B, T, V = x.shape
    L = cfg["L"]

    xn, mean, stdev = revin_norm(x, params["revin_w"], params["revin_b"])
    x4 = jnp.repeat(xn[..., None], L, axis=-1)          # (B, T, V, L)

    capsule_x, store = cap_encoder(xn, x4, params["x_encoder"], cfg, noise_key)

    residuals = [
        residual_call(m, r, e)
        for m, r, e in zip(store["ms"], store["rs"], store["es"])
    ]

    rep = pallas_linear(
        capsule_x.reshape(B, -1), params["emb_w"], params["emb_b"]
    ).reshape(capsule_x.shape)

    Y_tilde = cap_decoder(rep, residuals, params["decoder"], cfg)

    # real_predictor + permute + level_weight + squeeze, fused in one kernel
    y_hat = head_call(Y_tilde[-1], params["real_w"], params["real_b"],
                      params["level_w_bcast"])          # (B, pred_len, V)

    y_hat = revin_denorm(y_hat, params["revin_w"], params["revin_b"], mean, stdev)
    return y_hat, rep, Y_tilde, store


# ----------------------------------------------------------------------------
# Parameter initialisation (kernel-ready: fused / folded / bf16 weights)
# ----------------------------------------------------------------------------
def init_params(key, cfg):
    T, L, V = cfg["d_inputs"]
    T_c, L_c, V_c = cfg["d_compress"]
    d_folds = cfg["d_folds"]
    d_model, d_ff, pred_len = cfg["d_model"], cfg["d_ff"], cfg["pred_len"]
    bn_fold = 1.0 / math.sqrt(1.0 + _BN_EPS)   # BatchNorm1d eval, fresh stats

    keys = iter(jax.random.split(key, 512))

    def lin(d_in, d_out):
        s = 1.0 / math.sqrt(d_in)
        w = jax.random.uniform(next(keys), (d_in, d_out), F32, -s, s)
        b = jax.random.uniform(next(keys), (d_out,), F32, -s, s)
        return w, b

    def qkv_cat(d_in):
        wq, bq = lin(d_in, d_model)
        wk, bk = lin(d_in, d_model)
        wv, bv = lin(d_in, d_model)
        wqkv = jnp.concatenate([wq, wk, wv], axis=1).astype(BF16)
        bqkv = jnp.concatenate([bq, bk, bv])[None, :]
        return wqkv, bqkv

    def bn_affine(n_c):
        w = jnp.ones((n_c,), F32)
        b = jnp.zeros((n_c,), F32)
        return (w * bn_fold)[:, None], b[:, None]        # folded eval-mode BN

    def block_common(n_c, d):
        wo, bo = lin(d_model, d)
        w1, b1 = lin(d, d_ff)
        w2, b2 = lin(d_ff, d)
        sA, bA = bn_affine(n_c)
        sF, bF = bn_affine(n_c)
        return dict(wo=wo.astype(BF16), bo=bo[None, :],
                    w1=w1.astype(BF16), b1=b1[None, :],
                    w2=w2.astype(BF16), b2=b2[None, :],
                    bnA_s=sA, bnA_b=bA, bnF_s=sF, bnF_b=bF)

    def mo_block(d_input, d_comp, d):
        wqkv, bqkv = qkv_cat(d_model)
        E = jax.random.normal(next(keys), (d_input, d_comp), F32) / math.sqrt(d_input)
        p = block_common(d_comp, d)
        p.update(wqkv=wqkv, bqkv=bqkv, E=E, E_T=E.T.astype(BF16))
        return p

    def normal_block(d_comp, d):
        wqkv, bqkv = qkv_cat(d)
        p = block_common(d_comp, d)
        p.update(wqkv=wqkv, bqkv=bqkv)
        return p

    def dec_block(d_in, d_out):
        w1, b1 = lin(d_in, d_ff)
        w2, b2 = lin(d_ff, d_ff)
        w3, b3 = lin(d_ff, d_out)
        return dict(w1=w1.astype(BF16), b1=b1[None, :],
                    w2=w2.astype(BF16), b2=b2[None, :],
                    w3=w3.astype(BF16), b3=b3[None, :])

    p1w, p1b = lin(d_folds[0], d_model)
    p2w, p2b = lin(d_folds[1], d_model)
    p3w, p3b = lin(d_folds[2], d_model)
    # fold the L-fold repeat of the model input into proj1 (exact):
    #   m_1[:, :, v*L + l] == xn[:, :, v]  =>  W1_folded[v] = sum_l W1[v*L + l]
    p1wf = p1w.reshape(V, L, d_model).sum(axis=1)

    x_encoder = dict(
        proj1_wf=p1wf.astype(BF16), proj1_b=p1b[None, :],
        proj2_w=p2w.astype(BF16), proj2_b=p2b[None, :],
        proj3_w=p3w.astype(BF16), proj3_b=p3b[None, :],
        pos_emb=jnp.zeros((T, d_model), F32),            # pe='zeros'
        mo1=mo_block(T, T_c, d_folds[0]),
        mo2=mo_block(L, L_c, d_folds[1]),
        mo3=mo_block(V, V_c, d_folds[2]),
        tunnel1=[normal_block(T_c, d_folds[0]) for _ in range(cfg["n_block"])],
        tunnel2=[normal_block(L_c, d_folds[1]) for _ in range(cfg["n_block"])],
        tunnel3=[normal_block(V_c, d_folds[2]) for _ in range(cfg["n_block"])],
    )

    decoder = dict(
        r1=dec_block(T_c + T, pred_len),
        r2=dec_block(L_c + L, L),
        r3=dec_block(V_c + V, V),
    )

    d_caps = T_c * L_c * V_c
    emb_w, emb_b = lin(d_caps, d_caps)
    real_w, real_b = lin(pred_len, pred_len)
    s = 1.0 / math.sqrt(L)
    level_w = jax.random.uniform(next(keys), (L,), F32, -s, s)
    level_w_bcast = jnp.tile(level_w[:, None], (1, pred_len))  # (L, pred_len)

    return dict(
        x_encoder=x_encoder,
        decoder=decoder,
        emb_w=emb_w.astype(BF16), emb_b=emb_b[None, :],
        real_w=real_w.astype(BF16), real_b=real_b[None, :],
        level_w_bcast=level_w_bcast,
        revin_w=jnp.ones((V,), F32),
        revin_b=jnp.zeros((V,), F32),
    )


# ----------------------------------------------------------------------------
# main
# ----------------------------------------------------------------------------
if __name__ == "__main__":
    # Small shapes consistent with the module:
    #   d_inputs = (T, L, V), d_compress = (T_c, L_c, V_c),
    #   d_folds  = (V*L, T_c*V, T_c*L_c)
    T, L, V = 16, 4, 8
    T_c, L_c, V_c = 8, 2, 4
    cfg = dict(
        d_inputs=(T, L, V),
        d_compress=(T_c, L_c, V_c),
        d_folds=(V * L, T_c * V, T_c * L_c),
        d_model=32,
        d_ff=64,
        n_heads=4,
        n_block=1,
        pred_len=16,
        L=L,
        add_noise=True,
    )

    key = jax.random.PRNGKey(0)
    k_param, k_input, k_noise = jax.random.split(key, 3)

    params = init_params(k_param, cfg)
    B = 2
    x = jax.random.normal(k_input, (B, T, V), F32)       # model input (B, T, V)

    fwd = jax.jit(functools.partial(model_forward, cfg=cfg, noise_key=k_noise))
    y_hat, rep, Y_tilde, store = fwd(x, params)
    jax.block_until_ready(y_hat)

    assert y_hat.shape == (B, cfg["pred_len"], V)
    assert rep.shape == (B, T_c, L_c, V_c)
    assert Y_tilde[-1].shape == (B, L, V, cfg["pred_len"])
    print("KERNEL_OK")
</pallas_src>

<mosaic_0001>
module attributes {stable_mosaic.version = 11 : i64} {
  func.func @_linear_kernel(%arg0: memref<32x8xf32, #tpu.memory_space<vmem>>, %arg1: memref<8x32xbf16, #tpu.memory_space<vmem>>, %arg2: memref<1x32xf32, #tpu.memory_space<vmem>>, %arg3: memref<32x32xf32, #tpu.memory_space<vmem>>) attributes {dimension_semantics = [], scalar_prefetch = 0 : i64, scratch_operands = 0 : i64, tpu.core_type = #tpu.core_type<tc>} {
    %c0 = arith.constant 0 : index
    %c0_0 = arith.constant 0 : index
    %0 = vector.load %arg0[%c0, %c0_0] : memref<32x8xf32, #tpu.memory_space<vmem>>, vector<32x8xf32>
    %1 = arith.truncf %0 : vector<32x8xf32> to vector<32x8xbf16>
    %c0_1 = arith.constant 0 : index
    %c0_2 = arith.constant 0 : index
    %2 = vector.load %arg1[%c0_1, %c0_2] : memref<8x32xbf16, #tpu.memory_space<vmem>>, vector<8x32xbf16>
    %cst = arith.constant dense<0.000000e+00> : vector<32x32xf32>
    %3 = tpu.matmul %1, %2, %cst {dimension_numbers = #tpu.dot_dimension_numbers<[1], [0], [0], [1], [0, 0, 1, 1], [], []>} : vector<32x8xbf16>, vector<8x32xbf16>, vector<32x32xf32> -> vector<32x32xf32>
    %c0_3 = arith.constant 0 : index
    %c0_4 = arith.constant 0 : index
    %4 = vector.load %arg2[%c0_3, %c0_4] : memref<1x32xf32, #tpu.memory_space<vmem>>, vector<1x32xf32>
    %5 = vector.broadcast %4 : vector<1x32xf32> to vector<32x32xf32>
    %6 = arith.addf %3, %5 : vector<32x32xf32>
    %c0_5 = arith.constant 0 : index
    %c0_6 = arith.constant 0 : index
    %7 = vector.load %arg3[%c0_5, %c0_6] : memref<32x32xf32, #tpu.memory_space<vmem>>, vector<32x32xf32>
    tpu.vector_store %arg3[%c0_5, %c0_6], %6 {strides = array<i32>} : memref<32x32xf32, #tpu.memory_space<vmem>>, vector<32x32xf32>,
    return
  }
}

module attributes {stable_mosaic.version = 11 : i64} {
  func.func @_mo_qkv_kernel(%arg0: i32, %arg1: memref<1x16x32xf32, #tpu.memory_space<vmem>>, %arg2: memref<8x16xbf16, #tpu.memory_space<vmem>>, %arg3: memref<32x96xbf16, #tpu.memory_space<vmem>>, %arg4: memref<1x96xf32, #tpu.memory_space<vmem>>, %arg5: memref<1x8x96xf32, #tpu.memory_space<vmem>>) attributes {dimension_semantics = [#tpu.dimension_semantics<parallel>], iteration_bounds = array<i64: 2>, scalar_prefetch = 0 : i64, scratch_operands = 0 : i64, tpu.core_type = #tpu.core_type<tc>, window_params = [{transform_indices = @transform_0, window_bounds = array<i64: 1, 16, 32>}, {pipeline_mode = #tpu.pipeline_mode<synchronous>, transform_indices = @transform_1, window_bounds = array<i64: 8, 16>}, {pipeline_mode = #tpu.pipeline_mode<synchronous>, transform_indices = @transform_2, window_bounds = array<i64: 32, 96>}, {pipeline_mode = #tpu.pipeline_mode<synchronous>, transform_indices = @transform_3, window_bounds = array<i64: 1, 96>}, {transform_indices = @transform_4, window_bounds = array<i64: 1, 8, 96>}]} {
    %c0 = arith.constant 0 : index
    %c0_0 = arith.constant 0 : index
    %c0_1 = arith.constant 0 : index
    %0 = vector.load %arg1[%c0, %c0_0, %c0_1] : memref<1x16x32xf32, #tpu.memory_space<vmem>>, vector<1x16x32xf32>
    %1 = vector.shape_cast %0 : vector<1x16x32xf32> to vector<16x32xf32>
    %2 = arith.truncf %1 : vector<16x32xf32> to vector<16x32xbf16>
    %c0_2 = arith.constant 0 : index
    %c0_3 = arith.constant 0 : index
    %3 = vector.load %arg2[%c0_2, %c0_3] : memref<8x16xbf16, #tpu.memory_space<vmem>>, vector<8x16xbf16>
    %cst = arith.constant dense<0.000000e+00> : vector<8x32xf32>
    %4 = tpu.matmul %3, %2, %cst {dimension_numbers = #tpu.dot_dimension_numbers<[1], [0], [0], [1], [0, 0, 1, 1], [], []>} : vector<8x16xbf16>, vector<16x32xbf16>, vector<8x32xf32> -> vector<8x32xf32>
    %5 = arith.truncf %4 : vector<8x32xf32> to vector<8x32xbf16>
    %c0_4 = arith.constant 0 : index
    %c0_5 = arith.constant 0 : index
    %6 = vector.load %arg3[%c0_4, %c0_5] : memref<32x96xbf16, #tpu.memory_space<vmem>>, vector<32x96xbf16>
    %cst_6 = arith.constant dense<0.000000e+00> : vector<8x96xf32>
    %7 = tpu.matmul %5, %6, %cst_6 {dimension_numbers = #tpu.dot_dimension_numbers<[1], [0], [0], [1], [0, 0, 1, 1], [], []>} : vector<8x32xbf16>, vector<32x96xbf16>, vector<8x96xf32> -> vector<8x96xf32>
    %c0_7 = arith.constant 0 : index
    %c0_8 = arith.constant 0 : index
    %8 = vector.load %arg4[%c0_7, %c0_8] : memref<1x96xf32, #tpu.memory_space<vmem>>, vector<1x96xf32>
    %9 = vector.broadcast %8 : vector<1x96xf32> to vector<8x96xf32>
    %10 = arith.addf %7, %9 : vector<8x96xf32>
    %c0_9 = arith.constant 0 : index
    %c0_10 = arith.constant 0 : index
    %c0_11 = arith.constant 0 : index
    %11 = vector.load %arg5[%c0_9, %c0_10, %c0_11] : memref<1x8x96xf32, #tpu.memory_space<vmem>>, vector<1x8x96xf32>
    %12 = vector.shape_cast %11 : vector<1x8x96xf32> to vector<8x96xf32>
    %13 = vector.shape_cast %10 : vector<8x96xf32> to vector<1x8x96xf32>
    tpu.vector_store %arg5[%c0_9, %c0_10, %c0_11], %13 {strides = array<i32>} : memref<1x8x96xf32, #tpu.memory_space<vmem>>, vector<1x8x96xf32>,
    return
  }
  func.func @transform_0(%arg0: i32) -> (i32, i32, i32) {
    %c0_i32 = arith.constant 0 : i32
    %c0_i32_0 = arith.constant 0 : i32
    %c0_i32_1 = arith.constant 0 : i32
    return %arg0, %c0_i32, %c0_i32_0 : i32, i32, i32
  }
  func.func @transform_1(%arg0: i32) -> (i32, i32) {
    %c0_i32 = arith.constant 0 : i32
    %c0_i32_0 = arith.constant 0 : i32
    %c0_i32_1 = arith.constant 0 : i32
    return %c0_i32, %c0_i32_0 : i32, i32
  }
  func.func @transform_2(%arg0: i32) -> (i32, i32) {
    %c0_i32 = arith.constant 0 : i32
    %c0_i32_0 = arith.constant 0 : i32
    %c0_i32_1 = arith.constant 0 : i32
    return %c0_i32, %c0_i32_0 : i32, i32
  }
  func.func @transform_3(%arg0: i32) -> (i32, i32) {
    %c0_i32 = arith.constant 0 : i32
    %c0_i32_0 = arith.constant 0 : i32
    %c0_i32_1 = arith.constant 0 : i32
    return %c0_i32, %c0_i32_0 : i32, i32
  }
  func.func @transform_4(%arg0: i32) -> (i32, i32, i32) {
    %c0_i32 = arith.constant 0 : i32
    %c0_i32_0 = arith.constant 0 : i32
    %c0_i32_1 = arith.constant 0 : i32
    return %arg0, %c0_i32, %c0_i32_0 : i32, i32, i32
  }
}

module attributes {stable_mosaic.version = 11 : i64} {
  func.func @_linear_kernel(%arg0: memref<8x64xf32, #tpu.memory_space<vmem>>, %arg1: memref<64x32xbf16, #tpu.memory_space<vmem>>, %arg2: memref<1x32xf32, #tpu.memory_space<vmem>>, %arg3: memref<8x32xf32, #tpu.memory_space<vmem>>) attributes {dimension_semantics = [], scalar_prefetch = 0 : i64, scratch_operands = 0 : i64, tpu.core_type = #tpu.core_type<tc>} {
    %c0 = arith.constant 0 : index
    %c0_0 = arith.constant 0 : index
    %0 = vector.load %arg0[%c0, %c0_0] : memref<8x64xf32, #tpu.memory_space<vmem>>, vector<8x64xf32>
    %1 = arith.truncf %0 : vector<8x64xf32> to vector<8x64xbf16>
    %c0_1 = arith.constant 0 : index
    %c0_2 = arith.constant 0 : index
    %2 = vector.load %arg1[%c0_1, %c0_2] : memref<64x32xbf16, #tpu.memory_space<vmem>>, vector<64x32xbf16>
    %cst = arith.constant dense<0.000000e+00> : vector<8x32xf32>
    %3 = tpu.matmul %1, %2, %cst {dimension_numbers = #tpu.dot_dimension_numbers<[1], [0], [0], [1], [0, 0, 1, 1], [], []>} : vector<8x64xbf16>, vector<64x32xbf16>, vector<8x32xf32> -> vector<8x32xf32>
    %c0_3 = arith.constant 0 : index
    %c0_4 = arith.constant 0 : index
    %4 = vector.load %arg2[%c0_3, %c0_4] : memref<1x32xf32, #tpu.memory_space<vmem>>, vector<1x32xf32>
    %5 = vector.broadcast %4 : vector<1x32xf32> to vector<8x32xf32>
    %6 = arith.addf %3, %5 : vector<8x32xf32>
    %c0_5 = arith.constant 0 : index
    %c0_6 = arith.constant 0 : index
    %7 = vector.load %arg3[%c0_5, %c0_6] : memref<8x32xf32, #tpu.memory_space<vmem>>, vector<8x32xf32>
    tpu.vector_store %arg3[%c0_5, %c0_6], %6 {strides = array<i32>} : memref<8x32xf32, #tpu.memory_space<vmem>>, vector<8x32xf32>,
    return
  }
}

module attributes {stable_mosaic.version = 11 : i64} {
  func.func @_qkv_kernel(%arg0: i32, %arg1: memref<1x8x32xf32, #tpu.memory_space<vmem>>, %arg2: memref<32x96xbf16, #tpu.memory_space<vmem>>, %arg3: memref<1x96xf32, #tpu.memory_space<vmem>>, %arg4: memref<1x8x96xf32, #tpu.memory_space<vmem>>) attributes {dimension_semantics = [#tpu.dimension_semantics<parallel>], iteration_bounds = array<i64: 2>, scalar_prefetch = 0 : i64, scratch_operands = 0 : i64, tpu.core_type = #tpu.core_type<tc>, window_params = [{transform_indices = @transform_0, window_bounds = array<i64: 1, 8, 32>}, {pipeline_mode = #tpu.pipeline_mode<synchronous>, transform_indices = @transform_1, window_bounds = array<i64: 32, 96>}, {pipeline_mode = #tpu.pipeline_mode<synchronous>, transform_indices = @transform_2, window_bounds = array<i64: 1, 96>}, {transform_indices = @transform_3, window_bounds = array<i64: 1, 8, 96>}]} {
    %c0 = arith.constant 0 : index
    %c0_0 = arith.constant 0 : index
    %c0_1 = arith.constant 0 : index
    %0 = vector.load %arg1[%c0, %c0_0, %c0_1] : memref<1x8x32xf32, #tpu.memory_space<vmem>>, vector<1x8x32xf32>
    %1 = vector.shape_cast %0 : vector<1x8x32xf32> to vector<8x32xf32>
    %2 = arith.truncf %1 : vector<8x32xf32> to vector<8x32xbf16>
    %c0_2 = arith.constant 0 : index
    %c0_3 = arith.constant 0 : index
    %3 = vector.load %arg2[%c0_2, %c0_3] : memref<32x96xbf16, #tpu.memory_space<vmem>>, vector<32x96xbf16>
    %cst = arith.constant dense<0.000000e+00> : vector<8x96xf32>
    %4 = tpu.matmul %2, %3, %cst {dimension_numbers = #tpu.dot_dimension_numbers<[1], [0], [0], [1], [0, 0, 1, 1], [], []>} : vector<8x32xbf16>, vector<32x96xbf16>, vector<8x96xf32> -> vector<8x96xf32>
    %c0_4 = arith.constant 0 : index
    %c0_5 = arith.constant 0 : index
    %5 = vector.load %arg3[%c0_4, %c0_5] : memref<1x96xf32, #tpu.memory_space<vmem>>, vector<1x96xf32>
    %6 = vector.broadcast %5 : vector<1x96xf32> to vector<8x96xf32>
    %7 = arith.addf %4, %6 : vector<8x96xf32>
    %c0_6 = arith.constant 0 : index
    %c0_7 = arith.constant 0 : index
    %c0_8 = arith.constant 0 : index
    %8 = vector.load %arg4[%c0_6, %c0_7, %c0_8] : memref<1x8x96xf32, #tpu.memory_space<vmem>>, vector<1x8x96xf32>
    %9 = vector.shape_cast %8 : vector<1x8x96xf32> to vector<8x96xf32>
    %10 = vector.shape_cast %7 : vector<8x96xf32> to vector<1x8x96xf32>
    tpu.vector_store %arg4[%c0_6, %c0_7, %c0_8], %10 {strides = array<i32>} : memref<1x8x96xf32, #tpu.memory_space<vmem>>, vector<1x8x96xf32>,
    return
  }
  func.func @transform_0(%arg0: i32) -> (i32, i32, i32) {
    %c0_i32 = arith.constant 0 : i32
    %c0_i32_0 = arith.constant 0 : i32
    %c0_i32_1 = arith.constant 0 : i32
    return %arg0, %c0_i32, %c0_i32_0 : i32, i32, i32
  }
  func.func @transform_1(%arg0: i32) -> (i32, i32) {
    %c0_i32 = arith.constant 0 : i32
    %c0_i32_0 = arith.constant 0 : i32
    %c0_i32_1 = arith.constant 0 : i32
    return %c0_i32, %c0_i32_0 : i32, i32
  }
  func.func @transform_2(%arg0: i32) -> (i32, i32) {
    %c0_i32 = arith.constant 0 : i32
    %c0_i32_0 = arith.constant 0 : i32
    %c0_i32_1 = arith.constant 0 : i32
    return %c0_i32, %c0_i32_0 : i32, i32
  }
  func.func @transform_3(%arg0: i32) -> (i32, i32, i32) {
    %c0_i32 = arith.constant 0 : i32
    %c0_i32_0 = arith.constant 0 : i32
    %c0_i32_1 = arith.constant 0 : i32
    return %arg0, %c0_i32, %c0_i32_0 : i32, i32, i32
  }
}

module attributes {stable_mosaic.version = 11 : i64} {
  func.func @_out_ffn_kernel(%arg0: i32, %arg1: memref<1x8x32xf32, #tpu.memory_space<vmem>>, %arg2: memref<32x32xbf16, #tpu.memory_space<vmem>>, %arg3: memref<1x32xf32, #tpu.memory_space<vmem>>, %arg4: memref<8x1xf32, #tpu.memory_space<vmem>>, %arg5: memref<8x1xf32, #tpu.memory_space<vmem>>, %arg6: memref<32x64xbf16, #tpu.memory_space<vmem>>, %arg7: memref<1x64xf32, #tpu.memory_space<vmem>>, %arg8: memref<64x32xbf16, #tpu.memory_space<vmem>>, %arg9: memref<1x32xf32, #tpu.memory_space<vmem>>, %arg10: memref<8x1xf32, #tpu.memory_space<vmem>>, %arg11: memref<8x1xf32, #tpu.memory_space<vmem>>, %arg12: memref<1x8x32xf32, #tpu.memory_space<vmem>>) attributes {dimension_semantics = [#tpu.dimension_semantics<parallel>], iteration_bounds = array<i64: 2>, scalar_prefetch = 0 : i64, scratch_operands = 0 : i64, tpu.core_type = #tpu.core_type<tc>, window_params = [{transform_indices = @transform_0, window_bounds = array<i64: 1, 8, 32>}, {pipeline_mode = #tpu.pipeline_mode<synchronous>, transform_indices = @transform_1, window_bounds = array<i64: 32, 32>}, {pipeline_mode = #tpu.pipeline_mode<synchronous>, transform_indices = @transform_2, window_bounds = array<i64: 1, 32>}, {pipeline_mode = #tpu.pipeline_mode<synchronous>, transform_indices = @transform_3, window_bounds = array<i64: 8, 1>}, {pipeline_mode = #tpu.pipeline_mode<synchronous>, transform_indices = @transform_4, window_bounds = array<i64: 8, 1>}, {pipeline_mode = #tpu.pipeline_mode<synchronous>, transform_indices = @transform_5, window_bounds = array<i64: 32, 64>}, {pipeline_mode = #tpu.pipeline_mode<synchronous>, transform_indices = @transform_6, window_bounds = array<i64: 1, 64>}, {pipeline_mode = #tpu.pipeline_mode<synchronous>, transform_indices = @transform_7, window_bounds = array<i64: 64, 32>}, {pipeline_mode = #tpu.pipeline_mode<synchronous>, transform_indices = @transform_8, window_bounds = array<i64: 1, 32>}, {pipeline_mode = #tpu.pipeline_mode<synchronous>, transform_indices = @transform_9, window_bounds = array<i64: 8, 1>}, {pipeline_mode = #tpu.pipeline_mode<synchronous>, transform_indices = @transform_10, window_bounds = array<i64: 8, 1>}, {transform_indices = @transform_11, window_bounds = array<i64: 1, 8, 32>}]} {
    %c0 = arith.constant 0 : index
    %c0_0 = arith.constant 0 : index
    %c0_1 = arith.constant 0 : index
    %0 = vector.load %arg1[%c0, %c0_0, %c0_1] : memref<1x8x32xf32, #tpu.memory_space<vmem>>, vector<1x8x32xf32>
    %1 = vector.shape_cast %0 : vector<1x8x32xf32> to vector<8x32xf32>
    %2 = arith.truncf %1 : vector<8x32xf32> to vector<8x32xbf16>
    %c0_2 = arith.constant 0 : index
    %c0_3 = arith.constant 0 : index
    %3 = vector.load %arg2[%c0_2, %c0_3] : memref<32x32xbf16, #tpu.memory_space<vmem>>, vector<32x32xbf16>
    %cst = arith.constant dense<0.000000e+00> : vector<8x32xf32>
    %4 = tpu.matmul %2, %3, %cst {dimension_numbers = #tpu.dot_dimension_numbers<[1], [0], [0], [1], [0, 0, 1, 1], [], []>} : vector<8x32xbf16>, vector<32x32xbf16>, vector<8x32xf32> -> vector<8x32xf32>
    %c0_4 = arith.constant 0 : index
    %c0_5 = arith.constant 0 : index
    %5 = vector.load %arg3[%c0_4, %c0_5] : memref<1x32xf32, #tpu.memory_space<vmem>>, vector<1x32xf32>
    %6 = vector.broadcast %5 : vector<1x32xf32> to vector<8x32xf32>
    %7 = arith.addf %4, %6 : vector<8x32xf32>
    %c0_6 = arith.constant 0 : index
    %c0_7 = arith.constant 0 : index
    %8 = vector.load %arg4[%c0_6, %c0_7] : memref<8x1xf32, #tpu.memory_space<vmem>>, vector<8x1xf32>
    %9 = vector.broadcast %8 : vector<8x1xf32> to vector<8x32xf32>
    %10 = arith.mulf %7, %9 : vector<8x32xf32>
    %c0_8 = arith.constant 0 : index
    %c0_9 = arith.constant 0 : index
    %11 = vector.load %arg5[%c0_8, %c0_9] : memref<8x1xf32, #tpu.memory_space<vmem>>, vector<8x1xf32>
    %12 = vector.broadcast %11 : vector<8x1xf32> to vector<8x32xf32>
    %13 = arith.addf %10, %12 : vector<8x32xf32>
    %14 = arith.truncf %13 : vector<8x32xf32> to vector<8x32xbf16>
    %c0_10 = arith.constant 0 : index
    %c0_11 = arith.constant 0 : index
    %15 = vector.load %arg6[%c0_10, %c0_11] : memref<32x64xbf16, #tpu.memory_space<vmem>>, vector<32x64xbf16>
    %cst_12 = arith.constant dense<0.000000e+00> : vector<8x64xf32>
    %16 = tpu.matmul %14, %15, %cst_12 {dimension_numbers = #tpu.dot_dimension_numbers<[1], [0], [0], [1], [0, 0, 1, 1], [], []>} : vector<8x32xbf16>, vector<32x64xbf16>, vector<8x64xf32> -> vector<8x64xf32>
    %c0_13 = arith.constant 0 : index
    %c0_14 = arith.constant 0 : index
    %17 = vector.load %arg7[%c0_13, %c0_14] : memref<1x64xf32, #tpu.memory_space<vmem>>, vector<1x64xf32>
    %18 = vector.broadcast %17 : vector<1x64xf32> to vector<8x64xf32>
    %19 = arith.addf %16, %18 : vector<8x64xf32>
    %cst_15 = arith.constant 5.000000e-01 : f32
    %20 = vector.broadcast %cst_15 : f32 to vector<8x64xf32>
    %21 = arith.mulf %20, %19 : vector<8x64xf32>
    %cst_16 = arith.constant 0.707106769 : f32
    %22 = vector.broadcast %cst_16 : f32 to vector<8x64xf32>
    %23 = arith.mulf %19, %22 : vector<8x64xf32>
    %cst_17 = arith.constant 0.000000e+00 : f32
    %24 = vector.broadcast %cst_17 : f32 to vector<8x64xf32>
    %25 = arith.cmpf olt, %23, %24 : vector<8x64xf32>
    %cst_18 = arith.constant -1.000000e+00 : f32
    %cst_19 = arith.constant 1.000000e+00 : f32
    %26 = vector.broadcast %cst_18 : f32 to vector<8x64xf32>
    %27 = vector.broadcast %cst_19 : f32 to vector<8x64xf32>
    %28 = arith.select %25, %26, %27 : vector<8x64xi1>, vector<8x64xf32>
    %29 = math.absf %23 : vector<8x64xf32>
    %cst_20 = arith.constant 0.327591091 : f32
    %30 = vector.broadcast %cst_20 : f32 to vector<8x64xf32>
    %31 = arith.mulf %30, %29 : vector<8x64xf32>
    %cst_21 = arith.constant 1.000000e+00 : f32
    %32 = vector.broadcast %cst_21 : f32 to vector<8x64xf32>
    %33 = arith.addf %32, %31 : vector<8x64xf32>
    %cst_22 = arith.constant 1.000000e+00 : f32
    %34 = vector.broadcast %cst_22 : f32 to vector<8x64xf32>
    %35 = arith.divf %34, %33 : vector<8x64xf32>
    %cst_23 = arith.constant 1.06140542 : f32
    %36 = vector.broadcast %cst_23 : f32 to vector<8x64xf32>
    %37 = arith.mulf %36, %35 : vector<8x64xf32>
    %cst_24 = arith.constant -1.45315206 : f32
    %38 = vector.broadcast %cst_24 : f32 to vector<8x64xf32>
    %39 = arith.addf %37, %38 : vector<8x64xf32>
    %40 = arith.mulf %39, %35 : vector<8x64xf32>
    %cst_25 = arith.constant 1.42141378 : f32
    %41 = vector.broadcast %cst_25 : f32 to vector<8x64xf32>
    %42 = arith.addf %40, %41 : vector<8x64xf32>
    %43 = arith.mulf %42, %35 : vector<8x64xf32>
    %cst_26 = arith.constant -0.284496725 : f32
    %44 = vector.broadcast %cst_26 : f32 to vector<8x64xf32>
    %45 = arith.addf %43, %44 : vector<8x64xf32>
    %46 = arith.mulf %45, %35 : vector<8x64xf32>
    %cst_27 = arith.constant 0.254829586 : f32
    %47 = vector.broadcast %cst_27 : f32 to vector<8x64xf32>
    %48 = arith.addf %46, %47 : vector<8x64xf32>
    %49 = arith.mulf %48, %35 : vector<8x64xf32>
    %cst_28 = arith.constant 0.000000e+00 : f32
    %50 = vector.broadcast %cst_28 : f32 to vector<8x64xf32>
    %51 = arith.subf %50, %29 : vector<8x64xf32>
    %52 = arith.mulf %51, %29 : vector<8x64xf32>
    %53 = math.exp %52 : vector<8x64xf32>
    %54 = arith.mulf %49, %53 : vector<8x64xf32>
    %cst_29 = arith.constant 1.000000e+00 : f32
    %55 = vector.broadcast %cst_29 : f32 to vector<8x64xf32>
    %56 = arith.subf %55, %54 : vector<8x64xf32>
    %57 = arith.mulf %28, %56 : vector<8x64xf32>
    %cst_30 = arith.constant 1.000000e+00 : f32
    %58 = vector.broadcast %cst_30 : f32 to vector<8x64xf32>
    %59 = arith.addf %58, %57 : vector<8x64xf32>
    %60 = arith.mulf %21, %59 : vector<8x64xf32>
    %61 = arith.truncf %60 : vector<8x64xf32> to vector<8x64xbf16>
    %c0_31 = arith.constant 0 : index
    %c0_32 = arith.constant 0 : index
    %62 = vector.load %arg8[%c0_31, %c0_32] : memref<64x32xbf16, #tpu.memory_space<vmem>>, vector<64x32xbf16>
    %cst_33 = arith.constant dense<0.000000e+00> : vector<8x32xf32>
    %63 = tpu.matmul %61, %62, %cst_33 {dimension_numbers = #tpu.dot_dimension_numbers<[1], [0], [0], [1], [0, 0, 1, 1], [], []>} : vector<8x64xbf16>, vector<64x32xbf16>, vector<8x32xf32> -> vector<8x32xf32>
    %c0_34 = arith.constant 0 : index
    %c0_35 = arith.constant 0 : index
    %64 = vector.load %arg9[%c0_34, %c0_35] : memref<1x32xf32, #tpu.memory_space<vmem>>, vector<1x32xf32>
    %65 = vector.broadcast %64 : vector<1x32xf32> to vector<8x32xf32>
    %66 = arith.addf %63, %65 : vector<8x32xf32>
    %67 = arith.addf %66, %13 : vector<8x32xf32>
    %c0_36 = arith.constant 0 : index
    %c0_37 = arith.constant 0 : index
    %68 = vector.load %arg10[%c0_36, %c0_37] : memref<8x1xf32, #tpu.memory_space<vmem>>, vector<8x1xf32>
    %69 = vector.broadcast %68 : vector<8x1xf32> to vector<8x32xf32>
    %70 = arith.mulf %67, %69 : vector<8x32xf32>
    %c0_38 = arith.constant 0 : index
    %c0_39 = arith.constant 0 : index
    %71 = vector.load %arg11[%c0_38, %c0_39] : memref<8x1xf32, #tpu.memory_space<vmem>>, vector<8x1xf32>
    %72 = vector.broadcast %71 : vector<8x1xf32> to vector<8x32xf32>
    %73 = arith.addf %70, %72 : vector<8x32xf32>
    %c0_40 = arith.constant 0 : index
    %c0_41 = arith.constant 0 : index
    %c0_42 = arith.constant 0 : index
    %74 = vector.load %arg12[%c0_40, %c0_41, %c0_42] : memref<1x8x32xf32, #tpu.memory_space<vmem>>, vector<1x8x32xf32>
    %75 = vector.shape_cast %74 : vector<1x8x32xf32> to vector<8x32xf32>
    %76 = vector.shape_cast %73 : vector<8x32xf32> to vector<1x8x32xf32>
    tpu.vector_store %arg12[%c0_40, %c0_41, %c0_42], %76 {strides = array<i32>} : memref<1x8x32xf32, #tpu.memory_space<vmem>>, vector<1x8x32xf32>,
    return
  }
  func.func @transform_0(%arg0: i32) -> (i32, i32, i32) {
    %c0_i32 = arith.constant 0 : i32
    %c0_i32_0 = arith.constant 0 : i32
    %c0_i32_1 = arith.constant 0 : i32
    return %arg0, %c0_i32, %c0_i32_0 : i32, i32, i32
  }
  func.func @transform_1(%arg0: i32) -> (i32, i32) {
    %c0_i32 = arith.constant 0 : i32
    %c0_i32_0 = arith.constant 0 : i32
    %c0_i32_1 = arith.constant 0 : i32
    return %c0_i32, %c0_i32_0 : i32, i32
  }
  func.func @transform_2(%arg0: i32) -> (i32, i32) {
    %c0_i32 = arith.constant 0 : i32
    %c0_i32_0 = arith.constant 0 : i32
    %c0_i32_1 = arith.constant 0 : i32
    return %c0_i32, %c0_i32_0 : i32, i32
  }
  func.func @transform_3(%arg0: i32) -> (i32, i32) {
    %c0_i32 = arith.constant 0 : i32
    %c0_i32_0 = arith.constant 0 : i32
    %c0_i32_1 = arith.constant 0 : i32
    return %c0_i32, %c0_i32_0 : i32, i32
  }
  func.func @transform_4(%arg0: i32) -> (i32, i32) {
    %c0_i32 = arith.constant 0 : i32
    %c0_i32_0 = arith.constant 0 : i32
    %c0_i32_1 = arith.constant 0 : i32
    return %c0_i32, %c0_i32_0 : i32, i32
  }
  func.func @transform_5(%arg0: i32) -> (i32, i32) {
    %c0_i32 = arith.constant 0 : i32
    %c0_i32_0 = arith.constant 0 : i32
    %c0_i32_1 = arith.constant 0 : i32
    return %c0_i32, %c0_i32_0 : i32, i32
  }
  func.func @transform_6(%arg0: i32) -> (i32, i32) {
    %c0_i32 = arith.constant 0 : i32
    %c0_i32_0 = arith.constant 0 : i32
    %c0_i32_1 = arith.constant 0 : i32
    return %c0_i32, %c0_i32_0 : i32, i32
  }
  func.func @transform_7(%arg0: i32) -> (i32, i32) {
    %c0_i32 = arith.constant 0 : i32
    %c0_i32_0 = arith.constant 0 : i32
    %c0_i32_1 = arith.constant 0 : i32
    return %c0_i32, %c0_i32_0 : i32, i32
  }
  func.func @transform_8(%arg0: i32) -> (i32, i32) {
    %c0_i32 = arith.constant 0 : i32
    %c0_i32_0 = arith.constant 0 : i32
    %c0_i32_1 = arith.constant 0 : i32
    return %c0_i32, %c0_i32_0 : i32, i32
  }
  func.func @transform_9(%arg0: i32) -> (i32, i32) {
    %c0_i32 = arith.constant 0 : i32
    %c0_i32_0 = arith.constant 0 : i32
    %c0_i32_1 = arith.constant 0 : i32
    return %c0_i32, %c0_i32_0 : i32, i32
  }
  func.func @transform_10(%arg0: i32) -> (i32, i32) {
    %c0_i32 = arith.constant 0 : i32
    %c0_i32_0 = arith.constant 0 : i32
    %c0_i32_1 = arith.constant 0 : i32
    return %c0_i32, %c0_i32_0 : i32, i32
  }
  func.func @transform_11(%arg0: i32) -> (i32, i32, i32) {
    %c0_i32 = arith.constant 0 : i32
    %c0_i32_0 = arith.constant 0 : i32
    %c0_i32_1 = arith.constant 0 : i32
    return %arg0, %c0_i32, %c0_i32_0 : i32, i32, i32
  }
}

module attributes {stable_mosaic.version = 11 : i64} {
  func.func @_mo_qkv_kernel(%arg0: i32, %arg1: memref<1x4x32xf32, #tpu.memory_space<vmem>>, %arg2: memref<2x4xbf16, #tpu.memory_space<vmem>>, %arg3: memref<32x96xbf16, #tpu.memory_space<vmem>>, %arg4: memref<1x96xf32, #tpu.memory_space<vmem>>, %arg5: memref<1x2x96xf32, #tpu.memory_space<vmem>>) attributes {dimension_semantics = [#tpu.dimension_semantics<parallel>], iteration_bounds = array<i64: 2>, scalar_prefetch = 0 : i64, scratch_operands = 0 : i64, tpu.core_type = #tpu.core_type<tc>, window_params = [{transform_indices = @transform_0, window_bounds = array<i64: 1, 4, 32>}, {pipeline_mode = #tpu.pipeline_mode<synchronous>, transform_indices = @transform_1, window_bounds = array<i64: 2, 4>}, {pipeline_mode = #tpu.pipeline_mode<synchronous>, transform_indices = @transform_2, window_bounds = array<i64: 32, 96>}, {pipeline_mode = #tpu.pipeline_mode<synchronous>, transform_indices = @transform_3, window_bounds = array<i64: 1, 96>}, {transform_indices = @transform_4, window_bounds = array<i64: 1, 2, 96>}]} {
    %c0 = arith.constant 0 : index
    %c0_0 = arith.constant 0 : index
    %c0_1 = arith.constant 0 : index
    %0 = vector.load %arg1[%c0, %c0_0, %c0_1] : memref<1x4x32xf32, #tpu.memory_space<vmem>>, vector<1x4x32xf32>
    %1 = vector.shape_cast %0 : vector<1x4x32xf32> to vector<4x32xf32>
    %2 = arith.truncf %1 : vector<4x32xf32> to vector<4x32xbf16>
    %c0_2 = arith.constant 0 : index
    %c0_3 = arith.constant 0 : index
    %3 = vector.load %arg2[%c0_2, %c0_3] : memref<2x4xbf16, #tpu.memory_space<vmem>>, vector<2x4xbf16>
    %cst = arith.constant dense<0.000000e+00> : vector<2x32xf32>
    %4 = tpu.matmul %3, %2, %cst {dimension_numbers = #tpu.dot_dimension_numbers<[1], [0], [0], [1], [0, 0, 1, 1], [], []>} : vector<2x4xbf16>, vector<4x32xbf16>, vector<2x32xf32> -> vector<2x32xf32>
    %5 = arith.truncf %4 : vector<2x32xf32> to vector<2x32xbf16>
    %c0_4 = arith.constant 0 : index
    %c0_5 = arith.constant 0 : index
    %6 = vector.load %arg3[%c0_4, %c0_5] : memref<32x96xbf16, #tpu.memory_space<vmem>>, vector<32x96xbf16>
    %cst_6 = arith.constant dense<0.000000e+00> : vector<2x96xf32>
    %7 = tpu.matmul %5, %6, %cst_6 {dimension_numbers = #tpu.dot_dimension_numbers<[1], [0], [0], [1], [0, 0, 1, 1], [], []>} : vector<2x32xbf16>, vector<32x96xbf16>, vector<2x96xf32> -> vector<2x96xf32>
    %c0_7 = arith.constant 0 : index
    %c0_8 = arith.constant 0 : index
    %8 = vector.load %arg4[%c0_7, %c0_8] : memref<1x96xf32, #tpu.memory_space<vmem>>, vector<1x96xf32>
    %9 = vector.broadcast %8 : vector<1x96xf32> to vector<2x96xf32>
    %10 = arith.addf %7, %9 : vector<2x96xf32>
    %c0_9 = arith.constant 0 : index
    %c0_10 = arith.constant 0 : index
    %c0_11 = arith.constant 0 : index
    %11 = vector.load %arg5[%c0_9, %c0_10, %c0_11] : memref<1x2x96xf32, #tpu.memory_space<vmem>>, vector<1x2x96xf32>
    %12 = vector.shape_cast %11 : vector<1x2x96xf32> to vector<2x96xf32>
    %13 = vector.shape_cast %10 : vector<2x96xf32> to vector<1x2x96xf32>
    tpu.vector_store %arg5[%c0_9, %c0_10, %c0_11], %13 {strides = array<i32>} : memref<1x2x96xf32, #tpu.memory_space<vmem>>, vector<1x2x96xf32>,
    return
  }
  func.func @transform_0(%arg0: i32) -> (i32, i32, i32) {
    %c0_i32 = arith.constant 0 : i32
    %c0_i32_0 = arith.constant 0 : i32
    %c0_i32_1 = arith.constant 0 : i32
    return %arg0, %c0_i32, %c0_i32_0 : i32, i32, i32
  }
  func.func @transform_1(%arg0: i32) -> (i32, i32) {
    %c0_i32 = arith.constant 0 : i32
    %c0_i32_0 = arith.constant 0 : i32
    %c0_i32_1 = arith.constant 0 : i32
    return %c0_i32, %c0_i32_0 : i32, i32
  }
  func.func @transform_2(%arg0: i32) -> (i32, i32) {
    %c0_i32 = arith.constant 0 : i32
    %c0_i32_0 = arith.constant 0 : i32
    %c0_i32_1 = arith.constant 0 : i32
    return %c0_i32, %c0_i32_0 : i32, i32
  }
  func.func @transform_3(%arg0: i32) -> (i32, i32) {
    %c0_i32 = arith.constant 0 : i32
    %c0_i32_0 = arith.constant 0 : i32
    %c0_i32_1 = arith.constant 0 : i32
    return %c0_i32, %c0_i32_0 : i32, i32
  }
  func.func @transform_4(%arg0: i32) -> (i32, i32, i32) {
    %c0_i32 = arith.constant 0 : i32
    %c0_i32_0 = arith.constant 0 : i32
    %c0_i32_1 = arith.constant 0 : i32
    return %arg0, %c0_i32, %c0_i32_0 : i32, i32, i32
  }
}

module attributes {stable_mosaic.version = 11 : i64} {
  func.func @_out_ffn_kernel(%arg0: i32, %arg1: memref<1x2x32xf32, #tpu.memory_space<vmem>>, %arg2: memref<32x64xbf16, #tpu.memory_space<vmem>>, %arg3: memref<1x64xf32, #tpu.memory_space<vmem>>, %arg4: memref<2x1xf32, #tpu.memory_space<vmem>>, %arg5: memref<2x1xf32, #tpu.memory_space<vmem>>, %arg6: memref<64x64xbf16, #tpu.memory_space<vmem>>, %arg7: memref<1x64xf32, #tpu.memory_space<vmem>>, %arg8: memref<64x64xbf16, #tpu.memory_space<vmem>>, %arg9: memref<1x64xf32, #tpu.memory_space<vmem>>, %arg10: memref<2x1xf32, #tpu.memory_space<vmem>>, %arg11: memref<2x1xf32, #tpu.memory_space<vmem>>, %arg12: memref<1x2x64xf32, #tpu.memory_space<vmem>>) attributes {dimension_semantics = [#tpu.dimension_semantics<parallel>], iteration_bounds = array<i64: 2>, scalar_prefetch = 0 : i64, scratch_operands = 0 : i64, tpu.core_type = #tpu.core_type<tc>, window_params = [{transform_indices = @transform_0, window_bounds = array<i64: 1, 2, 32>}, {pipeline_mode = #tpu.pipeline_mode<synchronous>, transform_indices = @transform_1, window_bounds = array<i64: 32, 64>}, {pipeline_mode = #tpu.pipeline_mode<synchronous>, transform_indices = @transform_2, window_bounds = array<i64: 1, 64>}, {pipeline_mode = #tpu.pipeline_mode<synchronous>, transform_indices = @transform_3, window_bounds = array<i64: 2, 1>}, {pipeline_mode = #tpu.pipeline_mode<synchronous>, transform_indices = @transform_4, window_bounds = array<i64: 2, 1>}, {pipeline_mode = #tpu.pipeline_mode<synchronous>, transform_indices = @transform_5, window_bounds = array<i64: 64, 64>}, {pipeline_mode = #tpu.pipeline_mode<synchronous>, transform_indices = @transform_6, window_bounds = array<i64: 1, 64>}, {pipeline_mode = #tpu.pipeline_mode<synchronous>, transform_indices = @transform_7, window_bounds = array<i64: 64, 64>}, {pipeline_mode = #tpu.pipeline_mode<synchronous>, transform_indices = @transform_8, window_bounds = array<i64: 1, 64>}, {pipeline_mode = #tpu.pipeline_mode<synchronous>, transform_indices = @transform_9, window_bounds = array<i64: 2, 1>}, {pipeline_mode = #tpu.pipeline_mode<synchronous>, transform_indices = @transform_10, window_bounds = array<i64: 2, 1>}, {transform_indices = @transform_11, window_bounds = array<i64: 1, 2, 64>}]} {
    %c0 = arith.constant 0 : index
    %c0_0 = arith.constant 0 : index
    %c0_1 = arith.constant 0 : index
    %0 = vector.load %arg1[%c0, %c0_0, %c0_1] : memref<1x2x32xf32, #tpu.memory_space<vmem>>, vector<1x2x32xf32>
    %1 = vector.shape_cast %0 : vector<1x2x32xf32> to vector<2x32xf32>
    %2 = arith.truncf %1 : vector<2x32xf32> to vector<2x32xbf16>
    %c0_2 = arith.constant 0 : index
    %c0_3 = arith.constant 0 : index
    %3 = vector.load %arg2[%c0_2, %c0_3] : memref<32x64xbf16, #tpu.memory_space<vmem>>, vector<32x64xbf16>
    %cst = arith.constant dense<0.000000e+00> : vector<2x64xf32>
    %4 = tpu.matmul %2, %3, %cst {dimension_numbers = #tpu.dot_dimension_numbers<[1], [0], [0], [1], [0, 0, 1, 1], [], []>} : vector<2x32xbf16>, vector<32x64xbf16>, vector<2x64xf32> -> vector<2x64xf32>
    %c0_4 = arith.constant 0 : index
    %c0_5 = arith.constant 0 : index
    %5 = vector.load %arg3[%c0_4, %c0_5] : memref<1x64xf32, #tpu.memory_space<vmem>>, vector<1x64xf32>
    %6 = vector.broadcast %5 : vector<1x64xf32> to vector<2x64xf32>
    %7 = arith.addf %4, %6 : vector<2x64xf32>
    %c0_6 = arith.constant 0 : index
    %c0_7 = arith.constant 0 : index
    %8 = vector.load %arg4[%c0_6, %c0_7] : memref<2x1xf32, #tpu.memory_space<vmem>>, vector<2x1xf32>
    %9 = vector.broadcast %8 : vector<2x1xf32> to vector<2x64xf32>
    %10 = arith.mulf %7, %9 : vector<2x64xf32>
    %c0_8 = arith.constant 0 : index
    %c0_9 = arith.constant 0 : index
    %11 = vector.load %arg5[%c0_8, %c0_9] : memref<2x1xf32, #tpu.memory_space<vmem>>, vector<2x1xf32>
    %12 = vector.broadcast %11 : vector<2x1xf32> to vector<2x64xf32>
    %13 = arith.addf %10, %12 : vector<2x64xf32>
    %14 = arith.truncf %13 : vector<2x64xf32> to vector<2x64xbf16>
    %c0_10 = arith.constant 0 : index
    %c0_11 = arith.constant 0 : index
    %15 = vector.load %arg6[%c0_10, %c0_11] : memref<64x64xbf16, #tpu.memory_space<vmem>>, vector<64x64xbf16>
    %cst_12 = arith.constant dense<0.000000e+00> : vector<2x64xf32>
    %16 = tpu.matmul %14, %15, %cst_12 {dimension_numbers = #tpu.dot_dimension_numbers<[1], [0], [0], [1], [0, 0, 1, 1], [], []>} : vector<2x64xbf16>, vector<64x64xbf16>, vector<2x64xf32> -> vector<2x64xf32>
    %c0_13 = arith.constant 0 : index
    %c0_14 = arith.constant 0 : index
    %17 = vector.load %arg7[%c0_13, %c0_14] : memref<1x64xf32, #tpu.memory_space<vmem>>, vector<1x64xf32>
    %18 = vector.broadcast %17 : vector<1x64xf32> to vector<2x64xf32>
    %19 = arith.addf %16, %18 : vector<2x64xf32>
    %cst_15 = arith.constant 5.000000e-01 : f32
    %20 = vector.broadcast %cst_15 : f32 to vector<2x64xf32>
    %21 = arith.mulf %20, %19 : vector<2x64xf32>
    %cst_16 = arith.constant 0.707106769 : f32
    %22 = vector.broadcast %cst_16 : f32 to vector<2x64xf32>
    %23 = arith.mulf %19, %22 : vector<2x64xf32>
    %cst_17 = arith.constant 0.000000e+00 : f32
    %24 = vector.broadcast %cst_17 : f32 to vector<2x64xf32>
    %25 = arith.cmpf olt, %23, %24 : vector<2x64xf32>
    %cst_18 = arith.constant -1.000000e+00 : f32
    %cst_19 = arith.constant 1.000000e+00 : f32
    %26 = vector.broadcast %cst_18 : f32 to vector<2x64xf32>
    %27 = vector.broadcast %cst_19 : f32 to vector<2x64xf32>
    %28 = arith.select %25, %26, %27 : vector<2x64xi1>, vector<2x64xf32>
    %29 = math.absf %23 : vector<2x64xf32>
    %cst_20 = arith.constant 0.327591091 : f32
    %30 = vector.broadcast %cst_20 : f32 to vector<2x64xf32>
    %31 = arith.mulf %30, %29 : vector<2x64xf32>
    %cst_21 = arith.constant 1.000000e+00 : f32
    %32 = vector.broadcast %cst_21 : f32 to vector<2x64xf32>
    %33 = arith.addf %32, %31 : vector<2x64xf32>
    %cst_22 = arith.constant 1.000000e+00 : f32
    %34 = vector.broadcast %cst_22 : f32 to vector<2x64xf32>
    %35 = arith.divf %34, %33 : vector<2x64xf32>
    %cst_23 = arith.constant 1.06140542 : f32
    %36 = vector.broadcast %cst_23 : f32 to vector<2x64xf32>
    %37 = arith.mulf %36, %35 : vector<2x64xf32>
    %cst_24 = arith.constant -1.45315206 : f32
    %38 = vector.broadcast %cst_24 : f32 to vector<2x64xf32>
    %39 = arith.addf %37, %38 : vector<2x64xf32>
    %40 = arith.mulf %39, %35 : vector<2x64xf32>
    %cst_25 = arith.constant 1.42141378 : f32
    %41 = vector.broadcast %cst_25 : f32 to vector<2x64xf32>
    %42 = arith.addf %40, %41 : vector<2x64xf32>
    %43 = arith.mulf %42, %35 : vector<2x64xf32>
    %cst_26 = arith.constant -0.284496725 : f32
    %44 = vector.broadcast %cst_26 : f32 to vector<2x64xf32>
    %45 = arith.addf %43, %44 : vector<2x64xf32>
    %46 = arith.mulf %45, %35 : vector<2x64xf32>
    %cst_27 = arith.constant 0.254829586 : f32
    %47 = vector.broadcast %cst_27 : f32 to vector<2x64xf32>
    %48 = arith.addf %46, %47 : vector<2x64xf32>
    %49 = arith.mulf %48, %35 : vector<2x64xf32>
    %cst_28 = arith.constant 0.000000e+00 : f32
    %50 = vector.broadcast %cst_28 : f32 to vector<2x64xf32>
    %51 = arith.subf %50, %29 : vector<2x64xf32>
    %52 = arith.mulf %51, %29 : vector<2x64xf32>
    %53 = math.exp %52 : vector<2x64xf32>
    %54 = arith.mulf %49, %53 : vector<2x64xf32>
    %cst_29 = arith.constant 1.000000e+00 : f32
    %55 = vector.broadcast %cst_29 : f32 to vector<2x64xf32>
    %56 = arith.subf %55, %54 : vector<2x64xf32>
    %57 = arith.mulf %28, %56 : vector<2x64xf32>
    %cst_30 = arith.constant 1.000000e+00 : f32
    %58 = vector.broadcast %cst_30 : f32 to vector<2x64xf32>
    %59 = arith.addf %58, %57 : vector<2x64xf32>
    %60 = arith.mulf %21, %59 : vector<2x64xf32>
    %61 = arith.truncf %60 : vector<2x64xf32> to vector<2x64xbf16>
    %c0_31 = arith.constant 0 : index
    %c0_32 = arith.constant 0 : index
    %62 = vector.load %arg8[%c0_31, %c0_32] : memref<64x64xbf16, #tpu.memory_space<vmem>>, vector<64x64xbf16>
    %cst_33 = arith.constant dense<0.000000e+00> : vector<2x64xf32>
    %63 = tpu.matmul %61, %62, %cst_33 {dimension_numbers = #tpu.dot_dimension_numbers<[1], [0], [0], [1], [0, 0, 1, 1], [], []>} : vector<2x64xbf16>, vector<64x64xbf16>, vector<2x64xf32> -> vector<2x64xf32>
    %c0_34 = arith.constant 0 : index
    %c0_35 = arith.constant 0 : index
    %64 = vector.load %arg9[%c0_34, %c0_35] : memref<1x64xf32, #tpu.memory_space<vmem>>, vector<1x64xf32>
    %65 = vector.broadcast %64 : vector<1x64xf32> to vector<2x64xf32>
    %66 = arith.addf %63, %65 : vector<2x64xf32>
    %67 = arith.addf %66, %13 : vector<2x64xf32>
    %c0_36 = arith.constant 0 : index
    %c0_37 = arith.constant 0 : index
    %68 = vector.load %arg10[%c0_36, %c0_37] : memref<2x1xf32, #tpu.memory_space<vmem>>, vector<2x1xf32>
    %69 = vector.broadcast %68 : vector<2x1xf32> to vector<2x64xf32>
    %70 = arith.mulf %67, %69 : vector<2x64xf32>
    %c0_38 = arith.constant 0 : index
    %c0_39 = arith.constant 0 : index
    %71 = vector.load %arg11[%c0_38, %c0_39] : memref<2x1xf32, #tpu.memory_space<vmem>>, vector<2x1xf32>
    %72 = vector.broadcast %71 : vector<2x1xf32> to vector<2x64xf32>
    %73 = arith.addf %70, %72 : vector<2x64xf32>
    %c0_40 = arith.constant 0 : index
    %c0_41 = arith.constant 0 : index
    %c0_42 = arith.constant 0 : index
    %74 = vector.load %arg12[%c0_40, %c0_41, %c0_42] : memref<1x2x64xf32, #tpu.memory_space<vmem>>, vector<1x2x64xf32>
    %75 = vector.shape_cast %74 : vector<1x2x64xf32> to vector<2x64xf32>
    %76 = vector.shape_cast %73 : vector<2x64xf32> to vector<1x2x64xf32>
    tpu.vector_store %arg12[%c0_40, %c0_41, %c0_42], %76 {strides = array<i32>} : memref<1x2x64xf32, #tpu.memory_space<vmem>>, vector<1x2x64xf32>,
    return
  }
  func.func @transform_0(%arg0: i32) -> (i32, i32, i32) {
    %c0_i32 = arith.constant 0 : i32
    %c0_i32_0 = arith.constant 0 : i32
    %c0_i32_1 = arith.constant 0 : i32
    return %arg0, %c0_i32, %c0_i32_0 : i32, i32, i32
  }
  func.func @transform_1(%arg0: i32) -> (i32, i32) {
    %c0_i32 = arith.constant 0 : i32
    %c0_i32_0 = arith.constant 0 : i32
    %c0_i32_1 = arith.constant 0 : i32
    return %c0_i32, %c0_i32_0 : i32, i32
  }
  func.func @transform_2(%arg0: i32) -> (i32, i32) {
    %c0_i32 = arith.constant 0 : i32
    %c0_i32_0 = arith.constant 0 : i32
    %c0_i32_1 = arith.constant 0 : i32
    return %c0_i32, %c0_i32_0 : i32, i32
  }
  func.func @transform_3(%arg0: i32) -> (i32, i32) {
    %c0_i32 = arith.constant 0 : i32
    %c0_i32_0 = arith.constant 0 : i32
    %c0_i32_1 = arith.constant 0 : i32
    return %c0_i32, %c0_i32_0 : i32, i32
  }
  func.func @transform_4(%arg0: i32) -> (i32, i32) {
    %c0_i32 = arith.constant 0 : i32
    %c0_i32_0 = arith.constant 0 : i32
    %c0_i32_1 = arith.constant 0 : i32
    return %c0_i32, %c0_i32_0 : i32, i32
  }
  func.func @transform_5(%arg0: i32) -> (i32, i32) {
    %c0_i32 = arith.constant 0 : i32
    %c0_i32_0 = arith.constant 0 : i32
    %c0_i32_1 = arith.constant 0 : i32
    return %c0_i32, %c0_i32_0 : i32, i32
  }
  func.func @transform_6(%arg0: i32) -> (i32, i32) {
    %c0_i32 = arith.constant 0 : i32
    %c0_i32_0 = arith.constant 0 : i32
    %c0_i32_1 = arith.constant 0 : i32
    return %c0_i32, %c0_i32_0 : i32, i32
  }
  func.func @transform_7(%arg0: i32) -> (i32, i32) {
    %c0_i32 = arith.constant 0 : i32
    %c0_i32_0 = arith.constant 0 : i32
    %c0_i32_1 = arith.constant 0 : i32
    return %c0_i32, %c0_i32_0 : i32, i32
  }
  func.func @transform_8(%arg0: i32) -> (i32, i32) {
    %c0_i32 = arith.constant 0 : i32
    %c0_i32_0 = arith.constant 0 : i32
    %c0_i32_1 = arith.constant 0 : i32
    return %c0_i32, %c0_i32_0 : i32, i32
  }
  func.func @transform_9(%arg0: i32) -> (i32, i32) {
    %c0_i32 = arith.constant 0 : i32
    %c0_i32_0 = arith.constant 0 : i32
    %c0_i32_1 = arith.constant 0 : i32
    return %c0_i32, %c0_i32_0 : i32, i32
  }
  func.func @transform_10(%arg0: i32) -> (i32, i32) {
    %c0_i32 = arith.constant 0 : i32
    %c0_i32_0 = arith.constant 0 : i32
    %c0_i32_1 = arith.constant 0 : i32
    return %c0_i32, %c0_i32_0 : i32, i32
  }
  func.func @transform_11(%arg0: i32) -> (i32, i32, i32) {
    %c0_i32 = arith.constant 0 : i32
    %c0_i32_0 = arith.constant 0 : i32
    %c0_i32_1 = arith.constant 0 : i32
    return %arg0, %c0_i32, %c0_i32_0 : i32, i32, i32
  }
}

module attributes {stable_mosaic.version = 11 : i64} {
  func.func @_qkv_kernel(%arg0: i32, %arg1: memref<1x2x64xf32, #tpu.memory_space<vmem>>, %arg2: memref<64x96xbf16, #tpu.memory_space<vmem>>, %arg3: memref<1x96xf32, #tpu.memory_space<vmem>>, %arg4: memref<1x2x96xf32, #tpu.memory_space<vmem>>) attributes {dimension_semantics = [#tpu.dimension_semantics<parallel>], iteration_bounds = array<i64: 2>, scalar_prefetch = 0 : i64, scratch_operands = 0 : i64, tpu.core_type = #tpu.core_type<tc>, window_params = [{transform_indices = @transform_0, window_bounds = array<i64: 1, 2, 64>}, {pipeline_mode = #tpu.pipeline_mode<synchronous>, transform_indices = @transform_1, window_bounds = array<i64: 64, 96>}, {pipeline_mode = #tpu.pipeline_mode<synchronous>, transform_indices = @transform_2, window_bounds = array<i64: 1, 96>}, {transform_indices = @transform_3, window_bounds = array<i64: 1, 2, 96>}]} {
    %c0 = arith.constant 0 : index
    %c0_0 = arith.constant 0 : index
    %c0_1 = arith.constant 0 : index
    %0 = vector.load %arg1[%c0, %c0_0, %c0_1] : memref<1x2x64xf32, #tpu.memory_space<vmem>>, vector<1x2x64xf32>
    %1 = vector.shape_cast %0 : vector<1x2x64xf32> to vector<2x64xf32>
    %2 = arith.truncf %1 : vector<2x64xf32> to vector<2x64xbf16>
    %c0_2 = arith.constant 0 : index
    %c0_3 = arith.constant 0 : index
    %3 = vector.load %arg2[%c0_2, %c0_3] : memref<64x96xbf16, #tpu.memory_space<vmem>>, vector<64x96xbf16>
    %cst = arith.constant dense<0.000000e+00> : vector<2x96xf32>
    %4 = tpu.matmul %2, %3, %cst {dimension_numbers = #tpu.dot_dimension_numbers<[1], [0], [0], [1], [0, 0, 1, 1], [], []>} : vector<2x64xbf16>, vector<64x96xbf16>, vector<2x96xf32> -> vector<2x96xf32>
    %c0_4 = arith.constant 0 : index
    %c0_5 = arith.constant 0 : index
    %5 = vector.load %arg3[%c0_4, %c0_5] : memref<1x96xf32, #tpu.memory_space<vmem>>, vector<1x96xf32>
    %6 = vector.broadcast %5 : vector<1x96xf32> to vector<2x96xf32>
    %7 = arith.addf %4, %6 : vector<2x96xf32>
    %c0_6 = arith.constant 0 : index
    %c0_7 = arith.constant 0 : index
    %c0_8 = arith.constant 0 : index
    %8 = vector.load %arg4[%c0_6, %c0_7, %c0_8] : memref<1x2x96xf32, #tpu.memory_space<vmem>>, vector<1x2x96xf32>
    %9 = vector.shape_cast %8 : vector<1x2x96xf32> to vector<2x96xf32>
    %10 = vector.shape_cast %7 : vector<2x96xf32> to vector<1x2x96xf32>
    tpu.vector_store %arg4[%c0_6, %c0_7, %c0_8], %10 {strides = array<i32>} : memref<1x2x96xf32, #tpu.memory_space<vmem>>, vector<1x2x96xf32>,
    return
  }
  func.func @transform_0(%arg0: i32) -> (i32, i32, i32) {
    %c0_i32 = arith.constant 0 : i32
    %c0_i32_0 = arith.constant 0 : i32
    %c0_i32_1 = arith.constant 0 : i32
    return %arg0, %c0_i32, %c0_i32_0 : i32, i32, i32
  }
  func.func @transform_1(%arg0: i32) -> (i32, i32) {
    %c0_i32 = arith.constant 0 : i32
    %c0_i32_0 = arith.constant 0 : i32
    %c0_i32_1 = arith.constant 0 : i32
    return %c0_i32, %c0_i32_0 : i32, i32
  }
  func.func @transform_2(%arg0: i32) -> (i32, i32) {
    %c0_i32 = arith.constant 0 : i32
    %c0_i32_0 = arith.constant 0 : i32
    %c0_i32_1 = arith.constant 0 : i32
    return %c0_i32, %c0_i32_0 : i32, i32
  }
  func.func @transform_3(%arg0: i32) -> (i32, i32, i32) {
    %c0_i32 = arith.constant 0 : i32
    %c0_i32_0 = arith.constant 0 : i32
    %c0_i32_1 = arith.constant 0 : i32
    return %arg0, %c0_i32, %c0_i32_0 : i32, i32, i32
  }
}

module attributes {stable_mosaic.version = 11 : i64} {
  func.func @_linear_kernel(%arg0: memref<16x16xf32, #tpu.memory_space<vmem>>, %arg1: memref<16x32xbf16, #tpu.memory_space<vmem>>, %arg2: memref<1x32xf32, #tpu.memory_space<vmem>>, %arg3: memref<16x32xf32, #tpu.memory_space<vmem>>) attributes {dimension_semantics = [], scalar_prefetch = 0 : i64, scratch_operands = 0 : i64, tpu.core_type = #tpu.core_type<tc>} {
    %c0 = arith.constant 0 : index
    %c0_0 = arith.constant 0 : index
    %0 = vector.load %arg0[%c0, %c0_0] : memref<16x16xf32, #tpu.memory_space<vmem>>, vector<16x16xf32>
    %1 = arith.truncf %0 : vector<16x16xf32> to vector<16x16xbf16>
    %c0_1 = arith.constant 0 : index
    %c0_2 = arith.constant 0 : index
    %2 = vector.load %arg1[%c0_1, %c0_2] : memref<16x32xbf16, #tpu.memory_space<vmem>>, vector<16x32xbf16>
    %cst = arith.constant dense<0.000000e+00> : vector<16x32xf32>
    %3 = tpu.matmul %1, %2, %cst {dimension_numbers = #tpu.dot_dimension_numbers<[1], [0], [0], [1], [0, 0, 1, 1], [], []>} : vector<16x16xbf16>, vector<16x32xbf16>, vector<16x32xf32> -> vector<16x32xf32>
    %c0_3 = arith.constant 0 : index
    %c0_4 = arith.constant 0 : index
    %4 = vector.load %arg2[%c0_3, %c0_4] : memref<1x32xf32, #tpu.memory_space<vmem>>, vector<1x32xf32>
    %5 = vector.broadcast %4 : vector<1x32xf32> to vector<16x32xf32>
    %6 = arith.addf %3, %5 : vector<16x32xf32>
    %c0_5 = arith.constant 0 : index
    %c0_6 = arith.constant 0 : index
    %7 = vector.load %arg3[%c0_5, %c0_6] : memref<16x32xf32, #tpu.memory_space<vmem>>, vector<16x32xf32>
    tpu.vector_store %arg3[%c0_5, %c0_6], %6 {strides = array<i32>} : memref<16x32xf32, #tpu.memory_space<vmem>>, vector<16x32xf32>,
    return
  }
}

module attributes {stable_mosaic.version = 11 : i64} {
  func.func @_mo_qkv_kernel(%arg0: i32, %arg1: memref<1x8x32xf32, #tpu.memory_space<vmem>>, %arg2: memref<4x8xbf16, #tpu.memory_space<vmem>>, %arg3: memref<32x96xbf16, #tpu.memory_space<vmem>>, %arg4: memref<1x96xf32, #tpu.memory_space<vmem>>, %arg5: memref<1x4x96xf32, #tpu.memory_space<vmem>>) attributes {dimension_semantics = [#tpu.dimension_semantics<parallel>], iteration_bounds = array<i64: 2>, scalar_prefetch = 0 : i64, scratch_operands = 0 : i64, tpu.core_type = #tpu.core_type<tc>, window_params = [{transform_indices = @transform_0, window_bounds = array<i64: 1, 8, 32>}, {pipeline_mode = #tpu.pipeline_mode<synchronous>, transform_indices = @transform_1, window_bounds = array<i64: 4, 8>}, {pipeline_mode = #tpu.pipeline_mode<synchronous>, transform_indices = @transform_2, window_bounds = array<i64: 32, 96>}, {pipeline_mode = #tpu.pipeline_mode<synchronous>, transform_indices = @transform_3, window_bounds = array<i64: 1, 96>}, {transform_indices = @transform_4, window_bounds = array<i64: 1, 4, 96>}]} {
    %c0 = arith.constant 0 : index
    %c0_0 = arith.constant 0 : index
    %c0_1 = arith.constant 0 : index
    %0 = vector.load %arg1[%c0, %c0_0, %c0_1] : memref<1x8x32xf32, #tpu.memory_space<vmem>>, vector<1x8x32xf32>
    %1 = vector.shape_cast %0 : vector<1x8x32xf32> to vector<8x32xf32>
    %2 = arith.truncf %1 : vector<8x32xf32> to vector<8x32xbf16>
    %c0_2 = arith.constant 0 : index
    %c0_3 = arith.constant 0 : index
    %3 = vector.load %arg2[%c0_2, %c0_3] : memref<4x8xbf16, #tpu.memory_space<vmem>>, vector<4x8xbf16>
    %cst = arith.constant dense<0.000000e+00> : vector<4x32xf32>
    %4 = tpu.matmul %3, %2, %cst {dimension_numbers = #tpu.dot_dimension_numbers<[1], [0], [0], [1], [0, 0, 1, 1], [], []>} : vector<4x8xbf16>, vector<8x32xbf16>, vector<4x32xf32> -> vector<4x32xf32>
    %5 = arith.truncf %4 : vector<4x32xf32> to vector<4x32xbf16>
    %c0_4 = arith.constant 0 : index
    %c0_5 = arith.constant 0 : index
    %6 = vector.load %arg3[%c0_4, %c0_5] : memref<32x96xbf16, #tpu.memory_space<vmem>>, vector<32x96xbf16>
    %cst_6 = arith.constant dense<0.000000e+00> : vector<4x96xf32>
    %7 = tpu.matmul %5, %6, %cst_6 {dimension_numbers = #tpu.dot_dimension_numbers<[1], [0], [0], [1], [0, 0, 1, 1], [], []>} : vector<4x32xbf16>, vector<32x96xbf16>, vector<4x96xf32> -> vector<4x96xf32>
    %c0_7 = arith.constant 0 : index
    %c0_8 = arith.constant 0 : index
    %8 = vector.load %arg4[%c0_7, %c0_8] : memref<1x96xf32, #tpu.memory_space<vmem>>, vector<1x96xf32>
    %9 = vector.broadcast %8 : vector<1x96xf32> to vector<4x96xf32>
    %10 = arith.addf %7, %9 : vector<4x96xf32>
    %c0_9 = arith.constant 0 : index
    %c0_10 = arith.constant 0 : index
    %c0_11 = arith.constant 0 : index
    %11 = vector.load %arg5[%c0_9, %c0_10, %c0_11] : memref<1x4x96xf32, #tpu.memory_space<vmem>>, vector<1x4x96xf32>
    %12 = vector.shape_cast %11 : vector<1x4x96xf32> to vector<4x96xf32>
    %13 = vector.shape_cast %10 : vector<4x96xf32> to vector<1x4x96xf32>
    tpu.vector_store %arg5[%c0_9, %c0_10, %c0_11], %13 {strides = array<i32>} : memref<1x4x96xf32, #tpu.memory_space<vmem>>, vector<1x4x96xf32>,
    return
  }
  func.func @transform_0(%arg0: i32) -> (i32, i32, i32) {
    %c0_i32 = arith.constant 0 : i32
    %c0_i32_0 = arith.constant 0 : i32
    %c0_i32_1 = arith.constant 0 : i32
    return %arg0, %c0_i32, %c0_i32_0 : i32, i32, i32
  }
  func.func @transform_1(%arg0: i32) -> (i32, i32) {
    %c0_i32 = arith.constant 0 : i32
    %c0_i32_0 = arith.constant 0 : i32
    %c0_i32_1 = arith.constant 0 : i32
    return %c0_i32, %c0_i32_0 : i32, i32
  }
  func.func @transform_2(%arg0: i32) -> (i32, i32) {
    %c0_i32 = arith.constant 0 : i32
    %c0_i32_0 = arith.constant 0 : i32
    %c0_i32_1 = arith.constant 0 : i32
    return %c0_i32, %c0_i32_0 : i32, i32
  }
  func.func @transform_3(%arg0: i32) -> (i32, i32) {
    %c0_i32 = arith.constant 0 : i32
    %c0_i32_0 = arith.constant 0 : i32
    %c0_i32_1 = arith.constant 0 : i32
    return %c0_i32, %c0_i32_0 : i32, i32
  }
  func.func @transform_4(%arg0: i32) -> (i32, i32, i32) {
    %c0_i32 = arith.constant 0 : i32
    %c0_i32_0 = arith.constant 0 : i32
    %c0_i32_1 = arith.constant 0 : i32
    return %arg0, %c0_i32, %c0_i32_0 : i32, i32, i32
  }
}

module attributes {stable_mosaic.version = 11 : i64} {
  func.func @_qkv_kernel(%arg0: i32, %arg1: memref<1x4x16xf32, #tpu.memory_space<vmem>>, %arg2: memref<16x96xbf16, #tpu.memory_space<vmem>>, %arg3: memref<1x96xf32, #tpu.memory_space<vmem>>, %arg4: memref<1x4x96xf32, #tpu.memory_space<vmem>>) attributes {dimension_semantics = [#tpu.dimension_semantics<parallel>], iteration_bounds = array<i64: 2>, scalar_prefetch = 0 : i64, scratch_operands = 0 : i64, tpu.core_type = #tpu.core_type<tc>, window_params = [{transform_indices = @transform_0, window_bounds = array<i64: 1, 4, 16>}, {pipeline_mode = #tpu.pipeline_mode<synchronous>, transform_indices = @transform_1, window_bounds = array<i64: 16, 96>}, {pipeline_mode = #tpu.pipeline_mode<synchronous>, transform_indices = @transform_2, window_bounds = array<i64: 1, 96>}, {transform_indices = @transform_3, window_bounds = array<i64: 1, 4, 96>}]} {
    %c0 = arith.constant 0 : index
    %c0_0 = arith.constant 0 : index
    %c0_1 = arith.constant 0 : index
    %0 = vector.load %arg1[%c0, %c0_0, %c0_1] : memref<1x4x16xf32, #tpu.memory_space<vmem>>, vector<1x4x16xf32>
    %1 = vector.shape_cast %0 : vector<1x4x16xf32> to vector<4x16xf32>
    %2 = arith.truncf %1 : vector<4x16xf32> to vector<4x16xbf16>
    %c0_2 = arith.constant 0 : index
    %c0_3 = arith.constant 0 : index
    %3 = vector.load %arg2[%c0_2, %c0_3] : memref<16x96xbf16, #tpu.memory_space<vmem>>, vector<16x96xbf16>
    %cst = arith.constant dense<0.000000e+00> : vector<4x96xf32>
    %4 = tpu.matmul %2, %3, %cst {dimension_numbers = #tpu.dot_dimension_numbers<[1], [0], [0], [1], [0, 0, 1, 1], [], []>} : vector<4x16xbf16>, vector<16x96xbf16>, vector<4x96xf32> -> vector<4x96xf32>
    %c0_4 = arith.constant 0 : index
    %c0_5 = arith.constant 0 : index
    %5 = vector.load %arg3[%c0_4, %c0_5] : memref<1x96xf32, #tpu.memory_space<vmem>>, vector<1x96xf32>
    %6 = vector.broadcast %5 : vector<1x96xf32> to vector<4x96xf32>
    %7 = arith.addf %4, %6 : vector<4x96xf32>
    %c0_6 = arith.constant 0 : index
    %c0_7 = arith.constant 0 : index
    %c0_8 = arith.constant 0 : index
    %8 = vector.load %arg4[%c0_6, %c0_7, %c0_8] : memref<1x4x96xf32, #tpu.memory_space<vmem>>, vector<1x4x96xf32>
    %9 = vector.shape_cast %8 : vector<1x4x96xf32> to vector<4x96xf32>
    %10 = vector.shape_cast %7 : vector<4x96xf32> to vector<1x4x96xf32>
    tpu.vector_store %arg4[%c0_6, %c0_7, %c0_8], %10 {strides = array<i32>} : memref<1x4x96xf32, #tpu.memory_space<vmem>>, vector<1x4x96xf32>,
    return
  }
  func.func @transform_0(%arg0: i32) -> (i32, i32, i32) {
    %c0_i32 = arith.constant 0 : i32
    %c0_i32_0 = arith.constant 0 : i32
    %c0_i32_1 = arith.constant 0 : i32
    return %arg0, %c0_i32, %c0_i32_0 : i32, i32, i32
  }
  func.func @transform_1(%arg0: i32) -> (i32, i32) {
    %c0_i32 = arith.constant 0 : i32
    %c0_i32_0 = arith.constant 0 : i32
    %c0_i32_1 = arith.constant 0 : i32
    return %c0_i32, %c0_i32_0 : i32, i32
  }
  func.func @transform_2(%arg0: i32) -> (i32, i32) {
    %c0_i32 = arith.constant 0 : i32
    %c0_i32_0 = arith.constant 0 : i32
    %c0_i32_1 = arith.constant 0 : i32
    return %c0_i32, %c0_i32_0 : i32, i32
  }
  func.func @transform_3(%arg0: i32) -> (i32, i32, i32) {
    %c0_i32 = arith.constant 0 : i32
    %c0_i32_0 = arith.constant 0 : i32
    %c0_i32_1 = arith.constant 0 : i32
    return %arg0, %c0_i32, %c0_i32_0 : i32, i32, i32
  }
}

module attributes {stable_mosaic.version = 11 : i64} {
  func.func @_out_ffn_kernel(%arg0: i32, %arg1: memref<1x4x32xf32, #tpu.memory_space<vmem>>, %arg2: memref<32x16xbf16, #tpu.memory_space<vmem>>, %arg3: memref<1x16xf32, #tpu.memory_space<vmem>>, %arg4: memref<4x1xf32, #tpu.memory_space<vmem>>, %arg5: memref<4x1xf32, #tpu.memory_space<vmem>>, %arg6: memref<16x64xbf16, #tpu.memory_space<vmem>>, %arg7: memref<1x64xf32, #tpu.memory_space<vmem>>, %arg8: memref<64x16xbf16, #tpu.memory_space<vmem>>, %arg9: memref<1x16xf32, #tpu.memory_space<vmem>>, %arg10: memref<4x1xf32, #tpu.memory_space<vmem>>, %arg11: memref<4x1xf32, #tpu.memory_space<vmem>>, %arg12: memref<1x4x16xf32, #tpu.memory_space<vmem>>) attributes {dimension_semantics = [#tpu.dimension_semantics<parallel>], iteration_bounds = array<i64: 2>, scalar_prefetch = 0 : i64, scratch_operands = 0 : i64, tpu.core_type = #tpu.core_type<tc>, window_params = [{transform_indices = @transform_0, window_bounds = array<i64: 1, 4, 32>}, {pipeline_mode = #tpu.pipeline_mode<synchronous>, transform_indices = @transform_1, window_bounds = array<i64: 32, 16>}, {pipeline_mode = #tpu.pipeline_mode<synchronous>, transform_indices = @transform_2, window_bounds = array<i64: 1, 16>}, {pipeline_mode = #tpu.pipeline_mode<synchronous>, transform_indices = @transform_3, window_bounds = array<i64: 4, 1>}, {pipeline_mode = #tpu.pipeline_mode<synchronous>, transform_indices = @transform_4, window_bounds = array<i64: 4, 1>}, {pipeline_mode = #tpu.pipeline_mode<synchronous>, transform_indices = @transform_5, window_bounds = array<i64: 16, 64>}, {pipeline_mode = #tpu.pipeline_mode<synchronous>, transform_indices = @transform_6, window_bounds = array<i64: 1, 64>}, {pipeline_mode = #tpu.pipeline_mode<synchronous>, transform_indices = @transform_7, window_bounds = array<i64: 64, 16>}, {pipeline_mode = #tpu.pipeline_mode<synchronous>, transform_indices = @transform_8, window_bounds = array<i64: 1, 16>}, {pipeline_mode = #tpu.pipeline_mode<synchronous>, transform_indices = @transform_9, window_bounds = array<i64: 4, 1>}, {pipeline_mode = #tpu.pipeline_mode<synchronous>, transform_indices = @transform_10, window_bounds = array<i64: 4, 1>}, {transform_indices = @transform_11, window_bounds = array<i64: 1, 4, 16>}]} {
    %c0 = arith.constant 0 : index
    %c0_0 = arith.constant 0 : index
    %c0_1 = arith.constant 0 : index
    %0 = vector.load %arg1[%c0, %c0_0, %c0_1] : memref<1x4x32xf32, #tpu.memory_space<vmem>>, vector<1x4x32xf32>
    %1 = vector.shape_cast %0 : vector<1x4x32xf32> to vector<4x32xf32>
    %2 = arith.truncf %1 : vector<4x32xf32> to vector<4x32xbf16>
    %c0_2 = arith.constant 0 : index
    %c0_3 = arith.constant 0 : index
    %3 = vector.load %arg2[%c0_2, %c0_3] : memref<32x16xbf16, #tpu.memory_space<vmem>>, vector<32x16xbf16>
    %cst = arith.constant dense<0.000000e+00> : vector<4x16xf32>
    %4 = tpu.matmul %2, %3, %cst {dimension_numbers = #tpu.dot_dimension_numbers<[1], [0], [0], [1], [0, 0, 1, 1], [], []>} : vector<4x32xbf16>, vector<32x16xbf16>, vector<4x16xf32> -> vector<4x16xf32>
    %c0_4 = arith.constant 0 : index
    %c0_5 = arith.constant 0 : index
    %5 = vector.load %arg3[%c0_4, %c0_5] : memref<1x16xf32, #tpu.memory_space<vmem>>, vector<1x16xf32>
    %6 = vector.broadcast %5 : vector<1x16xf32> to vector<4x16xf32>
    %7 = arith.addf %4, %6 : vector<4x16xf32>
    %c0_6 = arith.constant 0 : index
    %c0_7 = arith.constant 0 : index
    %8 = vector.load %arg4[%c0_6, %c0_7] : memref<4x1xf32, #tpu.memory_space<vmem>>, vector<4x1xf32>
    %9 = vector.broadcast %8 : vector<4x1xf32> to vector<4x16xf32>
    %10 = arith.mulf %7, %9 : vector<4x16xf32>
    %c0_8 = arith.constant 0 : index
    %c0_9 = arith.constant 0 : index
    %11 = vector.load %arg5[%c0_8, %c0_9] : memref<4x1xf32, #tpu.memory_space<vmem>>, vector<4x1xf32>
    %12 = vector.broadcast %11 : vector<4x1xf32> to vector<4x16xf32>
    %13 = arith.addf %10, %12 : vector<4x16xf32>
    %14 = arith.truncf %13 : vector<4x16xf32> to vector<4x16xbf16>
    %c0_10 = arith.constant 0 : index
    %c0_11 = arith.constant 0 : index
    %15 = vector.load %arg6[%c0_10, %c0_11] : memref<16x64xbf16, #tpu.memory_space<vmem>>, vector<16x64xbf16>
    %cst_12 = arith.constant dense<0.000000e+00> : vector<4x64xf32>
    %16 = tpu.matmul %14, %15, %cst_12 {dimension_numbers = #tpu.dot_dimension_numbers<[1], [0], [0], [1], [0, 0, 1, 1], [], []>} : vector<4x16xbf16>, vector<16x64xbf16>, vector<4x64xf32> -> vector<4x64xf32>
    %c0_13 = arith.constant 0 : index
    %c0_14 = arith.constant 0 : index
    %17 = vector.load %arg7[%c0_13, %c0_14] : memref<1x64xf32, #tpu.memory_space<vmem>>, vector<1x64xf32>
    %18 = vector.broadcast %17 : vector<1x64xf32> to vector<4x64xf32>
    %19 = arith.addf %16, %18 : vector<4x64xf32>
    %cst_15 = arith.constant 5.000000e-01 : f32
    %20 = vector.broadcast %cst_15 : f32 to vector<4x64xf32>
    %21 = arith.mulf %20, %19 : vector<4x64xf32>
    %cst_16 = arith.constant 0.707106769 : f32
    %22 = vector.broadcast %cst_16 : f32 to vector<4x64xf32>
    %23 = arith.mulf %19, %22 : vector<4x64xf32>
    %cst_17 = arith.constant 0.000000e+00 : f32
    %24 = vector.broadcast %cst_17 : f32 to vector<4x64xf32>
    %25 = arith.cmpf olt, %23, %24 : vector<4x64xf32>
    %cst_18 = arith.constant -1.000000e+00 : f32
    %cst_19 = arith.constant 1.000000e+00 : f32
    %26 = vector.broadcast %cst_18 : f32 to vector<4x64xf32>
    %27 = vector.broadcast %cst_19 : f32 to vector<4x64xf32>
    %28 = arith.select %25, %26, %27 : vector<4x64xi1>, vector<4x64xf32>
    %29 = math.absf %23 : vector<4x64xf32>
    %cst_20 = arith.constant 0.327591091 : f32
    %30 = vector.broadcast %cst_20 : f32 to vector<4x64xf32>
    %31 = arith.mulf %30, %29 : vector<4x64xf32>
    %cst_21 = arith.constant 1.000000e+00 : f32
    %32 = vector.broadcast %cst_21 : f32 to vector<4x64xf32>
    %33 = arith.addf %32, %31 : vector<4x64xf32>
    %cst_22 = arith.constant 1.000000e+00 : f32
    %34 = vector.broadcast %cst_22 : f32 to vector<4x64xf32>
    %35 = arith.divf %34, %33 : vector<4x64xf32>
    %cst_23 = arith.constant 1.06140542 : f32
    %36 = vector.broadcast %cst_23 : f32 to vector<4x64xf32>
    %37 = arith.mulf %36, %35 : vector<4x64xf32>
    %cst_24 = arith.constant -1.45315206 : f32
    %38 = vector.broadcast %cst_24 : f32 to vector<4x64xf32>
    %39 = arith.addf %37, %38 : vector<4x64xf32>
    %40 = arith.mulf %39, %35 : vector<4x64xf32>
    %cst_25 = arith.constant 1.42141378 : f32
    %41 = vector.broadcast %cst_25 : f32 to vector<4x64xf32>
    %42 = arith.addf %40, %41 : vector<4x64xf32>
    %43 = arith.mulf %42, %35 : vector<4x64xf32>
    %cst_26 = arith.constant -0.284496725 : f32
    %44 = vector.broadcast %cst_26 : f32 to vector<4x64xf32>
    %45 = arith.addf %43, %44 : vector<4x64xf32>
    %46 = arith.mulf %45, %35 : vector<4x64xf32>
    %cst_27 = arith.constant 0.254829586 : f32
    %47 = vector.broadcast %cst_27 : f32 to vector<4x64xf32>
    %48 = arith.addf %46, %47 : vector<4x64xf32>
    %49 = arith.mulf %48, %35 : vector<4x64xf32>
    %cst_28 = arith.constant 0.000000e+00 : f32
    %50 = vector.broadcast %cst_28 : f32 to vector<4x64xf32>
    %51 = arith.subf %50, %29 : vector<4x64xf32>
    %52 = arith.mulf %51, %29 : vector<4x64xf32>
    %53 = math.exp %52 : vector<4x64xf32>
    %54 = arith.mulf %49, %53 : vector<4x64xf32>
    %cst_29 = arith.constant 1.000000e+00 : f32
    %55 = vector.broadcast %cst_29 : f32 to vector<4x64xf32>
    %56 = arith.subf %55, %54 : vector<4x64xf32>
    %57 = arith.mulf %28, %56 : vector<4x64xf32>
    %cst_30 = arith.constant 1.000000e+00 : f32
    %58 = vector.broadcast %cst_30 : f32 to vector<4x64xf32>
    %59 = arith.addf %58, %57 : vector<4x64xf32>
    %60 = arith.mulf %21, %59 : vector<4x64xf32>
    %61 = arith.truncf %60 : vector<4x64xf32> to vector<4x64xbf16>
    %c0_31 = arith.constant 0 : index
    %c0_32 = arith.constant 0 : index
    %62 = vector.load %arg8[%c0_31, %c0_32] : memref<64x16xbf16, #tpu.memory_space<vmem>>, vector<64x16xbf16>
    %cst_33 = arith.constant dense<0.000000e+00> : vector<4x16xf32>
    %63 = tpu.matmul %61, %62, %cst_33 {dimension_numbers = #tpu.dot_dimension_numbers<[1], [0], [0], [1], [0, 0, 1, 1], [], []>} : vector<4x64xbf16>, vector<64x16xbf16>, vector<4x16xf32> -> vector<4x16xf32>
    %c0_34 = arith.constant 0 : index
    %c0_35 = arith.constant 0 : index
    %64 = vector.load %arg9[%c0_34, %c0_35] : memref<1x16xf32, #tpu.memory_space<vmem>>, vector<1x16xf32>
    %65 = vector.broadcast %64 : vector<1x16xf32> to vector<4x16xf32>
    %66 = arith.addf %63, %65 : vector<4x16xf32>
    %67 = arith.addf %66, %13 : vector<4x16xf32>
    %c0_36 = arith.constant 0 : index
    %c0_37 = arith.constant 0 : index
    %68 = vector.load %arg10[%c0_36, %c0_37] : memref<4x1xf32, #tpu.memory_space<vmem>>, vector<4x1xf32>
    %69 = vector.broadcast %68 : vector<4x1xf32> to vector<4x16xf32>
    %70 = arith.mulf %67, %69 : vector<4x16xf32>
    %c0_38 = arith.constant 0 : index
    %c0_39 = arith.constant 0 : index
    %71 = vector.load %arg11[%c0_38, %c0_39] : memref<4x1xf32, #tpu.memory_space<vmem>>, vector<4x1xf32>
    %72 = vector.broadcast %71 : vector<4x1xf32> to vector<4x16xf32>
    %73 = arith.addf %70, %72 : vector<4x16xf32>
    %c0_40 = arith.constant 0 : index
    %c0_41 = arith.constant 0 : index
    %c0_42 = arith.constant 0 : index
    %74 = vector.load %arg12[%c0_40, %c0_41, %c0_42] : memref<1x4x16xf32, #tpu.memory_space<vmem>>, vector<1x4x16xf32>
    %75 = vector.shape_cast %74 : vector<1x4x16xf32> to vector<4x16xf32>
    %76 = vector.shape_cast %73 : vector<4x16xf32> to vector<1x4x16xf32>
    tpu.vector_store %arg12[%c0_40, %c0_41, %c0_42], %76 {strides = array<i32>} : memref<1x4x16xf32, #tpu.memory_space<vmem>>, vector<1x4x16xf32>,
    return
  }
  func.func @transform_0(%arg0: i32) -> (i32, i32, i32) {
    %c0_i32 = arith.constant 0 : i32
    %c0_i32_0 = arith.constant 0 : i32
    %c0_i32_1 = arith.constant 0 : i32
    return %arg0, %c0_i32, %c0_i32_0 : i32, i32, i32
  }
  func.func @transform_1(%arg0: i32) -> (i32, i32) {
    %c0_i32 = arith.constant 0 : i32
    %c0_i32_0 = arith.constant 0 : i32
    %c0_i32_1 = arith.constant 0 : i32
    return %c0_i32, %c0_i32_0 : i32, i32
  }
  func.func @transform_2(%arg0: i32) -> (i32, i32) {
    %c0_i32 = arith.constant 0 : i32
    %c0_i32_0 = arith.constant 0 : i32
    %c0_i32_1 = arith.constant 0 : i32
    return %c0_i32, %c0_i32_0 : i32, i32
  }
  func.func @transform_3(%arg0: i32) -> (i32, i32) {
    %c0_i32 = arith.constant 0 : i32
    %c0_i32_0 = arith.constant 0 : i32
    %c0_i32_1 = arith.constant 0 : i32
    return %c0_i32, %c0_i32_0 : i32, i32
  }
  func.func @transform_4(%arg0: i32) -> (i32, i32) {
    %c0_i32 = arith.constant 0 : i32
    %c0_i32_0 = arith.constant 0 : i32
    %c0_i32_1 = arith.constant 0 : i32
    return %c0_i32, %c0_i32_0 : i32, i32
  }
  func.func @transform_5(%arg0: i32) -> (i32, i32) {
    %c0_i32 = arith.constant 0 : i32
    %c0_i32_0 = arith.constant 0 : i32
    %c0_i32_1 = arith.constant 0 : i32
    return %c0_i32, %c0_i32_0 : i32, i32
  }
  func.func @transform_6(%arg0: i32) -> (i32, i32) {
    %c0_i32 = arith.constant 0 : i32
    %c0_i32_0 = arith.constant 0 : i32
    %c0_i32_1 = arith.constant 0 : i32
    return %c0_i32, %c0_i32_0 : i32, i32
  }
  func.func @transform_7(%arg0: i32) -> (i32, i32) {
    %c0_i32 = arith.constant 0 : i32
    %c0_i32_0 = arith.constant 0 : i32
    %c0_i32_1 = arith.constant 0 : i32
    return %c0_i32, %c0_i32_0 : i32, i32
  }
  func.func @transform_8(%arg0: i32) -> (i32, i32) {
    %c0_i32 = arith.constant 0 : i32
    %c0_i32_0 = arith.constant 0 : i32
    %c0_i32_1 = arith.constant 0 : i32
    return %c0_i32, %c0_i32_0 : i32, i32
  }
  func.func @transform_9(%arg0: i32) -> (i32, i32) {
    %c0_i32 = arith.constant 0 : i32
    %c0_i32_0 = arith.constant 0 : i32
    %c0_i32_1 = arith.constant 0 : i32
    return %c0_i32, %c0_i32_0 : i32, i32
  }
  func.func @transform_10(%arg0: i32) -> (i32, i32) {
    %c0_i32 = arith.constant 0 : i32
    %c0_i32_0 = arith.constant 0 : i32
    %c0_i32_1 = arith.constant 0 : i32
    return %c0_i32, %c0_i32_0 : i32, i32
  }
  func.func @transform_11(%arg0: i32) -> (i32, i32, i32) {
    %c0_i32 = arith.constant 0 : i32
    %c0_i32_0 = arith.constant 0 : i32
    %c0_i32_1 = arith.constant 0 : i32
    return %arg0, %c0_i32, %c0_i32_0 : i32, i32, i32
  }
}

module attributes {stable_mosaic.version = 11 : i64} {
  func.func @_linear_kernel(%arg0: memref<2x64xf32, #tpu.memory_space<vmem>>, %arg1: memref<64x64xbf16, #tpu.memory_space<vmem>>, %arg2: memref<1x64xf32, #tpu.memory_space<vmem>>, %arg3: memref<2x64xf32, #tpu.memory_space<vmem>>) attributes {dimension_semantics = [], scalar_prefetch = 0 : i64, scratch_operands = 0 : i64, tpu.core_type = #tpu.core_type<tc>} {
    %c0 = arith.constant 0 : index
    %c0_0 = arith.constant 0 : index
    %0 = vector.load %arg0[%c0, %c0_0] : memref<2x64xf32, #tpu.memory_space<vmem>>, vector<2x64xf32>
    %1 = arith.truncf %0 : vector<2x64xf32> to vector<2x64xbf16>
    %c0_1 = arith.constant 0 : index
    %c0_2 = arith.constant 0 : index
    %2 = vector.load %arg1[%c0_1, %c0_2] : memref<64x64xbf16, #tpu.memory_space<vmem>>, vector<64x64xbf16>
    %cst = arith.constant dense<0.000000e+00> : vector<2x64xf32>
    %3 = tpu.matmul %1, %2, %cst {dimension_numbers = #tpu.dot_dimension_numbers<[1], [0], [0], [1], [0, 0, 1, 1], [], []>} : vector<2x64xbf16>, vector<64x64xbf16>, vector<2x64xf32> -> vector<2x64xf32>
    %c0_3 = arith.constant 0 : index
    %c0_4 = arith.constant 0 : index
    %4 = vector.load %arg2[%c0_3, %c0_4] : memref<1x64xf32, #tpu.memory_space<vmem>>, vector<1x64xf32>
    %5 = vector.broadcast %4 : vector<1x64xf32> to vector<2x64xf32>
    %6 = arith.addf %3, %5 : vector<2x64xf32>
    %c0_5 = arith.constant 0 : index
    %c0_6 = arith.constant 0 : index
    %7 = vector.load %arg3[%c0_5, %c0_6] : memref<2x64xf32, #tpu.memory_space<vmem>>, vector<2x64xf32>
    tpu.vector_store %arg3[%c0_5, %c0_6], %6 {strides = array<i32>} : memref<2x64xf32, #tpu.memory_space<vmem>>, vector<2x64xf32>,
    return
  }
}

module attributes {stable_mosaic.version = 11 : i64} {
  func.func @_residual_kernel(%arg0: i32, %arg1: memref<1x8x16xf32, #tpu.memory_space<vmem>>, %arg2: memref<8x4xf32, #tpu.memory_space<vmem>>, %arg3: memref<1x4x16xf32, #tpu.memory_space<vmem>>, %arg4: memref<1x8x16xf32, #tpu.memory_space<vmem>>) attributes {dimension_semantics = [#tpu.dimension_semantics<parallel>], iteration_bounds = array<i64: 2>, scalar_prefetch = 0 : i64, scratch_operands = 0 : i64, tpu.core_type = #tpu.core_type<tc>, window_params = [{transform_indices = @transform_0, window_bounds = array<i64: 1, 8, 16>}, {pipeline_mode = #tpu.pipeline_mode<synchronous>, transform_indices = @transform_1, window_bounds = array<i64: 8, 4>}, {transform_indices = @transform_2, window_bounds = array<i64: 1, 4, 16>}, {transform_indices = @transform_3, window_bounds = array<i64: 1, 8, 16>}]} {
    %c0 = arith.constant 0 : index
    %c0_0 = arith.constant 0 : index
    %0 = vector.load %arg2[%c0, %c0_0] : memref<8x4xf32, #tpu.memory_space<vmem>>, vector<8x4xf32>
    %1 = arith.truncf %0 : vector<8x4xf32> to vector<8x4xbf16>
    %c0_1 = arith.constant 0 : index
    %c0_2 = arith.constant 0 : index
    %c0_3 = arith.constant 0 : index
    %2 = vector.load %arg3[%c0_1, %c0_2, %c0_3] : memref<1x4x16xf32, #tpu.memory_space<vmem>>, vector<1x4x16xf32>
    %3 = vector.shape_cast %2 : vector<1x4x16xf32> to vector<4x16xf32>
    %4 = arith.truncf %3 : vector<4x16xf32> to vector<4x16xbf16>
    %cst = arith.constant dense<0.000000e+00> : vector<8x16xf32>
    %5 = tpu.matmul %1, %4, %cst {dimension_numbers = #tpu.dot_dimension_numbers<[1], [0], [0], [1], [0, 0, 1, 1], [], []>} : vector<8x4xbf16>, vector<4x16xbf16>, vector<8x16xf32> -> vector<8x16xf32>
    %c0_4 = arith.constant 0 : index
    %c0_5 = arith.constant 0 : index
    %c0_6 = arith.constant 0 : index
    %6 = vector.load %arg1[%c0_4, %c0_5, %c0_6] : memref<1x8x16xf32, #tpu.memory_space<vmem>>, vector<1x8x16xf32>
    %7 = vector.shape_cast %6 : vector<1x8x16xf32> to vector<8x16xf32>
    %8 = arith.subf %7, %5 : vector<8x16xf32>
    %c0_7 = arith.constant 0 : index
    %c0_8 = arith.constant 0 : index
    %c0_9 = arith.constant 0 : index
    %9 = vector.load %arg4[%c0_7, %c0_8, %c0_9] : memref<1x8x16xf32, #tpu.memory_space<vmem>>, vector<1x8x16xf32>
    %10 = vector.shape_cast %9 : vector<1x8x16xf32> to vector<8x16xf32>
    %11 = vector.shape_cast %8 : vector<8x16xf32> to vector<1x8x16xf32>
    tpu.vector_store %arg4[%c0_7, %c0_8, %c0_9], %11 {strides = array<i32>} : memref<1x8x16xf32, #tpu.memory_space<vmem>>, vector<1x8x16xf32>,
    return
  }
  func.func @transform_0(%arg0: i32) -> (i32, i32, i32) {
    %c0_i32 = arith.constant 0 : i32
    %c0_i32_0 = arith.constant 0 : i32
    %c0_i32_1 = arith.constant 0 : i32
    return %arg0, %c0_i32, %c0_i32_0 : i32, i32, i32
  }
  func.func @transform_1(%arg0: i32) -> (i32, i32) {
    %c0_i32 = arith.constant 0 : i32
    %c0_i32_0 = arith.constant 0 : i32
    %c0_i32_1 = arith.constant 0 : i32
    return %c0_i32, %c0_i32_0 : i32, i32
  }
  func.func @transform_2(%arg0: i32) -> (i32, i32, i32) {
    %c0_i32 = arith.constant 0 : i32
    %c0_i32_0 = arith.constant 0 : i32
    %c0_i32_1 = arith.constant 0 : i32
    return %arg0, %c0_i32, %c0_i32_0 : i32, i32, i32
  }
  func.func @transform_3(%arg0: i32) -> (i32, i32, i32) {
    %c0_i32 = arith.constant 0 : i32
    %c0_i32_0 = arith.constant 0 : i32
    %c0_i32_1 = arith.constant 0 : i32
    return %arg0, %c0_i32, %c0_i32_0 : i32, i32, i32
  }
}

module attributes {stable_mosaic.version = 11 : i64} {
  func.func @_residual_kernel(%arg0: i32, %arg1: memref<1x4x64xf32, #tpu.memory_space<vmem>>, %arg2: memref<4x2xf32, #tpu.memory_space<vmem>>, %arg3: memref<1x2x64xf32, #tpu.memory_space<vmem>>, %arg4: memref<1x4x64xf32, #tpu.memory_space<vmem>>) attributes {dimension_semantics = [#tpu.dimension_semantics<parallel>], iteration_bounds = array<i64: 2>, scalar_prefetch = 0 : i64, scratch_operands = 0 : i64, tpu.core_type = #tpu.core_type<tc>, window_params = [{transform_indices = @transform_0, window_bounds = array<i64: 1, 4, 64>}, {pipeline_mode = #tpu.pipeline_mode<synchronous>, transform_indices = @transform_1, window_bounds = array<i64: 4, 2>}, {transform_indices = @transform_2, window_bounds = array<i64: 1, 2, 64>}, {transform_indices = @transform_3, window_bounds = array<i64: 1, 4, 64>}]} {
    %c0 = arith.constant 0 : index
    %c0_0 = arith.constant 0 : index
    %0 = vector.load %arg2[%c0, %c0_0] : memref<4x2xf32, #tpu.memory_space<vmem>>, vector<4x2xf32>
    %1 = arith.truncf %0 : vector<4x2xf32> to vector<4x2xbf16>
    %c0_1 = arith.constant 0 : index
    %c0_2 = arith.constant 0 : index
    %c0_3 = arith.constant 0 : index
    %2 = vector.load %arg3[%c0_1, %c0_2, %c0_3] : memref<1x2x64xf32, #tpu.memory_space<vmem>>, vector<1x2x64xf32>
    %3 = vector.shape_cast %2 : vector<1x2x64xf32> to vector<2x64xf32>
    %4 = arith.truncf %3 : vector<2x64xf32> to vector<2x64xbf16>
    %cst = arith.constant dense<0.000000e+00> : vector<4x64xf32>
    %5 = tpu.matmul %1, %4, %cst {dimension_numbers = #tpu.dot_dimension_numbers<[1], [0], [0], [1], [0, 0, 1, 1], [], []>} : vector<4x2xbf16>, vector<2x64xbf16>, vector<4x64xf32> -> vector<4x64xf32>
    %c0_4 = arith.constant 0 : index
    %c0_5 = arith.constant 0 : index
    %c0_6 = arith.constant 0 : index
    %6 = vector.load %arg1[%c0_4, %c0_5, %c0_6] : memref<1x4x64xf32, #tpu.memory_space<vmem>>, vector<1x4x64xf32>
    %7 = vector.shape_cast %6 : vector<1x4x64xf32> to vector<4x64xf32>
    %8 = arith.subf %7, %5 : vector<4x64xf32>
    %c0_7 = arith.constant 0 : index
    %c0_8 = arith.constant 0 : index
    %c0_9 = arith.constant 0 : index
    %9 = vector.load %arg4[%c0_7, %c0_8, %c0_9] : memref<1x4x64xf32, #tpu.memory_space<vmem>>, vector<1x4x64xf32>
    %10 = vector.shape_cast %9 : vector<1x4x64xf32> to vector<4x64xf32>
    %11 = vector.shape_cast %8 : vector<4x64xf32> to vector<1x4x64xf32>
    tpu.vector_store %arg4[%c0_7, %c0_8, %c0_9], %11 {strides = array<i32>} : memref<1x4x64xf32, #tpu.memory_space<vmem>>, vector<1x4x64xf32>,
    return
  }
  func.func @transform_0(%arg0: i32) -> (i32, i32, i32) {
    %c0_i32 = arith.constant 0 : i32
    %c0_i32_0 = arith.constant 0 : i32
    %c0_i32_1 = arith.constant 0 : i32
    return %arg0, %c0_i32, %c0_i32_0 : i32, i32, i32
  }
  func.func @transform_1(%arg0: i32) -> (i32, i32) {
    %c0_i32 = arith.constant 0 : i32
    %c0_i32_0 = arith.constant 0 : i32
    %c0_i32_1 = arith.constant 0 : i32
    return %c0_i32, %c0_i32_0 : i32, i32
  }
  func.func @transform_2(%arg0: i32) -> (i32, i32, i32) {
    %c0_i32 = arith.constant 0 : i32
    %c0_i32_0 = arith.constant 0 : i32
    %c0_i32_1 = arith.constant 0 : i32
    return %arg0, %c0_i32, %c0_i32_0 : i32, i32, i32
  }
  func.func @transform_3(%arg0: i32) -> (i32, i32, i32) {
    %c0_i32 = arith.constant 0 : i32
    %c0_i32_0 = arith.constant 0 : i32
    %c0_i32_1 = arith.constant 0 : i32
    return %arg0, %c0_i32, %c0_i32_0 : i32, i32, i32
  }
}

module attributes {stable_mosaic.version = 11 : i64} {
  func.func @_dec_block_kernel(%arg0: i32, %arg1: memref<1x16x12xf32, #tpu.memory_space<vmem>>, %arg2: memref<12x64xbf16, #tpu.memory_space<vmem>>, %arg3: memref<1x64xf32, #tpu.memory_space<vmem>>, %arg4: memref<64x64xbf16, #tpu.memory_space<vmem>>, %arg5: memref<1x64xf32, #tpu.memory_space<vmem>>, %arg6: memref<64x8xbf16, #tpu.memory_space<vmem>>, %arg7: memref<1x8xf32, #tpu.memory_space<vmem>>, %arg8: memref<1x16x8xf32, #tpu.memory_space<vmem>>) attributes {dimension_semantics = [#tpu.dimension_semantics<parallel>], iteration_bounds = array<i64: 2>, scalar_prefetch = 0 : i64, scratch_operands = 0 : i64, tpu.core_type = #tpu.core_type<tc>, window_params = [{transform_indices = @transform_0, window_bounds = array<i64: 1, 16, 12>}, {pipeline_mode = #tpu.pipeline_mode<synchronous>, transform_indices = @transform_1, window_bounds = array<i64: 12, 64>}, {pipeline_mode = #tpu.pipeline_mode<synchronous>, transform_indices = @transform_2, window_bounds = array<i64: 1, 64>}, {pipeline_mode = #tpu.pipeline_mode<synchronous>, transform_indices = @transform_3, window_bounds = array<i64: 64, 64>}, {pipeline_mode = #tpu.pipeline_mode<synchronous>, transform_indices = @transform_4, window_bounds = array<i64: 1, 64>}, {pipeline_mode = #tpu.pipeline_mode<synchronous>, transform_indices = @transform_5, window_bounds = array<i64: 64, 8>}, {pipeline_mode = #tpu.pipeline_mode<synchronous>, transform_indices = @transform_6, window_bounds = array<i64: 1, 8>}, {transform_indices = @transform_7, window_bounds = array<i64: 1, 16, 8>}]} {
    %c0 = arith.constant 0 : index
    %c0_0 = arith.constant 0 : index
    %c0_1 = arith.constant 0 : index
    %0 = vector.load %arg1[%c0, %c0_0, %c0_1] : memref<1x16x12xf32, #tpu.memory_space<vmem>>, vector<1x16x12xf32>
    %1 = vector.shape_cast %0 : vector<1x16x12xf32> to vector<16x12xf32>
    %2 = arith.truncf %1 : vector<16x12xf32> to vector<16x12xbf16>
    %c0_2 = arith.constant 0 : index
    %c0_3 = arith.constant 0 : index
    %3 = vector.load %arg2[%c0_2, %c0_3] : memref<12x64xbf16, #tpu.memory_space<vmem>>, vector<12x64xbf16>
    %cst = arith.constant dense<0.000000e+00> : vector<16x64xf32>
    %4 = tpu.matmul %2, %3, %cst {dimension_numbers = #tpu.dot_dimension_numbers<[1], [0], [0], [1], [0, 0, 1, 1], [], []>} : vector<16x12xbf16>, vector<12x64xbf16>, vector<16x64xf32> -> vector<16x64xf32>
    %c0_4 = arith.constant 0 : index
    %c0_5 = arith.constant 0 : index
    %5 = vector.load %arg3[%c0_4, %c0_5] : memref<1x64xf32, #tpu.memory_space<vmem>>, vector<1x64xf32>
    %6 = vector.broadcast %5 : vector<1x64xf32> to vector<16x64xf32>
    %7 = arith.addf %4, %6 : vector<16x64xf32>
    %8 = arith.truncf %7 : vector<16x64xf32> to vector<16x64xbf16>
    %c0_6 = arith.constant 0 : index
    %c0_7 = arith.constant 0 : index
    %9 = vector.load %arg4[%c0_6, %c0_7] : memref<64x64xbf16, #tpu.memory_space<vmem>>, vector<64x64xbf16>
    %cst_8 = arith.constant dense<0.000000e+00> : vector<16x64xf32>
    %10 = tpu.matmul %8, %9, %cst_8 {dimension_numbers = #tpu.dot_dimension_numbers<[1], [0], [0], [1], [0, 0, 1, 1], [], []>} : vector<16x64xbf16>, vector<64x64xbf16>, vector<16x64xf32> -> vector<16x64xf32>
    %c0_9 = arith.constant 0 : index
    %c0_10 = arith.constant 0 : index
    %11 = vector.load %arg5[%c0_9, %c0_10] : memref<1x64xf32, #tpu.memory_space<vmem>>, vector<1x64xf32>
    %12 = vector.broadcast %11 : vector<1x64xf32> to vector<16x64xf32>
    %13 = arith.addf %10, %12 : vector<16x64xf32>
    %cst_11 = arith.constant 5.000000e-01 : f32
    %14 = vector.broadcast %cst_11 : f32 to vector<16x64xf32>
    %15 = arith.mulf %14, %13 : vector<16x64xf32>
    %cst_12 = arith.constant 0.707106769 : f32
    %16 = vector.broadcast %cst_12 : f32 to vector<16x64xf32>
    %17 = arith.mulf %13, %16 : vector<16x64xf32>
    %cst_13 = arith.constant 0.000000e+00 : f32
    %18 = vector.broadcast %cst_13 : f32 to vector<16x64xf32>
    %19 = arith.cmpf olt, %17, %18 : vector<16x64xf32>
    %cst_14 = arith.constant -1.000000e+00 : f32
    %cst_15 = arith.constant 1.000000e+00 : f32
    %20 = vector.broadcast %cst_14 : f32 to vector<16x64xf32>
    %21 = vector.broadcast %cst_15 : f32 to vector<16x64xf32>
    %22 = arith.select %19, %20, %21 : vector<16x64xi1>, vector<16x64xf32>
    %23 = math.absf %17 : vector<16x64xf32>
    %cst_16 = arith.constant 0.327591091 : f32
    %24 = vector.broadcast %cst_16 : f32 to vector<16x64xf32>
    %25 = arith.mulf %24, %23 : vector<16x64xf32>
    %cst_17 = arith.constant 1.000000e+00 : f32
    %26 = vector.broadcast %cst_17 : f32 to vector<16x64xf32>
    %27 = arith.addf %26, %25 : vector<16x64xf32>
    %cst_18 = arith.constant 1.000000e+00 : f32
    %28 = vector.broadcast %cst_18 : f32 to vector<16x64xf32>
    %29 = arith.divf %28, %27 : vector<16x64xf32>
    %cst_19 = arith.constant 1.06140542 : f32
    %30 = vector.broadcast %cst_19 : f32 to vector<16x64xf32>
    %31 = arith.mulf %30, %29 : vector<16x64xf32>
    %cst_20 = arith.constant -1.45315206 : f32
    %32 = vector.broadcast %cst_20 : f32 to vector<16x64xf32>
    %33 = arith.addf %31, %32 : vector<16x64xf32>
    %34 = arith.mulf %33, %29 : vector<16x64xf32>
    %cst_21 = arith.constant 1.42141378 : f32
    %35 = vector.broadcast %cst_21 : f32 to vector<16x64xf32>
    %36 = arith.addf %34, %35 : vector<16x64xf32>
    %37 = arith.mulf %36, %29 : vector<16x64xf32>
    %cst_22 = arith.constant -0.284496725 : f32
    %38 = vector.broadcast %cst_22 : f32 to vector<16x64xf32>
    %39 = arith.addf %37, %38 : vector<16x64xf32>
    %40 = arith.mulf %39, %29 : vector<16x64xf32>
    %cst_23 = arith.constant 0.254829586 : f32
    %41 = vector.broadcast %cst_23 : f32 to vector<16x64xf32>
    %42 = arith.addf %40, %41 : vector<16x64xf32>
    %43 = arith.mulf %42, %29 : vector<16x64xf32>
    %cst_24 = arith.constant 0.000000e+00 : f32
    %44 = vector.broadcast %cst_24 : f32 to vector<16x64xf32>
    %45 = arith.subf %44, %23 : vector<16x64xf32>
    %46 = arith.mulf %45, %23 : vector<16x64xf32>
    %47 = math.exp %46 : vector<16x64xf32>
    %48 = arith.mulf %43, %47 : vector<16x64xf32>
    %cst_25 = arith.constant 1.000000e+00 : f32
    %49 = vector.broadcast %cst_25 : f32 to vector<16x64xf32>
    %50 = arith.subf %49, %48 : vector<16x64xf32>
    %51 = arith.mulf %22, %50 : vector<16x64xf32>
    %cst_26 = arith.constant 1.000000e+00 : f32
    %52 = vector.broadcast %cst_26 : f32 to vector<16x64xf32>
    %53 = arith.addf %52, %51 : vector<16x64xf32>
    %54 = arith.mulf %15, %53 : vector<16x64xf32>
    %55 = arith.truncf %54 : vector<16x64xf32> to vector<16x64xbf16>
    %c0_27 = arith.constant 0 : index
    %c0_28 = arith.constant 0 : index
    %56 = vector.load %arg6[%c0_27, %c0_28] : memref<64x8xbf16, #tpu.memory_space<vmem>>, vector<64x8xbf16>
    %cst_29 = arith.constant dense<0.000000e+00> : vector<16x8xf32>
    %57 = tpu.matmul %55, %56, %cst_29 {dimension_numbers = #tpu.dot_dimension_numbers<[1], [0], [0], [1], [0, 0, 1, 1], [], []>} : vector<16x64xbf16>, vector<64x8xbf16>, vector<16x8xf32> -> vector<16x8xf32>
    %c0_30 = arith.constant 0 : index
    %c0_31 = arith.constant 0 : index
    %58 = vector.load %arg7[%c0_30, %c0_31] : memref<1x8xf32, #tpu.memory_space<vmem>>, vector<1x8xf32>
    %59 = vector.broadcast %58 : vector<1x8xf32> to vector<16x8xf32>
    %60 = arith.addf %57, %59 : vector<16x8xf32>
    %c0_32 = arith.constant 0 : index
    %c0_33 = arith.constant 0 : index
    %c0_34 = arith.constant 0 : index
    %61 = vector.load %arg8[%c0_32, %c0_33, %c0_34] : memref<1x16x8xf32, #tpu.memory_space<vmem>>, vector<1x16x8xf32>
    %62 = vector.shape_cast %61 : vector<1x16x8xf32> to vector<16x8xf32>
    %63 = vector.shape_cast %60 : vector<16x8xf32> to vector<1x16x8xf32>
    tpu.vector_store %arg8[%c0_32, %c0_33, %c0_34], %63 {strides = array<i32>} : memref<1x16x8xf32, #tpu.memory_space<vmem>>, vector<1x16x8xf32>,
    return
  }
  func.func @transform_0(%arg0: i32) -> (i32, i32, i32) {
    %c0_i32 = arith.constant 0 : i32
    %c0_i32_0 = arith.constant 0 : i32
    %c0_i32_1 = arith.constant 0 : i32
    return %arg0, %c0_i32, %c0_i32_0 : i32, i32, i32
  }
  func.func @transform_1(%arg0: i32) -> (i32, i32) {
    %c0_i32 = arith.constant 0 : i32
    %c0_i32_0 = arith.constant 0 : i32
    %c0_i32_1 = arith.constant 0 : i32
    return %c0_i32, %c0_i32_0 : i32, i32
  }
  func.func @transform_2(%arg0: i32) -> (i32, i32) {
    %c0_i32 = arith.constant 0 : i32
    %c0_i32_0 = arith.constant 0 : i32
    %c0_i32_1 = arith.constant 0 : i32
    return %c0_i32, %c0_i32_0 : i32, i32
  }
  func.func @transform_3(%arg0: i32) -> (i32, i32) {
    %c0_i32 = arith.constant 0 : i32
    %c0_i32_0 = arith.constant 0 : i32
    %c0_i32_1 = arith.constant 0 : i32
    return %c0_i32, %c0_i32_0 : i32, i32
  }
  func.func @transform_4(%arg0: i32) -> (i32, i32) {
    %c0_i32 = arith.constant 0 : i32
    %c0_i32_0 = arith.constant 0 : i32
    %c0_i32_1 = arith.constant 0 : i32
    return %c0_i32, %c0_i32_0 : i32, i32
  }
  func.func @transform_5(%arg0: i32) -> (i32, i32) {
    %c0_i32 = arith.constant 0 : i32
    %c0_i32_0 = arith.constant 0 : i32
    %c0_i32_1 = arith.constant 0 : i32
    return %c0_i32, %c0_i32_0 : i32, i32
  }
  func.func @transform_6(%arg0: i32) -> (i32, i32) {
    %c0_i32 = arith.constant 0 : i32
    %c0_i32_0 = arith.constant 0 : i32
    %c0_i32_1 = arith.constant 0 : i32
    return %c0_i32, %c0_i32_0 : i32, i32
  }
  func.func @transform_7(%arg0: i32) -> (i32, i32, i32) {
    %c0_i32 = arith.constant 0 : i32
    %c0_i32_0 = arith.constant 0 : i32
    %c0_i32_1 = arith.constant 0 : i32
    return %arg0, %c0_i32, %c0_i32_0 : i32, i32, i32
  }
}

module attributes {stable_mosaic.version = 11 : i64} {
  func.func @_dec_block_kernel(%arg0: i32, %arg1: memref<1x64x6xf32, #tpu.memory_space<vmem>>, %arg2: memref<6x64xbf16, #tpu.memory_space<vmem>>, %arg3: memref<1x64xf32, #tpu.memory_space<vmem>>, %arg4: memref<64x64xbf16, #tpu.memory_space<vmem>>, %arg5: memref<1x64xf32, #tpu.memory_space<vmem>>, %arg6: memref<64x4xbf16, #tpu.memory_space<vmem>>, %arg7: memref<1x4xf32, #tpu.memory_space<vmem>>, %arg8: memref<1x64x4xf32, #tpu.memory_space<vmem>>) attributes {dimension_semantics = [#tpu.dimension_semantics<parallel>], iteration_bounds = array<i64: 2>, scalar_prefetch = 0 : i64, scratch_operands = 0 : i64, tpu.core_type = #tpu.core_type<tc>, window_params = [{transform_indices = @transform_0, window_bounds = array<i64: 1, 64, 6>}, {pipeline_mode = #tpu.pipeline_mode<synchronous>, transform_indices = @transform_1, window_bounds = array<i64: 6, 64>}, {pipeline_mode = #tpu.pipeline_mode<synchronous>, transform_indices = @transform_2, window_bounds = array<i64: 1, 64>}, {pipeline_mode = #tpu.pipeline_mode<synchronous>, transform_indices = @transform_3, window_bounds = array<i64: 64, 64>}, {pipeline_mode = #tpu.pipeline_mode<synchronous>, transform_indices = @transform_4, window_bounds = array<i64: 1, 64>}, {pipeline_mode = #tpu.pipeline_mode<synchronous>, transform_indices = @transform_5, window_bounds = array<i64: 64, 4>}, {pipeline_mode = #tpu.pipeline_mode<synchronous>, transform_indices = @transform_6, window_bounds = array<i64: 1, 4>}, {transform_indices = @transform_7, window_bounds = array<i64: 1, 64, 4>}]} {
    %c0 = arith.constant 0 : index
    %c0_0 = arith.constant 0 : index
    %c0_1 = arith.constant 0 : index
    %0 = vector.load %arg1[%c0, %c0_0, %c0_1] : memref<1x64x6xf32, #tpu.memory_space<vmem>>, vector<1x64x6xf32>
    %1 = vector.shape_cast %0 : vector<1x64x6xf32> to vector<64x6xf32>
    %2 = arith.truncf %1 : vector<64x6xf32> to vector<64x6xbf16>
    %c0_2 = arith.constant 0 : index
    %c0_3 = arith.constant 0 : index
    %3 = vector.load %arg2[%c0_2, %c0_3] : memref<6x64xbf16, #tpu.memory_space<vmem>>, vector<6x64xbf16>
    %cst = arith.constant dense<0.000000e+00> : vector<64x64xf32>
    %4 = tpu.matmul %2, %3, %cst {dimension_numbers = #tpu.dot_dimension_numbers<[1], [0], [0], [1], [0, 0, 1, 1], [], []>} : vector<64x6xbf16>, vector<6x64xbf16>, vector<64x64xf32> -> vector<64x64xf32>
    %c0_4 = arith.constant 0 : index
    %c0_5 = arith.constant 0 : index
    %5 = vector.load %arg3[%c0_4, %c0_5] : memref<1x64xf32, #tpu.memory_space<vmem>>, vector<1x64xf32>
    %6 = vector.broadcast %5 : vector<1x64xf32> to vector<64x64xf32>
    %7 = arith.addf %4, %6 : vector<64x64xf32>
    %8 = arith.truncf %7 : vector<64x64xf32> to vector<64x64xbf16>
    %c0_6 = arith.constant 0 : index
    %c0_7 = arith.constant 0 : index
    %9 = vector.load %arg4[%c0_6, %c0_7] : memref<64x64xbf16, #tpu.memory_space<vmem>>, vector<64x64xbf16>
    %cst_8 = arith.constant dense<0.000000e+00> : vector<64x64xf32>
    %10 = tpu.matmul %8, %9, %cst_8 {dimension_numbers = #tpu.dot_dimension_numbers<[1], [0], [0], [1], [0, 0, 1, 1], [], []>} : vector<64x64xbf16>, vector<64x64xbf16>, vector<64x64xf32> -> vector<64x64xf32>
    %c0_9 = arith.constant 0 : index
    %c0_10 = arith.constant 0 : index
    %11 = vector.load %arg5[%c0_9, %c0_10] : memref<1x64xf32, #tpu.memory_space<vmem>>, vector<1x64xf32>
    %12 = vector.broadcast %11 : vector<1x64xf32> to vector<64x64xf32>
    %13 = arith.addf %10, %12 : vector<64x64xf32>
    %cst_11 = arith.constant 5.000000e-01 : f32
    %14 = vector.broadcast %cst_11 : f32 to vector<64x64xf32>
    %15 = arith.mulf %14, %13 : vector<64x64xf32>
    %cst_12 = arith.constant 0.707106769 : f32
    %16 = vector.broadcast %cst_12 : f32 to vector<64x64xf32>
    %17 = arith.mulf %13, %16 : vector<64x64xf32>
    %cst_13 = arith.constant 0.000000e+00 : f32
    %18 = vector.broadcast %cst_13 : f32 to vector<64x64xf32>
    %19 = arith.cmpf olt, %17, %18 : vector<64x64xf32>
    %cst_14 = arith.constant -1.000000e+00 : f32
    %cst_15 = arith.constant 1.000000e+00 : f32
    %20 = vector.broadcast %cst_14 : f32 to vector<64x64xf32>
    %21 = vector.broadcast %cst_15 : f32 to vector<64x64xf32>
    %22 = arith.select %19, %20, %21 : vector<64x64xi1>, vector<64x64xf32>
    %23 = math.absf %17 : vector<64x64xf32>
    %cst_16 = arith.constant 0.327591091 : f32
    %24 = vector.broadcast %cst_16 : f32 to vector<64x64xf32>
    %25 = arith.mulf %24, %23 : vector<64x64xf32>
    %cst_17 = arith.constant 1.000000e+00 : f32
    %26 = vector.broadcast %cst_17 : f32 to vector<64x64xf32>
    %27 = arith.addf %26, %25 : vector<64x64xf32>
    %cst_18 = arith.constant 1.000000e+00 : f32
    %28 = vector.broadcast %cst_18 : f32 to vector<64x64xf32>
    %29 = arith.divf %28, %27 : vector<64x64xf32>
    %cst_19 = arith.constant 1.06140542 : f32
    %30 = vector.broadcast %cst_19 : f32 to vector<64x64xf32>
    %31 = arith.mulf %30, %29 : vector<64x64xf32>
    %cst_20 = arith.constant -1.45315206 : f32
    %32 = vector.broadcast %cst_20 : f32 to vector<64x64xf32>
    %33 = arith.addf %31, %32 : vector<64x64xf32>
    %34 = arith.mulf %33, %29 : vector<64x64xf32>
    %cst_21 = arith.constant 1.42141378 : f32
    %35 = vector.broadcast %cst_21 : f32 to vector<64x64xf32>
    %36 = arith.addf %34, %35 : vector<64x64xf32>
    %37 = arith.mulf %36, %29 : vector<64x64xf32>
    %cst_22 = arith.constant -0.284496725 : f32
    %38 = vector.broadcast %cst_22 : f32 to vector<64x64xf32>
    %39 = arith.addf %37, %38 : vector<64x64xf32>
    %40 = arith.mulf %39, %29 : vector<64x64xf32>
    %cst_23 = arith.constant 0.254829586 : f32
    %41 = vector.broadcast %cst_23 : f32 to vector<64x64xf32>
    %42 = arith.addf %40, %41 : vector<64x64xf32>
    %43 = arith.mulf %42, %29 : vector<64x64xf32>
    %cst_24 = arith.constant 0.000000e+00 : f32
    %44 = vector.broadcast %cst_24 : f32 to vector<64x64xf32>
    %45 = arith.subf %44, %23 : vector<64x64xf32>
    %46 = arith.mulf %45, %23 : vector<64x64xf32>
    %47 = math.exp %46 : vector<64x64xf32>
    %48 = arith.mulf %43, %47 : vector<64x64xf32>
    %cst_25 = arith.constant 1.000000e+00 : f32
    %49 = vector.broadcast %cst_25 : f32 to vector<64x64xf32>
    %50 = arith.subf %49, %48 : vector<64x64xf32>
    %51 = arith.mulf %22, %50 : vector<64x64xf32>
    %cst_26 = arith.constant 1.000000e+00 : f32
    %52 = vector.broadcast %cst_26 : f32 to vector<64x64xf32>
    %53 = arith.addf %52, %51 : vector<64x64xf32>
    %54 = arith.mulf %15, %53 : vector<64x64xf32>
    %55 = arith.truncf %54 : vector<64x64xf32> to vector<64x64xbf16>
    %c0_27 = arith.constant 0 : index
    %c0_28 = arith.constant 0 : index
    %56 = vector.load %arg6[%c0_27, %c0_28] : memref<64x4xbf16, #tpu.memory_space<vmem>>, vector<64x4xbf16>
    %cst_29 = arith.constant dense<0.000000e+00> : vector<64x4xf32>
    %57 = tpu.matmul %55, %56, %cst_29 {dimension_numbers = #tpu.dot_dimension_numbers<[1], [0], [0], [1], [0, 0, 1, 1], [], []>} : vector<64x64xbf16>, vector<64x4xbf16>, vector<64x4xf32> -> vector<64x4xf32>
    %c0_30 = arith.constant 0 : index
    %c0_31 = arith.constant 0 : index
    %58 = vector.load %arg7[%c0_30, %c0_31] : memref<1x4xf32, #tpu.memory_space<vmem>>, vector<1x4xf32>
    %59 = vector.broadcast %58 : vector<1x4xf32> to vector<64x4xf32>
    %60 = arith.addf %57, %59 : vector<64x4xf32>
    %c0_32 = arith.constant 0 : index
    %c0_33 = arith.constant 0 : index
    %c0_34 = arith.constant 0 : index
    %61 = vector.load %arg8[%c0_32, %c0_33, %c0_34] : memref<1x64x4xf32, #tpu.memory_space<vmem>>, vector<1x64x4xf32>
    %62 = vector.shape_cast %61 : vector<1x64x4xf32> to vector<64x4xf32>
    %63 = vector.shape_cast %60 : vector<64x4xf32> to vector<1x64x4xf32>
    tpu.vector_store %arg8[%c0_32, %c0_33, %c0_34], %63 {strides = array<i32>} : memref<1x64x4xf32, #tpu.memory_space<vmem>>, vector<1x64x4xf32>,
    return
  }
  func.func @transform_0(%arg0: i32) -> (i32, i32, i32) {
    %c0_i32 = arith.constant 0 : i32
    %c0_i32_0 = arith.constant 0 : i32
    %c0_i32_1 = arith.constant 0 : i32
    return %arg0, %c0_i32, %c0_i32_0 : i32, i32, i32
  }
  func.func @transform_1(%arg0: i32) -> (i32, i32) {
    %c0_i32 = arith.constant 0 : i32
    %c0_i32_0 = arith.constant 0 : i32
    %c0_i32_1 = arith.constant 0 : i32
    return %c0_i32, %c0_i32_0 : i32, i32
  }
  func.func @transform_2(%arg0: i32) -> (i32, i32) {
    %c0_i32 = arith.constant 0 : i32
    %c0_i32_0 = arith.constant 0 : i32
    %c0_i32_1 = arith.constant 0 : i32
    return %c0_i32, %c0_i32_0 : i32, i32
  }
  func.func @transform_3(%arg0: i32) -> (i32, i32) {
    %c0_i32 = arith.constant 0 : i32
    %c0_i32_0 = arith.constant 0 : i32
    %c0_i32_1 = arith.constant 0 : i32
    return %c0_i32, %c0_i32_0 : i32, i32
  }
  func.func @transform_4(%arg0: i32) -> (i32, i32) {
    %c0_i32 = arith.constant 0 : i32
    %c0_i32_0 = arith.constant 0 : i32
    %c0_i32_1 = arith.constant 0 : i32
    return %c0_i32, %c0_i32_0 : i32, i32
  }
  func.func @transform_5(%arg0: i32) -> (i32, i32) {
    %c0_i32 = arith.constant 0 : i32
    %c0_i32_0 = arith.constant 0 : i32
    %c0_i32_1 = arith.constant 0 : i32
    return %c0_i32, %c0_i32_0 : i32, i32
  }
  func.func @transform_6(%arg0: i32) -> (i32, i32) {
    %c0_i32 = arith.constant 0 : i32
    %c0_i32_0 = arith.constant 0 : i32
    %c0_i32_1 = arith.constant 0 : i32
    return %c0_i32, %c0_i32_0 : i32, i32
  }
  func.func @transform_7(%arg0: i32) -> (i32, i32, i32) {
    %c0_i32 = arith.constant 0 : i32
    %c0_i32_0 = arith.constant 0 : i32
    %c0_i32_1 = arith.constant 0 : i32
    return %arg0, %c0_i32, %c0_i32_0 : i32, i32, i32
  }
}

module attributes {stable_mosaic.version = 11 : i64} {
  func.func @_residual_kernel(%arg0: i32, %arg1: memref<1x16x32xf32, #tpu.memory_space<vmem>>, %arg2: memref<16x8xf32, #tpu.memory_space<vmem>>, %arg3: memref<1x8x32xf32, #tpu.memory_space<vmem>>, %arg4: memref<1x16x32xf32, #tpu.memory_space<vmem>>) attributes {dimension_semantics = [#tpu.dimension_semantics<parallel>], iteration_bounds = array<i64: 2>, scalar_prefetch = 0 : i64, scratch_operands = 0 : i64, tpu.core_type = #tpu.core_type<tc>, window_params = [{transform_indices = @transform_0, window_bounds = array<i64: 1, 16, 32>}, {pipeline_mode = #tpu.pipeline_mode<synchronous>, transform_indices = @transform_1, window_bounds = array<i64: 16, 8>}, {transform_indices = @transform_2, window_bounds = array<i64: 1, 8, 32>}, {transform_indices = @transform_3, window_bounds = array<i64: 1, 16, 32>}]} {
    %c0 = arith.constant 0 : index
    %c0_0 = arith.constant 0 : index
    %0 = vector.load %arg2[%c0, %c0_0] : memref<16x8xf32, #tpu.memory_space<vmem>>, vector<16x8xf32>
    %1 = arith.truncf %0 : vector<16x8xf32> to vector<16x8xbf16>
    %c0_1 = arith.constant 0 : index
    %c0_2 = arith.constant 0 : index
    %c0_3 = arith.constant 0 : index
    %2 = vector.load %arg3[%c0_1, %c0_2, %c0_3] : memref<1x8x32xf32, #tpu.memory_space<vmem>>, vector<1x8x32xf32>
    %3 = vector.shape_cast %2 : vector<1x8x32xf32> to vector<8x32xf32>
    %4 = arith.truncf %3 : vector<8x32xf32> to vector<8x32xbf16>
    %cst = arith.constant dense<0.000000e+00> : vector<16x32xf32>
    %5 = tpu.matmul %1, %4, %cst {dimension_numbers = #tpu.dot_dimension_numbers<[1], [0], [0], [1], [0, 0, 1, 1], [], []>} : vector<16x8xbf16>, vector<8x32xbf16>, vector<16x32xf32> -> vector<16x32xf32>
    %c0_4 = arith.constant 0 : index
    %c0_5 = arith.constant 0 : index
    %c0_6 = arith.constant 0 : index
    %6 = vector.load %arg1[%c0_4, %c0_5, %c0_6] : memref<1x16x32xf32, #tpu.memory_space<vmem>>, vector<1x16x32xf32>
    %7 = vector.shape_cast %6 : vector<1x16x32xf32> to vector<16x32xf32>
    %8 = arith.subf %7, %5 : vector<16x32xf32>
    %c0_7 = arith.constant 0 : index
    %c0_8 = arith.constant 0 : index
    %c0_9 = arith.constant 0 : index
    %9 = vector.load %arg4[%c0_7, %c0_8, %c0_9] : memref<1x16x32xf32, #tpu.memory_space<vmem>>, vector<1x16x32xf32>
    %10 = vector.shape_cast %9 : vector<1x16x32xf32> to vector<16x32xf32>
    %11 = vector.shape_cast %8 : vector<16x32xf32> to vector<1x16x32xf32>
    tpu.vector_store %arg4[%c0_7, %c0_8, %c0_9], %11 {strides = array<i32>} : memref<1x16x32xf32, #tpu.memory_space<vmem>>, vector<1x16x32xf32>,
    return
  }
  func.func @transform_0(%arg0: i32) -> (i32, i32, i32) {
    %c0_i32 = arith.constant 0 : i32
    %c0_i32_0 = arith.constant 0 : i32
    %c0_i32_1 = arith.constant 0 : i32
    return %arg0, %c0_i32, %c0_i32_0 : i32, i32, i32
  }
  func.func @transform_1(%arg0: i32) -> (i32, i32) {
    %c0_i32 = arith.constant 0 : i32
    %c0_i32_0 = arith.constant 0 : i32
    %c0_i32_1 = arith.constant 0 : i32
    return %c0_i32, %c0_i32_0 : i32, i32
  }
  func.func @transform_2(%arg0: i32) -> (i32, i32, i32) {
    %c0_i32 = arith.constant 0 : i32
    %c0_i32_0 = arith.constant 0 : i32
    %c0_i32_1 = arith.constant 0 : i32
    return %arg0, %c0_i32, %c0_i32_0 : i32, i32, i32
  }
  func.func @transform_3(%arg0: i32) -> (i32, i32, i32) {
    %c0_i32 = arith.constant 0 : i32
    %c0_i32_0 = arith.constant 0 : i32
    %c0_i32_1 = arith.constant 0 : i32
    return %arg0, %c0_i32, %c0_i32_0 : i32, i32, i32
  }
}

module attributes {stable_mosaic.version = 11 : i64} {
  func.func @_dec_block_kernel(%arg0: i32, %arg1: memref<1x32x24xf32, #tpu.memory_space<vmem>>, %arg2: memref<24x64xbf16, #tpu.memory_space<vmem>>, %arg3: memref<1x64xf32, #tpu.memory_space<vmem>>, %arg4: memref<64x64xbf16, #tpu.memory_space<vmem>>, %arg5: memref<1x64xf32, #tpu.memory_space<vmem>>, %arg6: memref<64x16xbf16, #tpu.memory_space<vmem>>, %arg7: memref<1x16xf32, #tpu.memory_space<vmem>>, %arg8: memref<1x32x16xf32, #tpu.memory_space<vmem>>) attributes {dimension_semantics = [#tpu.dimension_semantics<parallel>], iteration_bounds = array<i64: 2>, scalar_prefetch = 0 : i64, scratch_operands = 0 : i64, tpu.core_type = #tpu.core_type<tc>, window_params = [{transform_indices = @transform_0, window_bounds = array<i64: 1, 32, 24>}, {pipeline_mode = #tpu.pipeline_mode<synchronous>, transform_indices = @transform_1, window_bounds = array<i64: 24, 64>}, {pipeline_mode = #tpu.pipeline_mode<synchronous>, transform_indices = @transform_2, window_bounds = array<i64: 1, 64>}, {pipeline_mode = #tpu.pipeline_mode<synchronous>, transform_indices = @transform_3, window_bounds = array<i64: 64, 64>}, {pipeline_mode = #tpu.pipeline_mode<synchronous>, transform_indices = @transform_4, window_bounds = array<i64: 1, 64>}, {pipeline_mode = #tpu.pipeline_mode<synchronous>, transform_indices = @transform_5, window_bounds = array<i64: 64, 16>}, {pipeline_mode = #tpu.pipeline_mode<synchronous>, transform_indices = @transform_6, window_bounds = array<i64: 1, 16>}, {transform_indices = @transform_7, window_bounds = array<i64: 1, 32, 16>}]} {
    %c0 = arith.constant 0 : index
    %c0_0 = arith.constant 0 : index
    %c0_1 = arith.constant 0 : index
    %0 = vector.load %arg1[%c0, %c0_0, %c0_1] : memref<1x32x24xf32, #tpu.memory_space<vmem>>, vector<1x32x24xf32>
    %1 = vector.shape_cast %0 : vector<1x32x24xf32> to vector<32x24xf32>
    %2 = arith.truncf %1 : vector<32x24xf32> to vector<32x24xbf16>
    %c0_2 = arith.constant 0 : index
    %c0_3 = arith.constant 0 : index
    %3 = vector.load %arg2[%c0_2, %c0_3] : memref<24x64xbf16, #tpu.memory_space<vmem>>, vector<24x64xbf16>
    %cst = arith.constant dense<0.000000e+00> : vector<32x64xf32>
    %4 = tpu.matmul %2, %3, %cst {dimension_numbers = #tpu.dot_dimension_numbers<[1], [0], [0], [1], [0, 0, 1, 1], [], []>} : vector<32x24xbf16>, vector<24x64xbf16>, vector<32x64xf32> -> vector<32x64xf32>
    %c0_4 = arith.constant 0 : index
    %c0_5 = arith.constant 0 : index
    %5 = vector.load %arg3[%c0_4, %c0_5] : memref<1x64xf32, #tpu.memory_space<vmem>>, vector<1x64xf32>
    %6 = vector.broadcast %5 : vector<1x64xf32> to vector<32x64xf32>
    %7 = arith.addf %4, %6 : vector<32x64xf32>
    %8 = arith.truncf %7 : vector<32x64xf32> to vector<32x64xbf16>
    %c0_6 = arith.constant 0 : index
    %c0_7 = arith.constant 0 : index
    %9 = vector.load %arg4[%c0_6, %c0_7] : memref<64x64xbf16, #tpu.memory_space<vmem>>, vector<64x64xbf16>
    %cst_8 = arith.constant dense<0.000000e+00> : vector<32x64xf32>
    %10 = tpu.matmul %8, %9, %cst_8 {dimension_numbers = #tpu.dot_dimension_numbers<[1], [0], [0], [1], [0, 0, 1, 1], [], []>} : vector<32x64xbf16>, vector<64x64xbf16>, vector<32x64xf32> -> vector<32x64xf32>
    %c0_9 = arith.constant 0 : index
    %c0_10 = arith.constant 0 : index
    %11 = vector.load %arg5[%c0_9, %c0_10] : memref<1x64xf32, #tpu.memory_space<vmem>>, vector<1x64xf32>
    %12 = vector.broadcast %11 : vector<1x64xf32> to vector<32x64xf32>
    %13 = arith.addf %10, %12 : vector<32x64xf32>
    %cst_11 = arith.constant 5.000000e-01 : f32
    %14 = vector.broadcast %cst_11 : f32 to vector<32x64xf32>
    %15 = arith.mulf %14, %13 : vector<32x64xf32>
    %cst_12 = arith.constant 0.707106769 : f32
    %16 = vector.broadcast %cst_12 : f32 to vector<32x64xf32>
    %17 = arith.mulf %13, %16 : vector<32x64xf32>
    %cst_13 = arith.constant 0.000000e+00 : f32
    %18 = vector.broadcast %cst_13 : f32 to vector<32x64xf32>
    %19 = arith.cmpf olt, %17, %18 : vector<32x64xf32>
    %cst_14 = arith.constant -1.000000e+00 : f32
    %cst_15 = arith.constant 1.000000e+00 : f32
    %20 = vector.broadcast %cst_14 : f32 to vector<32x64xf32>
    %21 = vector.broadcast %cst_15 : f32 to vector<32x64xf32>
    %22 = arith.select %19, %20, %21 : vector<32x64xi1>, vector<32x64xf32>
    %23 = math.absf %17 : vector<32x64xf32>
    %cst_16 = arith.constant 0.327591091 : f32
    %24 = vector.broadcast %cst_16 : f32 to vector<32x64xf32>
    %25 = arith.mulf %24, %23 : vector<32x64xf32>
    %cst_17 = arith.constant 1.000000e+00 : f32
    %26 = vector.broadcast %cst_17 : f32 to vector<32x64xf32>
    %27 = arith.addf %26, %25 : vector<32x64xf32>
    %cst_18 = arith.constant 1.000000e+00 : f32
    %28 = vector.broadcast %cst_18 : f32 to vector<32x64xf32>
    %29 = arith.divf %28, %27 : vector<32x64xf32>
    %cst_19 = arith.constant 1.06140542 : f32
    %30 = vector.broadcast %cst_19 : f32 to vector<32x64xf32>
    %31 = arith.mulf %30, %29 : vector<32x64xf32>
    %cst_20 = arith.constant -1.45315206 : f32
    %32 = vector.broadcast %cst_20 : f32 to vector<32x64xf32>
    %33 = arith.addf %31, %32 : vector<32x64xf32>
    %34 = arith.mulf %33, %29 : vector<32x64xf32>
    %cst_21 = arith.constant 1.42141378 : f32
    %35 = vector.broadcast %cst_21 : f32 to vector<32x64xf32>
    %36 = arith.addf %34, %35 : vector<32x64xf32>
    %37 = arith.mulf %36, %29 : vector<32x64xf32>
    %cst_22 = arith.constant -0.284496725 : f32
    %38 = vector.broadcast %cst_22 : f32 to vector<32x64xf32>
    %39 = arith.addf %37, %38 : vector<32x64xf32>
    %40 = arith.mulf %39, %29 : vector<32x64xf32>
    %cst_23 = arith.constant 0.254829586 : f32
    %41 = vector.broadcast %cst_23 : f32 to vector<32x64xf32>
    %42 = arith.addf %40, %41 : vector<32x64xf32>
    %43 = arith.mulf %42, %29 : vector<32x64xf32>
    %cst_24 = arith.constant 0.000000e+00 : f32
    %44 = vector.broadcast %cst_24 : f32 to vector<32x64xf32>
    %45 = arith.subf %44, %23 : vector<32x64xf32>
    %46 = arith.mulf %45, %23 : vector<32x64xf32>
    %47 = math.exp %46 : vector<32x64xf32>
    %48 = arith.mulf %43, %47 : vector<32x64xf32>
    %cst_25 = arith.constant 1.000000e+00 : f32
    %49 = vector.broadcast %cst_25 : f32 to vector<32x64xf32>
    %50 = arith.subf %49, %48 : vector<32x64xf32>
    %51 = arith.mulf %22, %50 : vector<32x64xf32>
    %cst_26 = arith.constant 1.000000e+00 : f32
    %52 = vector.broadcast %cst_26 : f32 to vector<32x64xf32>
    %53 = arith.addf %52, %51 : vector<32x64xf32>
    %54 = arith.mulf %15, %53 : vector<32x64xf32>
    %55 = arith.truncf %54 : vector<32x64xf32> to vector<32x64xbf16>
    %c0_27 = arith.constant 0 : index
    %c0_28 = arith.constant 0 : index
    %56 = vector.load %arg6[%c0_27, %c0_28] : memref<64x16xbf16, #tpu.memory_space<vmem>>, vector<64x16xbf16>
    %cst_29 = arith.constant dense<0.000000e+00> : vector<32x16xf32>
    %57 = tpu.matmul %55, %56, %cst_29 {dimension_numbers = #tpu.dot_dimension_numbers<[1], [0], [0], [1], [0, 0, 1, 1], [], []>} : vector<32x64xbf16>, vector<64x16xbf16>, vector<32x16xf32> -> vector<32x16xf32>
    %c0_30 = arith.constant 0 : index
    %c0_31 = arith.constant 0 : index
    %58 = vector.load %arg7[%c0_30, %c0_31] : memref<1x16xf32, #tpu.memory_space<vmem>>, vector<1x16xf32>
    %59 = vector.broadcast %58 : vector<1x16xf32> to vector<32x16xf32>
    %60 = arith.addf %57, %59 : vector<32x16xf32>
    %c0_32 = arith.constant 0 : index
    %c0_33 = arith.constant 0 : index
    %c0_34 = arith.constant 0 : index
    %61 = vector.load %arg8[%c0_32, %c0_33, %c0_34] : memref<1x32x16xf32, #tpu.memory_space<vmem>>, vector<1x32x16xf32>
    %62 = vector.shape_cast %61 : vector<1x32x16xf32> to vector<32x16xf32>
    %63 = vector.shape_cast %60 : vector<32x16xf32> to vector<1x32x16xf32>
    tpu.vector_store %arg8[%c0_32, %c0_33, %c0_34], %63 {strides = array<i32>} : memref<1x32x16xf32, #tpu.memory_space<vmem>>, vector<1x32x16xf32>,
    return
  }
  func.func @transform_0(%arg0: i32) -> (i32, i32, i32) {
    %c0_i32 = arith.constant 0 : i32
    %c0_i32_0 = arith.constant 0 : i32
    %c0_i32_1 = arith.constant 0 : i32
    return %arg0, %c0_i32, %c0_i32_0 : i32, i32, i32
  }
  func.func @transform_1(%arg0: i32) -> (i32, i32) {
    %c0_i32 = arith.constant 0 : i32
    %c0_i32_0 = arith.constant 0 : i32
    %c0_i32_1 = arith.constant 0 : i32
    return %c0_i32, %c0_i32_0 : i32, i32
  }
  func.func @transform_2(%arg0: i32) -> (i32, i32) {
    %c0_i32 = arith.constant 0 : i32
    %c0_i32_0 = arith.constant 0 : i32
    %c0_i32_1 = arith.constant 0 : i32
    return %c0_i32, %c0_i32_0 : i32, i32
  }
  func.func @transform_3(%arg0: i32) -> (i32, i32) {
    %c0_i32 = arith.constant 0 : i32
    %c0_i32_0 = arith.constant 0 : i32
    %c0_i32_1 = arith.constant 0 : i32
    return %c0_i32, %c0_i32_0 : i32, i32
  }
  func.func @transform_4(%arg0: i32) -> (i32, i32) {
    %c0_i32 = arith.constant 0 : i32
    %c0_i32_0 = arith.constant 0 : i32
    %c0_i32_1 = arith.constant 0 : i32
    return %c0_i32, %c0_i32_0 : i32, i32
  }
  func.func @transform_5(%arg0: i32) -> (i32, i32) {
    %c0_i32 = arith.constant 0 : i32
    %c0_i32_0 = arith.constant 0 : i32
    %c0_i32_1 = arith.constant 0 : i32
    return %c0_i32, %c0_i32_0 : i32, i32
  }
  func.func @transform_6(%arg0: i32) -> (i32, i32) {
    %c0_i32 = arith.constant 0 : i32
    %c0_i32_0 = arith.constant 0 : i32
    %c0_i32_1 = arith.constant 0 : i32
    return %c0_i32, %c0_i32_0 : i32, i32
  }
  func.func @transform_7(%arg0: i32) -> (i32, i32, i32) {
    %c0_i32 = arith.constant 0 : i32
    %c0_i32_0 = arith.constant 0 : i32
    %c0_i32_1 = arith.constant 0 : i32
    return %arg0, %c0_i32, %c0_i32_0 : i32, i32, i32
  }
}

module attributes {stable_mosaic.version = 11 : i64} {
  func.func @_head_kernel(%arg0: i32, %arg1: memref<1x4x8x16xf32, #tpu.memory_space<vmem>>, %arg2: memref<16x16xbf16, #tpu.memory_space<vmem>>, %arg3: memref<1x16xf32, #tpu.memory_space<vmem>>, %arg4: memref<4x16xf32, #tpu.memory_space<vmem>>, %arg5: memref<1x8x16xf32, #tpu.memory_space<vmem>>) attributes {dimension_semantics = [#tpu.dimension_semantics<parallel>], iteration_bounds = array<i64: 2>, scalar_prefetch = 0 : i64, scratch_operands = 0 : i64, tpu.core_type = #tpu.core_type<tc>, window_params = [{transform_indices = @transform_0, window_bounds = array<i64: 1, 4, 8, 16>}, {pipeline_mode = #tpu.pipeline_mode<synchronous>, transform_indices = @transform_1, window_bounds = array<i64: 16, 16>}, {pipeline_mode = #tpu.pipeline_mode<synchronous>, transform_indices = @transform_2, window_bounds = array<i64: 1, 16>}, {pipeline_mode = #tpu.pipeline_mode<synchronous>, transform_indices = @transform_3, window_bounds = array<i64: 4, 16>}, {transform_indices = @transform_4, window_bounds = array<i64: 1, 8, 16>}]} {
    %c0 = arith.constant 0 : index
    %c0_0 = arith.constant 0 : index
    %0 = vector.load %arg4[%c0, %c0_0] : memref<4x16xf32, #tpu.memory_space<vmem>>, vector<4x16xf32>
    %c0_1 = arith.constant 0 : index
    %c0_2 = arith.constant 0 : index
    %c0_3 = arith.constant 0 : index
    %c0_4 = arith.constant 0 : index
    %1 = vector.load %arg1[%c0_1, %c0_2, %c0_3, %c0_4] : memref<1x4x8x16xf32, #tpu.memory_space<vmem>>, vector<1x1x8x16xf32>
    %2 = vector.shape_cast %1 : vector<1x1x8x16xf32> to vector<8x16xf32>
    %3 = arith.truncf %2 : vector<8x16xf32> to vector<8x16xbf16>
    %c0_5 = arith.constant 0 : index
    %c0_6 = arith.constant 0 : index
    %4 = vector.load %arg2[%c0_5, %c0_6] : memref<16x16xbf16, #tpu.memory_space<vmem>>, vector<16x16xbf16>
    %cst = arith.constant dense<0.000000e+00> : vector<8x16xf32>
    %5 = tpu.matmul %3, %4, %cst {dimension_numbers = #tpu.dot_dimension_numbers<[1], [0], [0], [1], [0, 0, 1, 1], [], []>} : vector<8x16xbf16>, vector<16x16xbf16>, vector<8x16xf32> -> vector<8x16xf32>
    %c0_7 = arith.constant 0 : index
    %c0_8 = arith.constant 0 : index
    %6 = vector.load %arg3[%c0_7, %c0_8] : memref<1x16xf32, #tpu.memory_space<vmem>>, vector<1x16xf32>
    %7 = vector.broadcast %6 : vector<1x16xf32> to vector<8x16xf32>
    %8 = arith.addf %5, %7 : vector<8x16xf32>
    %9 = vector.extract_strided_slice %0 {offsets = [0, 0], sizes = [1, 16], strides = [1, 1]} : vector<4x16xf32> to vector<1x16xf32>
    %10 = vector.broadcast %9 : vector<1x16xf32> to vector<8x16xf32>
    %11 = arith.mulf %8, %10 : vector<8x16xf32>
    %c0_9 = arith.constant 0 : index
    %c1 = arith.constant 1 : index
    %c0_10 = arith.constant 0 : index
    %c0_11 = arith.constant 0 : index
    %12 = vector.load %arg1[%c0_9, %c1, %c0_10, %c0_11] : memref<1x4x8x16xf32, #tpu.memory_space<vmem>>, vector<1x1x8x16xf32>
    %13 = vector.shape_cast %12 : vector<1x1x8x16xf32> to vector<8x16xf32>
    %14 = arith.truncf %13 : vector<8x16xf32> to vector<8x16xbf16>
    %c0_12 = arith.constant 0 : index
    %c0_13 = arith.constant 0 : index
    %15 = vector.load %arg2[%c0_12, %c0_13] : memref<16x16xbf16, #tpu.memory_space<vmem>>, vector<16x16xbf16>
    %cst_14 = arith.constant dense<0.000000e+00> : vector<8x16xf32>
    %16 = tpu.matmul %14, %15, %cst_14 {dimension_numbers = #tpu.dot_dimension_numbers<[1], [0], [0], [1], [0, 0, 1, 1], [], []>} : vector<8x16xbf16>, vector<16x16xbf16>, vector<8x16xf32> -> vector<8x16xf32>
    %c0_15 = arith.constant 0 : index
    %c0_16 = arith.constant 0 : index
    %17 = vector.load %arg3[%c0_15, %c0_16] : memref<1x16xf32, #tpu.memory_space<vmem>>, vector<1x16xf32>
    %18 = vector.broadcast %17 : vector<1x16xf32> to vector<8x16xf32>
    %19 = arith.addf %16, %18 : vector<8x16xf32>
    %20 = vector.extract_strided_slice %0 {offsets = [1, 0], sizes = [1, 16], strides = [1, 1]} : vector<4x16xf32> to vector<1x16xf32>
    %21 = vector.broadcast %20 : vector<1x16xf32> to vector<8x16xf32>
    %22 = arith.mulf %19, %21 : vector<8x16xf32>
    %23 = arith.addf %11, %22 : vector<8x16xf32>
    %c0_17 = arith.constant 0 : index
    %c2 = arith.constant 2 : index
    %c0_18 = arith.constant 0 : index
    %c0_19 = arith.constant 0 : index
    %24 = vector.load %arg1[%c0_17, %c2, %c0_18, %c0_19] : memref<1x4x8x16xf32, #tpu.memory_space<vmem>>, vector<1x1x8x16xf32>
    %25 = vector.shape_cast %24 : vector<1x1x8x16xf32> to vector<8x16xf32>
    %26 = arith.truncf %25 : vector<8x16xf32> to vector<8x16xbf16>
    %c0_20 = arith.constant 0 : index
    %c0_21 = arith.constant 0 : index
    %27 = vector.load %arg2[%c0_20, %c0_21] : memref<16x16xbf16, #tpu.memory_space<vmem>>, vector<16x16xbf16>
    %cst_22 = arith.constant dense<0.000000e+00> : vector<8x16xf32>
    %28 = tpu.matmul %26, %27, %cst_22 {dimension_numbers = #tpu.dot_dimension_numbers<[1], [0], [0], [1], [0, 0, 1, 1], [], []>} : vector<8x16xbf16>, vector<16x16xbf16>, vector<8x16xf32> -> vector<8x16xf32>
    %c0_23 = arith.constant 0 : index
    %c0_24 = arith.constant 0 : index
    %29 = vector.load %arg3[%c0_23, %c0_24] : memref<1x16xf32, #tpu.memory_space<vmem>>, vector<1x16xf32>
    %30 = vector.broadcast %29 : vector<1x16xf32> to vector<8x16xf32>
    %31 = arith.addf %28, %30 : vector<8x16xf32>
    %32 = vector.extract_strided_slice %0 {offsets = [2, 0], sizes = [1, 16], strides = [1, 1]} : vector<4x16xf32> to vector<1x16xf32>
    %33 = vector.broadcast %32 : vector<1x16xf32> to vector<8x16xf32>
    %34 = arith.mulf %31, %33 : vector<8x16xf32>
    %35 = arith.addf %23, %34 : vector<8x16xf32>
    %c0_25 = arith.constant 0 : index
    %c3 = arith.constant 3 : index
    %c0_26 = arith.constant 0 : index
    %c0_27 = arith.constant 0 : index
    %36 = vector.load %arg1[%c0_25, %c3, %c0_26, %c0_27] : memref<1x4x8x16xf32, #tpu.memory_space<vmem>>, vector<1x1x8x16xf32>
    %37 = vector.shape_cast %36 : vector<1x1x8x16xf32> to vector<8x16xf32>
    %38 = arith.truncf %37 : vector<8x16xf32> to vector<8x16xbf16>
    %c0_28 = arith.constant 0 : index
    %c0_29 = arith.constant 0 : index
    %39 = vector.load %arg2[%c0_28, %c0_29] : memref<16x16xbf16, #tpu.memory_space<vmem>>, vector<16x16xbf16>
    %cst_30 = arith.constant dense<0.000000e+00> : vector<8x16xf32>
    %40 = tpu.matmul %38, %39, %cst_30 {dimension_numbers = #tpu.dot_dimension_numbers<[1], [0], [0], [1], [0, 0, 1, 1], [], []>} : vector<8x16xbf16>, vector<16x16xbf16>, vector<8x16xf32> -> vector<8x16xf32>
    %c0_31 = arith.constant 0 : index
    %c0_32 = arith.constant 0 : index
    %41 = vector.load %arg3[%c0_31, %c0_32] : memref<1x16xf32, #tpu.memory_space<vmem>>, vector<1x16xf32>
    %42 = vector.broadcast %41 : vector<1x16xf32> to vector<8x16xf32>
    %43 = arith.addf %40, %42 : vector<8x16xf32>
    %44 = vector.extract_strided_slice %0 {offsets = [3, 0], sizes = [1, 16], strides = [1, 1]} : vector<4x16xf32> to vector<1x16xf32>
    %45 = vector.broadcast %44 : vector<1x16xf32> to vector<8x16xf32>
    %46 = arith.mulf %43, %45 : vector<8x16xf32>
    %47 = arith.addf %35, %46 : vector<8x16xf32>
    %c0_33 = arith.constant 0 : index
    %c0_34 = arith.constant 0 : index
    %c0_35 = arith.constant 0 : index
    %48 = vector.load %arg5[%c0_33, %c0_34, %c0_35] : memref<1x8x16xf32, #tpu.memory_space<vmem>>, vector<1x8x16xf32>
    %49 = vector.shape_cast %48 : vector<1x8x16xf32> to vector<8x16xf32>
    %50 = vector.shape_cast %47 : vector<8x16xf32> to vector<1x8x16xf32>
    tpu.vector_store %arg5[%c0_33, %c0_34, %c0_35], %50 {strides = array<i32>} : memref<1x8x16xf32, #tpu.memory_space<vmem>>, vector<1x8x16xf32>,
    return
  }
  func.func @transform_0(%arg0: i32) -> (i32, i32, i32, i32) {
    %c0_i32 = arith.constant 0 : i32
    %c0_i32_0 = arith.constant 0 : i32
    %c0_i32_1 = arith.constant 0 : i32
    %c0_i32_2 = arith.constant 0 : i32
    return %arg0, %c0_i32, %c0_i32_0, %c0_i32_1 : i32, i32, i32, i32
  }
  func.func @transform_1(%arg0: i32) -> (i32, i32) {
    %c0_i32 = arith.constant 0 : i32
    %c0_i32_0 = arith.constant 0 : i32
    %c0_i32_1 = arith.constant 0 : i32
    return %c0_i32, %c0_i32_0 : i32, i32
  }
  func.func @transform_2(%arg0: i32) -> (i32, i32) {
    %c0_i32 = arith.constant 0 : i32
    %c0_i32_0 = arith.constant 0 : i32
    %c0_i32_1 = arith.constant 0 : i32
    return %c0_i32, %c0_i32_0 : i32, i32
  }
  func.func @transform_3(%arg0: i32) -> (i32, i32) {
    %c0_i32 = arith.constant 0 : i32
    %c0_i32_0 = arith.constant 0 : i32
    %c0_i32_1 = arith.constant 0 : i32
    return %c0_i32, %c0_i32_0 : i32, i32
  }
  func.func @transform_4(%arg0: i32) -> (i32, i32, i32) {
    %c0_i32 = arith.constant 0 : i32
    %c0_i32_0 = arith.constant 0 : i32
    %c0_i32_1 = arith.constant 0 : i32
    return %arg0, %c0_i32, %c0_i32_0 : i32, i32, i32
  }
}

</mosaic_0001>

<llo_original>
// kernel: model_forward.23
$region0: #{model_forward.23}
  #allocation0 [shape = 'u32[]', space=smem, size = 0x4, offset = 0x4, fixed_abs, tag = 'smem constant byte address 0x4 - core index']
  #allocation1 [shape = 'u32[144,128]{1,0:T(1,128)}', space=vmem, size = 0x12000, scoped, tag = 'internal scratch']
  %s0 = inlined_call_operand.vmem [shape: f32[32,8], index: 0, kind: input, shape index: {}]
  %s1 = inlined_call_operand.vmem [shape: bf16[8,32], index: 1, kind: input, shape index: {}]
  %s2 = inlined_call_operand.vmem [shape: f32[1,32], index: 2, kind: input, shape index: {}]
  %s3 = inlined_call_operand.vmem [shape: f32[32,32], index: 3, kind: output, shape index: {}]
  %s4 = sld [smem:[#allocation0]]
  $region22: #{model_forward.23} parent=0
    _
  %s6 = ssub.s32 1, %s4
  %s7 = scalar_select 0, %s6, %s4
  // Predicated region
  $region2: #{model_forward.23} parent=0 // pred_check
    _
  $region3: #{model_forward.23} parent=0 // pred_check_branch
    %9 = sbr.rel (0) target = $region5
  $region4: #{model_forward.23} parent=0 // pred_region
    _
  $region5: #{model_forward.23} parent=0 // pred_fallthru
    _
  // Predicated region
  $region6: #{model_forward.23} parent=0 // pred_check
    _
  $region7: #{model_forward.23} parent=0 // pred_check_branch
    %11 = sbr.rel (0) target = $region9
  $region8: #{model_forward.23} parent=0 // pred_region
    _
  $region9: #{model_forward.23} parent=0 // pred_fallthru
    _
  // Predicated region
  $region10: #{model_forward.23} parent=0 // pred_check
    _
  $region11: #{model_forward.23} parent=0 // pred_check_branch
    %13 = sbr.rel (0) target = $region13
  $region12: #{model_forward.23} parent=0 // pred_region
    _
  $region13: #{model_forward.23} parent=0 // pred_fallthru
    _
  %v15 = vld [vmem:[%s0] sm:$0xff]
  %v16 = vld [vmem:[%s0 + $0x8] sm:$0xff]
  %v17 = vld [vmem:[%s0 + $0x10] sm:$0xff]
  %v18 = vld [vmem:[%s0 + $0x18] sm:$0xff]
  %v19 = vpack.c.bf16 %v16, %v15
  %v20 = vpack.c.bf16 %v18, %v17
  %v21 = vld [vmem:[%s1] sm:$0xf]
  %v22 = vld [vmem:[%s2] sm:$0x1]
  %v24 = vlaneseq
  %v25 = vshrl.u32 %v24, 7
  %v26 = vsub.s32 0, %v25
  %v27 = vrot.slane %v22, %v26
  %vm29 = vcmask 64512
  %v31 = vsel %vm29, %v19, 0
  %v34 = vsel %vm29, %v20, 0
  %vm36 = vcmask 1043456
  %v38 = vsel %vm36, %v21, 0
  %40 = vmatprep.subr.bf16.mxu0 0
  %41 = vmatpush1.bf16.msra.mxu0 0
  %42 = vmatprep.subr.bf16.mxu0 0
  %43 = vmatpush1.bf16.msra.mxu0 0
  %44 = vmatprep.subr.bf16.mxu0 0
  %45 = vmatpush1.bf16.msra.mxu0 0
  %46 = vmatprep.subr.bf16.mxu0 0
  %47 = vmatpush1.bf16.msra.mxu0 0
  %48 = vmatprep.subr.bf16.mxu0 0
  %49 = vmatpush1.bf16.msra.mxu0 0
  %50 = vmatprep.subr.bf16.mxu0 0
  %51 = vmatpush1.bf16.msra.mxu0 0
  %52 = vmatprep.subr.bf16.mxu0 0
  %53 = vmatpush1.bf16.msra.mxu0 0
  %54 = vmatprep.subr.bf16.mxu0 0
  %55 = vmatpush1.bf16.msra.mxu0 %v38
  %56 = vmatprep.subr.bf16.mxu0 0
  %57 = vmatpush2.bf16.msra.mxu0 0
  %58 = vmatprep.subr.bf16.mxu0 0
  %59 = vmatpush2.bf16.msra.mxu0 0
  %60 = vmatprep.subr.bf16.mxu0 0
  %61 = vmatpush2.bf16.msra.mxu0 0
  %62 = vmatprep.subr.bf16.mxu0 0
  %63 = vmatpush2.bf16.msra.mxu0 0
  %64 = vmatprep.subr.bf16.mxu0 0
  %65 = vmatpush2.bf16.msra.mxu0 0
  %66 = vmatprep.subr.bf16.mxu0 0
  %67 = vmatpush2.bf16.msra.mxu0 0
  %68 = vmatprep.subr.bf16.mxu0 0
  %69 = vmatpush2.bf16.msra.mxu0 0
  %70 = vmatprep.subr.bf16.mxu0 0
  %71 = vmatpush2.bf16.msra.mxu0 0
  %72 = vmatprep.mubr.bf16.mxu0 0
  %73 = vmatmul.mubr.bf16.gmra.mxu0 %v31
  %v74 = vpop.f32.mrf.mxu0
  %v75 = vadd.f32 %v27, %v74
  %v76 = vpop.f32.mrf.mxu0
  %v77 = vpop.f32.mrf.mxu0
  %v78 = vadd.f32 %v27, %v77
  %v79 = vpop.f32.mrf.mxu0
  %80 = vmatprep.mubr.bf16.mxu0 0
  %81 = vmatmul.mubr.bf16.gmra.mxu0 %v34
  %v82 = vpop.f32.mrf.mxu0
  %v83 = vadd.f32 %v27, %v82
  %v84 = vpop.f32.mrf.mxu0
  %v85 = vpop.f32.mrf.mxu0
  %v86 = vadd.f32 %v27, %v85
  %v87 = vpop.f32.mrf.mxu0
  %88 = vdwg.mxu0
  %vm89 = vcmask 261120
  %90 = vst.msk [vmem:[%s3] sm:$0xff] %vm89, %v75
  %91 = vst.msk [vmem:[%s3 + $0x8] sm:$0xff] %vm89, %v78
  %92 = vst.msk [vmem:[%s3 + $0x10] sm:$0xff] %vm89, %v83
  %93 = vst.msk [vmem:[%s3 + $0x18] sm:$0xff] %vm89, %v86
  // Predicated region
  $region14: #{model_forward.23} parent=0 // pred_check
    _
  $region15: #{model_forward.23} parent=0 // pred_check_branch
    %95 = sbr.rel (0) target = $region17
  $region16: #{model_forward.23} parent=0 // pred_region
    _
  $region17: #{model_forward.23} parent=0 // pred_fallthru
    _
  // Predicated region
  $region18: #{model_forward.23} parent=0 // pred_check
    _
  $region19: #{model_forward.23} parent=0 // pred_check_branch
    %97 = sbr.rel (0) target = $region21
  $region20: #{model_forward.23} parent=0 // pred_region
    _
  $region21: #{model_forward.23} parent=0 // pred_fallthru
    _

// kernel: model_forward.24
$region0: #{model_forward.24}
  #allocation0 [shape = 'u32[]', space=smem, size = 0x4, offset = 0x4, fixed_abs, tag = 'smem constant byte address 0x4 - core index']
  #allocation1 [shape = 'u32[144,128]{1,0:T(1,128)}', space=vmem, size = 0x12000, scoped, tag = 'internal scratch']
  %s0 = inlined_call_operand.vmem [shape: f32[2,16,32], index: 0, kind: input, shape index: {}]
  %s1 = inlined_call_operand.vmem [shape: bf16[8,16], index: 1, kind: input, shape index: {}]
  %s2 = inlined_call_operand.vmem [shape: bf16[32,96], index: 2, kind: input, shape index: {}]
  %s3 = inlined_call_operand.vmem [shape: f32[1,96], index: 3, kind: input, shape index: {}]
  %s4 = inlined_call_operand.vmem [shape: f32[2,8,96], index: 4, kind: output, shape index: {}]
  %s5 = sld [smem:[#allocation0]]
  $region49: #{model_forward.24} parent=0
    _
  %s7 = ssub.s32 1, %s5
  %s8 = scalar_select 0, %s7, %s5
  loop: start=0, step=1, limit=4
  $region2: #{model_forward.24} parent=0 // loop_pre_header
    _
  $region3: #{model_forward.24} parent=0 // loop_header
    %s10 = sphi 0, %s14
    %p11 = scmp.ge.s32.totalorder %s10, 4
    %s20 = sphi 0, %s22
    %s23 = sphi 0, %s20
    %s24 = sphi 0, %s23
    %s40 = sphi 0, %s24
    %s44 = sphi 0, %s44
    %s46 = sphi 0, %s44
    %s47 = sphi 0, %s46
    %s61 = sphi 0, %s47
    %s65 = sphi 0, %s65
    %s67 = sphi 0, %s65
    %s68 = sphi 0, %s67
    %s82 = sphi 0, %s68
    %s86 = sphi 0, %s86
    %s88 = sphi 0, %s86
    %s89 = sphi 0, %s88
    %s103 = sphi 0, %s89
    %s109 = sphi 0, %s111
    %s112 = sphi 0, %s109
    %s113 = sphi 0, %s112
    %s129 = sphi 0, %s113
  $region4: #{model_forward.24} parent=0 // loop_header_branch
    %13 = sbr.rel (%p11) target = $region8
  $region5: #{model_forward.24} parent=0 // loop_body
    %s15 = ssub.s32 %s10, 1
    %s16 = ssub.s32 %s10, 2
    %s17 = sadd.s32 %s10, 1
    %s18 = ssub.s32 %s10, %s17
    %p19 = scmp.eq.s32.totalorder %s18, 0
    %s21 = sadd.s32 %s20, 1
    %s22 = scalar_select %p19, %s20, %s21
    %p25 = pneg %p19
    %p26 = scmp.eq.s32.totalorder %s10, 1
    %p27 = por %p25, %p26
    %p28 = scmp.ne.s32.totalorder %s20, %s23
    %p29 = scmp.eq.s32.totalorder %s10, 0
    %p30 = por %p28, %p29
    %p31 = scmp.ne.s32.totalorder %s20, %s23
    %p32 = scmp.eq.s32.totalorder %s15, 1
    %p33 = por %p31, %p32
    %p34 = scmp.ne.s32.totalorder %s23, %s24
    %p35 = scmp.eq.s32.totalorder %s15, 0
    %p36 = por %p34, %p35
    %p37 = scmp.ne.s32.totalorder %s23, %s24
    %p38 = scmp.eq.s32.totalorder %s16, 1
    %p39 = por %p37, %p38
    %p41 = scmp.ne.s32.totalorder %s24, %s40
    %p42 = scmp.eq.s32.totalorder %s16, 0
    %p43 = por %p41, %p42
    %s45 = sadd.s32 %s44, 1
    %p48 = scmp.eq.s32.totalorder %s10, 1
    %p49 = scmp.ne.s32.totalorder %s44, %s46
    %p50 = scmp.eq.s32.totalorder %s10, 0
    %p51 = por %p49, %p50
    %p52 = scmp.ne.s32.totalorder %s44, %s46
    %p53 = scmp.eq.s32.totalorder %s15, 1
    %p54 = por %p52, %p53
    %p55 = scmp.ne.s32.totalorder %s46, %s47
    %p56 = scmp.eq.s32.totalorder %s15, 0
    %p57 = por %p55, %p56
    %p58 = scmp.ne.s32.totalorder %s46, %s47
    %p59 = scmp.eq.s32.totalorder %s16, 1
    %p60 = por %p58, %p59
    %p62 = scmp.ne.s32.totalorder %s47, %s61
    %p63 = scmp.eq.s32.totalorder %s16, 0
    %p64 = por %p62, %p63
    %s66 = sadd.s32 %s65, 1
    %p69 = scmp.eq.s32.totalorder %s10, 1
    %p70 = scmp.ne.s32.totalorder %s65, %s67
    %p71 = scmp.eq.s32.totalorder %s10, 0
    %p72 = por %p70, %p71
    %p73 = scmp.ne.s32.totalorder %s65, %s67
    %p74 = scmp.eq.s32.totalorder %s15, 1
    %p75 = por %p73, %p74
    %p76 = scmp.ne.s32.totalorder %s67, %s68
    %p77 = scmp.eq.s32.totalorder %s15, 0
    %p78 = por %p76, %p77
    %p79 = scmp.ne.s32.totalorder %s67, %s68
    %p80 = scmp.eq.s32.totalorder %s16, 1
    %p81 = por %p79, %p80
    %p83 = scmp.ne.s32.totalorder %s68, %s82
    %p84 = scmp.eq.s32.totalorder %s16, 0
    %p85 = por %p83, %p84
    %s87 = sadd.s32 %s86, 1
    %p90 = scmp.eq.s32.totalorder %s10, 1
    %p91 = scmp.ne.s32.totalorder %s86, %s88
    %p92 = scmp.eq.s32.totalorder %s10, 0
    %p93 = por %p91, %p92
    %p94 = scmp.ne.s32.totalorder %s86, %s88
    %p95 = scmp.eq.s32.totalorder %s15, 1
    %p96 = por %p94, %p95
    %p97 = scmp.ne.s32.totalorder %s88, %s89
    %p98 = scmp.eq.s32.totalorder %s15, 0
    %p99 = por %p97, %p98
    %p100 = scmp.ne.s32.totalorder %s88, %s89
    %p101 = scmp.eq.s32.totalorder %s16, 1
    %p102 = por %p100, %p101
    %p104 = scmp.ne.s32.totalorder %s89, %s103
    %p105 = scmp.eq.s32.totalorder %s16, 0
    %p106 = por %p104, %p105
    %s107 = ssub.s32 %s10, %s17
    %p108 = scmp.eq.s32.totalorder %s107, 0
    %s110 = sadd.s32 %s109, 1
    %s111 = scalar_select %p108, %s109, %s110
    %p114 = pneg %p108
    %p115 = scmp.eq.s32.totalorder %s10, 1
    %p116 = por %p114, %p115
    %p117 = scmp.ne.s32.totalorder %s109, %s112
    %p118 = scmp.eq.s32.totalorder %s10, 0
    %p119 = por %p117, %p118
    %p120 = scmp.ne.s32.totalorder %s109, %s112
    %p121 = scmp.eq.s32.totalorder %s15, 1
    %p122 = por %p120, %p121
    %p123 = scmp.ne.s32.totalorder %s112, %s113
    %p124 = scmp.eq.s32.totalorder %s15, 0
    %p125 = por %p123, %p124
    %p126 = scmp.ne.s32.totalorder %s112, %s113
    %p127 = scmp.eq.s32.totalorder %s16, 1
    %p128 = por %p126, %p127
    %p130 = scmp.ne.s32.totalorder %s113, %s129
    %p131 = scmp.eq.s32.totalorder %s16, 0
    %p132 = por %p130, %p131
    %p133 = scmp.le.s32.totalorder 1, %s10
    %p134 = scmp.lt.s32.totalorder %s10, 3
    %p135 = pnand %p133, %p134
    %p136 = pneg %p135
    // Predicated region
    $region9: #{model_forward.24} parent=5 // pred_check
      _
    $region10: #{model_forward.24} parent=5 // pred_check_branch
      %138 = sbr.rel (%p135) target = $region12
    $region11: #{model_forward.24} parent=5 // pred_region
      %s139 = ssub.s32 %s10, 1
      // Predicated region
      $region13: #{model_forward.24} parent=11 // pred_check
        %p140 = pneg %p57
      $region14: #{model_forward.24} parent=11 // pred_check_branch
        %142 = sbr.rel (%p140) target = $region16
      $region15: #{model_forward.24} parent=11 // pred_region
        _
      $region16: #{model_forward.24} parent=11 // pred_fallthru
        _
      // Predicated region
      $region17: #{model_forward.24} parent=11 // pred_check
        %p143 = pneg %p78
      $region18: #{model_forward.24} parent=11 // pred_check_branch
        %145 = sbr.rel (%p143) target = $region20
      $region19: #{model_forward.24} parent=11 // pred_region
        _
      $region20: #{model_forward.24} parent=11 // pred_fallthru
        _
      // Predicated region
      $region21: #{model_forward.24} parent=11 // pred_check
        %p146 = pneg %p99
      $region22: #{model_forward.24} parent=11 // pred_check_branch
        %148 = sbr.rel (%p146) target = $region24
      $region23: #{model_forward.24} parent=11 // pred_region
        _
      $region24: #{model_forward.24} parent=11 // pred_fallthru
        _
    $region12: #{model_forward.24} parent=5 // pred_fallthru
      _
    %p149 = scmp.lt.s32.totalorder %s10, 2
    // Predicated region
    $region25: #{model_forward.24} parent=5 // pred_check
      %p150 = pneg %p149
    $region26: #{model_forward.24} parent=5 // pred_check_branch
      %152 = sbr.rel (%p150) target = $region28
    $region27: #{model_forward.24} parent=5 // pred_region
      // Predicated region
      $region29: #{model_forward.24} parent=27 // pred_check
        %p153 = pneg %p30
      $region30: #{model_forward.24} parent=27 // pred_check_branch
        %155 = sbr.rel (%p153) target = $region32
      $region31: #{model_forward.24} parent=27 // pred_region
        %p156 = scmp.lt.s32.totalorder %s10, 1
        %s157 = scalar_select %p156, %s10, 1
        %s158 = smul.addr %s157, 2
        %s159 = smul.addr %s158, 8
        %s160 = scalar_lea.vmem %s0, %s159
      $region32: #{model_forward.24} parent=27 // pred_fallthru
        _
    $region28: #{model_forward.24} parent=5 // pred_fallthru
      _
    %p161 = scmp.le.s32.totalorder 1, %s10
    %p162 = scmp.lt.s32.totalorder %s10, 3
    %p163 = pnand %p161, %p162
    %p164 = pneg %p163
    // Predicated region
    $region33: #{model_forward.24} parent=5 // pred_check
      _
    $region34: #{model_forward.24} parent=5 // pred_check_branch
      %166 = sbr.rel (%p163) target = $region36
    $region35: #{model_forward.24} parent=5 // pred_region
      %s167 = ssub.s32 %s10, 1
      %p168 = scmp.lt.s32.totalorder %s15, 1
      %s169 = scalar_select %p168, %s15, 1
      %s170 = smul.addr %s169, 2
      %s171 = smul.addr %s170, 8
      %s172 = scalar_lea.vmem %s0, %s171
      %p173 = pneg %p36
      %p174 = pneg %p33
      %p175 = pneg %p57
      %p176 = pneg %p54
      %p177 = pneg %p78
      %p178 = pneg %p75
      %p179 = pneg %p99
      %p180 = pneg %p96
      %p181 = pneg %p125
      %p182 = pneg %p122
      %p183 = scmp.lt.s32.totalorder %s15, 1
      %s184 = scalar_select %p183, %s15, 1
      %s185 = smul.addr %s184, 8
      %s186 = scalar_lea.vmem %s4, %s185
      %p187 = scmp.lt.s32.totalorder %s15, 1
      %s188 = scalar_select %p187, %s15, 1
      %s189 = smul.addr %s188, 2
      %s190 = smul.addr %s189, 8
      %s191 = scalar_lea.vmem %s0, %s190
      %p192 = scmp.lt.s32.totalorder %s15, 1
      %s193 = scalar_select %p192, %s15, 1
      %s194 = smul.addr %s193, 8
      %s195 = scalar_lea.vmem %s4, %s194
      %v197 = vld [vmem:[%s191] sm:$0xff]
      %v198 = vld [vmem:[%s191 + $0x8] sm:$0xff]
      %v199 = vpack.c.bf16 %v198, %v197
      %v200 = vld [vmem:[%s1] sm:$0xf]
      %vm201 = vcmask 130048
      %v203 = vsel %vm201, %v200, 0
      %205 = vmatprep.subr.bf16.mxu0 0
      %206 = vmatpush1.bf16.msra.mxu0 0
      %207 = vmatprep.subr.bf16.mxu0 0
      %208 = vmatpush1.bf16.msra.mxu0 0
      %209 = vmatprep.subr.bf16.mxu0 0
      %210 = vmatpush1.bf16.msra.mxu0 0
      %211 = vmatprep.subr.bf16.mxu0 0
      %212 = vmatpush1.bf16.msra.mxu0 0
      %213 = vmatprep.subr.bf16.mxu0 0
      %214 = vmatpush1.bf16.msra.mxu0 0
      %215 = vmatprep.subr.bf16.mxu0 0
      %216 = vmatpush1.bf16.msra.mxu0 0
      %217 = vmatprep.subr.bf16.mxu0 0
      %218 = vmatpush1.bf16.msra.mxu0 0
      %219 = vmatprep.subr.bf16.mxu0 0
      %220 = vmatpush1.bf16.msra.mxu0 %v199
      %221 = vmatprep.subr.bf16.mxu0 0
      %222 = vmatpush2.bf16.msra.mxu0 0
      %223 = vmatprep.subr.bf16.mxu0 0
      %224 = vmatpush2.bf16.msra.mxu0 0
      %225 = vmatprep.subr.bf16.mxu0 0
      %226 = vmatpush2.bf16.msra.mxu0 0
      %227 = vmatprep.subr.bf16.mxu0 0
      %228 = vmatpush2.bf16.msra.mxu0 0
      %229 = vmatprep.subr.bf16.mxu0 0
      %230 = vmatpush2.bf16.msra.mxu0 0
      %231 = vmatprep.subr.bf16.mxu0 0
      %232 = vmatpush2.bf16.msra.mxu0 0
      %233 = vmatprep.subr.bf16.mxu0 0
      %234 = vmatpush2.bf16.msra.mxu0 0
      %235 = vmatprep.subr.bf16.mxu0 0
      %236 = vmatpush2.bf16.msra.mxu0 0
      %237 = vmatprep.mubr.bf16.mxu0 0
      %238 = vmatmul.mubr.bf16.gmra.mxu0 %v203
      %v239 = vpop.f32.mrf.mxu0
      %v240 = vadd.f32 0.0, %v239
      %v241 = vpop.f32.mrf.mxu0
      %v242 = vpop.f32.mrf.mxu0
      %v243 = vpop.f32.mrf.mxu0
      %244 = vdwg.mxu0
      %v245 = vpack.c.bf16 %v240, %v240
      %v246 = vld [vmem:[%s2] sm:$0xf]
      %v247 = vld [vmem:[%s2 + $0x4] sm:$0xf]
      %v248 = vld [vmem:[%s2 + $0x8] sm:$0xf]
      %v249 = vld [vmem:[%s2 + $0xc] sm:$0xf]
      %v250 = vld [vmem:[%s3] sm:$0x1]
      %v252 = vlaneseq
      %v253 = vshrl.u32 %v252, 7
      %v254 = vsub.s32 0, %v253
      %v255 = vrot.slane %v250, %v254
      %v261 = vunpack.c.l.b16 %v246
      %v262 = vunpack.c.l.b16 %v247
      %v263 = vunpack.c.l.b16 %v248
      %v264 = vunpack.c.l.b16 %v249
      %v265 = vpack.c.b16 %v262, %v261
      %v266 = vpack.c.b16 %v264, %v263
      %vm269 = vcmask 261120
      %v271 = vsel %vm269, %v245, 0
      %273 = vmatprep.subr.bf16.mxu0 0
      %274 = vmatpush1.bf16.msra.mxu0 0
      %275 = vmatprep.subr.bf16.mxu0 0
      %276 = vmatpush1.bf16.msra.mxu0 0
      %277 = vmatprep.subr.bf16.mxu0 0
      %278 = vmatpush1.bf16.msra.mxu0 0
      %279 = vmatprep.subr.bf16.mxu0 0
      %280 = vmatpush1.bf16.msra.mxu0 0
      %281 = vmatprep.subr.bf16.mxu0 0
      %282 = vmatpush1.bf16.msra.mxu0 0
      %283 = vmatprep.subr.bf16.mxu0 0
      %284 = vmatpush1.bf16.msra.mxu0 0
      %285 = vmatprep.subr.bf16.mxu0 0
      %286 = vmatpush1.bf16.msra.mxu0 %v266
      %287 = vmatprep.subr.bf16.mxu0 0
      %288 = vmatpush1.bf16.msra.mxu0 %v265
      %289 = vmatprep.subr.bf16.mxu0 0
      %290 = vmatpush2.bf16.msra.mxu0 0
      %291 = vmatprep.subr.bf16.mxu0 0
      %292 = vmatpush2.bf16.msra.mxu0 0
      %293 = vmatprep.subr.bf16.mxu0 0
      %294 = vmatpush2.bf16.msra.mxu0 0
      %295 = vmatprep.subr.bf16.mxu0 0
      %296 = vmatpush2.bf16.msra.mxu0 0
      %297 = vmatprep.subr.bf16.mxu0 0
      %298 = vmatpush2.bf16.msra.mxu0 0
      %299 = vmatprep.subr.bf16.mxu0 0
      %300 = vmatpush2.bf16.msra.mxu0 0
      %301 = vmatprep.subr.bf16.mxu0 0
      %302 = vmatpush2.bf16.msra.mxu0 0
      %303 = vmatprep.subr.bf16.mxu0 0
      %304 = vmatpush2.bf16.msra.mxu0 0
      %305 = vmatprep.mubr.bf16.mxu0 0
      %306 = vmatmul.mubr.bf16.gmra.mxu0 %v271
      %v307 = vpop.f32.mrf.mxu0
      %v308 = vadd.f32 %v255, %v307
      %v309 = vpop.f32.mrf.mxu0
      %v310 = vpop.f32.mrf.mxu0
      %v311 = vpop.f32.mrf.mxu0
      %312 = vdwg.mxu0
      %vm313 = vcmask 785408
      %314 = vst.msk [vmem:[%s195] sm:$0xff] %vm313, %v308
      %p315 = scmp.lt.s32.totalorder %s15, 1
      %s316 = scalar_select %p315, %s15, 1
      %s317 = smul.addr %s316, 8
      %s318 = scalar_lea.vmem %s4, %s317
      // Predicated region
      $region37: #{model_forward.24} parent=35 // pred_check
        %p319 = pneg %p122
      $region38: #{model_forward.24} parent=35 // pred_check_branch
        %321 = sbr.rel (%p319) target = $region40
      $region39: #{model_forward.24} parent=35 // pred_region
        _
      $region40: #{model_forward.24} parent=35 // pred_fallthru
        _
    $region36: #{model_forward.24} parent=5 // pred_fallthru
      _
    %p322 = scmp.le.s32.totalorder 2, %s10
    // Predicated region
    $region41: #{model_forward.24} parent=5 // pred_check
      %p323 = pneg %p322
    $region42: #{model_forward.24} parent=5 // pred_check_branch
      %325 = sbr.rel (%p323) target = $region44
    $region43: #{model_forward.24} parent=5 // pred_region
      %s326 = ssub.s32 %s10, 2
      // Predicated region
      $region45: #{model_forward.24} parent=43 // pred_check
        %p327 = pneg %p128
      $region46: #{model_forward.24} parent=43 // pred_check_branch
        %329 = sbr.rel (%p327) target = $region48
      $region47: #{model_forward.24} parent=43 // pred_region
        %p330 = scmp.lt.s32.totalorder %s16, 1
        %s331 = scalar_select %p330, %s16, 1
        %s332 = smul.addr %s331, 8
        %s333 = scalar_lea.vmem %s4, %s332
      $region48: #{model_forward.24} parent=43 // pred_fallthru
        _
    $region44: #{model_forward.24} parent=5 // pred_fallthru
      _
  $region6: #{model_forward.24} parent=0 // loop_footer
    %s14 = sadd.s32 1, %s10
  $region7: #{model_forward.24} parent=0 // loop_footer_branch
    %9 = sbr.rel target = $region3
  $region8: #{model_forward.24} parent=0 // loop_exit
    _

// kernel: model_forward.28
$region0: #{model_forward.28}
  #allocation0 [shape = 'u32[]', space=smem, size = 0x4, offset = 0x4, fixed_abs, tag = 'smem constant byte address 0x4 - core index']
  #allocation1 [shape = 'u32[144,128]{1,0:T(1,128)}', space=vmem, size = 0x12000, scoped, tag = 'internal scratch']
  %s0 = inlined_call_operand.vmem [shape: f32[8,64], index: 0, kind: input, shape index: {}]
  %s1 = inlined_call_operand.vmem [shape: bf16[64,32], index: 1, kind: input, shape index: {}]
  %s2 = inlined_call_operand.vmem [shape: f32[1,32], index: 2, kind: input, shape index: {}]
  %s3 = inlined_call_operand.vmem [shape: f32[8,32], index: 3, kind: output, shape index: {}]
  %s4 = sld [smem:[#allocation0]]
  $region22: #{model_forward.28} parent=0
    _
  %s6 = ssub.s32 1, %s4
  %s7 = scalar_select 0, %s6, %s4
  // Predicated region
  $region2: #{model_forward.28} parent=0 // pred_check
    _
  $region3: #{model_forward.28} parent=0 // pred_check_branch
    %9 = sbr.rel (0) target = $region5
  $region4: #{model_forward.28} parent=0 // pred_region
    _
  $region5: #{model_forward.28} parent=0 // pred_fallthru
    _
  // Predicated region
  $region6: #{model_forward.28} parent=0 // pred_check
    _
  $region7: #{model_forward.28} parent=0 // pred_check_branch
    %11 = sbr.rel (0) target = $region9
  $region8: #{model_forward.28} parent=0 // pred_region
    _
  $region9: #{model_forward.28} parent=0 // pred_fallthru
    _
  // Predicated region
  $region10: #{model_forward.28} parent=0 // pred_check
    _
  $region11: #{model_forward.28} parent=0 // pred_check_branch
    %13 = sbr.rel (0) target = $region13
  $region12: #{model_forward.28} parent=0 // pred_region
    _
  $region13: #{model_forward.28} parent=0 // pred_fallthru
    _
  %v15 = vld [vmem:[%s0] sm:$0xff]
  %v16 = vpack.c.bf16 %v15, %v15
  %v17 = vld [vmem:[%s1] sm:$0xf]
  %v18 = vld [vmem:[%s1 + $0x4] sm:$0xf]
  %v19 = vld [vmem:[%s1 + $0x8] sm:$0xf]
  %v20 = vld [vmem:[%s1 + $0xc] sm:$0xf]
  %v21 = vld [vmem:[%s1 + $0x10] sm:$0xf]
  %v22 = vld [vmem:[%s1 + $0x14] sm:$0xf]
  %v23 = vld [vmem:[%s1 + $0x18] sm:$0xf]
  %v24 = vld [vmem:[%s1 + $0x1c] sm:$0xf]
  %v25 = vld [vmem:[%s2] sm:$0x1]
  %v27 = vlaneseq
  %v28 = vshrl.u32 %v27, 7
  %v29 = vsub.s32 0, %v28
  %v30 = vrot.slane %v25, %v29
  %v40 = vunpack.c.l.b16 %v17
  %v41 = vunpack.c.l.b16 %v18
  %v42 = vunpack.c.l.b16 %v19
  %v43 = vunpack.c.l.b16 %v20
  %v44 = vunpack.c.l.b16 %v21
  %v45 = vunpack.c.l.b16 %v22
  %v46 = vunpack.c.l.b16 %v23
  %v47 = vunpack.c.l.b16 %v24
  %v48 = vpack.c.b16 %v41, %v40
  %v49 = vpack.c.b16 %v43, %v42
  %v50 = vpack.c.b16 %v45, %v44
  %v51 = vpack.c.b16 %v47, %v46
  %vm56 = vcmask 523264
  %v58 = vsel %vm56, %v16, 0
  %60 = vmatprep.subr.bf16.mxu0 0
  %61 = vmatpush1.bf16.msra.mxu0 0
  %62 = vmatprep.subr.bf16.mxu0 0
  %63 = vmatpush1.bf16.msra.mxu0 0
  %64 = vmatprep.subr.bf16.mxu0 0
  %65 = vmatpush1.bf16.msra.mxu0 0
  %66 = vmatprep.subr.bf16.mxu0 0
  %67 = vmatpush1.bf16.msra.mxu0 0
  %68 = vmatprep.subr.bf16.mxu0 0
  %69 = vmatpush1.bf16.msra.mxu0 %v51
  %70 = vmatprep.subr.bf16.mxu0 0
  %71 = vmatpush1.bf16.msra.mxu0 %v50
  %72 = vmatprep.subr.bf16.mxu0 0
  %73 = vmatpush1.bf16.msra.mxu0 %v49
  %74 = vmatprep.subr.bf16.mxu0 0
  %75 = vmatpush1.bf16.msra.mxu0 %v48
  %76 = vmatprep.subr.bf16.mxu0 0
  %77 = vmatpush2.bf16.msra.mxu0 0
  %78 = vmatprep.subr.bf16.mxu0 0
  %79 = vmatpush2.bf16.msra.mxu0 0
  %80 = vmatprep.subr.bf16.mxu0 0
  %81 = vmatpush2.bf16.msra.mxu0 0
  %82 = vmatprep.subr.bf16.mxu0 0
  %83 = vmatpush2.bf16.msra.mxu0 0
  %84 = vmatprep.subr.bf16.mxu0 0
  %85 = vmatpush2.bf16.msra.mxu0 0
  %86 = vmatprep.subr.bf16.mxu0 0
  %87 = vmatpush2.bf16.msra.mxu0 0
  %88 = vmatprep.subr.bf16.mxu0 0
  %89 = vmatpush2.bf16.msra.mxu0 0
  %90 = vmatprep.subr.bf16.mxu0 0
  %91 = vmatpush2.bf16.msra.mxu0 0
  %92 = vmatprep.mubr.bf16.mxu0 0
  %93 = vmatmul.mubr.bf16.gmra.mxu0 %v58
  %v94 = vpop.f32.mrf.mxu0
  %v95 = vadd.f32 %v30, %v94
  %v96 = vpop.f32.mrf.mxu0
  %v97 = vpop.f32.mrf.mxu0
  %v98 = vpop.f32.mrf.mxu0
  %99 = vdwg.mxu0
  %vm100 = vcmask 261120
  %101 = vst.msk [vmem:[%s3] sm:$0xff] %vm100, %v95
  // Predicated region
  $region14: #{model_forward.28} parent=0 // pred_check
    _
  $region15: #{model_forward.28} parent=0 // pred_check_branch
    %103 = sbr.rel (0) target = $region17
  $region16: #{model_forward.28} parent=0 // pred_region
    _
  $region17: #{model_forward.28} parent=0 // pred_fallthru
    _
  // Predicated region
  $region18: #{model_forward.28} parent=0 // pred_check
    _
  $region19: #{model_forward.28} parent=0 // pred_check_branch
    %105 = sbr.rel (0) target = $region21
  $region20: #{model_forward.28} parent=0 // pred_region
    _
  $region21: #{model_forward.28} parent=0 // pred_fallthru
    _

// kernel: model_forward.26
$region0: #{model_forward.26}
  #allocation0 [shape = 'u32[]', space=smem, size = 0x4, offset = 0x4, fixed_abs, tag = 'smem constant byte address 0x4 - core index']
  #allocation1 [shape = 'u32[144,128]{1,0:T(1,128)}', space=vmem, size = 0x12000, scoped, tag = 'internal scratch']
  %s0 = inlined_call_operand.vmem [shape: f32[2,8,32], index: 0, kind: input, shape index: {}]
  %s1 = inlined_call_operand.vmem [shape: bf16[32,96], index: 1, kind: input, shape index: {}]
  %s2 = inlined_call_operand.vmem [shape: f32[1,96], index: 2, kind: input, shape index: {}]
  %s3 = inlined_call_operand.vmem [shape: f32[2,8,96], index: 3, kind: output, shape index: {}]
  %s4 = sld [smem:[#allocation0]]
  $region45: #{model_forward.26} parent=0
    _
  %s6 = ssub.s32 1, %s4
  %s7 = scalar_select 0, %s6, %s4
  loop: start=0, step=1, limit=4
  $region2: #{model_forward.26} parent=0 // loop_pre_header
    _
  $region3: #{model_forward.26} parent=0 // loop_header
    %s9 = sphi 0, %s13
    %p10 = scmp.ge.s32.totalorder %s9, 4
    %s19 = sphi 0, %s21
    %s22 = sphi 0, %s19
    %s23 = sphi 0, %s22
    %s39 = sphi 0, %s23
    %s43 = sphi 0, %s43
    %s45 = sphi 0, %s43
    %s46 = sphi 0, %s45
    %s60 = sphi 0, %s46
    %s64 = sphi 0, %s64
    %s66 = sphi 0, %s64
    %s67 = sphi 0, %s66
    %s81 = sphi 0, %s67
    %s87 = sphi 0, %s89
    %s90 = sphi 0, %s87
    %s91 = sphi 0, %s90
    %s107 = sphi 0, %s91
  $region4: #{model_forward.26} parent=0 // loop_header_branch
    %12 = sbr.rel (%p10) target = $region8
  $region5: #{model_forward.26} parent=0 // loop_body
    %s14 = ssub.s32 %s9, 1
    %s15 = ssub.s32 %s9, 2
    %s16 = sadd.s32 %s9, 1
    %s17 = ssub.s32 %s9, %s16
    %p18 = scmp.eq.s32.totalorder %s17, 0
    %s20 = sadd.s32 %s19, 1
    %s21 = scalar_select %p18, %s19, %s20
    %p24 = pneg %p18
    %p25 = scmp.eq.s32.totalorder %s9, 1
    %p26 = por %p24, %p25
    %p27 = scmp.ne.s32.totalorder %s19, %s22
    %p28 = scmp.eq.s32.totalorder %s9, 0
    %p29 = por %p27, %p28
    %p30 = scmp.ne.s32.totalorder %s19, %s22
    %p31 = scmp.eq.s32.totalorder %s14, 1
    %p32 = por %p30, %p31
    %p33 = scmp.ne.s32.totalorder %s22, %s23
    %p34 = scmp.eq.s32.totalorder %s14, 0
    %p35 = por %p33, %p34
    %p36 = scmp.ne.s32.totalorder %s22, %s23
    %p37 = scmp.eq.s32.totalorder %s15, 1
    %p38 = por %p36, %p37
    %p40 = scmp.ne.s32.totalorder %s23, %s39
    %p41 = scmp.eq.s32.totalorder %s15, 0
    %p42 = por %p40, %p41
    %s44 = sadd.s32 %s43, 1
    %p47 = scmp.eq.s32.totalorder %s9, 1
    %p48 = scmp.ne.s32.totalorder %s43, %s45
    %p49 = scmp.eq.s32.totalorder %s9, 0
    %p50 = por %p48, %p49
    %p51 = scmp.ne.s32.totalorder %s43, %s45
    %p52 = scmp.eq.s32.totalorder %s14, 1
    %p53 = por %p51, %p52
    %p54 = scmp.ne.s32.totalorder %s45, %s46
    %p55 = scmp.eq.s32.totalorder %s14, 0
    %p56 = por %p54, %p55
    %p57 = scmp.ne.s32.totalorder %s45, %s46
    %p58 = scmp.eq.s32.totalorder %s15, 1
    %p59 = por %p57, %p58
    %p61 = scmp.ne.s32.totalorder %s46, %s60
    %p62 = scmp.eq.s32.totalorder %s15, 0
    %p63 = por %p61, %p62
    %s65 = sadd.s32 %s64, 1
    %p68 = scmp.eq.s32.totalorder %s9, 1
    %p69 = scmp.ne.s32.totalorder %s64, %s66
    %p70 = scmp.eq.s32.totalorder %s9, 0
    %p71 = por %p69, %p70
    %p72 = scmp.ne.s32.totalorder %s64, %s66
    %p73 = scmp.eq.s32.totalorder %s14, 1
    %p74 = por %p72, %p73
    %p75 = scmp.ne.s32.totalorder %s66, %s67
    %p76 = scmp.eq.s32.totalorder %s14, 0
    %p77 = por %p75, %p76
    %p78 = scmp.ne.s32.totalorder %s66, %s67
    %p79 = scmp.eq.s32.totalorder %s15, 1
    %p80 = por %p78, %p79
    %p82 = scmp.ne.s32.totalorder %s67, %s81
    %p83 = scmp.eq.s32.totalorder %s15, 0
    %p84 = por %p82, %p83
    %s85 = ssub.s32 %s9, %s16
    %p86 = scmp.eq.s32.totalorder %s85, 0
    %s88 = sadd.s32 %s87, 1
    %s89 = scalar_select %p86, %s87, %s88
    %p92 = pneg %p86
    %p93 = scmp.eq.s32.totalorder %s9, 1
    %p94 = por %p92, %p93
    %p95 = scmp.ne.s32.totalorder %s87, %s90
    %p96 = scmp.eq.s32.totalorder %s9, 0
    %p97 = por %p95, %p96
    %p98 = scmp.ne.s32.totalorder %s87, %s90
    %p99 = scmp.eq.s32.totalorder %s14, 1
    %p100 = por %p98, %p99
    %p101 = scmp.ne.s32.totalorder %s90, %s91
    %p102 = scmp.eq.s32.totalorder %s14, 0
    %p103 = por %p101, %p102
    %p104 = scmp.ne.s32.totalorder %s90, %s91
    %p105 = scmp.eq.s32.totalorder %s15, 1
    %p106 = por %p104, %p105
    %p108 = scmp.ne.s32.totalorder %s91, %s107
    %p109 = scmp.eq.s32.totalorder %s15, 0
    %p110 = por %p108, %p109
    %p111 = scmp.le.s32.totalorder 1, %s9
    %p112 = scmp.lt.s32.totalorder %s9, 3
    %p113 = pnand %p111, %p112
    %p114 = pneg %p113
    // Predicated region
    $region9: #{model_forward.26} parent=5 // pred_check
      _
    $region10: #{model_forward.26} parent=5 // pred_check_branch
      %116 = sbr.rel (%p113) target = $region12
    $region11: #{model_forward.26} parent=5 // pred_region
      %s117 = ssub.s32 %s9, 1
      // Predicated region
      $region13: #{model_forward.26} parent=11 // pred_check
        %p118 = pneg %p56
      $region14: #{model_forward.26} parent=11 // pred_check_branch
        %120 = sbr.rel (%p118) target = $region16
      $region15: #{model_forward.26} parent=11 // pred_region
        _
      $region16: #{model_forward.26} parent=11 // pred_fallthru
        _
      // Predicated region
      $region17: #{model_forward.26} parent=11 // pred_check
        %p121 = pneg %p77
      $region18: #{model_forward.26} parent=11 // pred_check_branch
        %123 = sbr.rel (%p121) target = $region20
      $region19: #{model_forward.26} parent=11 // pred_region
        _
      $region20: #{model_forward.26} parent=11 // pred_fallthru
        _
    $region12: #{model_forward.26} parent=5 // pred_fallthru
      _
    %p124 = scmp.lt.s32.totalorder %s9, 2
    // Predicated region
    $region21: #{model_forward.26} parent=5 // pred_check
      %p125 = pneg %p124
    $region22: #{model_forward.26} parent=5 // pred_check_branch
      %127 = sbr.rel (%p125) target = $region24
    $region23: #{model_forward.26} parent=5 // pred_region
      // Predicated region
      $region25: #{model_forward.26} parent=23 // pred_check
        %p128 = pneg %p29
      $region26: #{model_forward.26} parent=23 // pred_check_branch
        %130 = sbr.rel (%p128) target = $region28
      $region27: #{model_forward.26} parent=23 // pred_region
        %p131 = scmp.lt.s32.totalorder %s9, 1
        %s132 = scalar_select %p131, %s9, 1
        %s133 = smul.addr %s132, 8
        %s134 = scalar_lea.vmem %s0, %s133
      $region28: #{model_forward.26} parent=23 // pred_fallthru
        _
    $region24: #{model_forward.26} parent=5 // pred_fallthru
      _
    %p135 = scmp.le.s32.totalorder 1, %s9
    %p136 = scmp.lt.s32.totalorder %s9, 3
    %p137 = pnand %p135, %p136
    %p138 = pneg %p137
    // Predicated region
    $region29: #{model_forward.26} parent=5 // pred_check
      _
    $region30: #{model_forward.26} parent=5 // pred_check_branch
      %140 = sbr.rel (%p137) target = $region32
    $region31: #{model_forward.26} parent=5 // pred_region
      %s141 = ssub.s32 %s9, 1
      %p142 = scmp.lt.s32.totalorder %s14, 1
      %s143 = scalar_select %p142, %s14, 1
      %s144 = smul.addr %s143, 8
      %s145 = scalar_lea.vmem %s0, %s144
      %p146 = pneg %p35
      %p147 = pneg %p32
      %p148 = pneg %p56
      %p149 = pneg %p53
      %p150 = pneg %p77
      %p151 = pneg %p74
      %p152 = pneg %p103
      %p153 = pneg %p100
      %p154 = scmp.lt.s32.totalorder %s14, 1
      %s155 = scalar_select %p154, %s14, 1
      %s156 = smul.addr %s155, 8
      %s157 = scalar_lea.vmem %s3, %s156
      %p158 = scmp.lt.s32.totalorder %s14, 1
      %s159 = scalar_select %p158, %s14, 1
      %s160 = smul.addr %s159, 8
      %s161 = scalar_lea.vmem %s0, %s160
      %p162 = scmp.lt.s32.totalorder %s14, 1
      %s163 = scalar_select %p162, %s14, 1
      %s164 = smul.addr %s163, 8
      %s165 = scalar_lea.vmem %s3, %s164
      %v167 = vld [vmem:[%s161] sm:$0xff]
      %v168 = vpack.c.bf16 %v167, %v167
      %v169 = vld [vmem:[%s1] sm:$0xf]
      %v170 = vld [vmem:[%s1 + $0x4] sm:$0xf]
      %v171 = vld [vmem:[%s1 + $0x8] sm:$0xf]
      %v172 = vld [vmem:[%s1 + $0xc] sm:$0xf]
      %v173 = vld [vmem:[%s2] sm:$0x1]
      %v175 = vlaneseq
      %v176 = vshrl.u32 %v175, 7
      %v177 = vsub.s32 0, %v176
      %v178 = vrot.slane %v173, %v177
      %v184 = vunpack.c.l.b16 %v169
      %v185 = vunpack.c.l.b16 %v170
      %v186 = vunpack.c.l.b16 %v171
      %v187 = vunpack.c.l.b16 %v172
      %v188 = vpack.c.b16 %v185, %v184
      %v189 = vpack.c.b16 %v187, %v186
      %vm192 = vcmask 261120
      %v194 = vsel %vm192, %v168, 0
      %196 = vmatprep.subr.bf16.mxu0 0
      %197 = vmatpush1.bf16.msra.mxu0 0
      %198 = vmatprep.subr.bf16.mxu0 0
      %199 = vmatpush1.bf16.msra.mxu0 0
      %200 = vmatprep.subr.bf16.mxu0 0
      %201 = vmatpush1.bf16.msra.mxu0 0
      %202 = vmatprep.subr.bf16.mxu0 0
      %203 = vmatpush1.bf16.msra.mxu0 0
      %204 = vmatprep.subr.bf16.mxu0 0
      %205 = vmatpush1.bf16.msra.mxu0 0
      %206 = vmatprep.subr.bf16.mxu0 0
      %207 = vmatpush1.bf16.msra.mxu0 0
      %208 = vmatprep.subr.bf16.mxu0 0
      %209 = vmatpush1.bf16.msra.mxu0 %v189
      %210 = vmatprep.subr.bf16.mxu0 0
      %211 = vmatpush1.bf16.msra.mxu0 %v188
      %212 = vmatprep.subr.bf16.mxu0 0
      %213 = vmatpush2.bf16.msra.mxu0 0
      %214 = vmatprep.subr.bf16.mxu0 0
      %215 = vmatpush2.bf16.msra.mxu0 0
      %216 = vmatprep.subr.bf16.mxu0 0
      %217 = vmatpush2.bf16.msra.mxu0 0
      %218 = vmatprep.subr.bf16.mxu0 0
      %219 = vmatpush2.bf16.msra.mxu0 0
      %220 = vmatprep.subr.bf16.mxu0 0
      %221 = vmatpush2.bf16.msra.mxu0 0
      %222 = vmatprep.subr.bf16.mxu0 0
      %223 = vmatpush2.bf16.msra.mxu0 0
      %224 = vmatprep.subr.bf16.mxu0 0
      %225 = vmatpush2.bf16.msra.mxu0 0
      %226 = vmatprep.subr.bf16.mxu0 0
      %227 = vmatpush2.bf16.msra.mxu0 0
      %228 = vmatprep.mubr.bf16.mxu0 0
      %229 = vmatmul.mubr.bf16.gmra.mxu0 %v194
      %v230 = vpop.f32.mrf.mxu0
      %v231 = vadd.f32 %v178, %v230
      %v232 = vpop.f32.mrf.mxu0
      %v233 = vpop.f32.mrf.mxu0
      %v234 = vpop.f32.mrf.mxu0
      %235 = vdwg.mxu0
      %vm236 = vcmask 785408
      %237 = vst.msk [vmem:[%s165] sm:$0xff] %vm236, %v231
      %p238 = scmp.lt.s32.totalorder %s14, 1
      %s239 = scalar_select %p238, %s14, 1
      %s240 = smul.addr %s239, 8
      %s241 = scalar_lea.vmem %s3, %s240
      // Predicated region
      $region33: #{model_forward.26} parent=31 // pred_check
        %p242 = pneg %p100
      $region34: #{model_forward.26} parent=31 // pred_check_branch
        %244 = sbr.rel (%p242) target = $region36
      $region35: #{model_forward.26} parent=31 // pred_region
        _
      $region36: #{model_forward.26} parent=31 // pred_fallthru
        _
    $region32: #{model_forward.26} parent=5 // pred_fallthru
      _
    %p245 = scmp.le.s32.totalorder 2, %s9
    // Predicated region
    $region37: #{model_forward.26} parent=5 // pred_check
      %p246 = pneg %p245
    $region38: #{model_forward.26} parent=5 // pred_check_branch
      %248 = sbr.rel (%p246) target = $region40
    $region39: #{model_forward.26} parent=5 // pred_region
      %s249 = ssub.s32 %s9, 2
      // Predicated region
      $region41: #{model_forward.26} parent=39 // pred_check
        %p250 = pneg %p106
      $region42: #{model_forward.26} parent=39 // pred_check_branch
        %252 = sbr.rel (%p250) target = $region44
      $region43: #{model_forward.26} parent=39 // pred_region
        %p253 = scmp.lt.s32.totalorder %s15, 1
        %s254 = scalar_select %p253, %s15, 1
        %s255 = smul.addr %s254, 8
        %s256 = scalar_lea.vmem %s3, %s255
      $region44: #{model_forward.26} parent=39 // pred_fallthru
        _
    $region40: #{model_forward.26} parent=5 // pred_fallthru
      _
  $region6: #{model_forward.26} parent=0 // loop_footer
    %s13 = sadd.s32 1, %s9
  $region7: #{model_forward.26} parent=0 // loop_footer_branch
    %8 = sbr.rel target = $region3
  $region8: #{model_forward.26} parent=0 // loop_exit
    _

// kernel: model_forward.25
$region0: #{model_forward.25}
  #allocation0 [shape = 'u32[]', space=smem, size = 0x4, offset = 0x4, fixed_abs, tag = 'smem constant byte address 0x4 - core index']
  #allocation1 [shape = 'u32[144,128]{1,0:T(1,128)}', space=vmem, size = 0x12000, scoped, tag = 'internal scratch']
  %s0 = inlined_call_operand.vmem [shape: f32[2,8,32], index: 0, kind: input, shape index: {}]
  %s1 = inlined_call_operand.vmem [shape: bf16[32,32], index: 1, kind: input, shape index: {}]
  %s2 = inlined_call_operand.vmem [shape: f32[1,32], index: 2, kind: input, shape index: {}]
  %s3 = inlined_call_operand.vmem [shape: f32[8,1], index: 3, kind: input, shape index: {}]
  %s4 = inlined_call_operand.vmem [shape: f32[8,1], index: 4, kind: input, shape index: {}]
  %s5 = inlined_call_operand.vmem [shape: bf16[32,64], index: 5, kind: input, shape index: {}]
  %s6 = inlined_call_operand.vmem [shape: f32[1,64], index: 6, kind: input, shape index: {}]
  %s7 = inlined_call_operand.vmem [shape: bf16[64,32], index: 7, kind: input, shape index: {}]
  %s8 = inlined_call_operand.vmem [shape: f32[1,32], index: 8, kind: input, shape index: {}]
  %s9 = inlined_call_operand.vmem [shape: f32[8,1], index: 9, kind: input, shape index: {}]
  %s10 = inlined_call_operand.vmem [shape: f32[8,1], index: 10, kind: input, shape index: {}]
  %s11 = inlined_call_operand.vmem [shape: f32[2,8,32], index: 11, kind: output, shape index: {}]
  %s12 = sld [smem:[#allocation0]]
  $region77: #{model_forward.25} parent=0
    _
  %s14 = ssub.s32 1, %s12
  %s15 = scalar_select 0, %s14, %s12
  loop: start=0, step=1, limit=4
  $region2: #{model_forward.25} parent=0 // loop_pre_header
    _
  $region3: #{model_forward.25} parent=0 // loop_header
    %s17 = sphi 0, %s21
    %p18 = scmp.ge.s32.totalorder %s17, 4
    %s27 = sphi 0, %s29
    %s30 = sphi 0, %s27
    %s31 = sphi 0, %s30
    %s47 = sphi 0, %s31
    %s51 = sphi 0, %s51
    %s53 = sphi 0, %s51
    %s54 = sphi 0, %s53
    %s68 = sphi 0, %s54
    %s72 = sphi 0, %s72
    %s74 = sphi 0, %s72
    %s75 = sphi 0, %s74
    %s89 = sphi 0, %s75
    %s93 = sphi 0, %s93
    %s95 = sphi 0, %s93
    %s96 = sphi 0, %s95
    %s110 = sphi 0, %s96
    %s114 = sphi 0, %s114
    %s116 = sphi 0, %s114
    %s117 = sphi 0, %s116
    %s131 = sphi 0, %s117
    %s135 = sphi 0, %s135
    %s137 = sphi 0, %s135
    %s138 = sphi 0, %s137
    %s152 = sphi 0, %s138
    %s156 = sphi 0, %s156
    %s158 = sphi 0, %s156
    %s159 = sphi 0, %s158
    %s173 = sphi 0, %s159
    %s177 = sphi 0, %s177
    %s179 = sphi 0, %s177
    %s180 = sphi 0, %s179
    %s194 = sphi 0, %s180
    %s198 = sphi 0, %s198
    %s200 = sphi 0, %s198
    %s201 = sphi 0, %s200
    %s215 = sphi 0, %s201
    %s219 = sphi 0, %s219
    %s221 = sphi 0, %s219
    %s222 = sphi 0, %s221
    %s236 = sphi 0, %s222
    %s240 = sphi 0, %s240
    %s242 = sphi 0, %s240
    %s243 = sphi 0, %s242
    %s257 = sphi 0, %s243
    %s263 = sphi 0, %s265
    %s266 = sphi 0, %s263
    %s267 = sphi 0, %s266
    %s283 = sphi 0, %s267
  $region4: #{model_forward.25} parent=0 // loop_header_branch
    %20 = sbr.rel (%p18) target = $region8
  $region5: #{model_forward.25} parent=0 // loop_body
    %s22 = ssub.s32 %s17, 1
    %s23 = ssub.s32 %s17, 2
    %s24 = sadd.s32 %s17, 1
    %s25 = ssub.s32 %s17, %s24
    %p26 = scmp.eq.s32.totalorder %s25, 0
    %s28 = sadd.s32 %s27, 1
    %s29 = scalar_select %p26, %s27, %s28
    %p32 = pneg %p26
    %p33 = scmp.eq.s32.totalorder %s17, 1
    %p34 = por %p32, %p33
    %p35 = scmp.ne.s32.totalorder %s27, %s30
    %p36 = scmp.eq.s32.totalorder %s17, 0
    %p37 = por %p35, %p36
    %p38 = scmp.ne.s32.totalorder %s27, %s30
    %p39 = scmp.eq.s32.totalorder %s22, 1
    %p40 = por %p38, %p39
    %p41 = scmp.ne.s32.totalorder %s30, %s31
    %p42 = scmp.eq.s32.totalorder %s22, 0
    %p43 = por %p41, %p42
    %p44 = scmp.ne.s32.totalorder %s30, %s31
    %p45 = scmp.eq.s32.totalorder %s23, 1
    %p46 = por %p44, %p45
    %p48 = scmp.ne.s32.totalorder %s31, %s47
    %p49 = scmp.eq.s32.totalorder %s23, 0
    %p50 = por %p48, %p49
    %s52 = sadd.s32 %s51, 1
    %p55 = scmp.eq.s32.totalorder %s17, 1
    %p56 = scmp.ne.s32.totalorder %s51, %s53
    %p57 = scmp.eq.s32.totalorder %s17, 0
    %p58 = por %p56, %p57
    %p59 = scmp.ne.s32.totalorder %s51, %s53
    %p60 = scmp.eq.s32.totalorder %s22, 1
    %p61 = por %p59, %p60
    %p62 = scmp.ne.s32.totalorder %s53, %s54
    %p63 = scmp.eq.s32.totalorder %s22, 0
    %p64 = por %p62, %p63
    %p65 = scmp.ne.s32.totalorder %s53, %s54
    %p66 = scmp.eq.s32.totalorder %s23, 1
    %p67 = por %p65, %p66
    %p69 = scmp.ne.s32.totalorder %s54, %s68
    %p70 = scmp.eq.s32.totalorder %s23, 0
    %p71 = por %p69, %p70
    %s73 = sadd.s32 %s72, 1
    %p76 = scmp.eq.s32.totalorder %s17, 1
    %p77 = scmp.ne.s32.totalorder %s72, %s74
    %p78 = scmp.eq.s32.totalorder %s17, 0
    %p79 = por %p77, %p78
    %p80 = scmp.ne.s32.totalorder %s72, %s74
    %p81 = scmp.eq.s32.totalorder %s22, 1
    %p82 = por %p80, %p81
    %p83 = scmp.ne.s32.totalorder %s74, %s75
    %p84 = scmp.eq.s32.totalorder %s22, 0
    %p85 = por %p83, %p84
    %p86 = scmp.ne.s32.totalorder %s74, %s75
    %p87 = scmp.eq.s32.totalorder %s23, 1
    %p88 = por %p86, %p87
    %p90 = scmp.ne.s32.totalorder %s75, %s89
    %p91 = scmp.eq.s32.totalorder %s23, 0
    %p92 = por %p90, %p91
    %s94 = sadd.s32 %s93, 1
    %p97 = scmp.eq.s32.totalorder %s17, 1
    %p98 = scmp.ne.s32.totalorder %s93, %s95
    %p99 = scmp.eq.s32.totalorder %s17, 0
    %p100 = por %p98, %p99
    %p101 = scmp.ne.s32.totalorder %s93, %s95
    %p102 = scmp.eq.s32.totalorder %s22, 1
    %p103 = por %p101, %p102
    %p104 = scmp.ne.s32.totalorder %s95, %s96
    %p105 = scmp.eq.s32.totalorder %s22, 0
    %p106 = por %p104, %p105
    %p107 = scmp.ne.s32.totalorder %s95, %s96
    %p108 = scmp.eq.s32.totalorder %s23, 1
    %p109 = por %p107, %p108
    %p111 = scmp.ne.s32.totalorder %s96, %s110
    %p112 = scmp.eq.s32.totalorder %s23, 0
    %p113 = por %p111, %p112
    %s115 = sadd.s32 %s114, 1
    %p118 = scmp.eq.s32.totalorder %s17, 1
    %p119 = scmp.ne.s32.totalorder %s114, %s116
    %p120 = scmp.eq.s32.totalorder %s17, 0
    %p121 = por %p119, %p120
    %p122 = scmp.ne.s32.totalorder %s114, %s116
    %p123 = scmp.eq.s32.totalorder %s22, 1
    %p124 = por %p122, %p123
    %p125 = scmp.ne.s32.totalorder %s116, %s117
    %p126 = scmp.eq.s32.totalorder %s22, 0
    %p127 = por %p125, %p126
    %p128 = scmp.ne.s32.totalorder %s116, %s117
    %p129 = scmp.eq.s32.totalorder %s23, 1
    %p130 = por %p128, %p129
    %p132 = scmp.ne.s32.totalorder %s117, %s131
    %p133 = scmp.eq.s32.totalorder %s23, 0
    %p134 = por %p132, %p133
    %s136 = sadd.s32 %s135, 1
    %p139 = scmp.eq.s32.totalorder %s17, 1
    %p140 = scmp.ne.s32.totalorder %s135, %s137
    %p141 = scmp.eq.s32.totalorder %s17, 0
    %p142 = por %p140, %p141
    %p143 = scmp.ne.s32.totalorder %s135, %s137
    %p144 = scmp.eq.s32.totalorder %s22, 1
    %p145 = por %p143, %p144
    %p146 = scmp.ne.s32.totalorder %s137, %s138
    %p147 = scmp.eq.s32.totalorder %s22, 0
    %p148 = por %p146, %p147
    %p149 = scmp.ne.s32.totalorder %s137, %s138
    %p150 = scmp.eq.s32.totalorder %s23, 1
    %p151 = por %p149, %p150
    %p153 = scmp.ne.s32.totalorder %s138, %s152
    %p154 = scmp.eq.s32.totalorder %s23, 0
    %p155 = por %p153, %p154
    %s157 = sadd.s32 %s156, 1
    %p160 = scmp.eq.s32.totalorder %s17, 1
    %p161 = scmp.ne.s32.totalorder %s156, %s158
    %p162 = scmp.eq.s32.totalorder %s17, 0
    %p163 = por %p161, %p162
    %p164 = scmp.ne.s32.totalorder %s156, %s158
    %p165 = scmp.eq.s32.totalorder %s22, 1
    %p166 = por %p164, %p165
    %p167 = scmp.ne.s32.totalorder %s158, %s159
    %p168 = scmp.eq.s32.totalorder %s22, 0
    %p169 = por %p167, %p168
    %p170 = scmp.ne.s32.totalorder %s158, %s159
    %p171 = scmp.eq.s32.totalorder %s23, 1
    %p172 = por %p170, %p171
    %p174 = scmp.ne.s32.totalorder %s159, %s173
    %p175 = scmp.eq.s32.totalorder %s23, 0
    %p176 = por %p174, %p175
    %s178 = sadd.s32 %s177, 1
    %p181 = scmp.eq.s32.totalorder %s17, 1
    %p182 = scmp.ne.s32.totalorder %s177, %s179
    %p183 = scmp.eq.s32.totalorder %s17, 0
    %p184 = por %p182, %p183
    %p185 = scmp.ne.s32.totalorder %s177, %s179
    %p186 = scmp.eq.s32.totalorder %s22, 1
    %p187 = por %p185, %p186
    %p188 = scmp.ne.s32.totalorder %s179, %s180
    %p189 = scmp.eq.s32.totalorder %s22, 0
    %p190 = por %p188, %p189
    %p191 = scmp.ne.s32.totalorder %s179, %s180
    %p192 = scmp.eq.s32.totalorder %s23, 1
    %p193 = por %p191, %p192
    %p195 = scmp.ne.s32.totalorder %s180, %s194
    %p196 = scmp.eq.s32.totalorder %s23, 0
    %p197 = por %p195, %p196
    %s199 = sadd.s32 %s198, 1
    %p202 = scmp.eq.s32.totalorder %s17, 1
    %p203 = scmp.ne.s32.totalorder %s198, %s200
    %p204 = scmp.eq.s32.totalorder %s17, 0
    %p205 = por %p203, %p204
    %p206 = scmp.ne.s32.totalorder %s198, %s200
    %p207 = scmp.eq.s32.totalorder %s22, 1
    %p208 = por %p206, %p207
    %p209 = scmp.ne.s32.totalorder %s200, %s201
    %p210 = scmp.eq.s32.totalorder %s22, 0
    %p211 = por %p209, %p210
    %p212 = scmp.ne.s32.totalorder %s200, %s201
    %p213 = scmp.eq.s32.totalorder %s23, 1
    %p214 = por %p212, %p213
    %p216 = scmp.ne.s32.totalorder %s201, %s215
    %p217 = scmp.eq.s32.totalorder %s23, 0
    %p218 = por %p216, %p217
    %s220 = sadd.s32 %s219, 1
    %p223 = scmp.eq.s32.totalorder %s17, 1
    %p224 = scmp.ne.s32.totalorder %s219, %s221
    %p225 = scmp.eq.s32.totalorder %s17, 0
    %p226 = por %p224, %p225
    %p227 = scmp.ne.s32.totalorder %s219, %s221
    %p228 = scmp.eq.s32.totalorder %s22, 1
    %p229 = por %p227, %p228
    %p230 = scmp.ne.s32.totalorder %s221, %s222
    %p231 = scmp.eq.s32.totalorder %s22, 0
    %p232 = por %p230, %p231
    %p233 = scmp.ne.s32.totalorder %s221, %s222
    %p234 = scmp.eq.s32.totalorder %s23, 1
    %p235 = por %p233, %p234
    %p237 = scmp.ne.s32.totalorder %s222, %s236
    %p238 = scmp.eq.s32.totalorder %s23, 0
    %p239 = por %p237, %p238
    %s241 = sadd.s32 %s240, 1
    %p244 = scmp.eq.s32.totalorder %s17, 1
    %p245 = scmp.ne.s32.totalorder %s240, %s242
    %p246 = scmp.eq.s32.totalorder %s17, 0
    %p247 = por %p245, %p246
    %p248 = scmp.ne.s32.totalorder %s240, %s242
    %p249 = scmp.eq.s32.totalorder %s22, 1
    %p250 = por %p248, %p249
    %p251 = scmp.ne.s32.totalorder %s242, %s243
    %p252 = scmp.eq.s32.totalorder %s22, 0
    %p253 = por %p251, %p252
    %p254 = scmp.ne.s32.totalorder %s242, %s243
    %p255 = scmp.eq.s32.totalorder %s23, 1
    %p256 = por %p254, %p255
    %p258 = scmp.ne.s32.totalorder %s243, %s257
    %p259 = scmp.eq.s32.totalorder %s23, 0
    %p260 = por %p258, %p259
    %s261 = ssub.s32 %s17, %s24
    %p262 = scmp.eq.s32.totalorder %s261, 0
    %s264 = sadd.s32 %s263, 1
    %s265 = scalar_select %p262, %s263, %s264
    %p268 = pneg %p262
    %p269 = scmp.eq.s32.totalorder %s17, 1
    %p270 = por %p268, %p269
    %p271 = scmp.ne.s32.totalorder %s263, %s266
    %p272 = scmp.eq.s32.totalorder %s17, 0
    %p273 = por %p271, %p272
    %p274 = scmp.ne.s32.totalorder %s263, %s266
    %p275 = scmp.eq.s32.totalorder %s22, 1
    %p276 = por %p274, %p275
    %p277 = scmp.ne.s32.totalorder %s266, %s267
    %p278 = scmp.eq.s32.totalorder %s22, 0
    %p279 = por %p277, %p278
    %p280 = scmp.ne.s32.totalorder %s266, %s267
    %p281 = scmp.eq.s32.totalorder %s23, 1
    %p282 = por %p280, %p281
    %p284 = scmp.ne.s32.totalorder %s267, %s283
    %p285 = scmp.eq.s32.totalorder %s23, 0
    %p286 = por %p284, %p285
    %p287 = scmp.le.s32.totalorder 1, %s17
    %p288 = scmp.lt.s32.totalorder %s17, 3
    %p289 = pnand %p287, %p288
    %p290 = pneg %p289
    // Predicated region
    $region9: #{model_forward.25} parent=5 // pred_check
      _
    $region10: #{model_forward.25} parent=5 // pred_check_branch
      %292 = sbr.rel (%p289) target = $region12
    $region11: #{model_forward.25} parent=5 // pred_region
      %s293 = ssub.s32 %s17, 1
      // Predicated region
      $region13: #{model_forward.25} parent=11 // pred_check
        %p294 = pneg %p64
      $region14: #{model_forward.25} parent=11 // pred_check_branch
        %296 = sbr.rel (%p294) target = $region16
      $region15: #{model_forward.25} parent=11 // pred_region
        _
      $region16: #{model_forward.25} parent=11 // pred_fallthru
        _
      // Predicated region
      $region17: #{model_forward.25} parent=11 // pred_check
        %p297 = pneg %p85
      $region18: #{model_forward.25} parent=11 // pred_check_branch
        %299 = sbr.rel (%p297) target = $region20
      $region19: #{model_forward.25} parent=11 // pred_region
        _
      $region20: #{model_forward.25} parent=11 // pred_fallthru
        _
      // Predicated region
      $region21: #{model_forward.25} parent=11 // pred_check
        %p300 = pneg %p106
      $region22: #{model_forward.25} parent=11 // pred_check_branch
        %302 = sbr.rel (%p300) target = $region24
      $region23: #{model_forward.25} parent=11 // pred_region
        _
      $region24: #{model_forward.25} parent=11 // pred_fallthru
        _
      // Predicated region
      $region25: #{model_forward.25} parent=11 // pred_check
        %p303 = pneg %p127
      $region26: #{model_forward.25} parent=11 // pred_check_branch
        %305 = sbr.rel (%p303) target = $region28
      $region27: #{model_forward.25} parent=11 // pred_region
        _
      $region28: #{model_forward.25} parent=11 // pred_fallthru
        _
      // Predicated region
      $region29: #{model_forward.25} parent=11 // pred_check
        %p306 = pneg %p148
      $region30: #{model_forward.25} parent=11 // pred_check_branch
        %308 = sbr.rel (%p306) target = $region32
      $region31: #{model_forward.25} parent=11 // pred_region
        _
      $region32: #{model_forward.25} parent=11 // pred_fallthru
        _
      // Predicated region
      $region33: #{model_forward.25} parent=11 // pred_check
        %p309 = pneg %p169
      $region34: #{model_forward.25} parent=11 // pred_check_branch
        %311 = sbr.rel (%p309) target = $region36
      $region35: #{model_forward.25} parent=11 // pred_region
        _
      $region36: #{model_forward.25} parent=11 // pred_fallthru
        _
      // Predicated region
      $region37: #{model_forward.25} parent=11 // pred_check
        %p312 = pneg %p190
      $region38: #{model_forward.25} parent=11 // pred_check_branch
        %314 = sbr.rel (%p312) target = $region40
      $region39: #{model_forward.25} parent=11 // pred_region
        _
      $region40: #{model_forward.25} parent=11 // pred_fallthru
        _
      // Predicated region
      $region41: #{model_forward.25} parent=11 // pred_check
        %p315 = pneg %p211
      $region42: #{model_forward.25} parent=11 // pred_check_branch
        %317 = sbr.rel (%p315) target = $region44
      $region43: #{model_forward.25} parent=11 // pred_region
        _
      $region44: #{model_forward.25} parent=11 // pred_fallthru
        _
      // Predicated region
      $region45: #{model_forward.25} parent=11 // pred_check
        %p318 = pneg %p232
      $region46: #{model_forward.25} parent=11 // pred_check_branch
        %320 = sbr.rel (%p318) target = $region48
      $region47: #{model_forward.25} parent=11 // pred_region
        _
      $region48: #{model_forward.25} parent=11 // pred_fallthru
        _
      // Predicated region
      $region49: #{model_forward.25} parent=11 // pred_check
        %p321 = pneg %p253
      $region50: #{model_forward.25} parent=11 // pred_check_branch
        %323 = sbr.rel (%p321) target = $region52
      $region51: #{model_forward.25} parent=11 // pred_region
        _
      $region52: #{model_forward.25} parent=11 // pred_fallthru
        _
    $region12: #{model_forward.25} parent=5 // pred_fallthru
      _
    %p324 = scmp.lt.s32.totalorder %s17, 2
    // Predicated region
    $region53: #{model_forward.25} parent=5 // pred_check
      %p325 = pneg %p324
    $region54: #{model_forward.25} parent=5 // pred_check_branch
      %327 = sbr.rel (%p325) target = $region56
    $region55: #{model_forward.25} parent=5 // pred_region
      // Predicated region
      $region57: #{model_forward.25} parent=55 // pred_check
        %p328 = pneg %p37
      $region58: #{model_forward.25} parent=55 // pred_check_branch
        %330 = sbr.rel (%p328) target = $region60
      $region59: #{model_forward.25} parent=55 // pred_region
        %p331 = scmp.lt.s32.totalorder %s17, 1
        %s332 = scalar_select %p331, %s17, 1
        %s333 = smul.addr %s332, 8
        %s334 = scalar_lea.vmem %s0, %s333
      $region60: #{model_forward.25} parent=55 // pred_fallthru
        _
    $region56: #{model_forward.25} parent=5 // pred_fallthru
      _
    %p335 = scmp.le.s32.totalorder 1, %s17
    %p336 = scmp.lt.s32.totalorder %s17, 3
    %p337 = pnand %p335, %p336
    %p338 = pneg %p337
    // Predicated region
    $region61: #{model_forward.25} parent=5 // pred_check
      _
    $region62: #{model_forward.25} parent=5 // pred_check_branch
      %340 = sbr.rel (%p337) target = $region64
    $region63: #{model_forward.25} parent=5 // pred_region
      %s341 = ssub.s32 %s17, 1
      %p342 = scmp.lt.s32.totalorder %s22, 1
      %s343 = scalar_select %p342, %s22, 1
      %s344 = smul.addr %s343, 8
      %s345 = scalar_lea.vmem %s0, %s344
      %p346 = pneg %p43
      %p347 = pneg %p40
      %p348 = pneg %p64
      %p349 = pneg %p61
      %p350 = pneg %p85
      %p351 = pneg %p82
      %p352 = pneg %p106
      %p353 = pneg %p103
      %p354 = pneg %p127
      %p355 = pneg %p124
      %p356 = pneg %p148
      %p357 = pneg %p145
      %p358 = pneg %p169
      %p359 = pneg %p166
      %p360 = pneg %p190
      %p361 = pneg %p187
      %p362 = pneg %p211
      %p363 = pneg %p208
      %p364 = pneg %p232
      %p365 = pneg %p229
      %p366 = pneg %p253
      %p367 = pneg %p250
      %p368 = pneg %p279
      %p369 = pneg %p276
      %p370 = scmp.lt.s32.totalorder %s22, 1
      %s371 = scalar_select %p370, %s22, 1
      %s372 = smul.addr %s371, 8
      %s373 = scalar_lea.vmem %s11, %s372
      %p374 = scmp.lt.s32.totalorder %s22, 1
      %s375 = scalar_select %p374, %s22, 1
      %s376 = smul.addr %s375, 8
      %s377 = scalar_lea.vmem %s0, %s376
      %p378 = scmp.lt.s32.totalorder %s22, 1
      %s379 = scalar_select %p378, %s22, 1
      %s380 = smul.addr %s379, 8
      %s381 = scalar_lea.vmem %s11, %s380
      %v383 = vld [vmem:[%s377] sm:$0xff]
      %v384 = vpack.c.bf16 %v383, %v383
      %v385 = vld [vmem:[%s1] sm:$0xf]
      %v386 = vld [vmem:[%s1 + $0x4] sm:$0xf]
      %v387 = vld [vmem:[%s1 + $0x8] sm:$0xf]
      %v388 = vld [vmem:[%s1 + $0xc] sm:$0xf]
      %v389 = vld [vmem:[%s2] sm:$0x1]
      %v391 = vlaneseq
      %v392 = vshrl.u32 %v391, 7
      %v393 = vsub.s32 0, %v392
      %v394 = vrot.slane %v389, %v393
      %v400 = vunpack.c.l.b16 %v385
      %v401 = vunpack.c.l.b16 %v386
      %v402 = vunpack.c.l.b16 %v387
      %v403 = vunpack.c.l.b16 %v388
      %v404 = vpack.c.b16 %v401, %v400
      %v405 = vpack.c.b16 %v403, %v402
      %vm408 = vcmask 261120
      %v410 = vsel %vm408, %v384, 0
      %412 = vmatprep.subr.bf16.mxu0 0
      %413 = vmatpush1.bf16.msra.mxu0 0
      %414 = vmatprep.subr.bf16.mxu0 0
      %415 = vmatpush1.bf16.msra.mxu0 0
      %416 = vmatprep.subr.bf16.mxu0 0
      %417 = vmatpush1.bf16.msra.mxu0 0
      %418 = vmatprep.subr.bf16.mxu0 0
      %419 = vmatpush1.bf16.msra.mxu0 0
      %420 = vmatprep.subr.bf16.mxu0 0
      %421 = vmatpush1.bf16.msra.mxu0 0
      %422 = vmatprep.subr.bf16.mxu0 0
      %423 = vmatpush1.bf16.msra.mxu0 0
      %424 = vmatprep.subr.bf16.mxu0 0
      %425 = vmatpush1.bf16.msra.mxu0 %v405
      %426 = vmatprep.subr.bf16.mxu0 0
      %427 = vmatpush1.bf16.msra.mxu0 %v404
      %428 = vmatprep.subr.bf16.mxu0 0
      %429 = vmatpush2.bf16.msra.mxu0 0
      %430 = vmatprep.subr.bf16.mxu0 0
      %431 = vmatpush2.bf16.msra.mxu0 0
      %432 = vmatprep.subr.bf16.mxu0 0
      %433 = vmatpush2.bf16.msra.mxu0 0
      %434 = vmatprep.subr.bf16.mxu0 0
      %435 = vmatpush2.bf16.msra.mxu0 0
      %436 = vmatprep.subr.bf16.mxu0 0
      %437 = vmatpush2.bf16.msra.mxu0 0
      %438 = vmatprep.subr.bf16.mxu0 0
      %439 = vmatpush2.bf16.msra.mxu0 0
      %440 = vmatprep.subr.bf16.mxu0 0
      %441 = vmatpush2.bf16.msra.mxu0 0
      %442 = vmatprep.subr.bf16.mxu0 0
      %443 = vmatpush2.bf16.msra.mxu0 0
      %444 = vmatprep.mubr.bf16.mxu0 0
      %445 = vmatmul.mubr.bf16.gmra.mxu0 %v410
      %v446 = vpop.f32.mrf.mxu0
      %v447 = vadd.f32 %v394, %v446
      %v448 = vpop.f32.mrf.mxu0
      %v449 = vpop.f32.mrf.mxu0
      %v450 = vpop.f32.mrf.mxu0
      %451 = vdwg.mxu0
      %v452 = vld [vmem:[%s3] sm:$0xff]
      %454 = vset.pattern.permute.xlu0 0
      %455 = vperm.xlu0 %454, %v452
      %v456 = vpop.permute.xlu0 %455
      %v458 = vmul.f32 %v447, %v456
      %v459 = vld [vmem:[%s4] sm:$0xff]
      %461 = vset.pattern.permute.xlu0 0
      %462 = vperm.xlu0 %461, %v459
      %v463 = vpop.permute.xlu0 %462
      %v465 = vadd.f32 %v458, %v463
      %v466 = vpack.c.bf16 %v465, %v465
      %v467 = vld [vmem:[%s5] sm:$0xf]
      %v468 = vld [vmem:[%s5 + $0x4] sm:$0xf]
      %v469 = vld [vmem:[%s5 + $0x8] sm:$0xf]
      %v470 = vld [vmem:[%s5 + $0xc] sm:$0xf]
      %v471 = vld [vmem:[%s6] sm:$0x1]
      %v473 = vlaneseq
      %v474 = vshrl.u32 %v473, 7
      %v475 = vsub.s32 0, %v474
      %v476 = vrot.slane %v471, %v475
      %v482 = vunpack.c.l.b16 %v467
      %v483 = vunpack.c.l.b16 %v468
      %v484 = vunpack.c.l.b16 %v469
      %v485 = vunpack.c.l.b16 %v470
      %v486 = vpack.c.b16 %v483, %v482
      %v487 = vpack.c.b16 %v485, %v484
      %v491 = vsel %vm408, %v466, 0
      %493 = vmatprep.subr.bf16.mxu0 0
      %494 = vmatpush1.bf16.msra.mxu0 0
      %495 = vmatprep.subr.bf16.mxu0 0
      %496 = vmatpush1.bf16.msra.mxu0 0
      %497 = vmatprep.subr.bf16.mxu0 0
      %498 = vmatpush1.bf16.msra.mxu0 0
      %499 = vmatprep.subr.bf16.mxu0 0
      %500 = vmatpush1.bf16.msra.mxu0 0
      %501 = vmatprep.subr.bf16.mxu0 0
      %502 = vmatpush1.bf16.msra.mxu0 0
      %503 = vmatprep.subr.bf16.mxu0 0
      %504 = vmatpush1.bf16.msra.mxu0 0
      %505 = vmatprep.subr.bf16.mxu0 0
      %506 = vmatpush1.bf16.msra.mxu0 %v487
      %507 = vmatprep.subr.bf16.mxu0 0
      %508 = vmatpush1.bf16.msra.mxu0 %v486
      %509 = vmatprep.subr.bf16.mxu0 0
      %510 = vmatpush2.bf16.msra.mxu0 0
      %511 = vmatprep.subr.bf16.mxu0 0
      %512 = vmatpush2.bf16.msra.mxu0 0
      %513 = vmatprep.subr.bf16.mxu0 0
      %514 = vmatpush2.bf16.msra.mxu0 0
      %515 = vmatprep.subr.bf16.mxu0 0
      %516 = vmatpush2.bf16.msra.mxu0 0
      %517 = vmatprep.subr.bf16.mxu0 0
      %518 = vmatpush2.bf16.msra.mxu0 0
      %519 = vmatprep.subr.bf16.mxu0 0
      %520 = vmatpush2.bf16.msra.mxu0 0
      %521 = vmatprep.subr.bf16.mxu0 0
      %522 = vmatpush2.bf16.msra.mxu0 0
      %523 = vmatprep.subr.bf16.mxu0 0
      %524 = vmatpush2.bf16.msra.mxu0 0
      %525 = vmatprep.mubr.bf16.mxu0 0
      %526 = vmatmul.mubr.bf16.gmra.mxu0 %v491
      %v527 = vpop.f32.mrf.mxu0
      %v528 = vadd.f32 %v476, %v527
      %v529 = vpop.f32.mrf.mxu0
      %v530 = vpop.f32.mrf.mxu0
      %v531 = vpop.f32.mrf.mxu0
      %532 = vdwg.mxu0
      %v533 = vmul.f32 %v528, 0.5
      %v534 = vmul.f32 %v528, 0.70710677
      %vm535 = vcmp.lt.f32.partialorder %v534, 0.0
      %v536 = vsel %vm535, -1.0, 1.0
      %v537 = vand.u32 2147483647, %v534
      %v538 = vmul.f32 %v537, 0.3275911
      %v539 = vadd.f32 %v538, 1.0
      %v540 = vrcp.pop %v539
      %v541 = vmul.f32 1.0, %v540
      %v542 = vmul.f32 %v541, 1.0614054
      %v543 = vadd.f32 %v542, -1.4531521
      %v544 = vmul.f32 %v543, %v541
      %v545 = vadd.f32 %v544, 1.4214138
      %v546 = vmul.f32 %v545, %v541
      %v547 = vadd.f32 %v546, -0.28449672
      %v548 = vmul.f32 %v547, %v541
      %v549 = vadd.f32 %v548, 0.2548296
      %v550 = vmul.f32 %v549, %v541
      %v551 = vsub.f32 0.0, %v537
      %v552 = vmul.f32 %v551, %v537
      %v553 = vmul.f32 %v552, 1.442695
      %v554 = vpow.pop %v553
      %v555 = vmul.f32 %v550, %v554
      %v556 = vsub.f32 1.0, %v555
      %v557 = vmul.f32 %v536, %v556
      %v558 = vadd.f32 %v557, 1.0
      %v559 = vmul.f32 %v533, %v558
      %v560 = vpack.c.bf16 %v559, %v559
      %v561 = vld [vmem:[%s7] sm:$0xf]
      %v562 = vld [vmem:[%s7 + $0x4] sm:$0xf]
      %v563 = vld [vmem:[%s7 + $0x8] sm:$0xf]
      %v564 = vld [vmem:[%s7 + $0xc] sm:$0xf]
      %v565 = vld [vmem:[%s7 + $0x10] sm:$0xf]
      %v566 = vld [vmem:[%s7 + $0x14] sm:$0xf]
      %v567 = vld [vmem:[%s7 + $0x18] sm:$0xf]
      %v568 = vld [vmem:[%s7 + $0x1c] sm:$0xf]
      %v569 = vld [vmem:[%s8] sm:$0x1]
      %v571 = vlaneseq
      %v572 = vshrl.u32 %v571, 7
      %v573 = vsub.s32 0, %v572
      %v574 = vrot.slane %v569, %v573
      %v584 = vunpack.c.l.b16 %v561
      %v585 = vunpack.c.l.b16 %v562
      %v586 = vunpack.c.l.b16 %v563
      %v587 = vunpack.c.l.b16 %v564
      %v588 = vunpack.c.l.b16 %v565
      %v589 = vunpack.c.l.b16 %v566
      %v590 = vunpack.c.l.b16 %v567
      %v591 = vunpack.c.l.b16 %v568
      %v592 = vpack.c.b16 %v585, %v584
      %v593 = vpack.c.b16 %v587, %v586
      %v594 = vpack.c.b16 %v589, %v588
      %v595 = vpack.c.b16 %v591, %v590
      %vm600 = vcmask 523264
      %v602 = vsel %vm600, %v560, 0
      %604 = vmatprep.subr.bf16.mxu0 0
      %605 = vmatpush1.bf16.msra.mxu0 0
      %606 = vmatprep.subr.bf16.mxu0 0
      %607 = vmatpush1.bf16.msra.mxu0 0
      %608 = vmatprep.subr.bf16.mxu0 0
      %609 = vmatpush1.bf16.msra.mxu0 0
      %610 = vmatprep.subr.bf16.mxu0 0
      %611 = vmatpush1.bf16.msra.mxu0 0
      %612 = vmatprep.subr.bf16.mxu0 0
      %613 = vmatpush1.bf16.msra.mxu0 %v595
      %614 = vmatprep.subr.bf16.mxu0 0
      %615 = vmatpush1.bf16.msra.mxu0 %v594
      %616 = vmatprep.subr.bf16.mxu0 0
      %617 = vmatpush1.bf16.msra.mxu0 %v593
      %618 = vmatprep.subr.bf16.mxu0 0
      %619 = vmatpush1.bf16.msra.mxu0 %v592
      %620 = vmatprep.subr.bf16.mxu0 0
      %621 = vmatpush2.bf16.msra.mxu0 0
      %622 = vmatprep.subr.bf16.mxu0 0
      %623 = vmatpush2.bf16.msra.mxu0 0
      %624 = vmatprep.subr.bf16.mxu0 0
      %625 = vmatpush2.bf16.msra.mxu0 0
      %626 = vmatprep.subr.bf16.mxu0 0
      %627 = vmatpush2.bf16.msra.mxu0 0
      %628 = vmatprep.subr.bf16.mxu0 0
      %629 = vmatpush2.bf16.msra.mxu0 0
      %630 = vmatprep.subr.bf16.mxu0 0
      %631 = vmatpush2.bf16.msra.mxu0 0
      %632 = vmatprep.subr.bf16.mxu0 0
      %633 = vmatpush2.bf16.msra.mxu0 0
      %634 = vmatprep.subr.bf16.mxu0 0
      %635 = vmatpush2.bf16.msra.mxu0 0
      %636 = vmatprep.mubr.bf16.mxu0 0
      %637 = vmatmul.mubr.bf16.gmra.mxu0 %v602
      %v638 = vpop.f32.mrf.mxu0
      %v639 = vadd.f32 %v574, %v638
      %v640 = vpop.f32.mrf.mxu0
      %v641 = vpop.f32.mrf.mxu0
      %v642 = vpop.f32.mrf.mxu0
      %643 = vdwg.mxu0
      %v644 = vadd.f32 %v639, %v465
      %v645 = vld [vmem:[%s9] sm:$0xff]
      %647 = vset.pattern.permute.xlu0 0
      %648 = vperm.xlu0 %647, %v645
      %v649 = vpop.permute.xlu0 %648
      %v651 = vmul.f32 %v644, %v649
      %v652 = vld [vmem:[%s10] sm:$0xff]
      %654 = vset.pattern.permute.xlu0 0
      %655 = vperm.xlu0 %654, %v652
      %v656 = vpop.permute.xlu0 %655
      %v658 = vadd.f32 %v651, %v656
      %659 = vst.msk [vmem:[%s381] sm:$0xff] %vm408, %v658
      %p660 = scmp.lt.s32.totalorder %s22, 1
      %s661 = scalar_select %p660, %s22, 1
      %s662 = smul.addr %s661, 8
      %s663 = scalar_lea.vmem %s11, %s662
      // Predicated region
      $region65: #{model_forward.25} parent=63 // pred_check
        %p664 = pneg %p276
      $region66: #{model_forward.25} parent=63 // pred_check_branch
        %666 = sbr.rel (%p664) target = $region68
      $region67: #{model_forward.25} parent=63 // pred_region
        _
      $region68: #{model_forward.25} parent=63 // pred_fallthru
        _
    $region64: #{model_forward.25} parent=5 // pred_fallthru
      _
    %p667 = scmp.le.s32.totalorder 2, %s17
    // Predicated region
    $region69: #{model_forward.25} parent=5 // pred_check
      %p668 = pneg %p667
    $region70: #{model_forward.25} parent=5 // pred_check_branch
      %670 = sbr.rel (%p668) target = $region72
    $region71: #{model_forward.25} parent=5 // pred_region
      %s671 = ssub.s32 %s17, 2
      // Predicated region
      $region73: #{model_forward.25} parent=71 // pred_check
        %p672 = pneg %p282
      $region74: #{model_forward.25} parent=71 // pred_check_branch
        %674 = sbr.rel (%p672) target = $region76
      $region75: #{model_forward.25} parent=71 // pred_region
        %p675 = scmp.lt.s32.totalorder %s23, 1
        %s676 = scalar_select %p675, %s23, 1
        %s677 = smul.addr %s676, 8
        %s678 = scalar_lea.vmem %s11, %s677
      $region76: #{model_forward.25} parent=71 // pred_fallthru
        _
    $region72: #{model_forward.25} parent=5 // pred_fallthru
      _
  $region6: #{model_forward.25} parent=0 // loop_footer
    %s21 = sadd.s32 1, %s17
  $region7: #{model_forward.25} parent=0 // loop_footer_branch
    %16 = sbr.rel target = $region3
  $region8: #{model_forward.25} parent=0 // loop_exit
    _

// kernel: model_forward.29
$region0: #{model_forward.29}
  #allocation0 [shape = 'u32[]', space=smem, size = 0x4, offset = 0x4, fixed_abs, tag = 'smem constant byte address 0x4 - core index']
  #allocation1 [shape = 'u32[144,128]{1,0:T(1,128)}', space=vmem, size = 0x12000, scoped, tag = 'internal scratch']
  %s0 = inlined_call_operand.vmem [shape: f32[2,4,32], index: 0, kind: input, shape index: {}]
  %s1 = inlined_call_operand.vmem [shape: bf16[2,4], index: 1, kind: input, shape index: {}]
  %s2 = inlined_call_operand.vmem [shape: bf16[32,96], index: 2, kind: input, shape index: {}]
  %s3 = inlined_call_operand.vmem [shape: f32[1,96], index: 3, kind: input, shape index: {}]
  %s4 = inlined_call_operand.vmem [shape: f32[2,2,96], index: 4, kind: output, shape index: {}]
  %s5 = sld [smem:[#allocation0]]
  $region49: #{model_forward.29} parent=0
    _
  %s7 = ssub.s32 1, %s5
  %s8 = scalar_select 0, %s7, %s5
  loop: start=0, step=1, limit=4
  $region2: #{model_forward.29} parent=0 // loop_pre_header
    _
  $region3: #{model_forward.29} parent=0 // loop_header
    %s10 = sphi 0, %s14
    %p11 = scmp.ge.s32.totalorder %s10, 4
    %s20 = sphi 0, %s22
    %s23 = sphi 0, %s20
    %s24 = sphi 0, %s23
    %s40 = sphi 0, %s24
    %s44 = sphi 0, %s44
    %s46 = sphi 0, %s44
    %s47 = sphi 0, %s46
    %s61 = sphi 0, %s47
    %s65 = sphi 0, %s65
    %s67 = sphi 0, %s65
    %s68 = sphi 0, %s67
    %s82 = sphi 0, %s68
    %s86 = sphi 0, %s86
    %s88 = sphi 0, %s86
    %s89 = sphi 0, %s88
    %s103 = sphi 0, %s89
    %s109 = sphi 0, %s111
    %s112 = sphi 0, %s109
    %s113 = sphi 0, %s112
    %s129 = sphi 0, %s113
  $region4: #{model_forward.29} parent=0 // loop_header_branch
    %13 = sbr.rel (%p11) target = $region8
  $region5: #{model_forward.29} parent=0 // loop_body
    %s15 = ssub.s32 %s10, 1
    %s16 = ssub.s32 %s10, 2
    %s17 = sadd.s32 %s10, 1
    %s18 = ssub.s32 %s10, %s17
    %p19 = scmp.eq.s32.totalorder %s18, 0
    %s21 = sadd.s32 %s20, 1
    %s22 = scalar_select %p19, %s20, %s21
    %p25 = pneg %p19
    %p26 = scmp.eq.s32.totalorder %s10, 1
    %p27 = por %p25, %p26
    %p28 = scmp.ne.s32.totalorder %s20, %s23
    %p29 = scmp.eq.s32.totalorder %s10, 0
    %p30 = por %p28, %p29
    %p31 = scmp.ne.s32.totalorder %s20, %s23
    %p32 = scmp.eq.s32.totalorder %s15, 1
    %p33 = por %p31, %p32
    %p34 = scmp.ne.s32.totalorder %s23, %s24
    %p35 = scmp.eq.s32.totalorder %s15, 0
    %p36 = por %p34, %p35
    %p37 = scmp.ne.s32.totalorder %s23, %s24
    %p38 = scmp.eq.s32.totalorder %s16, 1
    %p39 = por %p37, %p38
    %p41 = scmp.ne.s32.totalorder %s24, %s40
    %p42 = scmp.eq.s32.totalorder %s16, 0
    %p43 = por %p41, %p42
    %s45 = sadd.s32 %s44, 1
    %p48 = scmp.eq.s32.totalorder %s10, 1
    %p49 = scmp.ne.s32.totalorder %s44, %s46
    %p50 = scmp.eq.s32.totalorder %s10, 0
    %p51 = por %p49, %p50
    %p52 = scmp.ne.s32.totalorder %s44, %s46
    %p53 = scmp.eq.s32.totalorder %s15, 1
    %p54 = por %p52, %p53
    %p55 = scmp.ne.s32.totalorder %s46, %s47
    %p56 = scmp.eq.s32.totalorder %s15, 0
    %p57 = por %p55, %p56
    %p58 = scmp.ne.s32.totalorder %s46, %s47
    %p59 = scmp.eq.s32.totalorder %s16, 1
    %p60 = por %p58, %p59
    %p62 = scmp.ne.s32.totalorder %s47, %s61
    %p63 = scmp.eq.s32.totalorder %s16, 0
    %p64 = por %p62, %p63
    %s66 = sadd.s32 %s65, 1
    %p69 = scmp.eq.s32.totalorder %s10, 1
    %p70 = scmp.ne.s32.totalorder %s65, %s67
    %p71 = scmp.eq.s32.totalorder %s10, 0
    %p72 = por %p70, %p71
    %p73 = scmp.ne.s32.totalorder %s65, %s67
    %p74 = scmp.eq.s32.totalorder %s15, 1
    %p75 = por %p73, %p74
    %p76 = scmp.ne.s32.totalorder %s67, %s68
    %p77 = scmp.eq.s32.totalorder %s15, 0
    %p78 = por %p76, %p77
    %p79 = scmp.ne.s32.totalorder %s67, %s68
    %p80 = scmp.eq.s32.totalorder %s16, 1
    %p81 = por %p79, %p80
    %p83 = scmp.ne.s32.totalorder %s68, %s82
    %p84 = scmp.eq.s32.totalorder %s16, 0
    %p85 = por %p83, %p84
    %s87 = sadd.s32 %s86, 1
    %p90 = scmp.eq.s32.totalorder %s10, 1
    %p91 = scmp.ne.s32.totalorder %s86, %s88
    %p92 = scmp.eq.s32.totalorder %s10, 0
    %p93 = por %p91, %p92
    %p94 = scmp.ne.s32.totalorder %s86, %s88
    %p95 = scmp.eq.s32.totalorder %s15, 1
    %p96 = por %p94, %p95
    %p97 = scmp.ne.s32.totalorder %s88, %s89
    %p98 = scmp.eq.s32.totalorder %s15, 0
    %p99 = por %p97, %p98
    %p100 = scmp.ne.s32.totalorder %s88, %s89
    %p101 = scmp.eq.s32.totalorder %s16, 1
    %p102 = por %p100, %p101
    %p104 = scmp.ne.s32.totalorder %s89, %s103
    %p105 = scmp.eq.s32.totalorder %s16, 0
    %p106 = por %p104, %p105
    %s107 = ssub.s32 %s10, %s17
    %p108 = scmp.eq.s32.totalorder %s107, 0
    %s110 = sadd.s32 %s109, 1
    %s111 = scalar_select %p108, %s109, %s110
    %p114 = pneg %p108
    %p115 = scmp.eq.s32.totalorder %s10, 1
    %p116 = por %p114, %p115
    %p117 = scmp.ne.s32.totalorder %s109, %s112
    %p118 = scmp.eq.s32.totalorder %s10, 0
    %p119 = por %p117, %p118
    %p120 = scmp.ne.s32.totalorder %s109, %s112
    %p121 = scmp.eq.s32.totalorder %s15, 1
    %p122 = por %p120, %p121
    %p123 = scmp.ne.s32.totalorder %s112, %s113
    %p124 = scmp.eq.s32.totalorder %s15, 0
    %p125 = por %p123, %p124
    %p126 = scmp.ne.s32.totalorder %s112, %s113
    %p127 = scmp.eq.s32.totalorder %s16, 1
    %p128 = por %p126, %p127
    %p130 = scmp.ne.s32.totalorder %s113, %s129
    %p131 = scmp.eq.s32.totalorder %s16, 0
    %p132 = por %p130, %p131
    %p133 = scmp.le.s32.totalorder 1, %s10
    %p134 = scmp.lt.s32.totalorder %s10, 3
    %p135 = pnand %p133, %p134
    %p136 = pneg %p135
    // Predicated region
    $region9: #{model_forward.29} parent=5 // pred_check
      _
    $region10: #{model_forward.29} parent=5 // pred_check_branch
      %138 = sbr.rel (%p135) target = $region12
    $region11: #{model_forward.29} parent=5 // pred_region
      %s139 = ssub.s32 %s10, 1
      // Predicated region
      $region13: #{model_forward.29} parent=11 // pred_check
        %p140 = pneg %p57
      $region14: #{model_forward.29} parent=11 // pred_check_branch
        %142 = sbr.rel (%p140) target = $region16
      $region15: #{model_forward.29} parent=11 // pred_region
        _
      $region16: #{model_forward.29} parent=11 // pred_fallthru
        _
      // Predicated region
      $region17: #{model_forward.29} parent=11 // pred_check
        %p143 = pneg %p78
      $region18: #{model_forward.29} parent=11 // pred_check_branch
        %145 = sbr.rel (%p143) target = $region20
      $region19: #{model_forward.29} parent=11 // pred_region
        _
      $region20: #{model_forward.29} parent=11 // pred_fallthru
        _
      // Predicated region
      $region21: #{model_forward.29} parent=11 // pred_check
        %p146 = pneg %p99
      $region22: #{model_forward.29} parent=11 // pred_check_branch
        %148 = sbr.rel (%p146) target = $region24
      $region23: #{model_forward.29} parent=11 // pred_region
        _
      $region24: #{model_forward.29} parent=11 // pred_fallthru
        _
    $region12: #{model_forward.29} parent=5 // pred_fallthru
      _
    %p149 = scmp.lt.s32.totalorder %s10, 2
    // Predicated region
    $region25: #{model_forward.29} parent=5 // pred_check
      %p150 = pneg %p149
    $region26: #{model_forward.29} parent=5 // pred_check_branch
      %152 = sbr.rel (%p150) target = $region28
    $region27: #{model_forward.29} parent=5 // pred_region
      // Predicated region
      $region29: #{model_forward.29} parent=27 // pred_check
        %p153 = pneg %p30
      $region30: #{model_forward.29} parent=27 // pred_check_branch
        %155 = sbr.rel (%p153) target = $region32
      $region31: #{model_forward.29} parent=27 // pred_region
        %p156 = scmp.lt.s32.totalorder %s10, 1
        %s157 = scalar_select %p156, %s10, 1
        %s158 = smul.addr %s157, 4
        %s159 = scalar_lea.vmem %s0, %s158
      $region32: #{model_forward.29} parent=27 // pred_fallthru
        _
    $region28: #{model_forward.29} parent=5 // pred_fallthru
      _
    %p160 = scmp.le.s32.totalorder 1, %s10
    %p161 = scmp.lt.s32.totalorder %s10, 3
    %p162 = pnand %p160, %p161
    %p163 = pneg %p162
    // Predicated region
    $region33: #{model_forward.29} parent=5 // pred_check
      _
    $region34: #{model_forward.29} parent=5 // pred_check_branch
      %165 = sbr.rel (%p162) target = $region36
    $region35: #{model_forward.29} parent=5 // pred_region
      %s166 = ssub.s32 %s10, 1
      %p167 = scmp.lt.s32.totalorder %s15, 1
      %s168 = scalar_select %p167, %s15, 1
      %s169 = smul.addr %s168, 4
      %s170 = scalar_lea.vmem %s0, %s169
      %p171 = pneg %p36
      %p172 = pneg %p33
      %p173 = pneg %p57
      %p174 = pneg %p54
      %p175 = pneg %p78
      %p176 = pneg %p75
      %p177 = pneg %p99
      %p178 = pneg %p96
      %p179 = pneg %p125
      %p180 = pneg %p122
      %p181 = scmp.lt.s32.totalorder %s15, 1
      %s182 = scalar_select %p181, %s15, 1
      %s183 = smul.addr %s182, 2
      %s184 = scalar_lea.vmem %s4, %s183
      %p185 = scmp.lt.s32.totalorder %s15, 1
      %s186 = scalar_select %p185, %s15, 1
      %s187 = smul.addr %s186, 4
      %s188 = scalar_lea.vmem %s0, %s187
      %p189 = scmp.lt.s32.totalorder %s15, 1
      %s190 = scalar_select %p189, %s15, 1
      %s191 = smul.addr %s190, 2
      %s192 = scalar_lea.vmem %s4, %s191
      %v194 = vld [vmem:[%s188] sm:$0xf]
      %v195 = vpack.c.bf16 %v194, %v194
      %v196 = vld [vmem:[%s1] sm:$0x1]
      %vm197 = vcmask 31744
      %v199 = vsel %vm197, %v196, 0
      %vm201 = vcmask 1041408
      %v203 = vsel %vm201, %v195, 0
      %205 = vmatprep.subr.bf16.mxu0 0
      %206 = vmatpush1.bf16.msra.mxu0 0
      %207 = vmatprep.subr.bf16.mxu0 0
      %208 = vmatpush1.bf16.msra.mxu0 0
      %209 = vmatprep.subr.bf16.mxu0 0
      %210 = vmatpush1.bf16.msra.mxu0 0
      %211 = vmatprep.subr.bf16.mxu0 0
      %212 = vmatpush1.bf16.msra.mxu0 0
      %213 = vmatprep.subr.bf16.mxu0 0
      %214 = vmatpush1.bf16.msra.mxu0 0
      %215 = vmatprep.subr.bf16.mxu0 0
      %216 = vmatpush1.bf16.msra.mxu0 0
      %217 = vmatprep.subr.bf16.mxu0 0
      %218 = vmatpush1.bf16.msra.mxu0 0
      %219 = vmatprep.subr.bf16.mxu0 0
      %220 = vmatpush1.bf16.msra.mxu0 %v203
      %221 = vmatprep.subr.bf16.mxu0 0
      %222 = vmatpush2.bf16.msra.mxu0 0
      %223 = vmatprep.subr.bf16.mxu0 0
      %224 = vmatpush2.bf16.msra.mxu0 0
      %225 = vmatprep.subr.bf16.mxu0 0
      %226 = vmatpush2.bf16.msra.mxu0 0
      %227 = vmatprep.subr.bf16.mxu0 0
      %228 = vmatpush2.bf16.msra.mxu0 0
      %229 = vmatprep.subr.bf16.mxu0 0
      %230 = vmatpush2.bf16.msra.mxu0 0
      %231 = vmatprep.subr.bf16.mxu0 0
      %232 = vmatpush2.bf16.msra.mxu0 0
      %233 = vmatprep.subr.bf16.mxu0 0
      %234 = vmatpush2.bf16.msra.mxu0 0
      %235 = vmatprep.subr.bf16.mxu0 0
      %236 = vmatpush2.bf16.msra.mxu0 0
      %237 = vmatprep.mubr.bf16.mxu0 0
      %238 = vmatmul.mubr.bf16.gmra.mxu0 %v199
      %v239 = vpop.f32.mrf.mxu0
      %v240 = vadd.f32 0.0, %v239
      %v241 = vpop.f32.mrf.mxu0
      %v242 = vpop.f32.mrf.mxu0
      %v243 = vpop.f32.mrf.mxu0
      %244 = vdwg.mxu0
      %v245 = vpack.c.bf16 %v240, %v240
      %v246 = vld [vmem:[%s2] sm:$0xf]
      %v247 = vld [vmem:[%s2 + $0x4] sm:$0xf]
      %v248 = vld [vmem:[%s2 + $0x8] sm:$0xf]
      %v249 = vld [vmem:[%s2 + $0xc] sm:$0xf]
      %v250 = vld [vmem:[%s3] sm:$0x1]
      %v252 = vlaneseq
      %v253 = vshrl.u32 %v252, 7
      %v254 = vsub.s32 0, %v253
      %v255 = vrot.slane %v250, %v254
      %v261 = vunpack.c.l.b16 %v246
      %v262 = vunpack.c.l.b16 %v247
      %v263 = vunpack.c.l.b16 %v248
      %v264 = vunpack.c.l.b16 %v249
      %v265 = vpack.c.b16 %v262, %v261
      %v266 = vpack.c.b16 %v264, %v263
      %vm269 = vcmask 261120
      %v271 = vsel %vm269, %v245, 0
      %273 = vmatprep.subr.bf16.mxu0 0
      %274 = vmatpush1.bf16.msra.mxu0 0
      %275 = vmatprep.subr.bf16.mxu0 0
      %276 = vmatpush1.bf16.msra.mxu0 0
      %277 = vmatprep.subr.bf16.mxu0 0
      %278 = vmatpush1.bf16.msra.mxu0 0
      %279 = vmatprep.subr.bf16.mxu0 0
      %280 = vmatpush1.bf16.msra.mxu0 0
      %281 = vmatprep.subr.bf16.mxu0 0
      %282 = vmatpush1.bf16.msra.mxu0 0
      %283 = vmatprep.subr.bf16.mxu0 0
      %284 = vmatpush1.bf16.msra.mxu0 0
      %285 = vmatprep.subr.bf16.mxu0 0
      %286 = vmatpush1.bf16.msra.mxu0 %v266
      %287 = vmatprep.subr.bf16.mxu0 0
      %288 = vmatpush1.bf16.msra.mxu0 %v265
      %289 = vmatprep.subr.bf16.mxu0 0
      %290 = vmatpush2.bf16.msra.mxu0 0
      %291 = vmatprep.subr.bf16.mxu0 0
      %292 = vmatpush2.bf16.msra.mxu0 0
      %293 = vmatprep.subr.bf16.mxu0 0
      %294 = vmatpush2.bf16.msra.mxu0 0
      %295 = vmatprep.subr.bf16.mxu0 0
      %296 = vmatpush2.bf16.msra.mxu0 0
      %297 = vmatprep.subr.bf16.mxu0 0
      %298 = vmatpush2.bf16.msra.mxu0 0
      %299 = vmatprep.subr.bf16.mxu0 0
      %300 = vmatpush2.bf16.msra.mxu0 0
      %301 = vmatprep.subr.bf16.mxu0 0
      %302 = vmatpush2.bf16.msra.mxu0 0
      %303 = vmatprep.subr.bf16.mxu0 0
      %304 = vmatpush2.bf16.msra.mxu0 0
      %305 = vmatprep.mubr.bf16.mxu0 0
      %306 = vmatmul.mubr.bf16.gmra.mxu0 %v271
      %v307 = vpop.f32.mrf.mxu0
      %v308 = vadd.f32 %v255, %v307
      %v309 = vpop.f32.mrf.mxu0
      %v310 = vpop.f32.mrf.mxu0
      %v311 = vpop.f32.mrf.mxu0
      %312 = vdwg.mxu0
      %vm313 = vcmask 779264
      %314 = vst.msk [vmem:[%s192] sm:$0x3] %vm313, %v308
      %p315 = scmp.lt.s32.totalorder %s15, 1
      %s316 = scalar_select %p315, %s15, 1
      %s317 = smul.addr %s316, 2
      %s318 = scalar_lea.vmem %s4, %s317
      // Predicated region
      $region37: #{model_forward.29} parent=35 // pred_check
        %p319 = pneg %p122
      $region38: #{model_forward.29} parent=35 // pred_check_branch
        %321 = sbr.rel (%p319) target = $region40
      $region39: #{model_forward.29} parent=35 // pred_region
        _
      $region40: #{model_forward.29} parent=35 // pred_fallthru
        _
    $region36: #{model_forward.29} parent=5 // pred_fallthru
      _
    %p322 = scmp.le.s32.totalorder 2, %s10
    // Predicated region
    $region41: #{model_forward.29} parent=5 // pred_check
      %p323 = pneg %p322
    $region42: #{model_forward.29} parent=5 // pred_check_branch
      %325 = sbr.rel (%p323) target = $region44
    $region43: #{model_forward.29} parent=5 // pred_region
      %s326 = ssub.s32 %s10, 2
      // Predicated region
      $region45: #{model_forward.29} parent=43 // pred_check
        %p327 = pneg %p128
      $region46: #{model_forward.29} parent=43 // pred_check_branch
        %329 = sbr.rel (%p327) target = $region48
      $region47: #{model_forward.29} parent=43 // pred_region
        %p330 = scmp.lt.s32.totalorder %s16, 1
        %s331 = scalar_select %p330, %s16, 1
        %s332 = smul.addr %s331, 2
        %s333 = scalar_lea.vmem %s4, %s332
      $region48: #{model_forward.29} parent=43 // pred_fallthru
        _
    $region44: #{model_forward.29} parent=5 // pred_fallthru
      _
  $region6: #{model_forward.29} parent=0 // loop_footer
    %s14 = sadd.s32 1, %s10
  $region7: #{model_forward.29} parent=0 // loop_footer_branch
    %9 = sbr.rel target = $region3
  $region8: #{model_forward.29} parent=0 // loop_exit
    _

// kernel: model_forward.31
$region0: #{model_forward.31}
  #allocation0 [shape = 'u32[]', space=smem, size = 0x4, offset = 0x4, fixed_abs, tag = 'smem constant byte address 0x4 - core index']
  #allocation1 [shape = 'u32[144,128]{1,0:T(1,128)}', space=vmem, size = 0x12000, scoped, tag = 'internal scratch']
  %s0 = inlined_call_operand.vmem [shape: f32[2,2,64], index: 0, kind: input, shape index: {}]
  %s1 = inlined_call_operand.vmem [shape: bf16[64,96], index: 1, kind: input, shape index: {}]
  %s2 = inlined_call_operand.vmem [shape: f32[1,96], index: 2, kind: input, shape index: {}]
  %s3 = inlined_call_operand.vmem [shape: f32[2,2,96], index: 3, kind: output, shape index: {}]
  %s4 = sld [smem:[#allocation0]]
  $region45: #{model_forward.31} parent=0
    _
  %s6 = ssub.s32 1, %s4
  %s7 = scalar_select 0, %s6, %s4
  loop: start=0, step=1, limit=4
  $region2: #{model_forward.31} parent=0 // loop_pre_header
    _
  $region3: #{model_forward.31} parent=0 // loop_header
    %s9 = sphi 0, %s13
    %p10 = scmp.ge.s32.totalorder %s9, 4
    %s19 = sphi 0, %s21
    %s22 = sphi 0, %s19
    %s23 = sphi 0, %s22
    %s39 = sphi 0, %s23
    %s43 = sphi 0, %s43
    %s45 = sphi 0, %s43
    %s46 = sphi 0, %s45
    %s60 = sphi 0, %s46
    %s64 = sphi 0, %s64
    %s66 = sphi 0, %s64
    %s67 = sphi 0, %s66
    %s81 = sphi 0, %s67
    %s87 = sphi 0, %s89
    %s90 = sphi 0, %s87
    %s91 = sphi 0, %s90
    %s107 = sphi 0, %s91
  $region4: #{model_forward.31} parent=0 // loop_header_branch
    %12 = sbr.rel (%p10) target = $region8
  $region5: #{model_forward.31} parent=0 // loop_body
    %s14 = ssub.s32 %s9, 1
    %s15 = ssub.s32 %s9, 2
    %s16 = sadd.s32 %s9, 1
    %s17 = ssub.s32 %s9, %s16
    %p18 = scmp.eq.s32.totalorder %s17, 0
    %s20 = sadd.s32 %s19, 1
    %s21 = scalar_select %p18, %s19, %s20
    %p24 = pneg %p18
    %p25 = scmp.eq.s32.totalorder %s9, 1
    %p26 = por %p24, %p25
    %p27 = scmp.ne.s32.totalorder %s19, %s22
    %p28 = scmp.eq.s32.totalorder %s9, 0
    %p29 = por %p27, %p28
    %p30 = scmp.ne.s32.totalorder %s19, %s22
    %p31 = scmp.eq.s32.totalorder %s14, 1
    %p32 = por %p30, %p31
    %p33 = scmp.ne.s32.totalorder %s22, %s23
    %p34 = scmp.eq.s32.totalorder %s14, 0
    %p35 = por %p33, %p34
    %p36 = scmp.ne.s32.totalorder %s22, %s23
    %p37 = scmp.eq.s32.totalorder %s15, 1
    %p38 = por %p36, %p37
    %p40 = scmp.ne.s32.totalorder %s23, %s39
    %p41 = scmp.eq.s32.totalorder %s15, 0
    %p42 = por %p40, %p41
    %s44 = sadd.s32 %s43, 1
    %p47 = scmp.eq.s32.totalorder %s9, 1
    %p48 = scmp.ne.s32.totalorder %s43, %s45
    %p49 = scmp.eq.s32.totalorder %s9, 0
    %p50 = por %p48, %p49
    %p51 = scmp.ne.s32.totalorder %s43, %s45
    %p52 = scmp.eq.s32.totalorder %s14, 1
    %p53 = por %p51, %p52
    %p54 = scmp.ne.s32.totalorder %s45, %s46
    %p55 = scmp.eq.s32.totalorder %s14, 0
    %p56 = por %p54, %p55
    %p57 = scmp.ne.s32.totalorder %s45, %s46
    %p58 = scmp.eq.s32.totalorder %s15, 1
    %p59 = por %p57, %p58
    %p61 = scmp.ne.s32.totalorder %s46, %s60
    %p62 = scmp.eq.s32.totalorder %s15, 0
    %p63 = por %p61, %p62
    %s65 = sadd.s32 %s64, 1
    %p68 = scmp.eq.s32.totalorder %s9, 1
    %p69 = scmp.ne.s32.totalorder %s64, %s66
    %p70 = scmp.eq.s32.totalorder %s9, 0
    %p71 = por %p69, %p70
    %p72 = scmp.ne.s32.totalorder %s64, %s66
    %p73 = scmp.eq.s32.totalorder %s14, 1
    %p74 = por %p72, %p73
    %p75 = scmp.ne.s32.totalorder %s66, %s67
    %p76 = scmp.eq.s32.totalorder %s14, 0
    %p77 = por %p75, %p76
    %p78 = scmp.ne.s32.totalorder %s66, %s67
    %p79 = scmp.eq.s32.totalorder %s15, 1
    %p80 = por %p78, %p79
    %p82 = scmp.ne.s32.totalorder %s67, %s81
    %p83 = scmp.eq.s32.totalorder %s15, 0
    %p84 = por %p82, %p83
    %s85 = ssub.s32 %s9, %s16
    %p86 = scmp.eq.s32.totalorder %s85, 0
    %s88 = sadd.s32 %s87, 1
    %s89 = scalar_select %p86, %s87, %s88
    %p92 = pneg %p86
    %p93 = scmp.eq.s32.totalorder %s9, 1
    %p94 = por %p92, %p93
    %p95 = scmp.ne.s32.totalorder %s87, %s90
    %p96 = scmp.eq.s32.totalorder %s9, 0
    %p97 = por %p95, %p96
    %p98 = scmp.ne.s32.totalorder %s87, %s90
    %p99 = scmp.eq.s32.totalorder %s14, 1
    %p100 = por %p98, %p99
    %p101 = scmp.ne.s32.totalorder %s90, %s91
    %p102 = scmp.eq.s32.totalorder %s14, 0
    %p103 = por %p101, %p102
    %p104 = scmp.ne.s32.totalorder %s90, %s91
    %p105 = scmp.eq.s32.totalorder %s15, 1
    %p106 = por %p104, %p105
    %p108 = scmp.ne.s32.totalorder %s91, %s107
    %p109 = scmp.eq.s32.totalorder %s15, 0
    %p110 = por %p108, %p109
    %p111 = scmp.le.s32.totalorder 1, %s9
    %p112 = scmp.lt.s32.totalorder %s9, 3
    %p113 = pnand %p111, %p112
    %p114 = pneg %p113
    // Predicated region
    $region9: #{model_forward.31} parent=5 // pred_check
      _
    $region10: #{model_forward.31} parent=5 // pred_check_branch
      %116 = sbr.rel (%p113) target = $region12
    $region11: #{model_forward.31} parent=5 // pred_region
      %s117 = ssub.s32 %s9, 1
      // Predicated region
      $region13: #{model_forward.31} parent=11 // pred_check
        %p118 = pneg %p56
      $region14: #{model_forward.31} parent=11 // pred_check_branch
        %120 = sbr.rel (%p118) target = $region16
      $region15: #{model_forward.31} parent=11 // pred_region
        _
      $region16: #{model_forward.31} parent=11 // pred_fallthru
        _
      // Predicated region
      $region17: #{model_forward.31} parent=11 // pred_check
        %p121 = pneg %p77
      $region18: #{model_forward.31} parent=11 // pred_check_branch
        %123 = sbr.rel (%p121) target = $region20
      $region19: #{model_forward.31} parent=11 // pred_region
        _
      $region20: #{model_forward.31} parent=11 // pred_fallthru
        _
    $region12: #{model_forward.31} parent=5 // pred_fallthru
      _
    %p124 = scmp.lt.s32.totalorder %s9, 2
    // Predicated region
    $region21: #{model_forward.31} parent=5 // pred_check
      %p125 = pneg %p124
    $region22: #{model_forward.31} parent=5 // pred_check_branch
      %127 = sbr.rel (%p125) target = $region24
    $region23: #{model_forward.31} parent=5 // pred_region
      // Predicated region
      $region25: #{model_forward.31} parent=23 // pred_check
        %p128 = pneg %p29
      $region26: #{model_forward.31} parent=23 // pred_check_branch
        %130 = sbr.rel (%p128) target = $region28
      $region27: #{model_forward.31} parent=23 // pred_region
        %p131 = scmp.lt.s32.totalorder %s9, 1
        %s132 = scalar_select %p131, %s9, 1
        %s133 = smul.addr %s132, 2
        %s134 = scalar_lea.vmem %s0, %s133
      $region28: #{model_forward.31} parent=23 // pred_fallthru
        _
    $region24: #{model_forward.31} parent=5 // pred_fallthru
      _
    %p135 = scmp.le.s32.totalorder 1, %s9
    %p136 = scmp.lt.s32.totalorder %s9, 3
    %p137 = pnand %p135, %p136
    %p138 = pneg %p137
    // Predicated region
    $region29: #{model_forward.31} parent=5 // pred_check
      _
    $region30: #{model_forward.31} parent=5 // pred_check_branch
      %140 = sbr.rel (%p137) target = $region32
    $region31: #{model_forward.31} parent=5 // pred_region
      %s141 = ssub.s32 %s9, 1
      %p142 = scmp.lt.s32.totalorder %s14, 1
      %s143 = scalar_select %p142, %s14, 1
      %s144 = smul.addr %s143, 2
      %s145 = scalar_lea.vmem %s0, %s144
      %p146 = pneg %p35
      %p147 = pneg %p32
      %p148 = pneg %p56
      %p149 = pneg %p53
      %p150 = pneg %p77
      %p151 = pneg %p74
      %p152 = pneg %p103
      %p153 = pneg %p100
      %p154 = scmp.lt.s32.totalorder %s14, 1
      %s155 = scalar_select %p154, %s14, 1
      %s156 = smul.addr %s155, 2
      %s157 = scalar_lea.vmem %s3, %s156
      %p158 = scmp.lt.s32.totalorder %s14, 1
      %s159 = scalar_select %p158, %s14, 1
      %s160 = smul.addr %s159, 2
      %s161 = scalar_lea.vmem %s0, %s160
      %p162 = scmp.lt.s32.totalorder %s14, 1
      %s163 = scalar_select %p162, %s14, 1
      %s164 = smul.addr %s163, 2
      %s165 = scalar_lea.vmem %s3, %s164
      %v167 = vld [vmem:[%s161] sm:$0x3]
      %v168 = vpack.c.bf16 %v167, %v167
      %v169 = vld [vmem:[%s1] sm:$0xf]
      %v170 = vld [vmem:[%s1 + $0x4] sm:$0xf]
      %v171 = vld [vmem:[%s1 + $0x8] sm:$0xf]
      %v172 = vld [vmem:[%s1 + $0xc] sm:$0xf]
      %v173 = vld [vmem:[%s1 + $0x10] sm:$0xf]
      %v174 = vld [vmem:[%s1 + $0x14] sm:$0xf]
      %v175 = vld [vmem:[%s1 + $0x18] sm:$0xf]
      %v176 = vld [vmem:[%s1 + $0x1c] sm:$0xf]
      %v177 = vld [vmem:[%s2] sm:$0x1]
      %v179 = vlaneseq
      %v180 = vshrl.u32 %v179, 7
      %v181 = vsub.s32 0, %v180
      %v182 = vrot.slane %v177, %v181
      %v192 = vunpack.c.l.b16 %v169
      %v193 = vunpack.c.l.b16 %v170
      %v194 = vunpack.c.l.b16 %v171
      %v195 = vunpack.c.l.b16 %v172
      %v196 = vunpack.c.l.b16 %v173
      %v197 = vunpack.c.l.b16 %v174
      %v198 = vunpack.c.l.b16 %v175
      %v199 = vunpack.c.l.b16 %v176
      %v200 = vpack.c.b16 %v193, %v192
      %v201 = vpack.c.b16 %v195, %v194
      %v202 = vpack.c.b16 %v197, %v196
      %v203 = vpack.c.b16 %v199, %v198
      %vm208 = vcmask 523264
      %v210 = vsel %vm208, %v168, 0
      %212 = vmatprep.subr.bf16.mxu0 0
      %213 = vmatpush1.bf16.msra.mxu0 0
      %214 = vmatprep.subr.bf16.mxu0 0
      %215 = vmatpush1.bf16.msra.mxu0 0
      %216 = vmatprep.subr.bf16.mxu0 0
      %217 = vmatpush1.bf16.msra.mxu0 0
      %218 = vmatprep.subr.bf16.mxu0 0
      %219 = vmatpush1.bf16.msra.mxu0 0
      %220 = vmatprep.subr.bf16.mxu0 0
      %221 = vmatpush1.bf16.msra.mxu0 %v203
      %222 = vmatprep.subr.bf16.mxu0 0
      %223 = vmatpush1.bf16.msra.mxu0 %v202
      %224 = vmatprep.subr.bf16.mxu0 0
      %225 = vmatpush1.bf16.msra.mxu0 %v201
      %226 = vmatprep.subr.bf16.mxu0 0
      %227 = vmatpush1.bf16.msra.mxu0 %v200
      %228 = vmatprep.subr.bf16.mxu0 0
      %229 = vmatpush2.bf16.msra.mxu0 0
      %230 = vmatprep.subr.bf16.mxu0 0
      %231 = vmatpush2.bf16.msra.mxu0 0
      %232 = vmatprep.subr.bf16.mxu0 0
      %233 = vmatpush2.bf16.msra.mxu0 0
      %234 = vmatprep.subr.bf16.mxu0 0
      %235 = vmatpush2.bf16.msra.mxu0 0
      %236 = vmatprep.subr.bf16.mxu0 0
      %237 = vmatpush2.bf16.msra.mxu0 0
      %238 = vmatprep.subr.bf16.mxu0 0
      %239 = vmatpush2.bf16.msra.mxu0 0
      %240 = vmatprep.subr.bf16.mxu0 0
      %241 = vmatpush2.bf16.msra.mxu0 0
      %242 = vmatprep.subr.bf16.mxu0 0
      %243 = vmatpush2.bf16.msra.mxu0 0
      %244 = vmatprep.mubr.bf16.mxu0 0
      %245 = vmatmul.mubr.bf16.gmra.mxu0 %v210
      %v246 = vpop.f32.mrf.mxu0
      %v247 = vadd.f32 %v182, %v246
      %v248 = vpop.f32.mrf.mxu0
      %v249 = vpop.f32.mrf.mxu0
      %v250 = vpop.f32.mrf.mxu0
      %251 = vdwg.mxu0
      %vm252 = vcmask 779264
      %253 = vst.msk [vmem:[%s165] sm:$0x3] %vm252, %v247
      %p254 = scmp.lt.s32.totalorder %s14, 1
      %s255 = scalar_select %p254, %s14, 1
      %s256 = smul.addr %s255, 2
      %s257 = scalar_lea.vmem %s3, %s256
      // Predicated region
      $region33: #{model_forward.31} parent=31 // pred_check
        %p258 = pneg %p100
      $region34: #{model_forward.31} parent=31 // pred_check_branch
        %260 = sbr.rel (%p258) target = $region36
      $region35: #{model_forward.31} parent=31 // pred_region
        _
      $region36: #{model_forward.31} parent=31 // pred_fallthru
        _
    $region32: #{model_forward.31} parent=5 // pred_fallthru
      _
    %p261 = scmp.le.s32.totalorder 2, %s9
    // Predicated region
    $region37: #{model_forward.31} parent=5 // pred_check
      %p262 = pneg %p261
    $region38: #{model_forward.31} parent=5 // pred_check_branch
      %264 = sbr.rel (%p262) target = $region40
    $region39: #{model_forward.31} parent=5 // pred_region
      %s265 = ssub.s32 %s9, 2
      // Predicated region
      $region41: #{model_forward.31} parent=39 // pred_check
        %p266 = pneg %p106
      $region42: #{model_forward.31} parent=39 // pred_check_branch
        %268 = sbr.rel (%p266) target = $region44
      $region43: #{model_forward.31} parent=39 // pred_region
        %p269 = scmp.lt.s32.totalorder %s15, 1
        %s270 = scalar_select %p269, %s15, 1
        %s271 = smul.addr %s270, 2
        %s272 = scalar_lea.vmem %s3, %s271
      $region44: #{model_forward.31} parent=39 // pred_fallthru
        _
    $region40: #{model_forward.31} parent=5 // pred_fallthru
      _
  $region6: #{model_forward.31} parent=0 // loop_footer
    %s13 = sadd.s32 1, %s9
  $region7: #{model_forward.31} parent=0 // loop_footer_branch
    %8 = sbr.rel target = $region3
  $region8: #{model_forward.31} parent=0 // loop_exit
    _

// kernel: model_forward.33
$region0: #{model_forward.33}
  #allocation0 [shape = 'u32[]', space=smem, size = 0x4, offset = 0x4, fixed_abs, tag = 'smem constant byte address 0x4 - core index']
  #allocation1 [shape = 'u32[144,128]{1,0:T(1,128)}', space=vmem, size = 0x12000, scoped, tag = 'internal scratch']
  %s0 = inlined_call_operand.vmem [shape: f32[16,16], index: 0, kind: input, shape index: {}]
  %s1 = inlined_call_operand.vmem [shape: bf16[16,32], index: 1, kind: input, shape index: {}]
  %s2 = inlined_call_operand.vmem [shape: f32[1,32], index: 2, kind: input, shape index: {}]
  %s3 = inlined_call_operand.vmem [shape: f32[16,32], index: 3, kind: output, shape index: {}]
  %s4 = sld [smem:[#allocation0]]
  $region22: #{model_forward.33} parent=0
    _
  %s6 = ssub.s32 1, %s4
  %s7 = scalar_select 0, %s6, %s4
  // Predicated region
  $region2: #{model_forward.33} parent=0 // pred_check
    _
  $region3: #{model_forward.33} parent=0 // pred_check_branch
    %9 = sbr.rel (0) target = $region5
  $region4: #{model_forward.33} parent=0 // pred_region
    _
  $region5: #{model_forward.33} parent=0 // pred_fallthru
    _
  // Predicated region
  $region6: #{model_forward.33} parent=0 // pred_check
    _
  $region7: #{model_forward.33} parent=0 // pred_check_branch
    %11 = sbr.rel (0) target = $region9
  $region8: #{model_forward.33} parent=0 // pred_region
    _
  $region9: #{model_forward.33} parent=0 // pred_fallthru
    _
  // Predicated region
  $region10: #{model_forward.33} parent=0 // pred_check
    _
  $region11: #{model_forward.33} parent=0 // pred_check_branch
    %13 = sbr.rel (0) target = $region13
  $region12: #{model_forward.33} parent=0 // pred_region
    _
  $region13: #{model_forward.33} parent=0 // pred_fallthru
    _
  %v15 = vld [vmem:[%s0] sm:$0xff]
  %v16 = vld [vmem:[%s0 + $0x8] sm:$0xff]
  %v17 = vpack.c.bf16 %v16, %v15
  %v18 = vld [vmem:[%s1] sm:$0xf]
  %v19 = vld [vmem:[%s1 + $0x4] sm:$0xf]
  %v20 = vld [vmem:[%s2] sm:$0x1]
  %v22 = vlaneseq
  %v23 = vshrl.u32 %v22, 7
  %v24 = vsub.s32 0, %v23
  %v25 = vrot.slane %v20, %v24
  %v29 = vunpack.c.l.b16 %v18
  %v30 = vunpack.c.l.b16 %v19
  %v31 = vpack.c.b16 %v30, %v29
  %vm33 = vcmask 130048
  %v35 = vsel %vm33, %v17, 0
  %37 = vmatprep.subr.bf16.mxu0 0
  %38 = vmatpush1.bf16.msra.mxu0 0
  %39 = vmatprep.subr.bf16.mxu0 0
  %40 = vmatpush1.bf16.msra.mxu0 0
  %41 = vmatprep.subr.bf16.mxu0 0
  %42 = vmatpush1.bf16.msra.mxu0 0
  %43 = vmatprep.subr.bf16.mxu0 0
  %44 = vmatpush1.bf16.msra.mxu0 0
  %45 = vmatprep.subr.bf16.mxu0 0
  %46 = vmatpush1.bf16.msra.mxu0 0
  %47 = vmatprep.subr.bf16.mxu0 0
  %48 = vmatpush1.bf16.msra.mxu0 0
  %49 = vmatprep.subr.bf16.mxu0 0
  %50 = vmatpush1.bf16.msra.mxu0 0
  %51 = vmatprep.subr.bf16.mxu0 0
  %52 = vmatpush1.bf16.msra.mxu0 %v31
  %53 = vmatprep.subr.bf16.mxu0 0
  %54 = vmatpush2.bf16.msra.mxu0 0
  %55 = vmatprep.subr.bf16.mxu0 0
  %56 = vmatpush2.bf16.msra.mxu0 0
  %57 = vmatprep.subr.bf16.mxu0 0
  %58 = vmatpush2.bf16.msra.mxu0 0
  %59 = vmatprep.subr.bf16.mxu0 0
  %60 = vmatpush2.bf16.msra.mxu0 0
  %61 = vmatprep.subr.bf16.mxu0 0
  %62 = vmatpush2.bf16.msra.mxu0 0
  %63 = vmatprep.subr.bf16.mxu0 0
  %64 = vmatpush2.bf16.msra.mxu0 0
  %65 = vmatprep.subr.bf16.mxu0 0
  %66 = vmatpush2.bf16.msra.mxu0 0
  %67 = vmatprep.subr.bf16.mxu0 0
  %68 = vmatpush2.bf16.msra.mxu0 0
  %69 = vmatprep.mubr.bf16.mxu0 0
  %70 = vmatmul.mubr.bf16.gmra.mxu0 %v35
  %v71 = vpop.f32.mrf.mxu0
  %v72 = vadd.f32 %v25, %v71
  %v73 = vpop.f32.mrf.mxu0
  %v74 = vpop.f32.mrf.mxu0
  %v75 = vadd.f32 %v25, %v74
  %v76 = vpop.f32.mrf.mxu0
  %77 = vdwg.mxu0
  %vm78 = vcmask 261120
  %79 = vst.msk [vmem:[%s3] sm:$0xff] %vm78, %v72
  %80 = vst.msk [vmem:[%s3 + $0x8] sm:$0xff] %vm78, %v75
  // Predicated region
  $region14: #{model_forward.33} parent=0 // pred_check
    _
  $region15: #{model_forward.33} parent=0 // pred_check_branch
    %82 = sbr.rel (0) target = $region17
  $region16: #{model_forward.33} parent=0 // pred_region
    _
  $region17: #{model_forward.33} parent=0 // pred_fallthru
    _
  // Predicated region
  $region18: #{model_forward.33} parent=0 // pred_check
    _
  $region19: #{model_forward.33} parent=0 // pred_check_branch
    %84 = sbr.rel (0) target = $region21
  $region20: #{model_forward.33} parent=0 // pred_region
    _
  $region21: #{model_forward.33} parent=0 // pred_fallthru
    _

// kernel: model_forward.30
$region0: #{model_forward.30}
  #allocation0 [shape = 'u32[]', space=smem, size = 0x4, offset = 0x4, fixed_abs, tag = 'smem constant byte address 0x4 - core index']
  #allocation1 [shape = 'u32[144,128]{1,0:T(1,128)}', space=vmem, size = 0x12000, scoped, tag = 'internal scratch']
  %s0 = inlined_call_operand.vmem [shape: f32[2,2,32], index: 0, kind: input, shape index: {}]
  %s1 = inlined_call_operand.vmem [shape: bf16[32,64], index: 1, kind: input, shape index: {}]
  %s2 = inlined_call_operand.vmem [shape: f32[1,64], index: 2, kind: input, shape index: {}]
  %s3 = inlined_call_operand.vmem [shape: f32[2,1], index: 3, kind: input, shape index: {}]
  %s4 = inlined_call_operand.vmem [shape: f32[2,1], index: 4, kind: input, shape index: {}]
  %s5 = inlined_call_operand.vmem [shape: bf16[64,64], index: 5, kind: input, shape index: {}]
  %s6 = inlined_call_operand.vmem [shape: f32[1,64], index: 6, kind: input, shape index: {}]
  %s7 = inlined_call_operand.vmem [shape: bf16[64,64], index: 7, kind: input, shape index: {}]
  %s8 = inlined_call_operand.vmem [shape: f32[1,64], index: 8, kind: input, shape index: {}]
  %s9 = inlined_call_operand.vmem [shape: f32[2,1], index: 9, kind: input, shape index: {}]
  %s10 = inlined_call_operand.vmem [shape: f32[2,1], index: 10, kind: input, shape index: {}]
  %s11 = inlined_call_operand.vmem [shape: f32[2,2,64], index: 11, kind: output, shape index: {}]
  %s12 = sld [smem:[#allocation0]]
  $region77: #{model_forward.30} parent=0
    _
  %s14 = ssub.s32 1, %s12
  %s15 = scalar_select 0, %s14, %s12
  loop: start=0, step=1, limit=4
  $region2: #{model_forward.30} parent=0 // loop_pre_header
    _
  $region3: #{model_forward.30} parent=0 // loop_header
    %s17 = sphi 0, %s21
    %p18 = scmp.ge.s32.totalorder %s17, 4
    %s27 = sphi 0, %s29
    %s30 = sphi 0, %s27
    %s31 = sphi 0, %s30
    %s47 = sphi 0, %s31
    %s51 = sphi 0, %s51
    %s53 = sphi 0, %s51
    %s54 = sphi 0, %s53
    %s68 = sphi 0, %s54
    %s72 = sphi 0, %s72
    %s74 = sphi 0, %s72
    %s75 = sphi 0, %s74
    %s89 = sphi 0, %s75
    %s93 = sphi 0, %s93
    %s95 = sphi 0, %s93
    %s96 = sphi 0, %s95
    %s110 = sphi 0, %s96
    %s114 = sphi 0, %s114
    %s116 = sphi 0, %s114
    %s117 = sphi 0, %s116
    %s131 = sphi 0, %s117
    %s135 = sphi 0, %s135
    %s137 = sphi 0, %s135
    %s138 = sphi 0, %s137
    %s152 = sphi 0, %s138
    %s156 = sphi 0, %s156
    %s158 = sphi 0, %s156
    %s159 = sphi 0, %s158
    %s173 = sphi 0, %s159
    %s177 = sphi 0, %s177
    %s179 = sphi 0, %s177
    %s180 = sphi 0, %s179
    %s194 = sphi 0, %s180
    %s198 = sphi 0, %s198
    %s200 = sphi 0, %s198
    %s201 = sphi 0, %s200
    %s215 = sphi 0, %s201
    %s219 = sphi 0, %s219
    %s221 = sphi 0, %s219
    %s222 = sphi 0, %s221
    %s236 = sphi 0, %s222
    %s240 = sphi 0, %s240
    %s242 = sphi 0, %s240
    %s243 = sphi 0, %s242
    %s257 = sphi 0, %s243
    %s263 = sphi 0, %s265
    %s266 = sphi 0, %s263
    %s267 = sphi 0, %s266
    %s283 = sphi 0, %s267
  $region4: #{model_forward.30} parent=0 // loop_header_branch
    %20 = sbr.rel (%p18) target = $region8
  $region5: #{model_forward.30} parent=0 // loop_body
    %s22 = ssub.s32 %s17, 1
    %s23 = ssub.s32 %s17, 2
    %s24 = sadd.s32 %s17, 1
    %s25 = ssub.s32 %s17, %s24
    %p26 = scmp.eq.s32.totalorder %s25, 0
    %s28 = sadd.s32 %s27, 1
    %s29 = scalar_select %p26, %s27, %s28
    %p32 = pneg %p26
    %p33 = scmp.eq.s32.totalorder %s17, 1
    %p34 = por %p32, %p33
    %p35 = scmp.ne.s32.totalorder %s27, %s30
    %p36 = scmp.eq.s32.totalorder %s17, 0
    %p37 = por %p35, %p36
    %p38 = scmp.ne.s32.totalorder %s27, %s30
    %p39 = scmp.eq.s32.totalorder %s22, 1
    %p40 = por %p38, %p39
    %p41 = scmp.ne.s32.totalorder %s30, %s31
    %p42 = scmp.eq.s32.totalorder %s22, 0
    %p43 = por %p41, %p42
    %p44 = scmp.ne.s32.totalorder %s30, %s31
    %p45 = scmp.eq.s32.totalorder %s23, 1
    %p46 = por %p44, %p45
    %p48 = scmp.ne.s32.totalorder %s31, %s47
    %p49 = scmp.eq.s32.totalorder %s23, 0
    %p50 = por %p48, %p49
    %s52 = sadd.s32 %s51, 1
    %p55 = scmp.eq.s32.totalorder %s17, 1
    %p56 = scmp.ne.s32.totalorder %s51, %s53
    %p57 = scmp.eq.s32.totalorder %s17, 0
    %p58 = por %p56, %p57
    %p59 = scmp.ne.s32.totalorder %s51, %s53
    %p60 = scmp.eq.s32.totalorder %s22, 1
    %p61 = por %p59, %p60
    %p62 = scmp.ne.s32.totalorder %s53, %s54
    %p63 = scmp.eq.s32.totalorder %s22, 0
    %p64 = por %p62, %p63
    %p65 = scmp.ne.s32.totalorder %s53, %s54
    %p66 = scmp.eq.s32.totalorder %s23, 1
    %p67 = por %p65, %p66
    %p69 = scmp.ne.s32.totalorder %s54, %s68
    %p70 = scmp.eq.s32.totalorder %s23, 0
    %p71 = por %p69, %p70
    %s73 = sadd.s32 %s72, 1
    %p76 = scmp.eq.s32.totalorder %s17, 1
    %p77 = scmp.ne.s32.totalorder %s72, %s74
    %p78 = scmp.eq.s32.totalorder %s17, 0
    %p79 = por %p77, %p78
    %p80 = scmp.ne.s32.totalorder %s72, %s74
    %p81 = scmp.eq.s32.totalorder %s22, 1
    %p82 = por %p80, %p81
    %p83 = scmp.ne.s32.totalorder %s74, %s75
    %p84 = scmp.eq.s32.totalorder %s22, 0
    %p85 = por %p83, %p84
    %p86 = scmp.ne.s32.totalorder %s74, %s75
    %p87 = scmp.eq.s32.totalorder %s23, 1
    %p88 = por %p86, %p87
    %p90 = scmp.ne.s32.totalorder %s75, %s89
    %p91 = scmp.eq.s32.totalorder %s23, 0
    %p92 = por %p90, %p91
    %s94 = sadd.s32 %s93, 1
    %p97 = scmp.eq.s32.totalorder %s17, 1
    %p98 = scmp.ne.s32.totalorder %s93, %s95
    %p99 = scmp.eq.s32.totalorder %s17, 0
    %p100 = por %p98, %p99
    %p101 = scmp.ne.s32.totalorder %s93, %s95
    %p102 = scmp.eq.s32.totalorder %s22, 1
    %p103 = por %p101, %p102
    %p104 = scmp.ne.s32.totalorder %s95, %s96
    %p105 = scmp.eq.s32.totalorder %s22, 0
    %p106 = por %p104, %p105
    %p107 = scmp.ne.s32.totalorder %s95, %s96
    %p108 = scmp.eq.s32.totalorder %s23, 1
    %p109 = por %p107, %p108
    %p111 = scmp.ne.s32.totalorder %s96, %s110
    %p112 = scmp.eq.s32.totalorder %s23, 0
    %p113 = por %p111, %p112
    %s115 = sadd.s32 %s114, 1
    %p118 = scmp.eq.s32.totalorder %s17, 1
    %p119 = scmp.ne.s32.totalorder %s114, %s116
    %p120 = scmp.eq.s32.totalorder %s17, 0
    %p121 = por %p119, %p120
    %p122 = scmp.ne.s32.totalorder %s114, %s116
    %p123 = scmp.eq.s32.totalorder %s22, 1
    %p124 = por %p122, %p123
    %p125 = scmp.ne.s32.totalorder %s116, %s117
    %p126 = scmp.eq.s32.totalorder %s22, 0
    %p127 = por %p125, %p126
    %p128 = scmp.ne.s32.totalorder %s116, %s117
    %p129 = scmp.eq.s32.totalorder %s23, 1
    %p130 = por %p128, %p129
    %p132 = scmp.ne.s32.totalorder %s117, %s131
    %p133 = scmp.eq.s32.totalorder %s23, 0
    %p134 = por %p132, %p133
    %s136 = sadd.s32 %s135, 1
    %p139 = scmp.eq.s32.totalorder %s17, 1
    %p140 = scmp.ne.s32.totalorder %s135, %s137
    %p141 = scmp.eq.s32.totalorder %s17, 0
    %p142 = por %p140, %p141
    %p143 = scmp.ne.s32.totalorder %s135, %s137
    %p144 = scmp.eq.s32.totalorder %s22, 1
    %p145 = por %p143, %p144
    %p146 = scmp.ne.s32.totalorder %s137, %s138
    %p147 = scmp.eq.s32.totalorder %s22, 0
    %p148 = por %p146, %p147
    %p149 = scmp.ne.s32.totalorder %s137, %s138
    %p150 = scmp.eq.s32.totalorder %s23, 1
    %p151 = por %p149, %p150
    %p153 = scmp.ne.s32.totalorder %s138, %s152
    %p154 = scmp.eq.s32.totalorder %s23, 0
    %p155 = por %p153, %p154
    %s157 = sadd.s32 %s156, 1
    %p160 = scmp.eq.s32.totalorder %s17, 1
    %p161 = scmp.ne.s32.totalorder %s156, %s158
    %p162 = scmp.eq.s32.totalorder %s17, 0
    %p163 = por %p161, %p162
    %p164 = scmp.ne.s32.totalorder %s156, %s158
    %p165 = scmp.eq.s32.totalorder %s22, 1
    %p166 = por %p164, %p165
    %p167 = scmp.ne.s32.totalorder %s158, %s159
    %p168 = scmp.eq.s32.totalorder %s22, 0
    %p169 = por %p167, %p168
    %p170 = scmp.ne.s32.totalorder %s158, %s159
    %p171 = scmp.eq.s32.totalorder %s23, 1
    %p172 = por %p170, %p171
    %p174 = scmp.ne.s32.totalorder %s159, %s173
    %p175 = scmp.eq.s32.totalorder %s23, 0
    %p176 = por %p174, %p175
    %s178 = sadd.s32 %s177, 1
    %p181 = scmp.eq.s32.totalorder %s17, 1
    %p182 = scmp.ne.s32.totalorder %s177, %s179
    %p183 = scmp.eq.s32.totalorder %s17, 0
    %p184 = por %p182, %p183
    %p185 = scmp.ne.s32.totalorder %s177, %s179
    %p186 = scmp.eq.s32.totalorder %s22, 1
    %p187 = por %p185, %p186
    %p188 = scmp.ne.s32.totalorder %s179, %s180
    %p189 = scmp.eq.s32.totalorder %s22, 0
    %p190 = por %p188, %p189
    %p191 = scmp.ne.s32.totalorder %s179, %s180
    %p192 = scmp.eq.s32.totalorder %s23, 1
    %p193 = por %p191, %p192
    %p195 = scmp.ne.s32.totalorder %s180, %s194
    %p196 = scmp.eq.s32.totalorder %s23, 0
    %p197 = por %p195, %p196
    %s199 = sadd.s32 %s198, 1
    %p202 = scmp.eq.s32.totalorder %s17, 1
    %p203 = scmp.ne.s32.totalorder %s198, %s200
    %p204 = scmp.eq.s32.totalorder %s17, 0
    %p205 = por %p203, %p204
    %p206 = scmp.ne.s32.totalorder %s198, %s200
    %p207 = scmp.eq.s32.totalorder %s22, 1
    %p208 = por %p206, %p207
    %p209 = scmp.ne.s32.totalorder %s200, %s201
    %p210 = scmp.eq.s32.totalorder %s22, 0
    %p211 = por %p209, %p210
    %p212 = scmp.ne.s32.totalorder %s200, %s201
    %p213 = scmp.eq.s32.totalorder %s23, 1
    %p214 = por %p212, %p213
    %p216 = scmp.ne.s32.totalorder %s201, %s215
    %p217 = scmp.eq.s32.totalorder %s23, 0
    %p218 = por %p216, %p217
    %s220 = sadd.s32 %s219, 1
    %p223 = scmp.eq.s32.totalorder %s17, 1
    %p224 = scmp.ne.s32.totalorder %s219, %s221
    %p225 = scmp.eq.s32.totalorder %s17, 0
    %p226 = por %p224, %p225
    %p227 = scmp.ne.s32.totalorder %s219, %s221
    %p228 = scmp.eq.s32.totalorder %s22, 1
    %p229 = por %p227, %p228
    %p230 = scmp.ne.s32.totalorder %s221, %s222
    %p231 = scmp.eq.s32.totalorder %s22, 0
    %p232 = por %p230, %p231
    %p233 = scmp.ne.s32.totalorder %s221, %s222
    %p234 = scmp.eq.s32.totalorder %s23, 1
    %p235 = por %p233, %p234
    %p237 = scmp.ne.s32.totalorder %s222, %s236
    %p238 = scmp.eq.s32.totalorder %s23, 0
    %p239 = por %p237, %p238
    %s241 = sadd.s32 %s240, 1
    %p244 = scmp.eq.s32.totalorder %s17, 1
    %p245 = scmp.ne.s32.totalorder %s240, %s242
    %p246 = scmp.eq.s32.totalorder %s17, 0
    %p247 = por %p245, %p246
    %p248 = scmp.ne.s32.totalorder %s240, %s242
    %p249 = scmp.eq.s32.totalorder %s22, 1
    %p250 = por %p248, %p249
    %p251 = scmp.ne.s32.totalorder %s242, %s243
    %p252 = scmp.eq.s32.totalorder %s22, 0
    %p253 = por %p251, %p252
    %p254 = scmp.ne.s32.totalorder %s242, %s243
    %p255 = scmp.eq.s32.totalorder %s23, 1
    %p256 = por %p254, %p255
    %p258 = scmp.ne.s32.totalorder %s243, %s257
    %p259 = scmp.eq.s32.totalorder %s23, 0
    %p260 = por %p258, %p259
    %s261 = ssub.s32 %s17, %s24
    %p262 = scmp.eq.s32.totalorder %s261, 0
    %s264 = sadd.s32 %s263, 1
    %s265 = scalar_select %p262, %s263, %s264
    %p268 = pneg %p262
    %p269 = scmp.eq.s32.totalorder %s17, 1
    %p270 = por %p268, %p269
    %p271 = scmp.ne.s32.totalorder %s263, %s266
    %p272 = scmp.eq.s32.totalorder %s17, 0
    %p273 = por %p271, %p272
    %p274 = scmp.ne.s32.totalorder %s263, %s266
    %p275 = scmp.eq.s32.totalorder %s22, 1
    %p276 = por %p274, %p275
    %p277 = scmp.ne.s32.totalorder %s266, %s267
    %p278 = scmp.eq.s32.totalorder %s22, 0
    %p279 = por %p277, %p278
    %p280 = scmp.ne.s32.totalorder %s266, %s267
    %p281 = scmp.eq.s32.totalorder %s23, 1
    %p282 = por %p280, %p281
    %p284 = scmp.ne.s32.totalorder %s267, %s283
    %p285 = scmp.eq.s32.totalorder %s23, 0
    %p286 = por %p284, %p285
    %p287 = scmp.le.s32.totalorder 1, %s17
    %p288 = scmp.lt.s32.totalorder %s17, 3
    %p289 = pnand %p287, %p288
    %p290 = pneg %p289
    // Predicated region
    $region9: #{model_forward.30} parent=5 // pred_check
      _
    $region10: #{model_forward.30} parent=5 // pred_check_branch
      %292 = sbr.rel (%p289) target = $region12
    $region11: #{model_forward.30} parent=5 // pred_region
      %s293 = ssub.s32 %s17, 1
      // Predicated region
      $region13: #{model_forward.30} parent=11 // pred_check
        %p294 = pneg %p64
      $region14: #{model_forward.30} parent=11 // pred_check_branch
        %296 = sbr.rel (%p294) target = $region16
      $region15: #{model_forward.30} parent=11 // pred_region
        _
      $region16: #{model_forward.30} parent=11 // pred_fallthru
        _
      // Predicated region
      $region17: #{model_forward.30} parent=11 // pred_check
        %p297 = pneg %p85
      $region18: #{model_forward.30} parent=11 // pred_check_branch
        %299 = sbr.rel (%p297) target = $region20
      $region19: #{model_forward.30} parent=11 // pred_region
        _
      $region20: #{model_forward.30} parent=11 // pred_fallthru
        _
      // Predicated region
      $region21: #{model_forward.30} parent=11 // pred_check
        %p300 = pneg %p106
      $region22: #{model_forward.30} parent=11 // pred_check_branch
        %302 = sbr.rel (%p300) target = $region24
      $region23: #{model_forward.30} parent=11 // pred_region
        _
      $region24: #{model_forward.30} parent=11 // pred_fallthru
        _
      // Predicated region
      $region25: #{model_forward.30} parent=11 // pred_check
        %p303 = pneg %p127
      $region26: #{model_forward.30} parent=11 // pred_check_branch
        %305 = sbr.rel (%p303) target = $region28
      $region27: #{model_forward.30} parent=11 // pred_region
        _
      $region28: #{model_forward.30} parent=11 // pred_fallthru
        _
      // Predicated region
      $region29: #{model_forward.30} parent=11 // pred_check
        %p306 = pneg %p148
      $region30: #{model_forward.30} parent=11 // pred_check_branch
        %308 = sbr.rel (%p306) target = $region32
      $region31: #{model_forward.30} parent=11 // pred_region
        _
      $region32: #{model_forward.30} parent=11 // pred_fallthru
        _
      // Predicated region
      $region33: #{model_forward.30} parent=11 // pred_check
        %p309 = pneg %p169
      $region34: #{model_forward.30} parent=11 // pred_check_branch
        %311 = sbr.rel (%p309) target = $region36
      $region35: #{model_forward.30} parent=11 // pred_region
        _
      $region36: #{model_forward.30} parent=11 // pred_fallthru
        _
      // Predicated region
      $region37: #{model_forward.30} parent=11 // pred_check
        %p312 = pneg %p190
      $region38: #{model_forward.30} parent=11 // pred_check_branch
        %314 = sbr.rel (%p312) target = $region40
      $region39: #{model_forward.30} parent=11 // pred_region
        _
      $region40: #{model_forward.30} parent=11 // pred_fallthru
        _
      // Predicated region
      $region41: #{model_forward.30} parent=11 // pred_check
        %p315 = pneg %p211
      $region42: #{model_forward.30} parent=11 // pred_check_branch
        %317 = sbr.rel (%p315) target = $region44
      $region43: #{model_forward.30} parent=11 // pred_region
        _
      $region44: #{model_forward.30} parent=11 // pred_fallthru
        _
      // Predicated region
      $region45: #{model_forward.30} parent=11 // pred_check
        %p318 = pneg %p232
      $region46: #{model_forward.30} parent=11 // pred_check_branch
        %320 = sbr.rel (%p318) target = $region48
      $region47: #{model_forward.30} parent=11 // pred_region
        _
      $region48: #{model_forward.30} parent=11 // pred_fallthru
        _
      // Predicated region
      $region49: #{model_forward.30} parent=11 // pred_check
        %p321 = pneg %p253
      $region50: #{model_forward.30} parent=11 // pred_check_branch
        %323 = sbr.rel (%p321) target = $region52
      $region51: #{model_forward.30} parent=11 // pred_region
        _
      $region52: #{model_forward.30} parent=11 // pred_fallthru
        _
    $region12: #{model_forward.30} parent=5 // pred_fallthru
      _
    %p324 = scmp.lt.s32.totalorder %s17, 2
    // Predicated region
    $region53: #{model_forward.30} parent=5 // pred_check
      %p325 = pneg %p324
    $region54: #{model_forward.30} parent=5 // pred_check_branch
      %327 = sbr.rel (%p325) target = $region56
    $region55: #{model_forward.30} parent=5 // pred_region
      // Predicated region
      $region57: #{model_forward.30} parent=55 // pred_check
        %p328 = pneg %p37
      $region58: #{model_forward.30} parent=55 // pred_check_branch
        %330 = sbr.rel (%p328) target = $region60
      $region59: #{model_forward.30} parent=55 // pred_region
        %p331 = scmp.lt.s32.totalorder %s17, 1
        %s332 = scalar_select %p331, %s17, 1
        %s333 = smul.addr %s332, 2
        %s334 = scalar_lea.vmem %s0, %s333
      $region60: #{model_forward.30} parent=55 // pred_fallthru
        _
    $region56: #{model_forward.30} parent=5 // pred_fallthru
      _
    %p335 = scmp.le.s32.totalorder 1, %s17
    %p336 = scmp.lt.s32.totalorder %s17, 3
    %p337 = pnand %p335, %p336
    %p338 = pneg %p337
    // Predicated region
    $region61: #{model_forward.30} parent=5 // pred_check
      _
    $region62: #{model_forward.30} parent=5 // pred_check_branch
      %340 = sbr.rel (%p337) target = $region64
    $region63: #{model_forward.30} parent=5 // pred_region
      %s341 = ssub.s32 %s17, 1
      %p342 = scmp.lt.s32.totalorder %s22, 1
      %s343 = scalar_select %p342, %s22, 1
      %s344 = smul.addr %s343, 2
      %s345 = scalar_lea.vmem %s0, %s344
      %p346 = pneg %p43
      %p347 = pneg %p40
      %p348 = pneg %p64
      %p349 = pneg %p61
      %p350 = pneg %p85
      %p351 = pneg %p82
      %p352 = pneg %p106
      %p353 = pneg %p103
      %p354 = pneg %p127
      %p355 = pneg %p124
      %p356 = pneg %p148
      %p357 = pneg %p145
      %p358 = pneg %p169
      %p359 = pneg %p166
      %p360 = pneg %p190
      %p361 = pneg %p187
      %p362 = pneg %p211
      %p363 = pneg %p208
      %p364 = pneg %p232
      %p365 = pneg %p229
      %p366 = pneg %p253
      %p367 = pneg %p250
      %p368 = pneg %p279
      %p369 = pneg %p276
      %p370 = scmp.lt.s32.totalorder %s22, 1
      %s371 = scalar_select %p370, %s22, 1
      %s372 = smul.addr %s371, 2
      %s373 = scalar_lea.vmem %s11, %s372
      %p374 = scmp.lt.s32.totalorder %s22, 1
      %s375 = scalar_select %p374, %s22, 1
      %s376 = smul.addr %s375, 2
      %s377 = scalar_lea.vmem %s0, %s376
      %p378 = scmp.lt.s32.totalorder %s22, 1
      %s379 = scalar_select %p378, %s22, 1
      %s380 = smul.addr %s379, 2
      %s381 = scalar_lea.vmem %s11, %s380
      %v383 = vld [vmem:[%s377] sm:$0x3]
      %v384 = vpack.c.bf16 %v383, %v383
      %v385 = vld [vmem:[%s1] sm:$0xf]
      %v386 = vld [vmem:[%s1 + $0x4] sm:$0xf]
      %v387 = vld [vmem:[%s1 + $0x8] sm:$0xf]
      %v388 = vld [vmem:[%s1 + $0xc] sm:$0xf]
      %v389 = vld [vmem:[%s2] sm:$0x1]
      %v391 = vlaneseq
      %v392 = vshrl.u32 %v391, 7
      %v393 = vsub.s32 0, %v392
      %v394 = vrot.slane %v389, %v393
      %v400 = vunpack.c.l.b16 %v385
      %v401 = vunpack.c.l.b16 %v386
      %v402 = vunpack.c.l.b16 %v387
      %v403 = vunpack.c.l.b16 %v388
      %v404 = vpack.c.b16 %v401, %v400
      %v405 = vpack.c.b16 %v403, %v402
      %vm408 = vcmask 261120
      %v410 = vsel %vm408, %v384, 0
      %412 = vmatprep.subr.bf16.mxu0 0
      %413 = vmatpush1.bf16.msra.mxu0 0
      %414 = vmatprep.subr.bf16.mxu0 0
      %415 = vmatpush1.bf16.msra.mxu0 0
      %416 = vmatprep.subr.bf16.mxu0 0
      %417 = vmatpush1.bf16.msra.mxu0 0
      %418 = vmatprep.subr.bf16.mxu0 0
      %419 = vmatpush1.bf16.msra.mxu0 0
      %420 = vmatprep.subr.bf16.mxu0 0
      %421 = vmatpush1.bf16.msra.mxu0 0
      %422 = vmatprep.subr.bf16.mxu0 0
      %423 = vmatpush1.bf16.msra.mxu0 0
      %424 = vmatprep.subr.bf16.mxu0 0
      %425 = vmatpush1.bf16.msra.mxu0 %v405
      %426 = vmatprep.subr.bf16.mxu0 0
      %427 = vmatpush1.bf16.msra.mxu0 %v404
      %428 = vmatprep.subr.bf16.mxu0 0
      %429 = vmatpush2.bf16.msra.mxu0 0
      %430 = vmatprep.subr.bf16.mxu0 0
      %431 = vmatpush2.bf16.msra.mxu0 0
      %432 = vmatprep.subr.bf16.mxu0 0
      %433 = vmatpush2.bf16.msra.mxu0 0
      %434 = vmatprep.subr.bf16.mxu0 0
      %435 = vmatpush2.bf16.msra.mxu0 0
      %436 = vmatprep.subr.bf16.mxu0 0
      %437 = vmatpush2.bf16.msra.mxu0 0
      %438 = vmatprep.subr.bf16.mxu0 0
      %439 = vmatpush2.bf16.msra.mxu0 0
      %440 = vmatprep.subr.bf16.mxu0 0
      %441 = vmatpush2.bf16.msra.mxu0 0
      %442 = vmatprep.subr.bf16.mxu0 0
      %443 = vmatpush2.bf16.msra.mxu0 0
      %444 = vmatprep.mubr.bf16.mxu0 0
      %445 = vmatmul.mubr.bf16.gmra.mxu0 %v410
      %v446 = vpop.f32.mrf.mxu0
      %v447 = vadd.f32 %v394, %v446
      %v448 = vpop.f32.mrf.mxu0
      %v449 = vpop.f32.mrf.mxu0
      %v450 = vpop.f32.mrf.mxu0
      %451 = vdwg.mxu0
      %v452 = vld [vmem:[%s3] sm:$0x3]
      %454 = vset.pattern.permute.xlu0 0
      %455 = vperm.xlu0 %454, %v452
      %v456 = vpop.permute.xlu0 %455
      %v458 = vmul.f32 %v447, %v456
      %v459 = vld [vmem:[%s4] sm:$0x3]
      %461 = vset.pattern.permute.xlu0 0
      %462 = vperm.xlu0 %461, %v459
      %v463 = vpop.permute.xlu0 %462
      %v465 = vadd.f32 %v458, %v463
      %v466 = vpack.c.bf16 %v465, %v465
      %v467 = vld [vmem:[%s5] sm:$0xf]
      %v468 = vld [vmem:[%s5 + $0x4] sm:$0xf]
      %v469 = vld [vmem:[%s5 + $0x8] sm:$0xf]
      %v470 = vld [vmem:[%s5 + $0xc] sm:$0xf]
      %v471 = vld [vmem:[%s5 + $0x10] sm:$0xf]
      %v472 = vld [vmem:[%s5 + $0x14] sm:$0xf]
      %v473 = vld [vmem:[%s5 + $0x18] sm:$0xf]
      %v474 = vld [vmem:[%s5 + $0x1c] sm:$0xf]
      %v475 = vld [vmem:[%s6] sm:$0x1]
      %v477 = vlaneseq
      %v478 = vshrl.u32 %v477, 7
      %v479 = vsub.s32 0, %v478
      %v480 = vrot.slane %v475, %v479
      %v490 = vunpack.c.l.b16 %v467
      %v491 = vunpack.c.l.b16 %v468
      %v492 = vunpack.c.l.b16 %v469
      %v493 = vunpack.c.l.b16 %v470
      %v494 = vunpack.c.l.b16 %v471
      %v495 = vunpack.c.l.b16 %v472
      %v496 = vunpack.c.l.b16 %v473
      %v497 = vunpack.c.l.b16 %v474
      %v498 = vpack.c.b16 %v491, %v490
      %v499 = vpack.c.b16 %v493, %v492
      %v500 = vpack.c.b16 %v495, %v494
      %v501 = vpack.c.b16 %v497, %v496
      %vm506 = vcmask 523264
      %v508 = vsel %vm506, %v466, 0
      %510 = vmatprep.subr.bf16.mxu0 0
      %511 = vmatpush1.bf16.msra.mxu0 0
      %512 = vmatprep.subr.bf16.mxu0 0
      %513 = vmatpush1.bf16.msra.mxu0 0
      %514 = vmatprep.subr.bf16.mxu0 0
      %515 = vmatpush1.bf16.msra.mxu0 0
      %516 = vmatprep.subr.bf16.mxu0 0
      %517 = vmatpush1.bf16.msra.mxu0 0
      %518 = vmatprep.subr.bf16.mxu0 0
      %519 = vmatpush1.bf16.msra.mxu0 %v501
      %520 = vmatprep.subr.bf16.mxu0 0
      %521 = vmatpush1.bf16.msra.mxu0 %v500
      %522 = vmatprep.subr.bf16.mxu0 0
      %523 = vmatpush1.bf16.msra.mxu0 %v499
      %524 = vmatprep.subr.bf16.mxu0 0
      %525 = vmatpush1.bf16.msra.mxu0 %v498
      %526 = vmatprep.subr.bf16.mxu0 0
      %527 = vmatpush2.bf16.msra.mxu0 0
      %528 = vmatprep.subr.bf16.mxu0 0
      %529 = vmatpush2.bf16.msra.mxu0 0
      %530 = vmatprep.subr.bf16.mxu0 0
      %531 = vmatpush2.bf16.msra.mxu0 0
      %532 = vmatprep.subr.bf16.mxu0 0
      %533 = vmatpush2.bf16.msra.mxu0 0
      %534 = vmatprep.subr.bf16.mxu0 0
      %535 = vmatpush2.bf16.msra.mxu0 0
      %536 = vmatprep.subr.bf16.mxu0 0
      %537 = vmatpush2.bf16.msra.mxu0 0
      %538 = vmatprep.subr.bf16.mxu0 0
      %539 = vmatpush2.bf16.msra.mxu0 0
      %540 = vmatprep.subr.bf16.mxu0 0
      %541 = vmatpush2.bf16.msra.mxu0 0
      %542 = vmatprep.mubr.bf16.mxu0 0
      %543 = vmatmul.mubr.bf16.gmra.mxu0 %v508
      %v544 = vpop.f32.mrf.mxu0
      %v545 = vadd.f32 %v480, %v544
      %v546 = vpop.f32.mrf.mxu0
      %v547 = vpop.f32.mrf.mxu0
      %v548 = vpop.f32.mrf.mxu0
      %549 = vdwg.mxu0
      %v550 = vmul.f32 %v545, 0.5
      %v551 = vmul.f32 %v545, 0.70710677
      %vm552 = vcmp.lt.f32.partialorder %v551, 0.0
      %v553 = vsel %vm552, -1.0, 1.0
      %v554 = vand.u32 2147483647, %v551
      %v555 = vmul.f32 %v554, 0.3275911
      %v556 = vadd.f32 %v555, 1.0
      %v557 = vrcp.pop %v556
      %v558 = vmul.f32 1.0, %v557
      %v559 = vmul.f32 %v558, 1.0614054
      %v560 = vadd.f32 %v559, -1.4531521
      %v561 = vmul.f32 %v560, %v558
      %v562 = vadd.f32 %v561, 1.4214138
      %v563 = vmul.f32 %v562, %v558
      %v564 = vadd.f32 %v563, -0.28449672
      %v565 = vmul.f32 %v564, %v558
      %v566 = vadd.f32 %v565, 0.2548296
      %v567 = vmul.f32 %v566, %v558
      %v568 = vsub.f32 0.0, %v554
      %v569 = vmul.f32 %v568, %v554
      %v570 = vmul.f32 %v569, 1.442695
      %v571 = vpow.pop %v570
      %v572 = vmul.f32 %v567, %v571
      %v573 = vsub.f32 1.0, %v572
      %v574 = vmul.f32 %v553, %v573
      %v575 = vadd.f32 %v574, 1.0
      %v576 = vmul.f32 %v550, %v575
      %v577 = vpack.c.bf16 %v576, %v576
      %v578 = vld [vmem:[%s7] sm:$0xf]
      %v579 = vld [vmem:[%s7 + $0x4] sm:$0xf]
      %v580 = vld [vmem:[%s7 + $0x8] sm:$0xf]
      %v581 = vld [vmem:[%s7 + $0xc] sm:$0xf]
      %v582 = vld [vmem:[%s7 + $0x10] sm:$0xf]
      %v583 = vld [vmem:[%s7 + $0x14] sm:$0xf]
      %v584 = vld [vmem:[%s7 + $0x18] sm:$0xf]
      %v585 = vld [vmem:[%s7 + $0x1c] sm:$0xf]
      %v586 = vld [vmem:[%s8] sm:$0x1]
      %v588 = vlaneseq
      %v589 = vshrl.u32 %v588, 7
      %v590 = vsub.s32 0, %v589
      %v591 = vrot.slane %v586, %v590
      %v601 = vunpack.c.l.b16 %v578
      %v602 = vunpack.c.l.b16 %v579
      %v603 = vunpack.c.l.b16 %v580
      %v604 = vunpack.c.l.b16 %v581
      %v605 = vunpack.c.l.b16 %v582
      %v606 = vunpack.c.l.b16 %v583
      %v607 = vunpack.c.l.b16 %v584
      %v608 = vunpack.c.l.b16 %v585
      %v609 = vpack.c.b16 %v602, %v601
      %v610 = vpack.c.b16 %v604, %v603
      %v611 = vpack.c.b16 %v606, %v605
      %v612 = vpack.c.b16 %v608, %v607
      %v618 = vsel %vm506, %v577, 0
      %620 = vmatprep.subr.bf16.mxu0 0
      %621 = vmatpush1.bf16.msra.mxu0 0
      %622 = vmatprep.subr.bf16.mxu0 0
      %623 = vmatpush1.bf16.msra.mxu0 0
      %624 = vmatprep.subr.bf16.mxu0 0
      %625 = vmatpush1.bf16.msra.mxu0 0
      %626 = vmatprep.subr.bf16.mxu0 0
      %627 = vmatpush1.bf16.msra.mxu0 0
      %628 = vmatprep.subr.bf16.mxu0 0
      %629 = vmatpush1.bf16.msra.mxu0 %v612
      %630 = vmatprep.subr.bf16.mxu0 0
      %631 = vmatpush1.bf16.msra.mxu0 %v611
      %632 = vmatprep.subr.bf16.mxu0 0
      %633 = vmatpush1.bf16.msra.mxu0 %v610
      %634 = vmatprep.subr.bf16.mxu0 0
      %635 = vmatpush1.bf16.msra.mxu0 %v609
      %636 = vmatprep.subr.bf16.mxu0 0
      %637 = vmatpush2.bf16.msra.mxu0 0
      %638 = vmatprep.subr.bf16.mxu0 0
      %639 = vmatpush2.bf16.msra.mxu0 0
      %640 = vmatprep.subr.bf16.mxu0 0
      %641 = vmatpush2.bf16.msra.mxu0 0
      %642 = vmatprep.subr.bf16.mxu0 0
      %643 = vmatpush2.bf16.msra.mxu0 0
      %644 = vmatprep.subr.bf16.mxu0 0
      %645 = vmatpush2.bf16.msra.mxu0 0
      %646 = vmatprep.subr.bf16.mxu0 0
      %647 = vmatpush2.bf16.msra.mxu0 0
      %648 = vmatprep.subr.bf16.mxu0 0
      %649 = vmatpush2.bf16.msra.mxu0 0
      %650 = vmatprep.subr.bf16.mxu0 0
      %651 = vmatpush2.bf16.msra.mxu0 0
      %652 = vmatprep.mubr.bf16.mxu0 0
      %653 = vmatmul.mubr.bf16.gmra.mxu0 %v618
      %v654 = vpop.f32.mrf.mxu0
      %v655 = vadd.f32 %v591, %v654
      %v656 = vpop.f32.mrf.mxu0
      %v657 = vpop.f32.mrf.mxu0
      %v658 = vpop.f32.mrf.mxu0
      %659 = vdwg.mxu0
      %v660 = vadd.f32 %v655, %v465
      %v661 = vld [vmem:[%s9] sm:$0x3]
      %663 = vset.pattern.permute.xlu0 0
      %664 = vperm.xlu0 %663, %v661
      %v665 = vpop.permute.xlu0 %664
      %v667 = vmul.f32 %v660, %v665
      %v668 = vld [vmem:[%s10] sm:$0x3]
      %670 = vset.pattern.permute.xlu0 0
      %671 = vperm.xlu0 %670, %v668
      %v672 = vpop.permute.xlu0 %671
      %v674 = vadd.f32 %v667, %v672
      %vm675 = vcmask 517120
      %676 = vst.msk [vmem:[%s381] sm:$0x3] %vm675, %v674
      %p677 = scmp.lt.s32.totalorder %s22, 1
      %s678 = scalar_select %p677, %s22, 1
      %s679 = smul.addr %s678, 2
      %s680 = scalar_lea.vmem %s11, %s679
      // Predicated region
      $region65: #{model_forward.30} parent=63 // pred_check
        %p681 = pneg %p276
      $region66: #{model_forward.30} parent=63 // pred_check_branch
        %683 = sbr.rel (%p681) target = $region68
      $region67: #{model_forward.30} parent=63 // pred_region
        _
      $region68: #{model_forward.30} parent=63 // pred_fallthru
        _
    $region64: #{model_forward.30} parent=5 // pred_fallthru
      _
    %p684 = scmp.le.s32.totalorder 2, %s17
    // Predicated region
    $region69: #{model_forward.30} parent=5 // pred_check
      %p685 = pneg %p684
    $region70: #{model_forward.30} parent=5 // pred_check_branch
      %687 = sbr.rel (%p685) target = $region72
    $region71: #{model_forward.30} parent=5 // pred_region
      %s688 = ssub.s32 %s17, 2
      // Predicated region
      $region73: #{model_forward.30} parent=71 // pred_check
        %p689 = pneg %p282
      $region74: #{model_forward.30} parent=71 // pred_check_branch
        %691 = sbr.rel (%p689) target = $region76
      $region75: #{model_forward.30} parent=71 // pred_region
        %p692 = scmp.lt.s32.totalorder %s23, 1
        %s693 = scalar_select %p692, %s23, 1
        %s694 = smul.addr %s693, 2
        %s695 = scalar_lea.vmem %s11, %s694
      $region76: #{model_forward.30} parent=71 // pred_fallthru
        _
    $region72: #{model_forward.30} parent=5 // pred_fallthru
      _
  $region6: #{model_forward.30} parent=0 // loop_footer
    %s21 = sadd.s32 1, %s17
  $region7: #{model_forward.30} parent=0 // loop_footer_branch
    %16 = sbr.rel target = $region3
  $region8: #{model_forward.30} parent=0 // loop_exit
    _

// kernel: model_forward.34
$region0: #{model_forward.34}
  #allocation0 [shape = 'u32[]', space=smem, size = 0x4, offset = 0x4, fixed_abs, tag = 'smem constant byte address 0x4 - core index']
  #allocation1 [shape = 'u32[144,128]{1,0:T(1,128)}', space=vmem, size = 0x12000, scoped, tag = 'internal scratch']
  %s0 = inlined_call_operand.vmem [shape: f32[2,8,32], index: 0, kind: input, shape index: {}]
  %s1 = inlined_call_operand.vmem [shape: bf16[4,8], index: 1, kind: input, shape index: {}]
  %s2 = inlined_call_operand.vmem [shape: bf16[32,96], index: 2, kind: input, shape index: {}]
  %s3 = inlined_call_operand.vmem [shape: f32[1,96], index: 3, kind: input, shape index: {}]
  %s4 = inlined_call_operand.vmem [shape: f32[2,4,96], index: 4, kind: output, shape index: {}]
  %s5 = sld [smem:[#allocation0]]
  $region49: #{model_forward.34} parent=0
    _
  %s7 = ssub.s32 1, %s5
  %s8 = scalar_select 0, %s7, %s5
  loop: start=0, step=1, limit=4
  $region2: #{model_forward.34} parent=0 // loop_pre_header
    _
  $region3: #{model_forward.34} parent=0 // loop_header
    %s10 = sphi 0, %s14
    %p11 = scmp.ge.s32.totalorder %s10, 4
    %s20 = sphi 0, %s22
    %s23 = sphi 0, %s20
    %s24 = sphi 0, %s23
    %s40 = sphi 0, %s24
    %s44 = sphi 0, %s44
    %s46 = sphi 0, %s44
    %s47 = sphi 0, %s46
    %s61 = sphi 0, %s47
    %s65 = sphi 0, %s65
    %s67 = sphi 0, %s65
    %s68 = sphi 0, %s67
    %s82 = sphi 0, %s68
    %s86 = sphi 0, %s86
    %s88 = sphi 0, %s86
    %s89 = sphi 0, %s88
    %s103 = sphi 0, %s89
    %s109 = sphi 0, %s111
    %s112 = sphi 0, %s109
    %s113 = sphi 0, %s112
    %s129 = sphi 0, %s113
  $region4: #{model_forward.34} parent=0 // loop_header_branch
    %13 = sbr.rel (%p11) target = $region8
  $region5: #{model_forward.34} parent=0 // loop_body
    %s15 = ssub.s32 %s10, 1
    %s16 = ssub.s32 %s10, 2
    %s17 = sadd.s32 %s10, 1
    %s18 = ssub.s32 %s10, %s17
    %p19 = scmp.eq.s32.totalorder %s18, 0
    %s21 = sadd.s32 %s20, 1
    %s22 = scalar_select %p19, %s20, %s21
    %p25 = pneg %p19
    %p26 = scmp.eq.s32.totalorder %s10, 1
    %p27 = por %p25, %p26
    %p28 = scmp.ne.s32.totalorder %s20, %s23
    %p29 = scmp.eq.s32.totalorder %s10, 0
    %p30 = por %p28, %p29
    %p31 = scmp.ne.s32.totalorder %s20, %s23
    %p32 = scmp.eq.s32.totalorder %s15, 1
    %p33 = por %p31, %p32
    %p34 = scmp.ne.s32.totalorder %s23, %s24
    %p35 = scmp.eq.s32.totalorder %s15, 0
    %p36 = por %p34, %p35
    %p37 = scmp.ne.s32.totalorder %s23, %s24
    %p38 = scmp.eq.s32.totalorder %s16, 1
    %p39 = por %p37, %p38
    %p41 = scmp.ne.s32.totalorder %s24, %s40
    %p42 = scmp.eq.s32.totalorder %s16, 0
    %p43 = por %p41, %p42
    %s45 = sadd.s32 %s44, 1
    %p48 = scmp.eq.s32.totalorder %s10, 1
    %p49 = scmp.ne.s32.totalorder %s44, %s46
    %p50 = scmp.eq.s32.totalorder %s10, 0
    %p51 = por %p49, %p50
    %p52 = scmp.ne.s32.totalorder %s44, %s46
    %p53 = scmp.eq.s32.totalorder %s15, 1
    %p54 = por %p52, %p53
    %p55 = scmp.ne.s32.totalorder %s46, %s47
    %p56 = scmp.eq.s32.totalorder %s15, 0
    %p57 = por %p55, %p56
    %p58 = scmp.ne.s32.totalorder %s46, %s47
    %p59 = scmp.eq.s32.totalorder %s16, 1
    %p60 = por %p58, %p59
    %p62 = scmp.ne.s32.totalorder %s47, %s61
    %p63 = scmp.eq.s32.totalorder %s16, 0
    %p64 = por %p62, %p63
    %s66 = sadd.s32 %s65, 1
    %p69 = scmp.eq.s32.totalorder %s10, 1
    %p70 = scmp.ne.s32.totalorder %s65, %s67
    %p71 = scmp.eq.s32.totalorder %s10, 0
    %p72 = por %p70, %p71
    %p73 = scmp.ne.s32.totalorder %s65, %s67
    %p74 = scmp.eq.s32.totalorder %s15, 1
    %p75 = por %p73, %p74
    %p76 = scmp.ne.s32.totalorder %s67, %s68
    %p77 = scmp.eq.s32.totalorder %s15, 0
    %p78 = por %p76, %p77
    %p79 = scmp.ne.s32.totalorder %s67, %s68
    %p80 = scmp.eq.s32.totalorder %s16, 1
    %p81 = por %p79, %p80
    %p83 = scmp.ne.s32.totalorder %s68, %s82
    %p84 = scmp.eq.s32.totalorder %s16, 0
    %p85 = por %p83, %p84
    %s87 = sadd.s32 %s86, 1
    %p90 = scmp.eq.s32.totalorder %s10, 1
    %p91 = scmp.ne.s32.totalorder %s86, %s88
    %p92 = scmp.eq.s32.totalorder %s10, 0
    %p93 = por %p91, %p92
    %p94 = scmp.ne.s32.totalorder %s86, %s88
    %p95 = scmp.eq.s32.totalorder %s15, 1
    %p96 = por %p94, %p95
    %p97 = scmp.ne.s32.totalorder %s88, %s89
    %p98 = scmp.eq.s32.totalorder %s15, 0
    %p99 = por %p97, %p98
    %p100 = scmp.ne.s32.totalorder %s88, %s89
    %p101 = scmp.eq.s32.totalorder %s16, 1
    %p102 = por %p100, %p101
    %p104 = scmp.ne.s32.totalorder %s89, %s103
    %p105 = scmp.eq.s32.totalorder %s16, 0
    %p106 = por %p104, %p105
    %s107 = ssub.s32 %s10, %s17
    %p108 = scmp.eq.s32.totalorder %s107, 0
    %s110 = sadd.s32 %s109, 1
    %s111 = scalar_select %p108, %s109, %s110
    %p114 = pneg %p108
    %p115 = scmp.eq.s32.totalorder %s10, 1
    %p116 = por %p114, %p115
    %p117 = scmp.ne.s32.totalorder %s109, %s112
    %p118 = scmp.eq.s32.totalorder %s10, 0
    %p119 = por %p117, %p118
    %p120 = scmp.ne.s32.totalorder %s109, %s112
    %p121 = scmp.eq.s32.totalorder %s15, 1
    %p122 = por %p120, %p121
    %p123 = scmp.ne.s32.totalorder %s112, %s113
    %p124 = scmp.eq.s32.totalorder %s15, 0
    %p125 = por %p123, %p124
    %p126 = scmp.ne.s32.totalorder %s112, %s113
    %p127 = scmp.eq.s32.totalorder %s16, 1
    %p128 = por %p126, %p127
    %p130 = scmp.ne.s32.totalorder %s113, %s129
    %p131 = scmp.eq.s32.totalorder %s16, 0
    %p132 = por %p130, %p131
    %p133 = scmp.le.s32.totalorder 1, %s10
    %p134 = scmp.lt.s32.totalorder %s10, 3
    %p135 = pnand %p133, %p134
    %p136 = pneg %p135
    // Predicated region
    $region9: #{model_forward.34} parent=5 // pred_check
      _
    $region10: #{model_forward.34} parent=5 // pred_check_branch
      %138 = sbr.rel (%p135) target = $region12
    $region11: #{model_forward.34} parent=5 // pred_region
      %s139 = ssub.s32 %s10, 1
      // Predicated region
      $region13: #{model_forward.34} parent=11 // pred_check
        %p140 = pneg %p57
      $region14: #{model_forward.34} parent=11 // pred_check_branch
        %142 = sbr.rel (%p140) target = $region16
      $region15: #{model_forward.34} parent=11 // pred_region
        _
      $region16: #{model_forward.34} parent=11 // pred_fallthru
        _
      // Predicated region
      $region17: #{model_forward.34} parent=11 // pred_check
        %p143 = pneg %p78
      $region18: #{model_forward.34} parent=11 // pred_check_branch
        %145 = sbr.rel (%p143) target = $region20
      $region19: #{model_forward.34} parent=11 // pred_region
        _
      $region20: #{model_forward.34} parent=11 // pred_fallthru
        _
      // Predicated region
      $region21: #{model_forward.34} parent=11 // pred_check
        %p146 = pneg %p99
      $region22: #{model_forward.34} parent=11 // pred_check_branch
        %148 = sbr.rel (%p146) target = $region24
      $region23: #{model_forward.34} parent=11 // pred_region
        _
      $region24: #{model_forward.34} parent=11 // pred_fallthru
        _
    $region12: #{model_forward.34} parent=5 // pred_fallthru
      _
    %p149 = scmp.lt.s32.totalorder %s10, 2
    // Predicated region
    $region25: #{model_forward.34} parent=5 // pred_check
      %p150 = pneg %p149
    $region26: #{model_forward.34} parent=5 // pred_check_branch
      %152 = sbr.rel (%p150) target = $region28
    $region27: #{model_forward.34} parent=5 // pred_region
      // Predicated region
      $region29: #{model_forward.34} parent=27 // pred_check
        %p153 = pneg %p30
      $region30: #{model_forward.34} parent=27 // pred_check_branch
        %155 = sbr.rel (%p153) target = $region32
      $region31: #{model_forward.34} parent=27 // pred_region
        %p156 = scmp.lt.s32.totalorder %s10, 1
        %s157 = scalar_select %p156, %s10, 1
        %s158 = smul.addr %s157, 8
        %s159 = scalar_lea.vmem %s0, %s158
      $region32: #{model_forward.34} parent=27 // pred_fallthru
        _
    $region28: #{model_forward.34} parent=5 // pred_fallthru
      _
    %p160 = scmp.le.s32.totalorder 1, %s10
    %p161 = scmp.lt.s32.totalorder %s10, 3
    %p162 = pnand %p160, %p161
    %p163 = pneg %p162
    // Predicated region
    $region33: #{model_forward.34} parent=5 // pred_check
      _
    $region34: #{model_forward.34} parent=5 // pred_check_branch
      %165 = sbr.rel (%p162) target = $region36
    $region35: #{model_forward.34} parent=5 // pred_region
      %s166 = ssub.s32 %s10, 1
      %p167 = scmp.lt.s32.totalorder %s15, 1
      %s168 = scalar_select %p167, %s15, 1
      %s169 = smul.addr %s168, 8
      %s170 = scalar_lea.vmem %s0, %s169
      %p171 = pneg %p36
      %p172 = pneg %p33
      %p173 = pneg %p57
      %p174 = pneg %p54
      %p175 = pneg %p78
      %p176 = pneg %p75
      %p177 = pneg %p99
      %p178 = pneg %p96
      %p179 = pneg %p125
      %p180 = pneg %p122
      %p181 = scmp.lt.s32.totalorder %s15, 1
      %s182 = scalar_select %p181, %s15, 1
      %s183 = smul.addr %s182, 4
      %s184 = scalar_lea.vmem %s4, %s183
      %p185 = scmp.lt.s32.totalorder %s15, 1
      %s186 = scalar_select %p185, %s15, 1
      %s187 = smul.addr %s186, 8
      %s188 = scalar_lea.vmem %s0, %s187
      %p189 = scmp.lt.s32.totalorder %s15, 1
      %s190 = scalar_select %p189, %s15, 1
      %s191 = smul.addr %s190, 4
      %s192 = scalar_lea.vmem %s4, %s191
      %v194 = vld [vmem:[%s188] sm:$0xff]
      %v195 = vpack.c.bf16 %v194, %v194
      %v196 = vld [vmem:[%s1] sm:$0x3]
      %vm197 = vcmask 64512
      %v199 = vsel %vm197, %v196, 0
      %vm201 = vcmask 1043456
      %v203 = vsel %vm201, %v195, 0
      %205 = vmatprep.subr.bf16.mxu0 0
      %206 = vmatpush1.bf16.msra.mxu0 0
      %207 = vmatprep.subr.bf16.mxu0 0
      %208 = vmatpush1.bf16.msra.mxu0 0
      %209 = vmatprep.subr.bf16.mxu0 0
      %210 = vmatpush1.bf16.msra.mxu0 0
      %211 = vmatprep.subr.bf16.mxu0 0
      %212 = vmatpush1.bf16.msra.mxu0 0
      %213 = vmatprep.subr.bf16.mxu0 0
      %214 = vmatpush1.bf16.msra.mxu0 0
      %215 = vmatprep.subr.bf16.mxu0 0
      %216 = vmatpush1.bf16.msra.mxu0 0
      %217 = vmatprep.subr.bf16.mxu0 0
      %218 = vmatpush1.bf16.msra.mxu0 0
      %219 = vmatprep.subr.bf16.mxu0 0
      %220 = vmatpush1.bf16.msra.mxu0 %v203
      %221 = vmatprep.subr.bf16.mxu0 0
      %222 = vmatpush2.bf16.msra.mxu0 0
      %223 = vmatprep.subr.bf16.mxu0 0
      %224 = vmatpush2.bf16.msra.mxu0 0
      %225 = vmatprep.subr.bf16.mxu0 0
      %226 = vmatpush2.bf16.msra.mxu0 0
      %227 = vmatprep.subr.bf16.mxu0 0
      %228 = vmatpush2.bf16.msra.mxu0 0
      %229 = vmatprep.subr.bf16.mxu0 0
      %230 = vmatpush2.bf16.msra.mxu0 0
      %231 = vmatprep.subr.bf16.mxu0 0
      %232 = vmatpush2.bf16.msra.mxu0 0
      %233 = vmatprep.subr.bf16.mxu0 0
      %234 = vmatpush2.bf16.msra.mxu0 0
      %235 = vmatprep.subr.bf16.mxu0 0
      %236 = vmatpush2.bf16.msra.mxu0 0
      %237 = vmatprep.mubr.bf16.mxu0 0
      %238 = vmatmul.mubr.bf16.gmra.mxu0 %v199
      %v239 = vpop.f32.mrf.mxu0
      %v240 = vadd.f32 0.0, %v239
      %v241 = vpop.f32.mrf.mxu0
      %v242 = vpop.f32.mrf.mxu0
      %v243 = vpop.f32.mrf.mxu0
      %244 = vdwg.mxu0
      %v245 = vpack.c.bf16 %v240, %v240
      %v246 = vld [vmem:[%s2] sm:$0xf]
      %v247 = vld [vmem:[%s2 + $0x4] sm:$0xf]
      %v248 = vld [vmem:[%s2 + $0x8] sm:$0xf]
      %v249 = vld [vmem:[%s2 + $0xc] sm:$0xf]
      %v250 = vld [vmem:[%s3] sm:$0x1]
      %v252 = vlaneseq
      %v253 = vshrl.u32 %v252, 7
      %v254 = vsub.s32 0, %v253
      %v255 = vrot.slane %v250, %v254
      %v261 = vunpack.c.l.b16 %v246
      %v262 = vunpack.c.l.b16 %v247
      %v263 = vunpack.c.l.b16 %v248
      %v264 = vunpack.c.l.b16 %v249
      %v265 = vpack.c.b16 %v262, %v261
      %v266 = vpack.c.b16 %v264, %v263
      %vm269 = vcmask 261120
      %v271 = vsel %vm269, %v245, 0
      %273 = vmatprep.subr.bf16.mxu0 0
      %274 = vmatpush1.bf16.msra.mxu0 0
      %275 = vmatprep.subr.bf16.mxu0 0
      %276 = vmatpush1.bf16.msra.mxu0 0
      %277 = vmatprep.subr.bf16.mxu0 0
      %278 = vmatpush1.bf16.msra.mxu0 0
      %279 = vmatprep.subr.bf16.mxu0 0
      %280 = vmatpush1.bf16.msra.mxu0 0
      %281 = vmatprep.subr.bf16.mxu0 0
      %282 = vmatpush1.bf16.msra.mxu0 0
      %283 = vmatprep.subr.bf16.mxu0 0
      %284 = vmatpush1.bf16.msra.mxu0 0
      %285 = vmatprep.subr.bf16.mxu0 0
      %286 = vmatpush1.bf16.msra.mxu0 %v266
      %287 = vmatprep.subr.bf16.mxu0 0
      %288 = vmatpush1.bf16.msra.mxu0 %v265
      %289 = vmatprep.subr.bf16.mxu0 0
      %290 = vmatpush2.bf16.msra.mxu0 0
      %291 = vmatprep.subr.bf16.mxu0 0
      %292 = vmatpush2.bf16.msra.mxu0 0
      %293 = vmatprep.subr.bf16.mxu0 0
      %294 = vmatpush2.bf16.msra.mxu0 0
      %295 = vmatprep.subr.bf16.mxu0 0
      %296 = vmatpush2.bf16.msra.mxu0 0
      %297 = vmatprep.subr.bf16.mxu0 0
      %298 = vmatpush2.bf16.msra.mxu0 0
      %299 = vmatprep.subr.bf16.mxu0 0
      %300 = vmatpush2.bf16.msra.mxu0 0
      %301 = vmatprep.subr.bf16.mxu0 0
      %302 = vmatpush2.bf16.msra.mxu0 0
      %303 = vmatprep.subr.bf16.mxu0 0
      %304 = vmatpush2.bf16.msra.mxu0 0
      %305 = vmatprep.mubr.bf16.mxu0 0
      %306 = vmatmul.mubr.bf16.gmra.mxu0 %v271
      %v307 = vpop.f32.mrf.mxu0
      %v308 = vadd.f32 %v255, %v307
      %v309 = vpop.f32.mrf.mxu0
      %v310 = vpop.f32.mrf.mxu0
      %v311 = vpop.f32.mrf.mxu0
      %312 = vdwg.mxu0
      %vm313 = vcmask 781312
      %314 = vst.msk [vmem:[%s192] sm:$0xf] %vm313, %v308
      %p315 = scmp.lt.s32.totalorder %s15, 1
      %s316 = scalar_select %p315, %s15, 1
      %s317 = smul.addr %s316, 4
      %s318 = scalar_lea.vmem %s4, %s317
      // Predicated region
      $region37: #{model_forward.34} parent=35 // pred_check
        %p319 = pneg %p122
      $region38: #{model_forward.34} parent=35 // pred_check_branch
        %321 = sbr.rel (%p319) target = $region40
      $region39: #{model_forward.34} parent=35 // pred_region
        _
      $region40: #{model_forward.34} parent=35 // pred_fallthru
        _
    $region36: #{model_forward.34} parent=5 // pred_fallthru
      _
    %p322 = scmp.le.s32.totalorder 2, %s10
    // Predicated region
    $region41: #{model_forward.34} parent=5 // pred_check
      %p323 = pneg %p322
    $region42: #{model_forward.34} parent=5 // pred_check_branch
      %325 = sbr.rel (%p323) target = $region44
    $region43: #{model_forward.34} parent=5 // pred_region
      %s326 = ssub.s32 %s10, 2
      // Predicated region
      $region45: #{model_forward.34} parent=43 // pred_check
        %p327 = pneg %p128
      $region46: #{model_forward.34} parent=43 // pred_check_branch
        %329 = sbr.rel (%p327) target = $region48
      $region47: #{model_forward.34} parent=43 // pred_region
        %p330 = scmp.lt.s32.totalorder %s16, 1
        %s331 = scalar_select %p330, %s16, 1
        %s332 = smul.addr %s331, 4
        %s333 = scalar_lea.vmem %s4, %s332
      $region48: #{model_forward.34} parent=43 // pred_fallthru
        _
    $region44: #{model_forward.34} parent=5 // pred_fallthru
      _
  $region6: #{model_forward.34} parent=0 // loop_footer
    %s14 = sadd.s32 1, %s10
  $region7: #{model_forward.34} parent=0 // loop_footer_branch
    %9 = sbr.rel target = $region3
  $region8: #{model_forward.34} parent=0 // loop_exit
    _

// kernel: model_forward.36
$region0: #{model_forward.36}
  #allocation0 [shape = 'u32[]', space=smem, size = 0x4, offset = 0x4, fixed_abs, tag = 'smem constant byte address 0x4 - core index']
  #allocation1 [shape = 'u32[144,128]{1,0:T(1,128)}', space=vmem, size = 0x12000, scoped, tag = 'internal scratch']
  %s0 = inlined_call_operand.vmem [shape: f32[2,4,16], index: 0, kind: input, shape index: {}]
  %s1 = inlined_call_operand.vmem [shape: bf16[16,96], index: 1, kind: input, shape index: {}]
  %s2 = inlined_call_operand.vmem [shape: f32[1,96], index: 2, kind: input, shape index: {}]
  %s3 = inlined_call_operand.vmem [shape: f32[2,4,96], index: 3, kind: output, shape index: {}]
  %s4 = sld [smem:[#allocation0]]
  $region45: #{model_forward.36} parent=0
    _
  %s6 = ssub.s32 1, %s4
  %s7 = scalar_select 0, %s6, %s4
  loop: start=0, step=1, limit=4
  $region2: #{model_forward.36} parent=0 // loop_pre_header
    _
  $region3: #{model_forward.36} parent=0 // loop_header
    %s9 = sphi 0, %s13
    %p10 = scmp.ge.s32.totalorder %s9, 4
    %s19 = sphi 0, %s21
    %s22 = sphi 0, %s19
    %s23 = sphi 0, %s22
    %s39 = sphi 0, %s23
    %s43 = sphi 0, %s43
    %s45 = sphi 0, %s43
    %s46 = sphi 0, %s45
    %s60 = sphi 0, %s46
    %s64 = sphi 0, %s64
    %s66 = sphi 0, %s64
    %s67 = sphi 0, %s66
    %s81 = sphi 0, %s67
    %s87 = sphi 0, %s89
    %s90 = sphi 0, %s87
    %s91 = sphi 0, %s90
    %s107 = sphi 0, %s91
  $region4: #{model_forward.36} parent=0 // loop_header_branch
    %12 = sbr.rel (%p10) target = $region8
  $region5: #{model_forward.36} parent=0 // loop_body
    %s14 = ssub.s32 %s9, 1
    %s15 = ssub.s32 %s9, 2
    %s16 = sadd.s32 %s9, 1
    %s17 = ssub.s32 %s9, %s16
    %p18 = scmp.eq.s32.totalorder %s17, 0
    %s20 = sadd.s32 %s19, 1
    %s21 = scalar_select %p18, %s19, %s20
    %p24 = pneg %p18
    %p25 = scmp.eq.s32.totalorder %s9, 1
    %p26 = por %p24, %p25
    %p27 = scmp.ne.s32.totalorder %s19, %s22
    %p28 = scmp.eq.s32.totalorder %s9, 0
    %p29 = por %p27, %p28
    %p30 = scmp.ne.s32.totalorder %s19, %s22
    %p31 = scmp.eq.s32.totalorder %s14, 1
    %p32 = por %p30, %p31
    %p33 = scmp.ne.s32.totalorder %s22, %s23
    %p34 = scmp.eq.s32.totalorder %s14, 0
    %p35 = por %p33, %p34
    %p36 = scmp.ne.s32.totalorder %s22, %s23
    %p37 = scmp.eq.s32.totalorder %s15, 1
    %p38 = por %p36, %p37
    %p40 = scmp.ne.s32.totalorder %s23, %s39
    %p41 = scmp.eq.s32.totalorder %s15, 0
    %p42 = por %p40, %p41
    %s44 = sadd.s32 %s43, 1
    %p47 = scmp.eq.s32.totalorder %s9, 1
    %p48 = scmp.ne.s32.totalorder %s43, %s45
    %p49 = scmp.eq.s32.totalorder %s9, 0
    %p50 = por %p48, %p49
    %p51 = scmp.ne.s32.totalorder %s43, %s45
    %p52 = scmp.eq.s32.totalorder %s14, 1
    %p53 = por %p51, %p52
    %p54 = scmp.ne.s32.totalorder %s45, %s46
    %p55 = scmp.eq.s32.totalorder %s14, 0
    %p56 = por %p54, %p55
    %p57 = scmp.ne.s32.totalorder %s45, %s46
    %p58 = scmp.eq.s32.totalorder %s15, 1
    %p59 = por %p57, %p58
    %p61 = scmp.ne.s32.totalorder %s46, %s60
    %p62 = scmp.eq.s32.totalorder %s15, 0
    %p63 = por %p61, %p62
    %s65 = sadd.s32 %s64, 1
    %p68 = scmp.eq.s32.totalorder %s9, 1
    %p69 = scmp.ne.s32.totalorder %s64, %s66
    %p70 = scmp.eq.s32.totalorder %s9, 0
    %p71 = por %p69, %p70
    %p72 = scmp.ne.s32.totalorder %s64, %s66
    %p73 = scmp.eq.s32.totalorder %s14, 1
    %p74 = por %p72, %p73
    %p75 = scmp.ne.s32.totalorder %s66, %s67
    %p76 = scmp.eq.s32.totalorder %s14, 0
    %p77 = por %p75, %p76
    %p78 = scmp.ne.s32.totalorder %s66, %s67
    %p79 = scmp.eq.s32.totalorder %s15, 1
    %p80 = por %p78, %p79
    %p82 = scmp.ne.s32.totalorder %s67, %s81
    %p83 = scmp.eq.s32.totalorder %s15, 0
    %p84 = por %p82, %p83
    %s85 = ssub.s32 %s9, %s16
    %p86 = scmp.eq.s32.totalorder %s85, 0
    %s88 = sadd.s32 %s87, 1
    %s89 = scalar_select %p86, %s87, %s88
    %p92 = pneg %p86
    %p93 = scmp.eq.s32.totalorder %s9, 1
    %p94 = por %p92, %p93
    %p95 = scmp.ne.s32.totalorder %s87, %s90
    %p96 = scmp.eq.s32.totalorder %s9, 0
    %p97 = por %p95, %p96
    %p98 = scmp.ne.s32.totalorder %s87, %s90
    %p99 = scmp.eq.s32.totalorder %s14, 1
    %p100 = por %p98, %p99
    %p101 = scmp.ne.s32.totalorder %s90, %s91
    %p102 = scmp.eq.s32.totalorder %s14, 0
    %p103 = por %p101, %p102
    %p104 = scmp.ne.s32.totalorder %s90, %s91
    %p105 = scmp.eq.s32.totalorder %s15, 1
    %p106 = por %p104, %p105
    %p108 = scmp.ne.s32.totalorder %s91, %s107
    %p109 = scmp.eq.s32.totalorder %s15, 0
    %p110 = por %p108, %p109
    %p111 = scmp.le.s32.totalorder 1, %s9
    %p112 = scmp.lt.s32.totalorder %s9, 3
    %p113 = pnand %p111, %p112
    %p114 = pneg %p113
    // Predicated region
    $region9: #{model_forward.36} parent=5 // pred_check
      _
    $region10: #{model_forward.36} parent=5 // pred_check_branch
      %116 = sbr.rel (%p113) target = $region12
    $region11: #{model_forward.36} parent=5 // pred_region
      %s117 = ssub.s32 %s9, 1
      // Predicated region
      $region13: #{model_forward.36} parent=11 // pred_check
        %p118 = pneg %p56
      $region14: #{model_forward.36} parent=11 // pred_check_branch
        %120 = sbr.rel (%p118) target = $region16
      $region15: #{model_forward.36} parent=11 // pred_region
        _
      $region16: #{model_forward.36} parent=11 // pred_fallthru
        _
      // Predicated region
      $region17: #{model_forward.36} parent=11 // pred_check
        %p121 = pneg %p77
      $region18: #{model_forward.36} parent=11 // pred_check_branch
        %123 = sbr.rel (%p121) target = $region20
      $region19: #{model_forward.36} parent=11 // pred_region
        _
      $region20: #{model_forward.36} parent=11 // pred_fallthru
        _
    $region12: #{model_forward.36} parent=5 // pred_fallthru
      _
    %p124 = scmp.lt.s32.totalorder %s9, 2
    // Predicated region
    $region21: #{model_forward.36} parent=5 // pred_check
      %p125 = pneg %p124
    $region22: #{model_forward.36} parent=5 // pred_check_branch
      %127 = sbr.rel (%p125) target = $region24
    $region23: #{model_forward.36} parent=5 // pred_region
      // Predicated region
      $region25: #{model_forward.36} parent=23 // pred_check
        %p128 = pneg %p29
      $region26: #{model_forward.36} parent=23 // pred_check_branch
        %130 = sbr.rel (%p128) target = $region28
      $region27: #{model_forward.36} parent=23 // pred_region
        %p131 = scmp.lt.s32.totalorder %s9, 1
        %s132 = scalar_select %p131, %s9, 1
        %s133 = smul.addr %s132, 4
        %s134 = scalar_lea.vmem %s0, %s133
      $region28: #{model_forward.36} parent=23 // pred_fallthru
        _
    $region24: #{model_forward.36} parent=5 // pred_fallthru
      _
    %p135 = scmp.le.s32.totalorder 1, %s9
    %p136 = scmp.lt.s32.totalorder %s9, 3
    %p137 = pnand %p135, %p136
    %p138 = pneg %p137
    // Predicated region
    $region29: #{model_forward.36} parent=5 // pred_check
      _
    $region30: #{model_forward.36} parent=5 // pred_check_branch
      %140 = sbr.rel (%p137) target = $region32
    $region31: #{model_forward.36} parent=5 // pred_region
      %s141 = ssub.s32 %s9, 1
      %p142 = scmp.lt.s32.totalorder %s14, 1
      %s143 = scalar_select %p142, %s14, 1
      %s144 = smul.addr %s143, 4
      %s145 = scalar_lea.vmem %s0, %s144
      %p146 = pneg %p35
      %p147 = pneg %p32
      %p148 = pneg %p56
      %p149 = pneg %p53
      %p150 = pneg %p77
      %p151 = pneg %p74
      %p152 = pneg %p103
      %p153 = pneg %p100
      %p154 = scmp.lt.s32.totalorder %s14, 1
      %s155 = scalar_select %p154, %s14, 1
      %s156 = smul.addr %s155, 4
      %s157 = scalar_lea.vmem %s3, %s156
      %p158 = scmp.lt.s32.totalorder %s14, 1
      %s159 = scalar_select %p158, %s14, 1
      %s160 = smul.addr %s159, 4
      %s161 = scalar_lea.vmem %s0, %s160
      %p162 = scmp.lt.s32.totalorder %s14, 1
      %s163 = scalar_select %p162, %s14, 1
      %s164 = smul.addr %s163, 4
      %s165 = scalar_lea.vmem %s3, %s164
      %v167 = vld [vmem:[%s161] sm:$0xf]
      %v168 = vpack.c.bf16 %v167, %v167
      %v169 = vld [vmem:[%s1] sm:$0xf]
      %v170 = vld [vmem:[%s1 + $0x4] sm:$0xf]
      %v171 = vld [vmem:[%s2] sm:$0x1]
      %v173 = vlaneseq
      %v174 = vshrl.u32 %v173, 7
      %v175 = vsub.s32 0, %v174
      %v176 = vrot.slane %v171, %v175
      %v180 = vunpack.c.l.b16 %v169
      %v181 = vunpack.c.l.b16 %v170
      %v182 = vpack.c.b16 %v181, %v180
      %vm184 = vcmask 130048
      %v186 = vsel %vm184, %v168, 0
      %188 = vmatprep.subr.bf16.mxu0 0
      %189 = vmatpush1.bf16.msra.mxu0 0
      %190 = vmatprep.subr.bf16.mxu0 0
      %191 = vmatpush1.bf16.msra.mxu0 0
      %192 = vmatprep.subr.bf16.mxu0 0
      %193 = vmatpush1.bf16.msra.mxu0 0
      %194 = vmatprep.subr.bf16.mxu0 0
      %195 = vmatpush1.bf16.msra.mxu0 0
      %196 = vmatprep.subr.bf16.mxu0 0
      %197 = vmatpush1.bf16.msra.mxu0 0
      %198 = vmatprep.subr.bf16.mxu0 0
      %199 = vmatpush1.bf16.msra.mxu0 0
      %200 = vmatprep.subr.bf16.mxu0 0
      %201 = vmatpush1.bf16.msra.mxu0 0
      %202 = vmatprep.subr.bf16.mxu0 0
      %203 = vmatpush1.bf16.msra.mxu0 %v182
      %204 = vmatprep.subr.bf16.mxu0 0
      %205 = vmatpush2.bf16.msra.mxu0 0
      %206 = vmatprep.subr.bf16.mxu0 0
      %207 = vmatpush2.bf16.msra.mxu0 0
      %208 = vmatprep.subr.bf16.mxu0 0
      %209 = vmatpush2.bf16.msra.mxu0 0
      %210 = vmatprep.subr.bf16.mxu0 0
      %211 = vmatpush2.bf16.msra.mxu0 0
      %212 = vmatprep.subr.bf16.mxu0 0
      %213 = vmatpush2.bf16.msra.mxu0 0
      %214 = vmatprep.subr.bf16.mxu0 0
      %215 = vmatpush2.bf16.msra.mxu0 0
      %216 = vmatprep.subr.bf16.mxu0 0
      %217 = vmatpush2.bf16.msra.mxu0 0
      %218 = vmatprep.subr.bf16.mxu0 0
      %219 = vmatpush2.bf16.msra.mxu0 0
      %220 = vmatprep.mubr.bf16.mxu0 0
      %221 = vmatmul.mubr.bf16.gmra.mxu0 %v186
      %v222 = vpop.f32.mrf.mxu0
      %v223 = vadd.f32 %v176, %v222
      %v224 = vpop.f32.mrf.mxu0
      %v225 = vpop.f32.mrf.mxu0
      %v226 = vpop.f32.mrf.mxu0
      %227 = vdwg.mxu0
      %vm228 = vcmask 781312
      %229 = vst.msk [vmem:[%s165] sm:$0xf] %vm228, %v223
      %p230 = scmp.lt.s32.totalorder %s14, 1
      %s231 = scalar_select %p230, %s14, 1
      %s232 = smul.addr %s231, 4
      %s233 = scalar_lea.vmem %s3, %s232
      // Predicated region
      $region33: #{model_forward.36} parent=31 // pred_check
        %p234 = pneg %p100
      $region34: #{model_forward.36} parent=31 // pred_check_branch
        %236 = sbr.rel (%p234) target = $region36
      $region35: #{model_forward.36} parent=31 // pred_region
        _
      $region36: #{model_forward.36} parent=31 // pred_fallthru
        _
    $region32: #{model_forward.36} parent=5 // pred_fallthru
      _
    %p237 = scmp.le.s32.totalorder 2, %s9
    // Predicated region
    $region37: #{model_forward.36} parent=5 // pred_check
      %p238 = pneg %p237
    $region38: #{model_forward.36} parent=5 // pred_check_branch
      %240 = sbr.rel (%p238) target = $region40
    $region39: #{model_forward.36} parent=5 // pred_region
      %s241 = ssub.s32 %s9, 2
      // Predicated region
      $region41: #{model_forward.36} parent=39 // pred_check
        %p242 = pneg %p106
      $region42: #{model_forward.36} parent=39 // pred_check_branch
        %244 = sbr.rel (%p242) target = $region44
      $region43: #{model_forward.36} parent=39 // pred_region
        %p245 = scmp.lt.s32.totalorder %s15, 1
        %s246 = scalar_select %p245, %s15, 1
        %s247 = smul.addr %s246, 4
        %s248 = scalar_lea.vmem %s3, %s247
      $region44: #{model_forward.36} parent=39 // pred_fallthru
        _
    $region40: #{model_forward.36} parent=5 // pred_fallthru
      _
  $region6: #{model_forward.36} parent=0 // loop_footer
    %s13 = sadd.s32 1, %s9
  $region7: #{model_forward.36} parent=0 // loop_footer_branch
    %8 = sbr.rel target = $region3
  $region8: #{model_forward.36} parent=0 // loop_exit
    _

// kernel: model_forward.38
$region0: #{model_forward.38}
  #allocation0 [shape = 'u32[]', space=smem, size = 0x4, offset = 0x4, fixed_abs, tag = 'smem constant byte address 0x4 - core index']
  #allocation1 [shape = 'u32[144,128]{1,0:T(1,128)}', space=vmem, size = 0x12000, scoped, tag = 'internal scratch']
  %s0 = inlined_call_operand.vmem [shape: f32[2,64], index: 0, kind: input, shape index: {}]
  %s1 = inlined_call_operand.vmem [shape: bf16[64,64], index: 1, kind: input, shape index: {}]
  %s2 = inlined_call_operand.vmem [shape: f32[1,64], index: 2, kind: input, shape index: {}]
  %s3 = inlined_call_operand.vmem [shape: f32[2,64], index: 3, kind: output, shape index: {}]
  %s4 = sld [smem:[#allocation0]]
  $region22: #{model_forward.38} parent=0
    _
  %s6 = ssub.s32 1, %s4
  %s7 = scalar_select 0, %s6, %s4
  // Predicated region
  $region2: #{model_forward.38} parent=0 // pred_check
    _
  $region3: #{model_forward.38} parent=0 // pred_check_branch
    %9 = sbr.rel (0) target = $region5
  $region4: #{model_forward.38} parent=0 // pred_region
    _
  $region5: #{model_forward.38} parent=0 // pred_fallthru
    _
  // Predicated region
  $region6: #{model_forward.38} parent=0 // pred_check
    _
  $region7: #{model_forward.38} parent=0 // pred_check_branch
    %11 = sbr.rel (0) target = $region9
  $region8: #{model_forward.38} parent=0 // pred_region
    _
  $region9: #{model_forward.38} parent=0 // pred_fallthru
    _
  // Predicated region
  $region10: #{model_forward.38} parent=0 // pred_check
    _
  $region11: #{model_forward.38} parent=0 // pred_check_branch
    %13 = sbr.rel (0) target = $region13
  $region12: #{model_forward.38} parent=0 // pred_region
    _
  $region13: #{model_forward.38} parent=0 // pred_fallthru
    _
  %v15 = vld [vmem:[%s0] sm:$0x3]
  %v16 = vpack.c.bf16 %v15, %v15
  %v17 = vld [vmem:[%s1] sm:$0xf]
  %v18 = vld [vmem:[%s1 + $0x4] sm:$0xf]
  %v19 = vld [vmem:[%s1 + $0x8] sm:$0xf]
  %v20 = vld [vmem:[%s1 + $0xc] sm:$0xf]
  %v21 = vld [vmem:[%s1 + $0x10] sm:$0xf]
  %v22 = vld [vmem:[%s1 + $0x14] sm:$0xf]
  %v23 = vld [vmem:[%s1 + $0x18] sm:$0xf]
  %v24 = vld [vmem:[%s1 + $0x1c] sm:$0xf]
  %v25 = vld [vmem:[%s2] sm:$0x1]
  %v27 = vlaneseq
  %v28 = vshrl.u32 %v27, 7
  %v29 = vsub.s32 0, %v28
  %v30 = vrot.slane %v25, %v29
  %v40 = vunpack.c.l.b16 %v17
  %v41 = vunpack.c.l.b16 %v18
  %v42 = vunpack.c.l.b16 %v19
  %v43 = vunpack.c.l.b16 %v20
  %v44 = vunpack.c.l.b16 %v21
  %v45 = vunpack.c.l.b16 %v22
  %v46 = vunpack.c.l.b16 %v23
  %v47 = vunpack.c.l.b16 %v24
  %v48 = vpack.c.b16 %v41, %v40
  %v49 = vpack.c.b16 %v43, %v42
  %v50 = vpack.c.b16 %v45, %v44
  %v51 = vpack.c.b16 %v47, %v46
  %vm56 = vcmask 523264
  %v58 = vsel %vm56, %v16, 0
  %60 = vmatprep.subr.bf16.mxu0 0
  %61 = vmatpush1.bf16.msra.mxu0 0
  %62 = vmatprep.subr.bf16.mxu0 0
  %63 = vmatpush1.bf16.msra.mxu0 0
  %64 = vmatprep.subr.bf16.mxu0 0
  %65 = vmatpush1.bf16.msra.mxu0 0
  %66 = vmatprep.subr.bf16.mxu0 0
  %67 = vmatpush1.bf16.msra.mxu0 0
  %68 = vmatprep.subr.bf16.mxu0 0
  %69 = vmatpush1.bf16.msra.mxu0 %v51
  %70 = vmatprep.subr.bf16.mxu0 0
  %71 = vmatpush1.bf16.msra.mxu0 %v50
  %72 = vmatprep.subr.bf16.mxu0 0
  %73 = vmatpush1.bf16.msra.mxu0 %v49
  %74 = vmatprep.subr.bf16.mxu0 0
  %75 = vmatpush1.bf16.msra.mxu0 %v48
  %76 = vmatprep.subr.bf16.mxu0 0
  %77 = vmatpush2.bf16.msra.mxu0 0
  %78 = vmatprep.subr.bf16.mxu0 0
  %79 = vmatpush2.bf16.msra.mxu0 0
  %80 = vmatprep.subr.bf16.mxu0 0
  %81 = vmatpush2.bf16.msra.mxu0 0
  %82 = vmatprep.subr.bf16.mxu0 0
  %83 = vmatpush2.bf16.msra.mxu0 0
  %84 = vmatprep.subr.bf16.mxu0 0
  %85 = vmatpush2.bf16.msra.mxu0 0
  %86 = vmatprep.subr.bf16.mxu0 0
  %87 = vmatpush2.bf16.msra.mxu0 0
  %88 = vmatprep.subr.bf16.mxu0 0
  %89 = vmatpush2.bf16.msra.mxu0 0
  %90 = vmatprep.subr.bf16.mxu0 0
  %91 = vmatpush2.bf16.msra.mxu0 0
  %92 = vmatprep.mubr.bf16.mxu0 0
  %93 = vmatmul.mubr.bf16.gmra.mxu0 %v58
  %v94 = vpop.f32.mrf.mxu0
  %v95 = vadd.f32 %v30, %v94
  %v96 = vpop.f32.mrf.mxu0
  %v97 = vpop.f32.mrf.mxu0
  %v98 = vpop.f32.mrf.mxu0
  %99 = vdwg.mxu0
  %vm100 = vcmask 517120
  %101 = vst.msk [vmem:[%s3] sm:$0x3] %vm100, %v95
  // Predicated region
  $region14: #{model_forward.38} parent=0 // pred_check
    _
  $region15: #{model_forward.38} parent=0 // pred_check_branch
    %103 = sbr.rel (0) target = $region17
  $region16: #{model_forward.38} parent=0 // pred_region
    _
  $region17: #{model_forward.38} parent=0 // pred_fallthru
    _
  // Predicated region
  $region18: #{model_forward.38} parent=0 // pred_check
    _
  $region19: #{model_forward.38} parent=0 // pred_check_branch
    %105 = sbr.rel (0) target = $region21
  $region20: #{model_forward.38} parent=0 // pred_region
    _
  $region21: #{model_forward.38} parent=0 // pred_fallthru
    _

// kernel: model_forward.35
$region0: #{model_forward.35}
  #allocation0 [shape = 'u32[]', space=smem, size = 0x4, offset = 0x4, fixed_abs, tag = 'smem constant byte address 0x4 - core index']
  #allocation1 [shape = 'u32[144,128]{1,0:T(1,128)}', space=vmem, size = 0x12000, scoped, tag = 'internal scratch']
  %s0 = inlined_call_operand.vmem [shape: f32[2,4,32], index: 0, kind: input, shape index: {}]
  %s1 = inlined_call_operand.vmem [shape: bf16[32,16], index: 1, kind: input, shape index: {}]
  %s2 = inlined_call_operand.vmem [shape: f32[1,16], index: 2, kind: input, shape index: {}]
  %s3 = inlined_call_operand.vmem [shape: f32[4,1], index: 3, kind: input, shape index: {}]
  %s4 = inlined_call_operand.vmem [shape: f32[4,1], index: 4, kind: input, shape index: {}]
  %s5 = inlined_call_operand.vmem [shape: bf16[16,64], index: 5, kind: input, shape index: {}]
  %s6 = inlined_call_operand.vmem [shape: f32[1,64], index: 6, kind: input, shape index: {}]
  %s7 = inlined_call_operand.vmem [shape: bf16[64,16], index: 7, kind: input, shape index: {}]
  %s8 = inlined_call_operand.vmem [shape: f32[1,16], index: 8, kind: input, shape index: {}]
  %s9 = inlined_call_operand.vmem [shape: f32[4,1], index: 9, kind: input, shape index: {}]
  %s10 = inlined_call_operand.vmem [shape: f32[4,1], index: 10, kind: input, shape index: {}]
  %s11 = inlined_call_operand.vmem [shape: f32[2,4,16], index: 11, kind: output, shape index: {}]
  %s12 = sld [smem:[#allocation0]]
  $region77: #{model_forward.35} parent=0
    _
  %s14 = ssub.s32 1, %s12
  %s15 = scalar_select 0, %s14, %s12
  loop: start=0, step=1, limit=4
  $region2: #{model_forward.35} parent=0 // loop_pre_header
    _
  $region3: #{model_forward.35} parent=0 // loop_header
    %s17 = sphi 0, %s21
    %p18 = scmp.ge.s32.totalorder %s17, 4
    %s27 = sphi 0, %s29
    %s30 = sphi 0, %s27
    %s31 = sphi 0, %s30
    %s47 = sphi 0, %s31
    %s51 = sphi 0, %s51
    %s53 = sphi 0, %s51
    %s54 = sphi 0, %s53
    %s68 = sphi 0, %s54
    %s72 = sphi 0, %s72
    %s74 = sphi 0, %s72
    %s75 = sphi 0, %s74
    %s89 = sphi 0, %s75
    %s93 = sphi 0, %s93
    %s95 = sphi 0, %s93
    %s96 = sphi 0, %s95
    %s110 = sphi 0, %s96
    %s114 = sphi 0, %s114
    %s116 = sphi 0, %s114
    %s117 = sphi 0, %s116
    %s131 = sphi 0, %s117
    %s135 = sphi 0, %s135
    %s137 = sphi 0, %s135
    %s138 = sphi 0, %s137
    %s152 = sphi 0, %s138
    %s156 = sphi 0, %s156
    %s158 = sphi 0, %s156
    %s159 = sphi 0, %s158
    %s173 = sphi 0, %s159
    %s177 = sphi 0, %s177
    %s179 = sphi 0, %s177
    %s180 = sphi 0, %s179
    %s194 = sphi 0, %s180
    %s198 = sphi 0, %s198
    %s200 = sphi 0, %s198
    %s201 = sphi 0, %s200
    %s215 = sphi 0, %s201
    %s219 = sphi 0, %s219
    %s221 = sphi 0, %s219
    %s222 = sphi 0, %s221
    %s236 = sphi 0, %s222
    %s240 = sphi 0, %s240
    %s242 = sphi 0, %s240
    %s243 = sphi 0, %s242
    %s257 = sphi 0, %s243
    %s263 = sphi 0, %s265
    %s266 = sphi 0, %s263
    %s267 = sphi 0, %s266
    %s283 = sphi 0, %s267
  $region4: #{model_forward.35} parent=0 // loop_header_branch
    %20 = sbr.rel (%p18) target = $region8
  $region5: #{model_forward.35} parent=0 // loop_body
    %s22 = ssub.s32 %s17, 1
    %s23 = ssub.s32 %s17, 2
    %s24 = sadd.s32 %s17, 1
    %s25 = ssub.s32 %s17, %s24
    %p26 = scmp.eq.s32.totalorder %s25, 0
    %s28 = sadd.s32 %s27, 1
    %s29 = scalar_select %p26, %s27, %s28
    %p32 = pneg %p26
    %p33 = scmp.eq.s32.totalorder %s17, 1
    %p34 = por %p32, %p33
    %p35 = scmp.ne.s32.totalorder %s27, %s30
    %p36 = scmp.eq.s32.totalorder %s17, 0
    %p37 = por %p35, %p36
    %p38 = scmp.ne.s32.totalorder %s27, %s30
    %p39 = scmp.eq.s32.totalorder %s22, 1
    %p40 = por %p38, %p39
    %p41 = scmp.ne.s32.totalorder %s30, %s31
    %p42 = scmp.eq.s32.totalorder %s22, 0
    %p43 = por %p41, %p42
    %p44 = scmp.ne.s32.totalorder %s30, %s31
    %p45 = scmp.eq.s32.totalorder %s23, 1
    %p46 = por %p44, %p45
    %p48 = scmp.ne.s32.totalorder %s31, %s47
    %p49 = scmp.eq.s32.totalorder %s23, 0
    %p50 = por %p48, %p49
    %s52 = sadd.s32 %s51, 1
    %p55 = scmp.eq.s32.totalorder %s17, 1
    %p56 = scmp.ne.s32.totalorder %s51, %s53
    %p57 = scmp.eq.s32.totalorder %s17, 0
    %p58 = por %p56, %p57
    %p59 = scmp.ne.s32.totalorder %s51, %s53
    %p60 = scmp.eq.s32.totalorder %s22, 1
    %p61 = por %p59, %p60
    %p62 = scmp.ne.s32.totalorder %s53, %s54
    %p63 = scmp.eq.s32.totalorder %s22, 0
    %p64 = por %p62, %p63
    %p65 = scmp.ne.s32.totalorder %s53, %s54
    %p66 = scmp.eq.s32.totalorder %s23, 1
    %p67 = por %p65, %p66
    %p69 = scmp.ne.s32.totalorder %s54, %s68
    %p70 = scmp.eq.s32.totalorder %s23, 0
    %p71 = por %p69, %p70
    %s73 = sadd.s32 %s72, 1
    %p76 = scmp.eq.s32.totalorder %s17, 1
    %p77 = scmp.ne.s32.totalorder %s72, %s74
    %p78 = scmp.eq.s32.totalorder %s17, 0
    %p79 = por %p77, %p78
    %p80 = scmp.ne.s32.totalorder %s72, %s74
    %p81 = scmp.eq.s32.totalorder %s22, 1
    %p82 = por %p80, %p81
    %p83 = scmp.ne.s32.totalorder %s74, %s75
    %p84 = scmp.eq.s32.totalorder %s22, 0
    %p85 = por %p83, %p84
    %p86 = scmp.ne.s32.totalorder %s74, %s75
    %p87 = scmp.eq.s32.totalorder %s23, 1
    %p88 = por %p86, %p87
    %p90 = scmp.ne.s32.totalorder %s75, %s89
    %p91 = scmp.eq.s32.totalorder %s23, 0
    %p92 = por %p90, %p91
    %s94 = sadd.s32 %s93, 1
    %p97 = scmp.eq.s32.totalorder %s17, 1
    %p98 = scmp.ne.s32.totalorder %s93, %s95
    %p99 = scmp.eq.s32.totalorder %s17, 0
    %p100 = por %p98, %p99
    %p101 = scmp.ne.s32.totalorder %s93, %s95
    %p102 = scmp.eq.s32.totalorder %s22, 1
    %p103 = por %p101, %p102
    %p104 = scmp.ne.s32.totalorder %s95, %s96
    %p105 = scmp.eq.s32.totalorder %s22, 0
    %p106 = por %p104, %p105
    %p107 = scmp.ne.s32.totalorder %s95, %s96
    %p108 = scmp.eq.s32.totalorder %s23, 1
    %p109 = por %p107, %p108
    %p111 = scmp.ne.s32.totalorder %s96, %s110
    %p112 = scmp.eq.s32.totalorder %s23, 0
    %p113 = por %p111, %p112
    %s115 = sadd.s32 %s114, 1
    %p118 = scmp.eq.s32.totalorder %s17, 1
    %p119 = scmp.ne.s32.totalorder %s114, %s116
    %p120 = scmp.eq.s32.totalorder %s17, 0
    %p121 = por %p119, %p120
    %p122 = scmp.ne.s32.totalorder %s114, %s116
    %p123 = scmp.eq.s32.totalorder %s22, 1
    %p124 = por %p122, %p123
    %p125 = scmp.ne.s32.totalorder %s116, %s117
    %p126 = scmp.eq.s32.totalorder %s22, 0
    %p127 = por %p125, %p126
    %p128 = scmp.ne.s32.totalorder %s116, %s117
    %p129 = scmp.eq.s32.totalorder %s23, 1
    %p130 = por %p128, %p129
    %p132 = scmp.ne.s32.totalorder %s117, %s131
    %p133 = scmp.eq.s32.totalorder %s23, 0
    %p134 = por %p132, %p133
    %s136 = sadd.s32 %s135, 1
    %p139 = scmp.eq.s32.totalorder %s17, 1
    %p140 = scmp.ne.s32.totalorder %s135, %s137
    %p141 = scmp.eq.s32.totalorder %s17, 0
    %p142 = por %p140, %p141
    %p143 = scmp.ne.s32.totalorder %s135, %s137
    %p144 = scmp.eq.s32.totalorder %s22, 1
    %p145 = por %p143, %p144
    %p146 = scmp.ne.s32.totalorder %s137, %s138
    %p147 = scmp.eq.s32.totalorder %s22, 0
    %p148 = por %p146, %p147
    %p149 = scmp.ne.s32.totalorder %s137, %s138
    %p150 = scmp.eq.s32.totalorder %s23, 1
    %p151 = por %p149, %p150
    %p153 = scmp.ne.s32.totalorder %s138, %s152
    %p154 = scmp.eq.s32.totalorder %s23, 0
    %p155 = por %p153, %p154
    %s157 = sadd.s32 %s156, 1
    %p160 = scmp.eq.s32.totalorder %s17, 1
    %p161 = scmp.ne.s32.totalorder %s156, %s158
    %p162 = scmp.eq.s32.totalorder %s17, 0
    %p163 = por %p161, %p162
    %p164 = scmp.ne.s32.totalorder %s156, %s158
    %p165 = scmp.eq.s32.totalorder %s22, 1
    %p166 = por %p164, %p165
    %p167 = scmp.ne.s32.totalorder %s158, %s159
    %p168 = scmp.eq.s32.totalorder %s22, 0
    %p169 = por %p167, %p168
    %p170 = scmp.ne.s32.totalorder %s158, %s159
    %p171 = scmp.eq.s32.totalorder %s23, 1
    %p172 = por %p170, %p171
    %p174 = scmp.ne.s32.totalorder %s159, %s173
    %p175 = scmp.eq.s32.totalorder %s23, 0
    %p176 = por %p174, %p175
    %s178 = sadd.s32 %s177, 1
    %p181 = scmp.eq.s32.totalorder %s17, 1
    %p182 = scmp.ne.s32.totalorder %s177, %s179
    %p183 = scmp.eq.s32.totalorder %s17, 0
    %p184 = por %p182, %p183
    %p185 = scmp.ne.s32.totalorder %s177, %s179
    %p186 = scmp.eq.s32.totalorder %s22, 1
    %p187 = por %p185, %p186
    %p188 = scmp.ne.s32.totalorder %s179, %s180
    %p189 = scmp.eq.s32.totalorder %s22, 0
    %p190 = por %p188, %p189
    %p191 = scmp.ne.s32.totalorder %s179, %s180
    %p192 = scmp.eq.s32.totalorder %s23, 1
    %p193 = por %p191, %p192
    %p195 = scmp.ne.s32.totalorder %s180, %s194
    %p196 = scmp.eq.s32.totalorder %s23, 0
    %p197 = por %p195, %p196
    %s199 = sadd.s32 %s198, 1
    %p202 = scmp.eq.s32.totalorder %s17, 1
    %p203 = scmp.ne.s32.totalorder %s198, %s200
    %p204 = scmp.eq.s32.totalorder %s17, 0
    %p205 = por %p203, %p204
    %p206 = scmp.ne.s32.totalorder %s198, %s200
    %p207 = scmp.eq.s32.totalorder %s22, 1
    %p208 = por %p206, %p207
    %p209 = scmp.ne.s32.totalorder %s200, %s201
    %p210 = scmp.eq.s32.totalorder %s22, 0
    %p211 = por %p209, %p210
    %p212 = scmp.ne.s32.totalorder %s200, %s201
    %p213 = scmp.eq.s32.totalorder %s23, 1
    %p214 = por %p212, %p213
    %p216 = scmp.ne.s32.totalorder %s201, %s215
    %p217 = scmp.eq.s32.totalorder %s23, 0
    %p218 = por %p216, %p217
    %s220 = sadd.s32 %s219, 1
    %p223 = scmp.eq.s32.totalorder %s17, 1
    %p224 = scmp.ne.s32.totalorder %s219, %s221
    %p225 = scmp.eq.s32.totalorder %s17, 0
    %p226 = por %p224, %p225
    %p227 = scmp.ne.s32.totalorder %s219, %s221
    %p228 = scmp.eq.s32.totalorder %s22, 1
    %p229 = por %p227, %p228
    %p230 = scmp.ne.s32.totalorder %s221, %s222
    %p231 = scmp.eq.s32.totalorder %s22, 0
    %p232 = por %p230, %p231
    %p233 = scmp.ne.s32.totalorder %s221, %s222
    %p234 = scmp.eq.s32.totalorder %s23, 1
    %p235 = por %p233, %p234
    %p237 = scmp.ne.s32.totalorder %s222, %s236
    %p238 = scmp.eq.s32.totalorder %s23, 0
    %p239 = por %p237, %p238
    %s241 = sadd.s32 %s240, 1
    %p244 = scmp.eq.s32.totalorder %s17, 1
    %p245 = scmp.ne.s32.totalorder %s240, %s242
    %p246 = scmp.eq.s32.totalorder %s17, 0
    %p247 = por %p245, %p246
    %p248 = scmp.ne.s32.totalorder %s240, %s242
    %p249 = scmp.eq.s32.totalorder %s22, 1
    %p250 = por %p248, %p249
    %p251 = scmp.ne.s32.totalorder %s242, %s243
    %p252 = scmp.eq.s32.totalorder %s22, 0
    %p253 = por %p251, %p252
    %p254 = scmp.ne.s32.totalorder %s242, %s243
    %p255 = scmp.eq.s32.totalorder %s23, 1
    %p256 = por %p254, %p255
    %p258 = scmp.ne.s32.totalorder %s243, %s257
    %p259 = scmp.eq.s32.totalorder %s23, 0
    %p260 = por %p258, %p259
    %s261 = ssub.s32 %s17, %s24
    %p262 = scmp.eq.s32.totalorder %s261, 0
    %s264 = sadd.s32 %s263, 1
    %s265 = scalar_select %p262, %s263, %s264
    %p268 = pneg %p262
    %p269 = scmp.eq.s32.totalorder %s17, 1
    %p270 = por %p268, %p269
    %p271 = scmp.ne.s32.totalorder %s263, %s266
    %p272 = scmp.eq.s32.totalorder %s17, 0
    %p273 = por %p271, %p272
    %p274 = scmp.ne.s32.totalorder %s263, %s266
    %p275 = scmp.eq.s32.totalorder %s22, 1
    %p276 = por %p274, %p275
    %p277 = scmp.ne.s32.totalorder %s266, %s267
    %p278 = scmp.eq.s32.totalorder %s22, 0
    %p279 = por %p277, %p278
    %p280 = scmp.ne.s32.totalorder %s266, %s267
    %p281 = scmp.eq.s32.totalorder %s23, 1
    %p282 = por %p280, %p281
    %p284 = scmp.ne.s32.totalorder %s267, %s283
    %p285 = scmp.eq.s32.totalorder %s23, 0
    %p286 = por %p284, %p285
    %p287 = scmp.le.s32.totalorder 1, %s17
    %p288 = scmp.lt.s32.totalorder %s17, 3
    %p289 = pnand %p287, %p288
    %p290 = pneg %p289
    // Predicated region
    $region9: #{model_forward.35} parent=5 // pred_check
      _
    $region10: #{model_forward.35} parent=5 // pred_check_branch
      %292 = sbr.rel (%p289) target = $region12
    $region11: #{model_forward.35} parent=5 // pred_region
      %s293 = ssub.s32 %s17, 1
      // Predicated region
      $region13: #{model_forward.35} parent=11 // pred_check
        %p294 = pneg %p64
      $region14: #{model_forward.35} parent=11 // pred_check_branch
        %296 = sbr.rel (%p294) target = $region16
      $region15: #{model_forward.35} parent=11 // pred_region
        _
      $region16: #{model_forward.35} parent=11 // pred_fallthru
        _
      // Predicated region
      $region17: #{model_forward.35} parent=11 // pred_check
        %p297 = pneg %p85
      $region18: #{model_forward.35} parent=11 // pred_check_branch
        %299 = sbr.rel (%p297) target = $region20
      $region19: #{model_forward.35} parent=11 // pred_region
        _
      $region20: #{model_forward.35} parent=11 // pred_fallthru
        _
      // Predicated region
      $region21: #{model_forward.35} parent=11 // pred_check
        %p300 = pneg %p106
      $region22: #{model_forward.35} parent=11 // pred_check_branch
        %302 = sbr.rel (%p300) target = $region24
      $region23: #{model_forward.35} parent=11 // pred_region
        _
      $region24: #{model_forward.35} parent=11 // pred_fallthru
        _
      // Predicated region
      $region25: #{model_forward.35} parent=11 // pred_check
        %p303 = pneg %p127
      $region26: #{model_forward.35} parent=11 // pred_check_branch
        %305 = sbr.rel (%p303) target = $region28
      $region27: #{model_forward.35} parent=11 // pred_region
        _
      $region28: #{model_forward.35} parent=11 // pred_fallthru
        _
      // Predicated region
      $region29: #{model_forward.35} parent=11 // pred_check
        %p306 = pneg %p148
      $region30: #{model_forward.35} parent=11 // pred_check_branch
        %308 = sbr.rel (%p306) target = $region32
      $region31: #{model_forward.35} parent=11 // pred_region
        _
      $region32: #{model_forward.35} parent=11 // pred_fallthru
        _
      // Predicated region
      $region33: #{model_forward.35} parent=11 // pred_check
        %p309 = pneg %p169
      $region34: #{model_forward.35} parent=11 // pred_check_branch
        %311 = sbr.rel (%p309) target = $region36
      $region35: #{model_forward.35} parent=11 // pred_region
        _
      $region36: #{model_forward.35} parent=11 // pred_fallthru
        _
      // Predicated region
      $region37: #{model_forward.35} parent=11 // pred_check
        %p312 = pneg %p190
      $region38: #{model_forward.35} parent=11 // pred_check_branch
        %314 = sbr.rel (%p312) target = $region40
      $region39: #{model_forward.35} parent=11 // pred_region
        _
      $region40: #{model_forward.35} parent=11 // pred_fallthru
        _
      // Predicated region
      $region41: #{model_forward.35} parent=11 // pred_check
        %p315 = pneg %p211
      $region42: #{model_forward.35} parent=11 // pred_check_branch
        %317 = sbr.rel (%p315) target = $region44
      $region43: #{model_forward.35} parent=11 // pred_region
        _
      $region44: #{model_forward.35} parent=11 // pred_fallthru
        _
      // Predicated region
      $region45: #{model_forward.35} parent=11 // pred_check
        %p318 = pneg %p232
      $region46: #{model_forward.35} parent=11 // pred_check_branch
        %320 = sbr.rel (%p318) target = $region48
      $region47: #{model_forward.35} parent=11 // pred_region
        _
      $region48: #{model_forward.35} parent=11 // pred_fallthru
        _
      // Predicated region
      $region49: #{model_forward.35} parent=11 // pred_check
        %p321 = pneg %p253
      $region50: #{model_forward.35} parent=11 // pred_check_branch
        %323 = sbr.rel (%p321) target = $region52
      $region51: #{model_forward.35} parent=11 // pred_region
        _
      $region52: #{model_forward.35} parent=11 // pred_fallthru
        _
    $region12: #{model_forward.35} parent=5 // pred_fallthru
      _
    %p324 = scmp.lt.s32.totalorder %s17, 2
    // Predicated region
    $region53: #{model_forward.35} parent=5 // pred_check
      %p325 = pneg %p324
    $region54: #{model_forward.35} parent=5 // pred_check_branch
      %327 = sbr.rel (%p325) target = $region56
    $region55: #{model_forward.35} parent=5 // pred_region
      // Predicated region
      $region57: #{model_forward.35} parent=55 // pred_check
        %p328 = pneg %p37
      $region58: #{model_forward.35} parent=55 // pred_check_branch
        %330 = sbr.rel (%p328) target = $region60
      $region59: #{model_forward.35} parent=55 // pred_region
        %p331 = scmp.lt.s32.totalorder %s17, 1
        %s332 = scalar_select %p331, %s17, 1
        %s333 = smul.addr %s332, 4
        %s334 = scalar_lea.vmem %s0, %s333
      $region60: #{model_forward.35} parent=55 // pred_fallthru
        _
    $region56: #{model_forward.35} parent=5 // pred_fallthru
      _
    %p335 = scmp.le.s32.totalorder 1, %s17
    %p336 = scmp.lt.s32.totalorder %s17, 3
    %p337 = pnand %p335, %p336
    %p338 = pneg %p337
    // Predicated region
    $region61: #{model_forward.35} parent=5 // pred_check
      _
    $region62: #{model_forward.35} parent=5 // pred_check_branch
      %340 = sbr.rel (%p337) target = $region64
    $region63: #{model_forward.35} parent=5 // pred_region
      %s341 = ssub.s32 %s17, 1
      %p342 = scmp.lt.s32.totalorder %s22, 1
      %s343 = scalar_select %p342, %s22, 1
      %s344 = smul.addr %s343, 4
      %s345 = scalar_lea.vmem %s0, %s344
      %p346 = pneg %p43
      %p347 = pneg %p40
      %p348 = pneg %p64
      %p349 = pneg %p61
      %p350 = pneg %p85
      %p351 = pneg %p82
      %p352 = pneg %p106
      %p353 = pneg %p103
      %p354 = pneg %p127
      %p355 = pneg %p124
      %p356 = pneg %p148
      %p357 = pneg %p145
      %p358 = pneg %p169
      %p359 = pneg %p166
      %p360 = pneg %p190
      %p361 = pneg %p187
      %p362 = pneg %p211
      %p363 = pneg %p208
      %p364 = pneg %p232
      %p365 = pneg %p229
      %p366 = pneg %p253
      %p367 = pneg %p250
      %p368 = pneg %p279
      %p369 = pneg %p276
      %p370 = scmp.lt.s32.totalorder %s22, 1
      %s371 = scalar_select %p370, %s22, 1
      %s372 = smul.addr %s371, 4
      %s373 = scalar_lea.vmem %s11, %s372
      %p374 = scmp.lt.s32.totalorder %s22, 1
      %s375 = scalar_select %p374, %s22, 1
      %s376 = smul.addr %s375, 4
      %s377 = scalar_lea.vmem %s0, %s376
      %p378 = scmp.lt.s32.totalorder %s22, 1
      %s379 = scalar_select %p378, %s22, 1
      %s380 = smul.addr %s379, 4
      %s381 = scalar_lea.vmem %s11, %s380
      %v383 = vld [vmem:[%s377] sm:$0xf]
      %v384 = vpack.c.bf16 %v383, %v383
      %v385 = vld [vmem:[%s1] sm:$0xf]
      %v386 = vld [vmem:[%s1 + $0x4] sm:$0xf]
      %v387 = vld [vmem:[%s1 + $0x8] sm:$0xf]
      %v388 = vld [vmem:[%s1 + $0xc] sm:$0xf]
      %v389 = vld [vmem:[%s2] sm:$0x1]
      %v391 = vlaneseq
      %v392 = vshrl.u32 %v391, 7
      %v393 = vsub.s32 0, %v392
      %v394 = vrot.slane %v389, %v393
      %v400 = vunpack.c.l.b16 %v385
      %v401 = vunpack.c.l.b16 %v386
      %v402 = vunpack.c.l.b16 %v387
      %v403 = vunpack.c.l.b16 %v388
      %v404 = vpack.c.b16 %v401, %v400
      %v405 = vpack.c.b16 %v403, %v402
      %vm408 = vcmask 261120
      %v410 = vsel %vm408, %v384, 0
      %412 = vmatprep.subr.bf16.mxu0 0
      %413 = vmatpush1.bf16.msra.mxu0 0
      %414 = vmatprep.subr.bf16.mxu0 0
      %415 = vmatpush1.bf16.msra.mxu0 0
      %416 = vmatprep.subr.bf16.mxu0 0
      %417 = vmatpush1.bf16.msra.mxu0 0
      %418 = vmatprep.subr.bf16.mxu0 0
      %419 = vmatpush1.bf16.msra.mxu0 0
      %420 = vmatprep.subr.bf16.mxu0 0
      %421 = vmatpush1.bf16.msra.mxu0 0
      %422 = vmatprep.subr.bf16.mxu0 0
      %423 = vmatpush1.bf16.msra.mxu0 0
      %424 = vmatprep.subr.bf16.mxu0 0
      %425 = vmatpush1.bf16.msra.mxu0 %v405
      %426 = vmatprep.subr.bf16.mxu0 0
      %427 = vmatpush1.bf16.msra.mxu0 %v404
      %428 = vmatprep.subr.bf16.mxu0 0
      %429 = vmatpush2.bf16.msra.mxu0 0
      %430 = vmatprep.subr.bf16.mxu0 0
      %431 = vmatpush2.bf16.msra.mxu0 0
      %432 = vmatprep.subr.bf16.mxu0 0
      %433 = vmatpush2.bf16.msra.mxu0 0
      %434 = vmatprep.subr.bf16.mxu0 0
      %435 = vmatpush2.bf16.msra.mxu0 0
      %436 = vmatprep.subr.bf16.mxu0 0
      %437 = vmatpush2.bf16.msra.mxu0 0
      %438 = vmatprep.subr.bf16.mxu0 0
      %439 = vmatpush2.bf16.msra.mxu0 0
      %440 = vmatprep.subr.bf16.mxu0 0
      %441 = vmatpush2.bf16.msra.mxu0 0
      %442 = vmatprep.subr.bf16.mxu0 0
      %443 = vmatpush2.bf16.msra.mxu0 0
      %444 = vmatprep.mubr.bf16.mxu0 0
      %445 = vmatmul.mubr.bf16.gmra.mxu0 %v410
      %v446 = vpop.f32.mrf.mxu0
      %v447 = vadd.f32 %v394, %v446
      %v448 = vpop.f32.mrf.mxu0
      %v449 = vpop.f32.mrf.mxu0
      %v450 = vpop.f32.mrf.mxu0
      %451 = vdwg.mxu0
      %v452 = vld [vmem:[%s3] sm:$0xf]
      %454 = vset.pattern.permute.xlu0 0
      %455 = vperm.xlu0 %454, %v452
      %v456 = vpop.permute.xlu0 %455
      %v458 = vmul.f32 %v447, %v456
      %v459 = vld [vmem:[%s4] sm:$0xf]
      %461 = vset.pattern.permute.xlu0 0
      %462 = vperm.xlu0 %461, %v459
      %v463 = vpop.permute.xlu0 %462
      %v465 = vadd.f32 %v458, %v463
      %v466 = vpack.c.bf16 %v465, %v465
      %v467 = vld [vmem:[%s5] sm:$0xf]
      %v468 = vld [vmem:[%s5 + $0x4] sm:$0xf]
      %v469 = vld [vmem:[%s6] sm:$0x1]
      %v471 = vlaneseq
      %v472 = vshrl.u32 %v471, 7
      %v473 = vsub.s32 0, %v472
      %v474 = vrot.slane %v469, %v473
      %v478 = vunpack.c.l.b16 %v467
      %v479 = vunpack.c.l.b16 %v468
      %v480 = vpack.c.b16 %v479, %v478
      %vm482 = vcmask 130048
      %v484 = vsel %vm482, %v466, 0
      %486 = vmatprep.subr.bf16.mxu0 0
      %487 = vmatpush1.bf16.msra.mxu0 0
      %488 = vmatprep.subr.bf16.mxu0 0
      %489 = vmatpush1.bf16.msra.mxu0 0
      %490 = vmatprep.subr.bf16.mxu0 0
      %491 = vmatpush1.bf16.msra.mxu0 0
      %492 = vmatprep.subr.bf16.mxu0 0
      %493 = vmatpush1.bf16.msra.mxu0 0
      %494 = vmatprep.subr.bf16.mxu0 0
      %495 = vmatpush1.bf16.msra.mxu0 0
      %496 = vmatprep.subr.bf16.mxu0 0
      %497 = vmatpush1.bf16.msra.mxu0 0
      %498 = vmatprep.subr.bf16.mxu0 0
      %499 = vmatpush1.bf16.msra.mxu0 0
      %500 = vmatprep.subr.bf16.mxu0 0
      %501 = vmatpush1.bf16.msra.mxu0 %v480
      %502 = vmatprep.subr.bf16.mxu0 0
      %503 = vmatpush2.bf16.msra.mxu0 0
      %504 = vmatprep.subr.bf16.mxu0 0
      %505 = vmatpush2.bf16.msra.mxu0 0
      %506 = vmatprep.subr.bf16.mxu0 0
      %507 = vmatpush2.bf16.msra.mxu0 0
      %508 = vmatprep.subr.bf16.mxu0 0
      %509 = vmatpush2.bf16.msra.mxu0 0
      %510 = vmatprep.subr.bf16.mxu0 0
      %511 = vmatpush2.bf16.msra.mxu0 0
      %512 = vmatprep.subr.bf16.mxu0 0
      %513 = vmatpush2.bf16.msra.mxu0 0
      %514 = vmatprep.subr.bf16.mxu0 0
      %515 = vmatpush2.bf16.msra.mxu0 0
      %516 = vmatprep.subr.bf16.mxu0 0
      %517 = vmatpush2.bf16.msra.mxu0 0
      %518 = vmatprep.mubr.bf16.mxu0 0
      %519 = vmatmul.mubr.bf16.gmra.mxu0 %v484
      %v520 = vpop.f32.mrf.mxu0
      %v521 = vadd.f32 %v474, %v520
      %v522 = vpop.f32.mrf.mxu0
      %v523 = vpop.f32.mrf.mxu0
      %v524 = vpop.f32.mrf.mxu0
      %525 = vdwg.mxu0
      %v526 = vmul.f32 %v521, 0.5
      %v527 = vmul.f32 %v521, 0.70710677
      %vm528 = vcmp.lt.f32.partialorder %v527, 0.0
      %v529 = vsel %vm528, -1.0, 1.0
      %v530 = vand.u32 2147483647, %v527
      %v531 = vmul.f32 %v530, 0.3275911
      %v532 = vadd.f32 %v531, 1.0
      %v533 = vrcp.pop %v532
      %v534 = vmul.f32 1.0, %v533
      %v535 = vmul.f32 %v534, 1.0614054
      %v536 = vadd.f32 %v535, -1.4531521
      %v537 = vmul.f32 %v536, %v534
      %v538 = vadd.f32 %v537, 1.4214138
      %v539 = vmul.f32 %v538, %v534
      %v540 = vadd.f32 %v539, -0.28449672
      %v541 = vmul.f32 %v540, %v534
      %v542 = vadd.f32 %v541, 0.2548296
      %v543 = vmul.f32 %v542, %v534
      %v544 = vsub.f32 0.0, %v530
      %v545 = vmul.f32 %v544, %v530
      %v546 = vmul.f32 %v545, 1.442695
      %v547 = vpow.pop %v546
      %v548 = vmul.f32 %v543, %v547
      %v549 = vsub.f32 1.0, %v548
      %v550 = vmul.f32 %v529, %v549
      %v551 = vadd.f32 %v550, 1.0
      %v552 = vmul.f32 %v526, %v551
      %v553 = vpack.c.bf16 %v552, %v552
      %v554 = vld [vmem:[%s7] sm:$0xf]
      %v555 = vld [vmem:[%s7 + $0x4] sm:$0xf]
      %v556 = vld [vmem:[%s7 + $0x8] sm:$0xf]
      %v557 = vld [vmem:[%s7 + $0xc] sm:$0xf]
      %v558 = vld [vmem:[%s7 + $0x10] sm:$0xf]
      %v559 = vld [vmem:[%s7 + $0x14] sm:$0xf]
      %v560 = vld [vmem:[%s7 + $0x18] sm:$0xf]
      %v561 = vld [vmem:[%s7 + $0x1c] sm:$0xf]
      %v562 = vld [vmem:[%s8] sm:$0x1]
      %v564 = vlaneseq
      %v565 = vshrl.u32 %v564, 7
      %v566 = vsub.s32 0, %v565
      %v567 = vrot.slane %v562, %v566
      %v577 = vunpack.c.l.b16 %v554
      %v578 = vunpack.c.l.b16 %v555
      %v579 = vunpack.c.l.b16 %v556
      %v580 = vunpack.c.l.b16 %v557
      %v581 = vunpack.c.l.b16 %v558
      %v582 = vunpack.c.l.b16 %v559
      %v583 = vunpack.c.l.b16 %v560
      %v584 = vunpack.c.l.b16 %v561
      %v585 = vpack.c.b16 %v578, %v577
      %v586 = vpack.c.b16 %v580, %v579
      %v587 = vpack.c.b16 %v582, %v581
      %v588 = vpack.c.b16 %v584, %v583
      %vm593 = vcmask 523264
      %v595 = vsel %vm593, %v553, 0
      %597 = vmatprep.subr.bf16.mxu0 0
      %598 = vmatpush1.bf16.msra.mxu0 0
      %599 = vmatprep.subr.bf16.mxu0 0
      %600 = vmatpush1.bf16.msra.mxu0 0
      %601 = vmatprep.subr.bf16.mxu0 0
      %602 = vmatpush1.bf16.msra.mxu0 0
      %603 = vmatprep.subr.bf16.mxu0 0
      %604 = vmatpush1.bf16.msra.mxu0 0
      %605 = vmatprep.subr.bf16.mxu0 0
      %606 = vmatpush1.bf16.msra.mxu0 %v588
      %607 = vmatprep.subr.bf16.mxu0 0
      %608 = vmatpush1.bf16.msra.mxu0 %v587
      %609 = vmatprep.subr.bf16.mxu0 0
      %610 = vmatpush1.bf16.msra.mxu0 %v586
      %611 = vmatprep.subr.bf16.mxu0 0
      %612 = vmatpush1.bf16.msra.mxu0 %v585
      %613 = vmatprep.subr.bf16.mxu0 0
      %614 = vmatpush2.bf16.msra.mxu0 0
      %615 = vmatprep.subr.bf16.mxu0 0
      %616 = vmatpush2.bf16.msra.mxu0 0
      %617 = vmatprep.subr.bf16.mxu0 0
      %618 = vmatpush2.bf16.msra.mxu0 0
      %619 = vmatprep.subr.bf16.mxu0 0
      %620 = vmatpush2.bf16.msra.mxu0 0
      %621 = vmatprep.subr.bf16.mxu0 0
      %622 = vmatpush2.bf16.msra.mxu0 0
      %623 = vmatprep.subr.bf16.mxu0 0
      %624 = vmatpush2.bf16.msra.mxu0 0
      %625 = vmatprep.subr.bf16.mxu0 0
      %626 = vmatpush2.bf16.msra.mxu0 0
      %627 = vmatprep.subr.bf16.mxu0 0
      %628 = vmatpush2.bf16.msra.mxu0 0
      %629 = vmatprep.mubr.bf16.mxu0 0
      %630 = vmatmul.mubr.bf16.gmra.mxu0 %v595
      %v631 = vpop.f32.mrf.mxu0
      %v632 = vadd.f32 %v567, %v631
      %v633 = vpop.f32.mrf.mxu0
      %v634 = vpop.f32.mrf.mxu0
      %v635 = vpop.f32.mrf.mxu0
      %636 = vdwg.mxu0
      %v637 = vadd.f32 %v632, %v465
      %v638 = vld [vmem:[%s9] sm:$0xf]
      %640 = vset.pattern.permute.xlu0 0
      %641 = vperm.xlu0 %640, %v638
      %v642 = vpop.permute.xlu0 %641
      %v644 = vmul.f32 %v637, %v642
      %v645 = vld [vmem:[%s10] sm:$0xf]
      %647 = vset.pattern.permute.xlu0 0
      %648 = vperm.xlu0 %647, %v645
      %v649 = vpop.permute.xlu0 %648
      %v651 = vadd.f32 %v644, %v649
      %vm652 = vcmask 125952
      %653 = vst.msk [vmem:[%s381] sm:$0xf] %vm652, %v651
      %p654 = scmp.lt.s32.totalorder %s22, 1
      %s655 = scalar_select %p654, %s22, 1
      %s656 = smul.addr %s655, 4
      %s657 = scalar_lea.vmem %s11, %s656
      // Predicated region
      $region65: #{model_forward.35} parent=63 // pred_check
        %p658 = pneg %p276
      $region66: #{model_forward.35} parent=63 // pred_check_branch
        %660 = sbr.rel (%p658) target = $region68
      $region67: #{model_forward.35} parent=63 // pred_region
        _
      $region68: #{model_forward.35} parent=63 // pred_fallthru
        _
    $region64: #{model_forward.35} parent=5 // pred_fallthru
      _
    %p661 = scmp.le.s32.totalorder 2, %s17
    // Predicated region
    $region69: #{model_forward.35} parent=5 // pred_check
      %p662 = pneg %p661
    $region70: #{model_forward.35} parent=5 // pred_check_branch
      %664 = sbr.rel (%p662) target = $region72
    $region71: #{model_forward.35} parent=5 // pred_region
      %s665 = ssub.s32 %s17, 2
      // Predicated region
      $region73: #{model_forward.35} parent=71 // pred_check
        %p666 = pneg %p282
      $region74: #{model_forward.35} parent=71 // pred_check_branch
        %668 = sbr.rel (%p666) target = $region76
      $region75: #{model_forward.35} parent=71 // pred_region
        %p669 = scmp.lt.s32.totalorder %s23, 1
        %s670 = scalar_select %p669, %s23, 1
        %s671 = smul.addr %s670, 4
        %s672 = scalar_lea.vmem %s11, %s671
      $region76: #{model_forward.35} parent=71 // pred_fallthru
        _
    $region72: #{model_forward.35} parent=5 // pred_fallthru
      _
  $region6: #{model_forward.35} parent=0 // loop_footer
    %s21 = sadd.s32 1, %s17
  $region7: #{model_forward.35} parent=0 // loop_footer_branch
    %16 = sbr.rel target = $region3
  $region8: #{model_forward.35} parent=0 // loop_exit
    _

// kernel: model_forward.39
$region0: #{model_forward.39}
  #allocation0 [shape = 'u32[]', space=smem, size = 0x4, offset = 0x4, fixed_abs, tag = 'smem constant byte address 0x4 - core index']
  #allocation1 [shape = 'u32[144,128]{1,0:T(1,128)}', space=vmem, size = 0x12000, scoped, tag = 'internal scratch']
  %s0 = inlined_call_operand.vmem [shape: f32[2,8,16], index: 0, kind: input, shape index: {}]
  %s1 = inlined_call_operand.vmem [shape: f32[8,4], index: 1, kind: input, shape index: {}]
  %s2 = inlined_call_operand.vmem [shape: f32[2,4,16], index: 2, kind: input, shape index: {}]
  %s3 = inlined_call_operand.vmem [shape: f32[2,8,16], index: 3, kind: output, shape index: {}]
  %s4 = sld [smem:[#allocation0]]
  $region45: #{model_forward.39} parent=0
    _
  %s6 = ssub.s32 1, %s4
  %s7 = scalar_select 0, %s6, %s4
  loop: start=0, step=1, limit=4
  $region2: #{model_forward.39} parent=0 // loop_pre_header
    _
  $region3: #{model_forward.39} parent=0 // loop_header
    %s9 = sphi 0, %s13
    %p10 = scmp.ge.s32.totalorder %s9, 4
    %s19 = sphi 0, %s21
    %s22 = sphi 0, %s19
    %s23 = sphi 0, %s22
    %s39 = sphi 0, %s23
    %s43 = sphi 0, %s43
    %s45 = sphi 0, %s43
    %s46 = sphi 0, %s45
    %s60 = sphi 0, %s46
    %s66 = sphi 0, %s68
    %s69 = sphi 0, %s66
    %s70 = sphi 0, %s69
    %s86 = sphi 0, %s70
    %s92 = sphi 0, %s94
    %s95 = sphi 0, %s92
    %s96 = sphi 0, %s95
    %s112 = sphi 0, %s96
  $region4: #{model_forward.39} parent=0 // loop_header_branch
    %12 = sbr.rel (%p10) target = $region8
  $region5: #{model_forward.39} parent=0 // loop_body
    %s14 = ssub.s32 %s9, 1
    %s15 = ssub.s32 %s9, 2
    %s16 = sadd.s32 %s9, 1
    %s17 = ssub.s32 %s9, %s16
    %p18 = scmp.eq.s32.totalorder %s17, 0
    %s20 = sadd.s32 %s19, 1
    %s21 = scalar_select %p18, %s19, %s20
    %p24 = pneg %p18
    %p25 = scmp.eq.s32.totalorder %s9, 1
    %p26 = por %p24, %p25
    %p27 = scmp.ne.s32.totalorder %s19, %s22
    %p28 = scmp.eq.s32.totalorder %s9, 0
    %p29 = por %p27, %p28
    %p30 = scmp.ne.s32.totalorder %s19, %s22
    %p31 = scmp.eq.s32.totalorder %s14, 1
    %p32 = por %p30, %p31
    %p33 = scmp.ne.s32.totalorder %s22, %s23
    %p34 = scmp.eq.s32.totalorder %s14, 0
    %p35 = por %p33, %p34
    %p36 = scmp.ne.s32.totalorder %s22, %s23
    %p37 = scmp.eq.s32.totalorder %s15, 1
    %p38 = por %p36, %p37
    %p40 = scmp.ne.s32.totalorder %s23, %s39
    %p41 = scmp.eq.s32.totalorder %s15, 0
    %p42 = por %p40, %p41
    %s44 = sadd.s32 %s43, 1
    %p47 = scmp.eq.s32.totalorder %s9, 1
    %p48 = scmp.ne.s32.totalorder %s43, %s45
    %p49 = scmp.eq.s32.totalorder %s9, 0
    %p50 = por %p48, %p49
    %p51 = scmp.ne.s32.totalorder %s43, %s45
    %p52 = scmp.eq.s32.totalorder %s14, 1
    %p53 = por %p51, %p52
    %p54 = scmp.ne.s32.totalorder %s45, %s46
    %p55 = scmp.eq.s32.totalorder %s14, 0
    %p56 = por %p54, %p55
    %p57 = scmp.ne.s32.totalorder %s45, %s46
    %p58 = scmp.eq.s32.totalorder %s15, 1
    %p59 = por %p57, %p58
    %p61 = scmp.ne.s32.totalorder %s46, %s60
    %p62 = scmp.eq.s32.totalorder %s15, 0
    %p63 = por %p61, %p62
    %s64 = ssub.s32 %s9, %s16
    %p65 = scmp.eq.s32.totalorder %s64, 0
    %s67 = sadd.s32 %s66, 1
    %s68 = scalar_select %p65, %s66, %s67
    %p71 = pneg %p65
    %p72 = scmp.eq.s32.totalorder %s9, 1
    %p73 = por %p71, %p72
    %p74 = scmp.ne.s32.totalorder %s66, %s69
    %p75 = scmp.eq.s32.totalorder %s9, 0
    %p76 = por %p74, %p75
    %p77 = scmp.ne.s32.totalorder %s66, %s69
    %p78 = scmp.eq.s32.totalorder %s14, 1
    %p79 = por %p77, %p78
    %p80 = scmp.ne.s32.totalorder %s69, %s70
    %p81 = scmp.eq.s32.totalorder %s14, 0
    %p82 = por %p80, %p81
    %p83 = scmp.ne.s32.totalorder %s69, %s70
    %p84 = scmp.eq.s32.totalorder %s15, 1
    %p85 = por %p83, %p84
    %p87 = scmp.ne.s32.totalorder %s70, %s86
    %p88 = scmp.eq.s32.totalorder %s15, 0
    %p89 = por %p87, %p88
    %s90 = ssub.s32 %s9, %s16
    %p91 = scmp.eq.s32.totalorder %s90, 0
    %s93 = sadd.s32 %s92, 1
    %s94 = scalar_select %p91, %s92, %s93
    %p97 = pneg %p91
    %p98 = scmp.eq.s32.totalorder %s9, 1
    %p99 = por %p97, %p98
    %p100 = scmp.ne.s32.totalorder %s92, %s95
    %p101 = scmp.eq.s32.totalorder %s9, 0
    %p102 = por %p100, %p101
    %p103 = scmp.ne.s32.totalorder %s92, %s95
    %p104 = scmp.eq.s32.totalorder %s14, 1
    %p105 = por %p103, %p104
    %p106 = scmp.ne.s32.totalorder %s95, %s96
    %p107 = scmp.eq.s32.totalorder %s14, 0
    %p108 = por %p106, %p107
    %p109 = scmp.ne.s32.totalorder %s95, %s96
    %p110 = scmp.eq.s32.totalorder %s15, 1
    %p111 = por %p109, %p110
    %p113 = scmp.ne.s32.totalorder %s96, %s112
    %p114 = scmp.eq.s32.totalorder %s15, 0
    %p115 = por %p113, %p114
    %p116 = scmp.le.s32.totalorder 1, %s9
    %p117 = scmp.lt.s32.totalorder %s9, 3
    %p118 = pnand %p116, %p117
    %p119 = pneg %p118
    // Predicated region
    $region9: #{model_forward.39} parent=5 // pred_check
      _
    $region10: #{model_forward.39} parent=5 // pred_check_branch
      %121 = sbr.rel (%p118) target = $region12
    $region11: #{model_forward.39} parent=5 // pred_region
      %s122 = ssub.s32 %s9, 1
      // Predicated region
      $region13: #{model_forward.39} parent=11 // pred_check
        %p123 = pneg %p56
      $region14: #{model_forward.39} parent=11 // pred_check_branch
        %125 = sbr.rel (%p123) target = $region16
      $region15: #{model_forward.39} parent=11 // pred_region
        _
      $region16: #{model_forward.39} parent=11 // pred_fallthru
        _
    $region12: #{model_forward.39} parent=5 // pred_fallthru
      _
    %p126 = scmp.lt.s32.totalorder %s9, 2
    // Predicated region
    $region17: #{model_forward.39} parent=5 // pred_check
      %p127 = pneg %p126
    $region18: #{model_forward.39} parent=5 // pred_check_branch
      %129 = sbr.rel (%p127) target = $region20
    $region19: #{model_forward.39} parent=5 // pred_region
      // Predicated region
      $region21: #{model_forward.39} parent=19 // pred_check
        %p130 = pneg %p29
      $region22: #{model_forward.39} parent=19 // pred_check_branch
        %132 = sbr.rel (%p130) target = $region24
      $region23: #{model_forward.39} parent=19 // pred_region
        %p133 = scmp.lt.s32.totalorder %s9, 1
        %s134 = scalar_select %p133, %s9, 1
        %s135 = smul.addr %s134, 8
        %s136 = scalar_lea.vmem %s0, %s135
      $region24: #{model_forward.39} parent=19 // pred_fallthru
        _
      // Predicated region
      $region25: #{model_forward.39} parent=19 // pred_check
        %p137 = pneg %p76
      $region26: #{model_forward.39} parent=19 // pred_check_branch
        %139 = sbr.rel (%p137) target = $region28
      $region27: #{model_forward.39} parent=19 // pred_region
        %p140 = scmp.lt.s32.totalorder %s9, 1
        %s141 = scalar_select %p140, %s9, 1
        %s142 = smul.addr %s141, 4
        %s143 = scalar_lea.vmem %s2, %s142
      $region28: #{model_forward.39} parent=19 // pred_fallthru
        _
    $region20: #{model_forward.39} parent=5 // pred_fallthru
      _
    %p144 = scmp.le.s32.totalorder 1, %s9
    %p145 = scmp.lt.s32.totalorder %s9, 3
    %p146 = pnand %p144, %p145
    %p147 = pneg %p146
    // Predicated region
    $region29: #{model_forward.39} parent=5 // pred_check
      _
    $region30: #{model_forward.39} parent=5 // pred_check_branch
      %149 = sbr.rel (%p146) target = $region32
    $region31: #{model_forward.39} parent=5 // pred_region
      %s150 = ssub.s32 %s9, 1
      %p151 = scmp.lt.s32.totalorder %s14, 1
      %s152 = scalar_select %p151, %s14, 1
      %s153 = smul.addr %s152, 8
      %s154 = scalar_lea.vmem %s0, %s153
      %p155 = pneg %p35
      %p156 = pneg %p32
      %p157 = pneg %p56
      %p158 = pneg %p53
      %p159 = scmp.lt.s32.totalorder %s14, 1
      %s160 = scalar_select %p159, %s14, 1
      %s161 = smul.addr %s160, 4
      %s162 = scalar_lea.vmem %s2, %s161
      %p163 = pneg %p82
      %p164 = pneg %p79
      %p165 = pneg %p108
      %p166 = pneg %p105
      %p167 = scmp.lt.s32.totalorder %s14, 1
      %s168 = scalar_select %p167, %s14, 1
      %s169 = smul.addr %s168, 8
      %s170 = scalar_lea.vmem %s3, %s169
      %p171 = scmp.lt.s32.totalorder %s14, 1
      %s172 = scalar_select %p171, %s14, 1
      %s173 = smul.addr %s172, 8
      %s174 = scalar_lea.vmem %s0, %s173
      %p175 = scmp.lt.s32.totalorder %s14, 1
      %s176 = scalar_select %p175, %s14, 1
      %s177 = smul.addr %s176, 4
      %s178 = scalar_lea.vmem %s2, %s177
      %p179 = scmp.lt.s32.totalorder %s14, 1
      %s180 = scalar_select %p179, %s14, 1
      %s181 = smul.addr %s180, 8
      %s182 = scalar_lea.vmem %s3, %s181
      %v184 = vld [vmem:[%s1] sm:$0xff]
      %v185 = vpack.c.bf16 %v184, %v184
      %v186 = vld [vmem:[%s178] sm:$0xf]
      %v187 = vpack.c.bf16 %v186, %v186
      %vm188 = vcmask 31744
      %v190 = vsel %vm188, %v185, 0
      %vm192 = vcmask 1041408
      %v194 = vsel %vm192, %v187, 0
      %196 = vmatprep.subr.bf16.mxu0 0
      %197 = vmatpush1.bf16.msra.mxu0 0
      %198 = vmatprep.subr.bf16.mxu0 0
      %199 = vmatpush1.bf16.msra.mxu0 0
      %200 = vmatprep.subr.bf16.mxu0 0
      %201 = vmatpush1.bf16.msra.mxu0 0
      %202 = vmatprep.subr.bf16.mxu0 0
      %203 = vmatpush1.bf16.msra.mxu0 0
      %204 = vmatprep.subr.bf16.mxu0 0
      %205 = vmatpush1.bf16.msra.mxu0 0
      %206 = vmatprep.subr.bf16.mxu0 0
      %207 = vmatpush1.bf16.msra.mxu0 0
      %208 = vmatprep.subr.bf16.mxu0 0
      %209 = vmatpush1.bf16.msra.mxu0 0
      %210 = vmatprep.subr.bf16.mxu0 0
      %211 = vmatpush1.bf16.msra.mxu0 %v194
      %212 = vmatprep.subr.bf16.mxu0 0
      %213 = vmatpush2.bf16.msra.mxu0 0
      %214 = vmatprep.subr.bf16.mxu0 0
      %215 = vmatpush2.bf16.msra.mxu0 0
      %216 = vmatprep.subr.bf16.mxu0 0
      %217 = vmatpush2.bf16.msra.mxu0 0
      %218 = vmatprep.subr.bf16.mxu0 0
      %219 = vmatpush2.bf16.msra.mxu0 0
      %220 = vmatprep.subr.bf16.mxu0 0
      %221 = vmatpush2.bf16.msra.mxu0 0
      %222 = vmatprep.subr.bf16.mxu0 0
      %223 = vmatpush2.bf16.msra.mxu0 0
      %224 = vmatprep.subr.bf16.mxu0 0
      %225 = vmatpush2.bf16.msra.mxu0 0
      %226 = vmatprep.subr.bf16.mxu0 0
      %227 = vmatpush2.bf16.msra.mxu0 0
      %228 = vmatprep.mubr.bf16.mxu0 0
      %229 = vmatmul.mubr.bf16.gmra.mxu0 %v190
      %v230 = vpop.f32.mrf.mxu0
      %v231 = vadd.f32 0.0, %v230
      %v232 = vpop.f32.mrf.mxu0
      %v233 = vpop.f32.mrf.mxu0
      %v234 = vpop.f32.mrf.mxu0
      %235 = vdwg.mxu0
      %v236 = vld [vmem:[%s174] sm:$0xff]
      %v237 = vsub.f32 %v236, %v231
      %vm238 = vcmask 130048
      %239 = vst.msk [vmem:[%s182] sm:$0xff] %vm238, %v237
      %p240 = scmp.lt.s32.totalorder %s14, 1
      %s241 = scalar_select %p240, %s14, 1
      %s242 = smul.addr %s241, 8
      %s243 = scalar_lea.vmem %s3, %s242
      // Predicated region
      $region33: #{model_forward.39} parent=31 // pred_check
        %p244 = pneg %p105
      $region34: #{model_forward.39} parent=31 // pred_check_branch
        %246 = sbr.rel (%p244) target = $region36
      $region35: #{model_forward.39} parent=31 // pred_region
        _
      $region36: #{model_forward.39} parent=31 // pred_fallthru
        _
    $region32: #{model_forward.39} parent=5 // pred_fallthru
      _
    %p247 = scmp.le.s32.totalorder 2, %s9
    // Predicated region
    $region37: #{model_forward.39} parent=5 // pred_check
      %p248 = pneg %p247
    $region38: #{model_forward.39} parent=5 // pred_check_branch
      %250 = sbr.rel (%p248) target = $region40
    $region39: #{model_forward.39} parent=5 // pred_region
      %s251 = ssub.s32 %s9, 2
      // Predicated region
      $region41: #{model_forward.39} parent=39 // pred_check
        %p252 = pneg %p111
      $region42: #{model_forward.39} parent=39 // pred_check_branch
        %254 = sbr.rel (%p252) target = $region44
      $region43: #{model_forward.39} parent=39 // pred_region
        %p255 = scmp.lt.s32.totalorder %s15, 1
        %s256 = scalar_select %p255, %s15, 1
        %s257 = smul.addr %s256, 8
        %s258 = scalar_lea.vmem %s3, %s257
      $region44: #{model_forward.39} parent=39 // pred_fallthru
        _
    $region40: #{model_forward.39} parent=5 // pred_fallthru
      _
  $region6: #{model_forward.39} parent=0 // loop_footer
    %s13 = sadd.s32 1, %s9
  $region7: #{model_forward.39} parent=0 // loop_footer_branch
    %8 = sbr.rel target = $region3
  $region8: #{model_forward.39} parent=0 // loop_exit
    _

// kernel: model_forward.41
$region0: #{model_forward.41}
  #allocation0 [shape = 'u32[]', space=smem, size = 0x4, offset = 0x4, fixed_abs, tag = 'smem constant byte address 0x4 - core index']
  #allocation1 [shape = 'u32[144,128]{1,0:T(1,128)}', space=vmem, size = 0x12000, scoped, tag = 'internal scratch']
  %s0 = inlined_call_operand.vmem [shape: f32[2,4,64], index: 0, kind: input, shape index: {}]
  %s1 = inlined_call_operand.vmem [shape: f32[4,2], index: 1, kind: input, shape index: {}]
  %s2 = inlined_call_operand.vmem [shape: f32[2,2,64], index: 2, kind: input, shape index: {}]
  %s3 = inlined_call_operand.vmem [shape: f32[2,4,64], index: 3, kind: output, shape index: {}]
  %s4 = sld [smem:[#allocation0]]
  $region45: #{model_forward.41} parent=0
    _
  %s6 = ssub.s32 1, %s4
  %s7 = scalar_select 0, %s6, %s4
  loop: start=0, step=1, limit=4
  $region2: #{model_forward.41} parent=0 // loop_pre_header
    _
  $region3: #{model_forward.41} parent=0 // loop_header
    %s9 = sphi 0, %s13
    %p10 = scmp.ge.s32.totalorder %s9, 4
    %s19 = sphi 0, %s21
    %s22 = sphi 0, %s19
    %s23 = sphi 0, %s22
    %s39 = sphi 0, %s23
    %s43 = sphi 0, %s43
    %s45 = sphi 0, %s43
    %s46 = sphi 0, %s45
    %s60 = sphi 0, %s46
    %s66 = sphi 0, %s68
    %s69 = sphi 0, %s66
    %s70 = sphi 0, %s69
    %s86 = sphi 0, %s70
    %s92 = sphi 0, %s94
    %s95 = sphi 0, %s92
    %s96 = sphi 0, %s95
    %s112 = sphi 0, %s96
  $region4: #{model_forward.41} parent=0 // loop_header_branch
    %12 = sbr.rel (%p10) target = $region8
  $region5: #{model_forward.41} parent=0 // loop_body
    %s14 = ssub.s32 %s9, 1
    %s15 = ssub.s32 %s9, 2
    %s16 = sadd.s32 %s9, 1
    %s17 = ssub.s32 %s9, %s16
    %p18 = scmp.eq.s32.totalorder %s17, 0
    %s20 = sadd.s32 %s19, 1
    %s21 = scalar_select %p18, %s19, %s20
    %p24 = pneg %p18
    %p25 = scmp.eq.s32.totalorder %s9, 1
    %p26 = por %p24, %p25
    %p27 = scmp.ne.s32.totalorder %s19, %s22
    %p28 = scmp.eq.s32.totalorder %s9, 0
    %p29 = por %p27, %p28
    %p30 = scmp.ne.s32.totalorder %s19, %s22
    %p31 = scmp.eq.s32.totalorder %s14, 1
    %p32 = por %p30, %p31
    %p33 = scmp.ne.s32.totalorder %s22, %s23
    %p34 = scmp.eq.s32.totalorder %s14, 0
    %p35 = por %p33, %p34
    %p36 = scmp.ne.s32.totalorder %s22, %s23
    %p37 = scmp.eq.s32.totalorder %s15, 1
    %p38 = por %p36, %p37
    %p40 = scmp.ne.s32.totalorder %s23, %s39
    %p41 = scmp.eq.s32.totalorder %s15, 0
    %p42 = por %p40, %p41
    %s44 = sadd.s32 %s43, 1
    %p47 = scmp.eq.s32.totalorder %s9, 1
    %p48 = scmp.ne.s32.totalorder %s43, %s45
    %p49 = scmp.eq.s32.totalorder %s9, 0
    %p50 = por %p48, %p49
    %p51 = scmp.ne.s32.totalorder %s43, %s45
    %p52 = scmp.eq.s32.totalorder %s14, 1
    %p53 = por %p51, %p52
    %p54 = scmp.ne.s32.totalorder %s45, %s46
    %p55 = scmp.eq.s32.totalorder %s14, 0
    %p56 = por %p54, %p55
    %p57 = scmp.ne.s32.totalorder %s45, %s46
    %p58 = scmp.eq.s32.totalorder %s15, 1
    %p59 = por %p57, %p58
    %p61 = scmp.ne.s32.totalorder %s46, %s60
    %p62 = scmp.eq.s32.totalorder %s15, 0
    %p63 = por %p61, %p62
    %s64 = ssub.s32 %s9, %s16
    %p65 = scmp.eq.s32.totalorder %s64, 0
    %s67 = sadd.s32 %s66, 1
    %s68 = scalar_select %p65, %s66, %s67
    %p71 = pneg %p65
    %p72 = scmp.eq.s32.totalorder %s9, 1
    %p73 = por %p71, %p72
    %p74 = scmp.ne.s32.totalorder %s66, %s69
    %p75 = scmp.eq.s32.totalorder %s9, 0
    %p76 = por %p74, %p75
    %p77 = scmp.ne.s32.totalorder %s66, %s69
    %p78 = scmp.eq.s32.totalorder %s14, 1
    %p79 = por %p77, %p78
    %p80 = scmp.ne.s32.totalorder %s69, %s70
    %p81 = scmp.eq.s32.totalorder %s14, 0
    %p82 = por %p80, %p81
    %p83 = scmp.ne.s32.totalorder %s69, %s70
    %p84 = scmp.eq.s32.totalorder %s15, 1
    %p85 = por %p83, %p84
    %p87 = scmp.ne.s32.totalorder %s70, %s86
    %p88 = scmp.eq.s32.totalorder %s15, 0
    %p89 = por %p87, %p88
    %s90 = ssub.s32 %s9, %s16
    %p91 = scmp.eq.s32.totalorder %s90, 0
    %s93 = sadd.s32 %s92, 1
    %s94 = scalar_select %p91, %s92, %s93
    %p97 = pneg %p91
    %p98 = scmp.eq.s32.totalorder %s9, 1
    %p99 = por %p97, %p98
    %p100 = scmp.ne.s32.totalorder %s92, %s95
    %p101 = scmp.eq.s32.totalorder %s9, 0
    %p102 = por %p100, %p101
    %p103 = scmp.ne.s32.totalorder %s92, %s95
    %p104 = scmp.eq.s32.totalorder %s14, 1
    %p105 = por %p103, %p104
    %p106 = scmp.ne.s32.totalorder %s95, %s96
    %p107 = scmp.eq.s32.totalorder %s14, 0
    %p108 = por %p106, %p107
    %p109 = scmp.ne.s32.totalorder %s95, %s96
    %p110 = scmp.eq.s32.totalorder %s15, 1
    %p111 = por %p109, %p110
    %p113 = scmp.ne.s32.totalorder %s96, %s112
    %p114 = scmp.eq.s32.totalorder %s15, 0
    %p115 = por %p113, %p114
    %p116 = scmp.le.s32.totalorder 1, %s9
    %p117 = scmp.lt.s32.totalorder %s9, 3
    %p118 = pnand %p116, %p117
    %p119 = pneg %p118
    // Predicated region
    $region9: #{model_forward.41} parent=5 // pred_check
      _
    $region10: #{model_forward.41} parent=5 // pred_check_branch
      %121 = sbr.rel (%p118) target = $region12
    $region11: #{model_forward.41} parent=5 // pred_region
      %s122 = ssub.s32 %s9, 1
      // Predicated region
      $region13: #{model_forward.41} parent=11 // pred_check
        %p123 = pneg %p56
      $region14: #{model_forward.41} parent=11 // pred_check_branch
        %125 = sbr.rel (%p123) target = $region16
      $region15: #{model_forward.41} parent=11 // pred_region
        _
      $region16: #{model_forward.41} parent=11 // pred_fallthru
        _
    $region12: #{model_forward.41} parent=5 // pred_fallthru
      _
    %p126 = scmp.lt.s32.totalorder %s9, 2
    // Predicated region
    $region17: #{model_forward.41} parent=5 // pred_check
      %p127 = pneg %p126
    $region18: #{model_forward.41} parent=5 // pred_check_branch
      %129 = sbr.rel (%p127) target = $region20
    $region19: #{model_forward.41} parent=5 // pred_region
      // Predicated region
      $region21: #{model_forward.41} parent=19 // pred_check
        %p130 = pneg %p29
      $region22: #{model_forward.41} parent=19 // pred_check_branch
        %132 = sbr.rel (%p130) target = $region24
      $region23: #{model_forward.41} parent=19 // pred_region
        %p133 = scmp.lt.s32.totalorder %s9, 1
        %s134 = scalar_select %p133, %s9, 1
        %s135 = smul.addr %s134, 4
        %s136 = scalar_lea.vmem %s0, %s135
      $region24: #{model_forward.41} parent=19 // pred_fallthru
        _
      // Predicated region
      $region25: #{model_forward.41} parent=19 // pred_check
        %p137 = pneg %p76
      $region26: #{model_forward.41} parent=19 // pred_check_branch
        %139 = sbr.rel (%p137) target = $region28
      $region27: #{model_forward.41} parent=19 // pred_region
        %p140 = scmp.lt.s32.totalorder %s9, 1
        %s141 = scalar_select %p140, %s9, 1
        %s142 = smul.addr %s141, 2
        %s143 = scalar_lea.vmem %s2, %s142
      $region28: #{model_forward.41} parent=19 // pred_fallthru
        _
    $region20: #{model_forward.41} parent=5 // pred_fallthru
      _
    %p144 = scmp.le.s32.totalorder 1, %s9
    %p145 = scmp.lt.s32.totalorder %s9, 3
    %p146 = pnand %p144, %p145
    %p147 = pneg %p146
    // Predicated region
    $region29: #{model_forward.41} parent=5 // pred_check
      _
    $region30: #{model_forward.41} parent=5 // pred_check_branch
      %149 = sbr.rel (%p146) target = $region32
    $region31: #{model_forward.41} parent=5 // pred_region
      %s150 = ssub.s32 %s9, 1
      %p151 = scmp.lt.s32.totalorder %s14, 1
      %s152 = scalar_select %p151, %s14, 1
      %s153 = smul.addr %s152, 4
      %s154 = scalar_lea.vmem %s0, %s153
      %p155 = pneg %p35
      %p156 = pneg %p32
      %p157 = pneg %p56
      %p158 = pneg %p53
      %p159 = scmp.lt.s32.totalorder %s14, 1
      %s160 = scalar_select %p159, %s14, 1
      %s161 = smul.addr %s160, 2
      %s162 = scalar_lea.vmem %s2, %s161
      %p163 = pneg %p82
      %p164 = pneg %p79
      %p165 = pneg %p108
      %p166 = pneg %p105
      %p167 = scmp.lt.s32.totalorder %s14, 1
      %s168 = scalar_select %p167, %s14, 1
      %s169 = smul.addr %s168, 4
      %s170 = scalar_lea.vmem %s3, %s169
      %p171 = scmp.lt.s32.totalorder %s14, 1
      %s172 = scalar_select %p171, %s14, 1
      %s173 = smul.addr %s172, 4
      %s174 = scalar_lea.vmem %s0, %s173
      %p175 = scmp.lt.s32.totalorder %s14, 1
      %s176 = scalar_select %p175, %s14, 1
      %s177 = smul.addr %s176, 2
      %s178 = scalar_lea.vmem %s2, %s177
      %p179 = scmp.lt.s32.totalorder %s14, 1
      %s180 = scalar_select %p179, %s14, 1
      %s181 = smul.addr %s180, 4
      %s182 = scalar_lea.vmem %s3, %s181
      %v184 = vld [vmem:[%s1] sm:$0xf]
      %v185 = vpack.c.bf16 %v184, %v184
      %v186 = vld [vmem:[%s178] sm:$0x3]
      %v187 = vpack.c.bf16 %v186, %v186
      %vm188 = vcmask 15360
      %v190 = vsel %vm188, %v185, 0
      %vm192 = vcmask 1040384
      %v194 = vsel %vm192, %v187, 0
      %196 = vmatprep.subr.bf16.mxu0 0
      %197 = vmatpush1.bf16.msra.mxu0 0
      %198 = vmatprep.subr.bf16.mxu0 0
      %199 = vmatpush1.bf16.msra.mxu0 0
      %200 = vmatprep.subr.bf16.mxu0 0
      %201 = vmatpush1.bf16.msra.mxu0 0
      %202 = vmatprep.subr.bf16.mxu0 0
      %203 = vmatpush1.bf16.msra.mxu0 0
      %204 = vmatprep.subr.bf16.mxu0 0
      %205 = vmatpush1.bf16.msra.mxu0 0
      %206 = vmatprep.subr.bf16.mxu0 0
      %207 = vmatpush1.bf16.msra.mxu0 0
      %208 = vmatprep.subr.bf16.mxu0 0
      %209 = vmatpush1.bf16.msra.mxu0 0
      %210 = vmatprep.subr.bf16.mxu0 0
      %211 = vmatpush1.bf16.msra.mxu0 %v194
      %212 = vmatprep.subr.bf16.mxu0 0
      %213 = vmatpush2.bf16.msra.mxu0 0
      %214 = vmatprep.subr.bf16.mxu0 0
      %215 = vmatpush2.bf16.msra.mxu0 0
      %216 = vmatprep.subr.bf16.mxu0 0
      %217 = vmatpush2.bf16.msra.mxu0 0
      %218 = vmatprep.subr.bf16.mxu0 0
      %219 = vmatpush2.bf16.msra.mxu0 0
      %220 = vmatprep.subr.bf16.mxu0 0
      %221 = vmatpush2.bf16.msra.mxu0 0
      %222 = vmatprep.subr.bf16.mxu0 0
      %223 = vmatpush2.bf16.msra.mxu0 0
      %224 = vmatprep.subr.bf16.mxu0 0
      %225 = vmatpush2.bf16.msra.mxu0 0
      %226 = vmatprep.subr.bf16.mxu0 0
      %227 = vmatpush2.bf16.msra.mxu0 0
      %228 = vmatprep.mubr.bf16.mxu0 0
      %229 = vmatmul.mubr.bf16.gmra.mxu0 %v190
      %v230 = vpop.f32.mrf.mxu0
      %v231 = vadd.f32 0.0, %v230
      %v232 = vpop.f32.mrf.mxu0
      %v233 = vpop.f32.mrf.mxu0
      %v234 = vpop.f32.mrf.mxu0
      %235 = vdwg.mxu0
      %v236 = vld [vmem:[%s174] sm:$0xf]
      %v237 = vsub.f32 %v236, %v231
      %vm238 = vcmask 519168
      %239 = vst.msk [vmem:[%s182] sm:$0xf] %vm238, %v237
      %p240 = scmp.lt.s32.totalorder %s14, 1
      %s241 = scalar_select %p240, %s14, 1
      %s242 = smul.addr %s241, 4
      %s243 = scalar_lea.vmem %s3, %s242
      // Predicated region
      $region33: #{model_forward.41} parent=31 // pred_check
        %p244 = pneg %p105
      $region34: #{model_forward.41} parent=31 // pred_check_branch
        %246 = sbr.rel (%p244) target = $region36
      $region35: #{model_forward.41} parent=31 // pred_region
        _
      $region36: #{model_forward.41} parent=31 // pred_fallthru
        _
    $region32: #{model_forward.41} parent=5 // pred_fallthru
      _
    %p247 = scmp.le.s32.totalorder 2, %s9
    // Predicated region
    $region37: #{model_forward.41} parent=5 // pred_check
      %p248 = pneg %p247
    $region38: #{model_forward.41} parent=5 // pred_check_branch
      %250 = sbr.rel (%p248) target = $region40
    $region39: #{model_forward.41} parent=5 // pred_region
      %s251 = ssub.s32 %s9, 2
      // Predicated region
      $region41: #{model_forward.41} parent=39 // pred_check
        %p252 = pneg %p111
      $region42: #{model_forward.41} parent=39 // pred_check_branch
        %254 = sbr.rel (%p252) target = $region44
      $region43: #{model_forward.41} parent=39 // pred_region
        %p255 = scmp.lt.s32.totalorder %s15, 1
        %s256 = scalar_select %p255, %s15, 1
        %s257 = smul.addr %s256, 4
        %s258 = scalar_lea.vmem %s3, %s257
      $region44: #{model_forward.41} parent=39 // pred_fallthru
        _
    $region40: #{model_forward.41} parent=5 // pred_fallthru
      _
  $region6: #{model_forward.41} parent=0 // loop_footer
    %s13 = sadd.s32 1, %s9
  $region7: #{model_forward.41} parent=0 // loop_footer_branch
    %8 = sbr.rel target = $region3
  $region8: #{model_forward.41} parent=0 // loop_exit
    _

// kernel: model_forward.40
$region0: #{model_forward.40}
  #allocation0 [shape = 'u32[]', space=smem, size = 0x4, offset = 0x4, fixed_abs, tag = 'smem constant byte address 0x4 - core index']
  #allocation1 [shape = 'u32[144,128]{1,0:T(1,128)}', space=vmem, size = 0x12000, scoped, tag = 'internal scratch']
  %s0 = inlined_call_operand.vmem [shape: f32[2,16,12], index: 0, kind: input, shape index: {}]
  %s1 = inlined_call_operand.vmem [shape: bf16[12,64], index: 1, kind: input, shape index: {}]
  %s2 = inlined_call_operand.vmem [shape: f32[1,64], index: 2, kind: input, shape index: {}]
  %s3 = inlined_call_operand.vmem [shape: bf16[64,64], index: 3, kind: input, shape index: {}]
  %s4 = inlined_call_operand.vmem [shape: f32[1,64], index: 4, kind: input, shape index: {}]
  %s5 = inlined_call_operand.vmem [shape: bf16[64,8], index: 5, kind: input, shape index: {}]
  %s6 = inlined_call_operand.vmem [shape: f32[1,8], index: 6, kind: input, shape index: {}]
  %s7 = inlined_call_operand.vmem [shape: f32[2,16,8], index: 7, kind: output, shape index: {}]
  %s8 = sld [smem:[#allocation0]]
  $region61: #{model_forward.40} parent=0
    _
  %s10 = ssub.s32 1, %s8
  %s11 = scalar_select 0, %s10, %s8
  loop: start=0, step=1, limit=4
  $region2: #{model_forward.40} parent=0 // loop_pre_header
    _
  $region3: #{model_forward.40} parent=0 // loop_header
    %s13 = sphi 0, %s17
    %p14 = scmp.ge.s32.totalorder %s13, 4
    %s23 = sphi 0, %s25
    %s26 = sphi 0, %s23
    %s27 = sphi 0, %s26
    %s43 = sphi 0, %s27
    %s47 = sphi 0, %s47
    %s49 = sphi 0, %s47
    %s50 = sphi 0, %s49
    %s64 = sphi 0, %s50
    %s68 = sphi 0, %s68
    %s70 = sphi 0, %s68
    %s71 = sphi 0, %s70
    %s85 = sphi 0, %s71
    %s89 = sphi 0, %s89
    %s91 = sphi 0, %s89
    %s92 = sphi 0, %s91
    %s106 = sphi 0, %s92
    %s110 = sphi 0, %s110
    %s112 = sphi 0, %s110
    %s113 = sphi 0, %s112
    %s127 = sphi 0, %s113
    %s131 = sphi 0, %s131
    %s133 = sphi 0, %s131
    %s134 = sphi 0, %s133
    %s148 = sphi 0, %s134
    %s152 = sphi 0, %s152
    %s154 = sphi 0, %s152
    %s155 = sphi 0, %s154
    %s169 = sphi 0, %s155
    %s175 = sphi 0, %s177
    %s178 = sphi 0, %s175
    %s179 = sphi 0, %s178
    %s195 = sphi 0, %s179
  $region4: #{model_forward.40} parent=0 // loop_header_branch
    %16 = sbr.rel (%p14) target = $region8
  $region5: #{model_forward.40} parent=0 // loop_body
    %s18 = ssub.s32 %s13, 1
    %s19 = ssub.s32 %s13, 2
    %s20 = sadd.s32 %s13, 1
    %s21 = ssub.s32 %s13, %s20
    %p22 = scmp.eq.s32.totalorder %s21, 0
    %s24 = sadd.s32 %s23, 1
    %s25 = scalar_select %p22, %s23, %s24
    %p28 = pneg %p22
    %p29 = scmp.eq.s32.totalorder %s13, 1
    %p30 = por %p28, %p29
    %p31 = scmp.ne.s32.totalorder %s23, %s26
    %p32 = scmp.eq.s32.totalorder %s13, 0
    %p33 = por %p31, %p32
    %p34 = scmp.ne.s32.totalorder %s23, %s26
    %p35 = scmp.eq.s32.totalorder %s18, 1
    %p36 = por %p34, %p35
    %p37 = scmp.ne.s32.totalorder %s26, %s27
    %p38 = scmp.eq.s32.totalorder %s18, 0
    %p39 = por %p37, %p38
    %p40 = scmp.ne.s32.totalorder %s26, %s27
    %p41 = scmp.eq.s32.totalorder %s19, 1
    %p42 = por %p40, %p41
    %p44 = scmp.ne.s32.totalorder %s27, %s43
    %p45 = scmp.eq.s32.totalorder %s19, 0
    %p46 = por %p44, %p45
    %s48 = sadd.s32 %s47, 1
    %p51 = scmp.eq.s32.totalorder %s13, 1
    %p52 = scmp.ne.s32.totalorder %s47, %s49
    %p53 = scmp.eq.s32.totalorder %s13, 0
    %p54 = por %p52, %p53
    %p55 = scmp.ne.s32.totalorder %s47, %s49
    %p56 = scmp.eq.s32.totalorder %s18, 1
    %p57 = por %p55, %p56
    %p58 = scmp.ne.s32.totalorder %s49, %s50
    %p59 = scmp.eq.s32.totalorder %s18, 0
    %p60 = por %p58, %p59
    %p61 = scmp.ne.s32.totalorder %s49, %s50
    %p62 = scmp.eq.s32.totalorder %s19, 1
    %p63 = por %p61, %p62
    %p65 = scmp.ne.s32.totalorder %s50, %s64
    %p66 = scmp.eq.s32.totalorder %s19, 0
    %p67 = por %p65, %p66
    %s69 = sadd.s32 %s68, 1
    %p72 = scmp.eq.s32.totalorder %s13, 1
    %p73 = scmp.ne.s32.totalorder %s68, %s70
    %p74 = scmp.eq.s32.totalorder %s13, 0
    %p75 = por %p73, %p74
    %p76 = scmp.ne.s32.totalorder %s68, %s70
    %p77 = scmp.eq.s32.totalorder %s18, 1
    %p78 = por %p76, %p77
    %p79 = scmp.ne.s32.totalorder %s70, %s71
    %p80 = scmp.eq.s32.totalorder %s18, 0
    %p81 = por %p79, %p80
    %p82 = scmp.ne.s32.totalorder %s70, %s71
    %p83 = scmp.eq.s32.totalorder %s19, 1
    %p84 = por %p82, %p83
    %p86 = scmp.ne.s32.totalorder %s71, %s85
    %p87 = scmp.eq.s32.totalorder %s19, 0
    %p88 = por %p86, %p87
    %s90 = sadd.s32 %s89, 1
    %p93 = scmp.eq.s32.totalorder %s13, 1
    %p94 = scmp.ne.s32.totalorder %s89, %s91
    %p95 = scmp.eq.s32.totalorder %s13, 0
    %p96 = por %p94, %p95
    %p97 = scmp.ne.s32.totalorder %s89, %s91
    %p98 = scmp.eq.s32.totalorder %s18, 1
    %p99 = por %p97, %p98
    %p100 = scmp.ne.s32.totalorder %s91, %s92
    %p101 = scmp.eq.s32.totalorder %s18, 0
    %p102 = por %p100, %p101
    %p103 = scmp.ne.s32.totalorder %s91, %s92
    %p104 = scmp.eq.s32.totalorder %s19, 1
    %p105 = por %p103, %p104
    %p107 = scmp.ne.s32.totalorder %s92, %s106
    %p108 = scmp.eq.s32.totalorder %s19, 0
    %p109 = por %p107, %p108
    %s111 = sadd.s32 %s110, 1
    %p114 = scmp.eq.s32.totalorder %s13, 1
    %p115 = scmp.ne.s32.totalorder %s110, %s112
    %p116 = scmp.eq.s32.totalorder %s13, 0
    %p117 = por %p115, %p116
    %p118 = scmp.ne.s32.totalorder %s110, %s112
    %p119 = scmp.eq.s32.totalorder %s18, 1
    %p120 = por %p118, %p119
    %p121 = scmp.ne.s32.totalorder %s112, %s113
    %p122 = scmp.eq.s32.totalorder %s18, 0
    %p123 = por %p121, %p122
    %p124 = scmp.ne.s32.totalorder %s112, %s113
    %p125 = scmp.eq.s32.totalorder %s19, 1
    %p126 = por %p124, %p125
    %p128 = scmp.ne.s32.totalorder %s113, %s127
    %p129 = scmp.eq.s32.totalorder %s19, 0
    %p130 = por %p128, %p129
    %s132 = sadd.s32 %s131, 1
    %p135 = scmp.eq.s32.totalorder %s13, 1
    %p136 = scmp.ne.s32.totalorder %s131, %s133
    %p137 = scmp.eq.s32.totalorder %s13, 0
    %p138 = por %p136, %p137
    %p139 = scmp.ne.s32.totalorder %s131, %s133
    %p140 = scmp.eq.s32.totalorder %s18, 1
    %p141 = por %p139, %p140
    %p142 = scmp.ne.s32.totalorder %s133, %s134
    %p143 = scmp.eq.s32.totalorder %s18, 0
    %p144 = por %p142, %p143
    %p145 = scmp.ne.s32.totalorder %s133, %s134
    %p146 = scmp.eq.s32.totalorder %s19, 1
    %p147 = por %p145, %p146
    %p149 = scmp.ne.s32.totalorder %s134, %s148
    %p150 = scmp.eq.s32.totalorder %s19, 0
    %p151 = por %p149, %p150
    %s153 = sadd.s32 %s152, 1
    %p156 = scmp.eq.s32.totalorder %s13, 1
    %p157 = scmp.ne.s32.totalorder %s152, %s154
    %p158 = scmp.eq.s32.totalorder %s13, 0
    %p159 = por %p157, %p158
    %p160 = scmp.ne.s32.totalorder %s152, %s154
    %p161 = scmp.eq.s32.totalorder %s18, 1
    %p162 = por %p160, %p161
    %p163 = scmp.ne.s32.totalorder %s154, %s155
    %p164 = scmp.eq.s32.totalorder %s18, 0
    %p165 = por %p163, %p164
    %p166 = scmp.ne.s32.totalorder %s154, %s155
    %p167 = scmp.eq.s32.totalorder %s19, 1
    %p168 = por %p166, %p167
    %p170 = scmp.ne.s32.totalorder %s155, %s169
    %p171 = scmp.eq.s32.totalorder %s19, 0
    %p172 = por %p170, %p171
    %s173 = ssub.s32 %s13, %s20
    %p174 = scmp.eq.s32.totalorder %s173, 0
    %s176 = sadd.s32 %s175, 1
    %s177 = scalar_select %p174, %s175, %s176
    %p180 = pneg %p174
    %p181 = scmp.eq.s32.totalorder %s13, 1
    %p182 = por %p180, %p181
    %p183 = scmp.ne.s32.totalorder %s175, %s178
    %p184 = scmp.eq.s32.totalorder %s13, 0
    %p185 = por %p183, %p184
    %p186 = scmp.ne.s32.totalorder %s175, %s178
    %p187 = scmp.eq.s32.totalorder %s18, 1
    %p188 = por %p186, %p187
    %p189 = scmp.ne.s32.totalorder %s178, %s179
    %p190 = scmp.eq.s32.totalorder %s18, 0
    %p191 = por %p189, %p190
    %p192 = scmp.ne.s32.totalorder %s178, %s179
    %p193 = scmp.eq.s32.totalorder %s19, 1
    %p194 = por %p192, %p193
    %p196 = scmp.ne.s32.totalorder %s179, %s195
    %p197 = scmp.eq.s32.totalorder %s19, 0
    %p198 = por %p196, %p197
    %p199 = scmp.le.s32.totalorder 1, %s13
    %p200 = scmp.lt.s32.totalorder %s13, 3
    %p201 = pnand %p199, %p200
    %p202 = pneg %p201
    // Predicated region
    $region9: #{model_forward.40} parent=5 // pred_check
      _
    $region10: #{model_forward.40} parent=5 // pred_check_branch
      %204 = sbr.rel (%p201) target = $region12
    $region11: #{model_forward.40} parent=5 // pred_region
      %s205 = ssub.s32 %s13, 1
      // Predicated region
      $region13: #{model_forward.40} parent=11 // pred_check
        %p206 = pneg %p60
      $region14: #{model_forward.40} parent=11 // pred_check_branch
        %208 = sbr.rel (%p206) target = $region16
      $region15: #{model_forward.40} parent=11 // pred_region
        _
      $region16: #{model_forward.40} parent=11 // pred_fallthru
        _
      // Predicated region
      $region17: #{model_forward.40} parent=11 // pred_check
        %p209 = pneg %p81
      $region18: #{model_forward.40} parent=11 // pred_check_branch
        %211 = sbr.rel (%p209) target = $region20
      $region19: #{model_forward.40} parent=11 // pred_region
        _
      $region20: #{model_forward.40} parent=11 // pred_fallthru
        _
      // Predicated region
      $region21: #{model_forward.40} parent=11 // pred_check
        %p212 = pneg %p102
      $region22: #{model_forward.40} parent=11 // pred_check_branch
        %214 = sbr.rel (%p212) target = $region24
      $region23: #{model_forward.40} parent=11 // pred_region
        _
      $region24: #{model_forward.40} parent=11 // pred_fallthru
        _
      // Predicated region
      $region25: #{model_forward.40} parent=11 // pred_check
        %p215 = pneg %p123
      $region26: #{model_forward.40} parent=11 // pred_check_branch
        %217 = sbr.rel (%p215) target = $region28
      $region27: #{model_forward.40} parent=11 // pred_region
        _
      $region28: #{model_forward.40} parent=11 // pred_fallthru
        _
      // Predicated region
      $region29: #{model_forward.40} parent=11 // pred_check
        %p218 = pneg %p144
      $region30: #{model_forward.40} parent=11 // pred_check_branch
        %220 = sbr.rel (%p218) target = $region32
      $region31: #{model_forward.40} parent=11 // pred_region
        _
      $region32: #{model_forward.40} parent=11 // pred_fallthru
        _
      // Predicated region
      $region33: #{model_forward.40} parent=11 // pred_check
        %p221 = pneg %p165
      $region34: #{model_forward.40} parent=11 // pred_check_branch
        %223 = sbr.rel (%p221) target = $region36
      $region35: #{model_forward.40} parent=11 // pred_region
        _
      $region36: #{model_forward.40} parent=11 // pred_fallthru
        _
    $region12: #{model_forward.40} parent=5 // pred_fallthru
      _
    %p224 = scmp.lt.s32.totalorder %s13, 2
    // Predicated region
    $region37: #{model_forward.40} parent=5 // pred_check
      %p225 = pneg %p224
    $region38: #{model_forward.40} parent=5 // pred_check_branch
      %227 = sbr.rel (%p225) target = $region40
    $region39: #{model_forward.40} parent=5 // pred_region
      // Predicated region
      $region41: #{model_forward.40} parent=39 // pred_check
        %p228 = pneg %p33
      $region42: #{model_forward.40} parent=39 // pred_check_branch
        %230 = sbr.rel (%p228) target = $region44
      $region43: #{model_forward.40} parent=39 // pred_region
        %p231 = scmp.lt.s32.totalorder %s13, 1
        %s232 = scalar_select %p231, %s13, 1
        %s233 = smul.addr %s232, 2
        %s234 = smul.addr %s233, 8
        %s235 = scalar_lea.vmem %s0, %s234
      $region44: #{model_forward.40} parent=39 // pred_fallthru
        _
    $region40: #{model_forward.40} parent=5 // pred_fallthru
      _
    %p236 = scmp.le.s32.totalorder 1, %s13
    %p237 = scmp.lt.s32.totalorder %s13, 3
    %p238 = pnand %p236, %p237
    %p239 = pneg %p238
    // Predicated region
    $region45: #{model_forward.40} parent=5 // pred_check
      _
    $region46: #{model_forward.40} parent=5 // pred_check_branch
      %241 = sbr.rel (%p238) target = $region48
    $region47: #{model_forward.40} parent=5 // pred_region
      %s242 = ssub.s32 %s13, 1
      %p243 = scmp.lt.s32.totalorder %s18, 1
      %s244 = scalar_select %p243, %s18, 1
      %s245 = smul.addr %s244, 2
      %s246 = smul.addr %s245, 8
      %s247 = scalar_lea.vmem %s0, %s246
      %p248 = pneg %p39
      %p249 = pneg %p36
      %p250 = pneg %p60
      %p251 = pneg %p57
      %p252 = pneg %p81
      %p253 = pneg %p78
      %p254 = pneg %p102
      %p255 = pneg %p99
      %p256 = pneg %p123
      %p257 = pneg %p120
      %p258 = pneg %p144
      %p259 = pneg %p141
      %p260 = pneg %p165
      %p261 = pneg %p162
      %p262 = pneg %p191
      %p263 = pneg %p188
      %p264 = scmp.lt.s32.totalorder %s18, 1
      %s265 = scalar_select %p264, %s18, 1
      %s266 = smul.addr %s265, 2
      %s267 = smul.addr %s266, 8
      %s268 = scalar_lea.vmem %s7, %s267
      %p269 = scmp.lt.s32.totalorder %s18, 1
      %s270 = scalar_select %p269, %s18, 1
      %s271 = smul.addr %s270, 2
      %s272 = smul.addr %s271, 8
      %s273 = scalar_lea.vmem %s0, %s272
      %p274 = scmp.lt.s32.totalorder %s18, 1
      %s275 = scalar_select %p274, %s18, 1
      %s276 = smul.addr %s275, 2
      %s277 = smul.addr %s276, 8
      %s278 = scalar_lea.vmem %s7, %s277
      %v280 = vld [vmem:[%s273] sm:$0xff]
      %v281 = vld [vmem:[%s273 + $0x8] sm:$0xff]
      %v282 = vpack.c.bf16 %v281, %v280
      %v283 = vld [vmem:[%s1] sm:$0xf]
      %v284 = vld [vmem:[%s1 + $0x4] sm:$0x3]
      %v285 = vld [vmem:[%s2] sm:$0x1]
      %v287 = vlaneseq
      %v288 = vshrl.u32 %v287, 7
      %v289 = vsub.s32 0, %v288
      %v290 = vrot.slane %v285, %v289
      %v294 = vunpack.c.l.b16 %v283
      %v295 = vunpack.c.l.b16 %v284
      %v296 = vpack.c.b16 %v295, %v294
      %vm297 = vcmask 97280
      %v299 = vsel %vm297, %v282, 0
      %vm301 = vcmask 1045504
      %v303 = vsel %vm301, %v296, 0
      %305 = vmatprep.subr.bf16.mxu0 0
      %306 = vmatpush1.bf16.msra.mxu0 0
      %307 = vmatprep.subr.bf16.mxu0 0
      %308 = vmatpush1.bf16.msra.mxu0 0
      %309 = vmatprep.subr.bf16.mxu0 0
      %310 = vmatpush1.bf16.msra.mxu0 0
      %311 = vmatprep.subr.bf16.mxu0 0
      %312 = vmatpush1.bf16.msra.mxu0 0
      %313 = vmatprep.subr.bf16.mxu0 0
      %314 = vmatpush1.bf16.msra.mxu0 0
      %315 = vmatprep.subr.bf16.mxu0 0
      %316 = vmatpush1.bf16.msra.mxu0 0
      %317 = vmatprep.subr.bf16.mxu0 0
      %318 = vmatpush1.bf16.msra.mxu0 0
      %319 = vmatprep.subr.bf16.mxu0 0
      %320 = vmatpush1.bf16.msra.mxu0 %v303
      %321 = vmatprep.subr.bf16.mxu0 0
      %322 = vmatpush2.bf16.msra.mxu0 0
      %323 = vmatprep.subr.bf16.mxu0 0
      %324 = vmatpush2.bf16.msra.mxu0 0
      %325 = vmatprep.subr.bf16.mxu0 0
      %326 = vmatpush2.bf16.msra.mxu0 0
      %327 = vmatprep.subr.bf16.mxu0 0
      %328 = vmatpush2.bf16.msra.mxu0 0
      %329 = vmatprep.subr.bf16.mxu0 0
      %330 = vmatpush2.bf16.msra.mxu0 0
      %331 = vmatprep.subr.bf16.mxu0 0
      %332 = vmatpush2.bf16.msra.mxu0 0
      %333 = vmatprep.subr.bf16.mxu0 0
      %334 = vmatpush2.bf16.msra.mxu0 0
      %335 = vmatprep.subr.bf16.mxu0 0
      %336 = vmatpush2.bf16.msra.mxu0 0
      %337 = vmatprep.mubr.bf16.mxu0 0
      %338 = vmatmul.mubr.bf16.gmra.mxu0 %v299
      %v339 = vpop.f32.mrf.mxu0
      %v340 = vadd.f32 %v290, %v339
      %v341 = vpop.f32.mrf.mxu0
      %v342 = vpop.f32.mrf.mxu0
      %v343 = vadd.f32 %v290, %v342
      %v344 = vpop.f32.mrf.mxu0
      %345 = vdwg.mxu0
      %v346 = vpack.c.bf16 %v343, %v340
      %v347 = vld [vmem:[%s3] sm:$0xf]
      %v348 = vld [vmem:[%s3 + $0x4] sm:$0xf]
      %v349 = vld [vmem:[%s3 + $0x8] sm:$0xf]
      %v350 = vld [vmem:[%s3 + $0xc] sm:$0xf]
      %v351 = vld [vmem:[%s3 + $0x10] sm:$0xf]
      %v352 = vld [vmem:[%s3 + $0x14] sm:$0xf]
      %v353 = vld [vmem:[%s3 + $0x18] sm:$0xf]
      %v354 = vld [vmem:[%s3 + $0x1c] sm:$0xf]
      %v355 = vld [vmem:[%s4] sm:$0x1]
      %v357 = vlaneseq
      %v358 = vshrl.u32 %v357, 7
      %v359 = vsub.s32 0, %v358
      %v360 = vrot.slane %v355, %v359
      %v370 = vunpack.c.l.b16 %v347
      %v371 = vunpack.c.l.b16 %v348
      %v372 = vunpack.c.l.b16 %v349
      %v373 = vunpack.c.l.b16 %v350
      %v374 = vunpack.c.l.b16 %v351
      %v375 = vunpack.c.l.b16 %v352
      %v376 = vunpack.c.l.b16 %v353
      %v377 = vunpack.c.l.b16 %v354
      %v378 = vpack.c.b16 %v371, %v370
      %v379 = vpack.c.b16 %v373, %v372
      %v380 = vpack.c.b16 %v375, %v374
      %v381 = vpack.c.b16 %v377, %v376
      %vm386 = vcmask 523264
      %v388 = vsel %vm386, %v346, 0
      %390 = vmatprep.subr.bf16.mxu0 0
      %391 = vmatpush1.bf16.msra.mxu0 0
      %392 = vmatprep.subr.bf16.mxu0 0
      %393 = vmatpush1.bf16.msra.mxu0 0
      %394 = vmatprep.subr.bf16.mxu0 0
      %395 = vmatpush1.bf16.msra.mxu0 0
      %396 = vmatprep.subr.bf16.mxu0 0
      %397 = vmatpush1.bf16.msra.mxu0 0
      %398 = vmatprep.subr.bf16.mxu0 0
      %399 = vmatpush1.bf16.msra.mxu0 %v381
      %400 = vmatprep.subr.bf16.mxu0 0
      %401 = vmatpush1.bf16.msra.mxu0 %v380
      %402 = vmatprep.subr.bf16.mxu0 0
      %403 = vmatpush1.bf16.msra.mxu0 %v379
      %404 = vmatprep.subr.bf16.mxu0 0
      %405 = vmatpush1.bf16.msra.mxu0 %v378
      %406 = vmatprep.subr.bf16.mxu0 0
      %407 = vmatpush2.bf16.msra.mxu0 0
      %408 = vmatprep.subr.bf16.mxu0 0
      %409 = vmatpush2.bf16.msra.mxu0 0
      %410 = vmatprep.subr.bf16.mxu0 0
      %411 = vmatpush2.bf16.msra.mxu0 0
      %412 = vmatprep.subr.bf16.mxu0 0
      %413 = vmatpush2.bf16.msra.mxu0 0
      %414 = vmatprep.subr.bf16.mxu0 0
      %415 = vmatpush2.bf16.msra.mxu0 0
      %416 = vmatprep.subr.bf16.mxu0 0
      %417 = vmatpush2.bf16.msra.mxu0 0
      %418 = vmatprep.subr.bf16.mxu0 0
      %419 = vmatpush2.bf16.msra.mxu0 0
      %420 = vmatprep.subr.bf16.mxu0 0
      %421 = vmatpush2.bf16.msra.mxu0 0
      %422 = vmatprep.mubr.bf16.mxu0 0
      %423 = vmatmul.mubr.bf16.gmra.mxu0 %v388
      %v424 = vpop.f32.mrf.mxu0
      %v425 = vadd.f32 %v360, %v424
      %v426 = vpop.f32.mrf.mxu0
      %v427 = vpop.f32.mrf.mxu0
      %v428 = vadd.f32 %v360, %v427
      %v429 = vpop.f32.mrf.mxu0
      %430 = vdwg.mxu0
      %v431 = vmul.f32 %v425, 0.5
      %v432 = vmul.f32 %v428, 0.5
      %v433 = vmul.f32 %v425, 0.70710677
      %v434 = vmul.f32 %v428, 0.70710677
      %vm435 = vcmp.lt.f32.partialorder %v433, 0.0
      %vm436 = vcmp.lt.f32.partialorder %v434, 0.0
      %v437 = vsel %vm435, -1.0, 1.0
      %v438 = vsel %vm436, -1.0, 1.0
      %v439 = vand.u32 2147483647, %v433
      %v440 = vand.u32 2147483647, %v434
      %v441 = vmul.f32 %v439, 0.3275911
      %v442 = vmul.f32 %v440, 0.3275911
      %v443 = vadd.f32 %v441, 1.0
      %v444 = vadd.f32 %v442, 1.0
      %v445 = vrcp.pop %v443
      %v446 = vmul.f32 1.0, %v445
      %v447 = vrcp.pop %v444
      %v448 = vmul.f32 1.0, %v447
      %v449 = vmul.f32 %v446, 1.0614054
      %v450 = vmul.f32 %v448, 1.0614054
      %v451 = vadd.f32 %v449, -1.4531521
      %v452 = vadd.f32 %v450, -1.4531521
      %v453 = vmul.f32 %v451, %v446
      %v454 = vmul.f32 %v452, %v448
      %v455 = vadd.f32 %v453, 1.4214138
      %v456 = vadd.f32 %v454, 1.4214138
      %v457 = vmul.f32 %v455, %v446
      %v458 = vmul.f32 %v456, %v448
      %v459 = vadd.f32 %v457, -0.28449672
      %v460 = vadd.f32 %v458, -0.28449672
      %v461 = vmul.f32 %v459, %v446
      %v462 = vmul.f32 %v460, %v448
      %v463 = vadd.f32 %v461, 0.2548296
      %v464 = vadd.f32 %v462, 0.2548296
      %v465 = vmul.f32 %v463, %v446
      %v466 = vmul.f32 %v464, %v448
      %v467 = vsub.f32 0.0, %v439
      %v468 = vsub.f32 0.0, %v440
      %v469 = vmul.f32 %v467, %v439
      %v470 = vmul.f32 %v468, %v440
      %v471 = vmul.f32 %v469, 1.442695
      %v472 = vpow.pop %v471
      %v473 = vmul.f32 %v470, 1.442695
      %v474 = vpow.pop %v473
      %v475 = vmul.f32 %v465, %v472
      %v476 = vmul.f32 %v466, %v474
      %v477 = vsub.f32 1.0, %v475
      %v478 = vsub.f32 1.0, %v476
      %v479 = vmul.f32 %v437, %v477
      %v480 = vmul.f32 %v438, %v478
      %v481 = vadd.f32 %v479, 1.0
      %v482 = vadd.f32 %v480, 1.0
      %v483 = vmul.f32 %v431, %v481
      %v484 = vmul.f32 %v432, %v482
      %v485 = vpack.c.bf16 %v484, %v483
      %v486 = vld [vmem:[%s5] sm:$0xf]
      %v487 = vld [vmem:[%s5 + $0x4] sm:$0xf]
      %v488 = vld [vmem:[%s5 + $0x8] sm:$0xf]
      %v489 = vld [vmem:[%s5 + $0xc] sm:$0xf]
      %v490 = vld [vmem:[%s5 + $0x10] sm:$0xf]
      %v491 = vld [vmem:[%s5 + $0x14] sm:$0xf]
      %v492 = vld [vmem:[%s5 + $0x18] sm:$0xf]
      %v493 = vld [vmem:[%s5 + $0x1c] sm:$0xf]
      %v494 = vld [vmem:[%s6] sm:$0x1]
      %v496 = vlaneseq
      %v497 = vshrl.u32 %v496, 7
      %v498 = vsub.s32 0, %v497
      %v499 = vrot.slane %v494, %v498
      %v509 = vunpack.c.l.b16 %v486
      %v510 = vunpack.c.l.b16 %v487
      %v511 = vunpack.c.l.b16 %v488
      %v512 = vunpack.c.l.b16 %v489
      %v513 = vunpack.c.l.b16 %v490
      %v514 = vunpack.c.l.b16 %v491
      %v515 = vunpack.c.l.b16 %v492
      %v516 = vunpack.c.l.b16 %v493
      %v517 = vpack.c.b16 %v510, %v509
      %v518 = vpack.c.b16 %v512, %v511
      %v519 = vpack.c.b16 %v514, %v513
      %v520 = vpack.c.b16 %v516, %v515
      %v526 = vsel %vm386, %v485, 0
      %528 = vmatprep.subr.bf16.mxu0 0
      %529 = vmatpush1.bf16.msra.mxu0 0
      %530 = vmatprep.subr.bf16.mxu0 0
      %531 = vmatpush1.bf16.msra.mxu0 0
      %532 = vmatprep.subr.bf16.mxu0 0
      %533 = vmatpush1.bf16.msra.mxu0 0
      %534 = vmatprep.subr.bf16.mxu0 0
      %535 = vmatpush1.bf16.msra.mxu0 0
      %536 = vmatprep.subr.bf16.mxu0 0
      %537 = vmatpush1.bf16.msra.mxu0 %v520
      %538 = vmatprep.subr.bf16.mxu0 0
      %539 = vmatpush1.bf16.msra.mxu0 %v519
      %540 = vmatprep.subr.bf16.mxu0 0
      %541 = vmatpush1.bf16.msra.mxu0 %v518
      %542 = vmatprep.subr.bf16.mxu0 0
      %543 = vmatpush1.bf16.msra.mxu0 %v517
      %544 = vmatprep.subr.bf16.mxu0 0
      %545 = vmatpush2.bf16.msra.mxu0 0
      %546 = vmatprep.subr.bf16.mxu0 0
      %547 = vmatpush2.bf16.msra.mxu0 0
      %548 = vmatprep.subr.bf16.mxu0 0
      %549 = vmatpush2.bf16.msra.mxu0 0
      %550 = vmatprep.subr.bf16.mxu0 0
      %551 = vmatpush2.bf16.msra.mxu0 0
      %552 = vmatprep.subr.bf16.mxu0 0
      %553 = vmatpush2.bf16.msra.mxu0 0
      %554 = vmatprep.subr.bf16.mxu0 0
      %555 = vmatpush2.bf16.msra.mxu0 0
      %556 = vmatprep.subr.bf16.mxu0 0
      %557 = vmatpush2.bf16.msra.mxu0 0
      %558 = vmatprep.subr.bf16.mxu0 0
      %559 = vmatpush2.bf16.msra.mxu0 0
      %560 = vmatprep.mubr.bf16.mxu0 0
      %561 = vmatmul.mubr.bf16.gmra.mxu0 %v526
      %v562 = vpop.f32.mrf.mxu0
      %v563 = vadd.f32 %v499, %v562
      %v564 = vpop.f32.mrf.mxu0
      %v565 = vpop.f32.mrf.mxu0
      %v566 = vadd.f32 %v499, %v565
      %v567 = vpop.f32.mrf.mxu0
      %568 = vdwg.mxu0
      %vm569 = vcmask 64512
      %570 = vst.msk [vmem:[%s278] sm:$0xff] %vm569, %v563
      %571 = vst.msk [vmem:[%s278 + $0x8] sm:$0xff] %vm569, %v566
      %p572 = scmp.lt.s32.totalorder %s18, 1
      %s573 = scalar_select %p572, %s18, 1
      %s574 = smul.addr %s573, 2
      %s575 = smul.addr %s574, 8
      %s576 = scalar_lea.vmem %s7, %s575
      // Predicated region
      $region49: #{model_forward.40} parent=47 // pred_check
        %p577 = pneg %p188
      $region50: #{model_forward.40} parent=47 // pred_check_branch
        %579 = sbr.rel (%p577) target = $region52
      $region51: #{model_forward.40} parent=47 // pred_region
        _
      $region52: #{model_forward.40} parent=47 // pred_fallthru
        _
    $region48: #{model_forward.40} parent=5 // pred_fallthru
      _
    %p580 = scmp.le.s32.totalorder 2, %s13
    // Predicated region
    $region53: #{model_forward.40} parent=5 // pred_check
      %p581 = pneg %p580
    $region54: #{model_forward.40} parent=5 // pred_check_branch
      %583 = sbr.rel (%p581) target = $region56
    $region55: #{model_forward.40} parent=5 // pred_region
      %s584 = ssub.s32 %s13, 2
      // Predicated region
      $region57: #{model_forward.40} parent=55 // pred_check
        %p585 = pneg %p194
      $region58: #{model_forward.40} parent=55 // pred_check_branch
        %587 = sbr.rel (%p585) target = $region60
      $region59: #{model_forward.40} parent=55 // pred_region
        %p588 = scmp.lt.s32.totalorder %s19, 1
        %s589 = scalar_select %p588, %s19, 1
        %s590 = smul.addr %s589, 2
        %s591 = smul.addr %s590, 8
        %s592 = scalar_lea.vmem %s7, %s591
      $region60: #{model_forward.40} parent=55 // pred_fallthru
        _
    $region56: #{model_forward.40} parent=5 // pred_fallthru
      _
  $region6: #{model_forward.40} parent=0 // loop_footer
    %s17 = sadd.s32 1, %s13
  $region7: #{model_forward.40} parent=0 // loop_footer_branch
    %12 = sbr.rel target = $region3
  $region8: #{model_forward.40} parent=0 // loop_exit
    _

// kernel: model_forward.42
$region0: #{model_forward.42}
  #allocation0 [shape = 'u32[]', space=smem, size = 0x4, offset = 0x4, fixed_abs, tag = 'smem constant byte address 0x4 - core index']
  #allocation1 [shape = 'u32[144,128]{1,0:T(1,128)}', space=vmem, size = 0x12000, scoped, tag = 'internal scratch']
  %s0 = inlined_call_operand.vmem [shape: f32[2,64,6], index: 0, kind: input, shape index: {}]
  %s1 = inlined_call_operand.vmem [shape: bf16[6,64], index: 1, kind: input, shape index: {}]
  %s2 = inlined_call_operand.vmem [shape: f32[1,64], index: 2, kind: input, shape index: {}]
  %s3 = inlined_call_operand.vmem [shape: bf16[64,64], index: 3, kind: input, shape index: {}]
  %s4 = inlined_call_operand.vmem [shape: f32[1,64], index: 4, kind: input, shape index: {}]
  %s5 = inlined_call_operand.vmem [shape: bf16[64,4], index: 5, kind: input, shape index: {}]
  %s6 = inlined_call_operand.vmem [shape: f32[1,4], index: 6, kind: input, shape index: {}]
  %s7 = inlined_call_operand.vmem [shape: f32[2,64,4], index: 7, kind: output, shape index: {}]
  %s8 = sld [smem:[#allocation0]]
  $region61: #{model_forward.42} parent=0
    _
  %s10 = ssub.s32 1, %s8
  %s11 = scalar_select 0, %s10, %s8
  loop: start=0, step=1, limit=4
  $region2: #{model_forward.42} parent=0 // loop_pre_header
    _
  $region3: #{model_forward.42} parent=0 // loop_header
    %s13 = sphi 0, %s17
    %p14 = scmp.ge.s32.totalorder %s13, 4
    %s23 = sphi 0, %s25
    %s26 = sphi 0, %s23
    %s27 = sphi 0, %s26
    %s43 = sphi 0, %s27
    %s47 = sphi 0, %s47
    %s49 = sphi 0, %s47
    %s50 = sphi 0, %s49
    %s64 = sphi 0, %s50
    %s68 = sphi 0, %s68
    %s70 = sphi 0, %s68
    %s71 = sphi 0, %s70
    %s85 = sphi 0, %s71
    %s89 = sphi 0, %s89
    %s91 = sphi 0, %s89
    %s92 = sphi 0, %s91
    %s106 = sphi 0, %s92
    %s110 = sphi 0, %s110
    %s112 = sphi 0, %s110
    %s113 = sphi 0, %s112
    %s127 = sphi 0, %s113
    %s131 = sphi 0, %s131
    %s133 = sphi 0, %s131
    %s134 = sphi 0, %s133
    %s148 = sphi 0, %s134
    %s152 = sphi 0, %s152
    %s154 = sphi 0, %s152
    %s155 = sphi 0, %s154
    %s169 = sphi 0, %s155
    %s175 = sphi 0, %s177
    %s178 = sphi 0, %s175
    %s179 = sphi 0, %s178
    %s195 = sphi 0, %s179
  $region4: #{model_forward.42} parent=0 // loop_header_branch
    %16 = sbr.rel (%p14) target = $region8
  $region5: #{model_forward.42} parent=0 // loop_body
    %s18 = ssub.s32 %s13, 1
    %s19 = ssub.s32 %s13, 2
    %s20 = sadd.s32 %s13, 1
    %s21 = ssub.s32 %s13, %s20
    %p22 = scmp.eq.s32.totalorder %s21, 0
    %s24 = sadd.s32 %s23, 1
    %s25 = scalar_select %p22, %s23, %s24
    %p28 = pneg %p22
    %p29 = scmp.eq.s32.totalorder %s13, 1
    %p30 = por %p28, %p29
    %p31 = scmp.ne.s32.totalorder %s23, %s26
    %p32 = scmp.eq.s32.totalorder %s13, 0
    %p33 = por %p31, %p32
    %p34 = scmp.ne.s32.totalorder %s23, %s26
    %p35 = scmp.eq.s32.totalorder %s18, 1
    %p36 = por %p34, %p35
    %p37 = scmp.ne.s32.totalorder %s26, %s27
    %p38 = scmp.eq.s32.totalorder %s18, 0
    %p39 = por %p37, %p38
    %p40 = scmp.ne.s32.totalorder %s26, %s27
    %p41 = scmp.eq.s32.totalorder %s19, 1
    %p42 = por %p40, %p41
    %p44 = scmp.ne.s32.totalorder %s27, %s43
    %p45 = scmp.eq.s32.totalorder %s19, 0
    %p46 = por %p44, %p45
    %s48 = sadd.s32 %s47, 1
    %p51 = scmp.eq.s32.totalorder %s13, 1
    %p52 = scmp.ne.s32.totalorder %s47, %s49
    %p53 = scmp.eq.s32.totalorder %s13, 0
    %p54 = por %p52, %p53
    %p55 = scmp.ne.s32.totalorder %s47, %s49
    %p56 = scmp.eq.s32.totalorder %s18, 1
    %p57 = por %p55, %p56
    %p58 = scmp.ne.s32.totalorder %s49, %s50
    %p59 = scmp.eq.s32.totalorder %s18, 0
    %p60 = por %p58, %p59
    %p61 = scmp.ne.s32.totalorder %s49, %s50
    %p62 = scmp.eq.s32.totalorder %s19, 1
    %p63 = por %p61, %p62
    %p65 = scmp.ne.s32.totalorder %s50, %s64
    %p66 = scmp.eq.s32.totalorder %s19, 0
    %p67 = por %p65, %p66
    %s69 = sadd.s32 %s68, 1
    %p72 = scmp.eq.s32.totalorder %s13, 1
    %p73 = scmp.ne.s32.totalorder %s68, %s70
    %p74 = scmp.eq.s32.totalorder %s13, 0
    %p75 = por %p73, %p74
    %p76 = scmp.ne.s32.totalorder %s68, %s70
    %p77 = scmp.eq.s32.totalorder %s18, 1
    %p78 = por %p76, %p77
    %p79 = scmp.ne.s32.totalorder %s70, %s71
    %p80 = scmp.eq.s32.totalorder %s18, 0
    %p81 = por %p79, %p80
    %p82 = scmp.ne.s32.totalorder %s70, %s71
    %p83 = scmp.eq.s32.totalorder %s19, 1
    %p84 = por %p82, %p83
    %p86 = scmp.ne.s32.totalorder %s71, %s85
    %p87 = scmp.eq.s32.totalorder %s19, 0
    %p88 = por %p86, %p87
    %s90 = sadd.s32 %s89, 1
    %p93 = scmp.eq.s32.totalorder %s13, 1
    %p94 = scmp.ne.s32.totalorder %s89, %s91
    %p95 = scmp.eq.s32.totalorder %s13, 0
    %p96 = por %p94, %p95
    %p97 = scmp.ne.s32.totalorder %s89, %s91
    %p98 = scmp.eq.s32.totalorder %s18, 1
    %p99 = por %p97, %p98
    %p100 = scmp.ne.s32.totalorder %s91, %s92
    %p101 = scmp.eq.s32.totalorder %s18, 0
    %p102 = por %p100, %p101
    %p103 = scmp.ne.s32.totalorder %s91, %s92
    %p104 = scmp.eq.s32.totalorder %s19, 1
    %p105 = por %p103, %p104
    %p107 = scmp.ne.s32.totalorder %s92, %s106
    %p108 = scmp.eq.s32.totalorder %s19, 0
    %p109 = por %p107, %p108
    %s111 = sadd.s32 %s110, 1
    %p114 = scmp.eq.s32.totalorder %s13, 1
    %p115 = scmp.ne.s32.totalorder %s110, %s112
    %p116 = scmp.eq.s32.totalorder %s13, 0
    %p117 = por %p115, %p116
    %p118 = scmp.ne.s32.totalorder %s110, %s112
    %p119 = scmp.eq.s32.totalorder %s18, 1
    %p120 = por %p118, %p119
    %p121 = scmp.ne.s32.totalorder %s112, %s113
    %p122 = scmp.eq.s32.totalorder %s18, 0
    %p123 = por %p121, %p122
    %p124 = scmp.ne.s32.totalorder %s112, %s113
    %p125 = scmp.eq.s32.totalorder %s19, 1
    %p126 = por %p124, %p125
    %p128 = scmp.ne.s32.totalorder %s113, %s127
    %p129 = scmp.eq.s32.totalorder %s19, 0
    %p130 = por %p128, %p129
    %s132 = sadd.s32 %s131, 1
    %p135 = scmp.eq.s32.totalorder %s13, 1
    %p136 = scmp.ne.s32.totalorder %s131, %s133
    %p137 = scmp.eq.s32.totalorder %s13, 0
    %p138 = por %p136, %p137
    %p139 = scmp.ne.s32.totalorder %s131, %s133
    %p140 = scmp.eq.s32.totalorder %s18, 1
    %p141 = por %p139, %p140
    %p142 = scmp.ne.s32.totalorder %s133, %s134
    %p143 = scmp.eq.s32.totalorder %s18, 0
    %p144 = por %p142, %p143
    %p145 = scmp.ne.s32.totalorder %s133, %s134
    %p146 = scmp.eq.s32.totalorder %s19, 1
    %p147 = por %p145, %p146
    %p149 = scmp.ne.s32.totalorder %s134, %s148
    %p150 = scmp.eq.s32.totalorder %s19, 0
    %p151 = por %p149, %p150
    %s153 = sadd.s32 %s152, 1
    %p156 = scmp.eq.s32.totalorder %s13, 1
    %p157 = scmp.ne.s32.totalorder %s152, %s154
    %p158 = scmp.eq.s32.totalorder %s13, 0
    %p159 = por %p157, %p158
    %p160 = scmp.ne.s32.totalorder %s152, %s154
    %p161 = scmp.eq.s32.totalorder %s18, 1
    %p162 = por %p160, %p161
    %p163 = scmp.ne.s32.totalorder %s154, %s155
    %p164 = scmp.eq.s32.totalorder %s18, 0
    %p165 = por %p163, %p164
    %p166 = scmp.ne.s32.totalorder %s154, %s155
    %p167 = scmp.eq.s32.totalorder %s19, 1
    %p168 = por %p166, %p167
    %p170 = scmp.ne.s32.totalorder %s155, %s169
    %p171 = scmp.eq.s32.totalorder %s19, 0
    %p172 = por %p170, %p171
    %s173 = ssub.s32 %s13, %s20
    %p174 = scmp.eq.s32.totalorder %s173, 0
    %s176 = sadd.s32 %s175, 1
    %s177 = scalar_select %p174, %s175, %s176
    %p180 = pneg %p174
    %p181 = scmp.eq.s32.totalorder %s13, 1
    %p182 = por %p180, %p181
    %p183 = scmp.ne.s32.totalorder %s175, %s178
    %p184 = scmp.eq.s32.totalorder %s13, 0
    %p185 = por %p183, %p184
    %p186 = scmp.ne.s32.totalorder %s175, %s178
    %p187 = scmp.eq.s32.totalorder %s18, 1
    %p188 = por %p186, %p187
    %p189 = scmp.ne.s32.totalorder %s178, %s179
    %p190 = scmp.eq.s32.totalorder %s18, 0
    %p191 = por %p189, %p190
    %p192 = scmp.ne.s32.totalorder %s178, %s179
    %p193 = scmp.eq.s32.totalorder %s19, 1
    %p194 = por %p192, %p193
    %p196 = scmp.ne.s32.totalorder %s179, %s195
    %p197 = scmp.eq.s32.totalorder %s19, 0
    %p198 = por %p196, %p197
    %p199 = scmp.le.s32.totalorder 1, %s13
    %p200 = scmp.lt.s32.totalorder %s13, 3
    %p201 = pnand %p199, %p200
    %p202 = pneg %p201
    // Predicated region
    $region9: #{model_forward.42} parent=5 // pred_check
      _
    $region10: #{model_forward.42} parent=5 // pred_check_branch
      %204 = sbr.rel (%p201) target = $region12
    $region11: #{model_forward.42} parent=5 // pred_region
      %s205 = ssub.s32 %s13, 1
      // Predicated region
      $region13: #{model_forward.42} parent=11 // pred_check
        %p206 = pneg %p60
      $region14: #{model_forward.42} parent=11 // pred_check_branch
        %208 = sbr.rel (%p206) target = $region16
      $region15: #{model_forward.42} parent=11 // pred_region
        _
      $region16: #{model_forward.42} parent=11 // pred_fallthru
        _
      // Predicated region
      $region17: #{model_forward.42} parent=11 // pred_check
        %p209 = pneg %p81
      $region18: #{model_forward.42} parent=11 // pred_check_branch
        %211 = sbr.rel (%p209) target = $region20
      $region19: #{model_forward.42} parent=11 // pred_region
        _
      $region20: #{model_forward.42} parent=11 // pred_fallthru
        _
      // Predicated region
      $region21: #{model_forward.42} parent=11 // pred_check
        %p212 = pneg %p102
      $region22: #{model_forward.42} parent=11 // pred_check_branch
        %214 = sbr.rel (%p212) target = $region24
      $region23: #{model_forward.42} parent=11 // pred_region
        _
      $region24: #{model_forward.42} parent=11 // pred_fallthru
        _
      // Predicated region
      $region25: #{model_forward.42} parent=11 // pred_check
        %p215 = pneg %p123
      $region26: #{model_forward.42} parent=11 // pred_check_branch
        %217 = sbr.rel (%p215) target = $region28
      $region27: #{model_forward.42} parent=11 // pred_region
        _
      $region28: #{model_forward.42} parent=11 // pred_fallthru
        _
      // Predicated region
      $region29: #{model_forward.42} parent=11 // pred_check
        %p218 = pneg %p144
      $region30: #{model_forward.42} parent=11 // pred_check_branch
        %220 = sbr.rel (%p218) target = $region32
      $region31: #{model_forward.42} parent=11 // pred_region
        _
      $region32: #{model_forward.42} parent=11 // pred_fallthru
        _
      // Predicated region
      $region33: #{model_forward.42} parent=11 // pred_check
        %p221 = pneg %p165
      $region34: #{model_forward.42} parent=11 // pred_check_branch
        %223 = sbr.rel (%p221) target = $region36
      $region35: #{model_forward.42} parent=11 // pred_region
        _
      $region36: #{model_forward.42} parent=11 // pred_fallthru
        _
    $region12: #{model_forward.42} parent=5 // pred_fallthru
      _
    %p224 = scmp.lt.s32.totalorder %s13, 2
    // Predicated region
    $region37: #{model_forward.42} parent=5 // pred_check
      %p225 = pneg %p224
    $region38: #{model_forward.42} parent=5 // pred_check_branch
      %227 = sbr.rel (%p225) target = $region40
    $region39: #{model_forward.42} parent=5 // pred_region
      // Predicated region
      $region41: #{model_forward.42} parent=39 // pred_check
        %p228 = pneg %p33
      $region42: #{model_forward.42} parent=39 // pred_check_branch
        %230 = sbr.rel (%p228) target = $region44
      $region43: #{model_forward.42} parent=39 // pred_region
        %p231 = scmp.lt.s32.totalorder %s13, 1
        %s232 = scalar_select %p231, %s13, 1
        %s233 = smul.addr %s232, 8
        %s234 = smul.addr %s233, 8
        %s235 = scalar_lea.vmem %s0, %s234
      $region44: #{model_forward.42} parent=39 // pred_fallthru
        _
    $region40: #{model_forward.42} parent=5 // pred_fallthru
      _
    %p236 = scmp.le.s32.totalorder 1, %s13
    %p237 = scmp.lt.s32.totalorder %s13, 3
    %p238 = pnand %p236, %p237
    %p239 = pneg %p238
    // Predicated region
    $region45: #{model_forward.42} parent=5 // pred_check
      _
    $region46: #{model_forward.42} parent=5 // pred_check_branch
      %241 = sbr.rel (%p238) target = $region48
    $region47: #{model_forward.42} parent=5 // pred_region
      %s242 = ssub.s32 %s13, 1
      %p243 = scmp.lt.s32.totalorder %s18, 1
      %s244 = scalar_select %p243, %s18, 1
      %s245 = smul.addr %s244, 8
      %s246 = smul.addr %s245, 8
      %s247 = scalar_lea.vmem %s0, %s246
      %p248 = pneg %p39
      %p249 = pneg %p36
      %p250 = pneg %p60
      %p251 = pneg %p57
      %p252 = pneg %p81
      %p253 = pneg %p78
      %p254 = pneg %p102
      %p255 = pneg %p99
      %p256 = pneg %p123
      %p257 = pneg %p120
      %p258 = pneg %p144
      %p259 = pneg %p141
      %p260 = pneg %p165
      %p261 = pneg %p162
      %p262 = pneg %p191
      %p263 = pneg %p188
      %p264 = scmp.lt.s32.totalorder %s18, 1
      %s265 = scalar_select %p264, %s18, 1
      %s266 = smul.addr %s265, 8
      %s267 = smul.addr %s266, 8
      %s268 = scalar_lea.vmem %s7, %s267
      %p269 = scmp.lt.s32.totalorder %s18, 1
      %s270 = scalar_select %p269, %s18, 1
      %s271 = smul.addr %s270, 8
      %s272 = smul.addr %s271, 8
      %s273 = scalar_lea.vmem %s0, %s272
      %p274 = scmp.lt.s32.totalorder %s18, 1
      %s275 = scalar_select %p274, %s18, 1
      %s276 = smul.addr %s275, 8
      %s277 = smul.addr %s276, 8
      %s278 = scalar_lea.vmem %s7, %s277
      %v280 = vld [vmem:[%s273] sm:$0xff]
      %v281 = vld [vmem:[%s273 + $0x8] sm:$0xff]
      %v282 = vld [vmem:[%s273 + $0x10] sm:$0xff]
      %v283 = vld [vmem:[%s273 + $0x18] sm:$0xff]
      %v284 = vld [vmem:[%s273 + $0x20] sm:$0xff]
      %v285 = vld [vmem:[%s273 + $0x28] sm:$0xff]
      %v286 = vld [vmem:[%s273 + $0x30] sm:$0xff]
      %v287 = vld [vmem:[%s273 + $0x38] sm:$0xff]
      %v288 = vpack.c.bf16 %v281, %v280
      %v289 = vpack.c.bf16 %v283, %v282
      %v290 = vpack.c.bf16 %v285, %v284
      %v291 = vpack.c.bf16 %v287, %v286
      %v292 = vld [vmem:[%s1] sm:$0x7]
      %v293 = vld [vmem:[%s2] sm:$0x1]
      %v295 = vlaneseq
      %v296 = vshrl.u32 %v295, 7
      %v297 = vsub.s32 0, %v296
      %v298 = vrot.slane %v293, %v297
      %vm300 = vcmask 48128
      %v302 = vsel %vm300, %v288, 0
      %v305 = vsel %vm300, %v289, 0
      %v308 = vsel %vm300, %v290, 0
      %v311 = vsel %vm300, %v291, 0
      %vm313 = vcmask 1042432
      %v315 = vsel %vm313, %v292, 0
      %317 = vmatprep.subr.bf16.mxu0 0
      %318 = vmatpush1.bf16.msra.mxu0 0
      %319 = vmatprep.subr.bf16.mxu0 0
      %320 = vmatpush1.bf16.msra.mxu0 0
      %321 = vmatprep.subr.bf16.mxu0 0
      %322 = vmatpush1.bf16.msra.mxu0 0
      %323 = vmatprep.subr.bf16.mxu0 0
      %324 = vmatpush1.bf16.msra.mxu0 0
      %325 = vmatprep.subr.bf16.mxu0 0
      %326 = vmatpush1.bf16.msra.mxu0 0
      %327 = vmatprep.subr.bf16.mxu0 0
      %328 = vmatpush1.bf16.msra.mxu0 0
      %329 = vmatprep.subr.bf16.mxu0 0
      %330 = vmatpush1.bf16.msra.mxu0 0
      %331 = vmatprep.subr.bf16.mxu0 0
      %332 = vmatpush1.bf16.msra.mxu0 %v315
      %333 = vmatprep.subr.bf16.mxu0 0
      %334 = vmatpush2.bf16.msra.mxu0 0
      %335 = vmatprep.subr.bf16.mxu0 0
      %336 = vmatpush2.bf16.msra.mxu0 0
      %337 = vmatprep.subr.bf16.mxu0 0
      %338 = vmatpush2.bf16.msra.mxu0 0
      %339 = vmatprep.subr.bf16.mxu0 0
      %340 = vmatpush2.bf16.msra.mxu0 0
      %341 = vmatprep.subr.bf16.mxu0 0
      %342 = vmatpush2.bf16.msra.mxu0 0
      %343 = vmatprep.subr.bf16.mxu0 0
      %344 = vmatpush2.bf16.msra.mxu0 0
      %345 = vmatprep.subr.bf16.mxu0 0
      %346 = vmatpush2.bf16.msra.mxu0 0
      %347 = vmatprep.subr.bf16.mxu0 0
      %348 = vmatpush2.bf16.msra.mxu0 0
      %349 = vmatprep.mubr.bf16.mxu0 0
      %350 = vmatmul.mubr.bf16.gmra.mxu0 %v302
      %v351 = vpop.f32.mrf.mxu0
      %v352 = vadd.f32 %v298, %v351
      %v353 = vpop.f32.mrf.mxu0
      %v354 = vpop.f32.mrf.mxu0
      %v355 = vadd.f32 %v298, %v354
      %v356 = vpop.f32.mrf.mxu0
      %357 = vmatprep.mubr.bf16.mxu0 0
      %358 = vmatmul.mubr.bf16.gmra.mxu0 %v305
      %v359 = vpop.f32.mrf.mxu0
      %v360 = vadd.f32 %v298, %v359
      %v361 = vpop.f32.mrf.mxu0
      %v362 = vpop.f32.mrf.mxu0
      %v363 = vadd.f32 %v298, %v362
      %v364 = vpop.f32.mrf.mxu0
      %365 = vmatprep.mubr.bf16.mxu0 0
      %366 = vmatmul.mubr.bf16.gmra.mxu0 %v308
      %v367 = vpop.f32.mrf.mxu0
      %v368 = vadd.f32 %v298, %v367
      %v369 = vpop.f32.mrf.mxu0
      %v370 = vpop.f32.mrf.mxu0
      %v371 = vadd.f32 %v298, %v370
      %v372 = vpop.f32.mrf.mxu0
      %373 = vmatprep.mubr.bf16.mxu0 0
      %374 = vmatmul.mubr.bf16.gmra.mxu0 %v311
      %v375 = vpop.f32.mrf.mxu0
      %v376 = vadd.f32 %v298, %v375
      %v377 = vpop.f32.mrf.mxu0
      %v378 = vpop.f32.mrf.mxu0
      %v379 = vadd.f32 %v298, %v378
      %v380 = vpop.f32.mrf.mxu0
      %381 = vdwg.mxu0
      %v382 = vpack.c.bf16 %v355, %v352
      %v383 = vpack.c.bf16 %v363, %v360
      %v384 = vpack.c.bf16 %v371, %v368
      %v385 = vpack.c.bf16 %v379, %v376
      %v386 = vld [vmem:[%s3] sm:$0xf]
      %v387 = vld [vmem:[%s3 + $0x4] sm:$0xf]
      %v388 = vld [vmem:[%s3 + $0x8] sm:$0xf]
      %v389 = vld [vmem:[%s3 + $0xc] sm:$0xf]
      %v390 = vld [vmem:[%s3 + $0x10] sm:$0xf]
      %v391 = vld [vmem:[%s3 + $0x14] sm:$0xf]
      %v392 = vld [vmem:[%s3 + $0x18] sm:$0xf]
      %v393 = vld [vmem:[%s3 + $0x1c] sm:$0xf]
      %v394 = vld [vmem:[%s4] sm:$0x1]
      %v396 = vlaneseq
      %v397 = vshrl.u32 %v396, 7
      %v398 = vsub.s32 0, %v397
      %v399 = vrot.slane %v394, %v398
      %v409 = vunpack.c.l.b16 %v386
      %v410 = vunpack.c.l.b16 %v387
      %v411 = vunpack.c.l.b16 %v388
      %v412 = vunpack.c.l.b16 %v389
      %v413 = vunpack.c.l.b16 %v390
      %v414 = vunpack.c.l.b16 %v391
      %v415 = vunpack.c.l.b16 %v392
      %v416 = vunpack.c.l.b16 %v393
      %v417 = vpack.c.b16 %v410, %v409
      %v418 = vpack.c.b16 %v412, %v411
      %v419 = vpack.c.b16 %v414, %v413
      %v420 = vpack.c.b16 %v416, %v415
      %vm425 = vcmask 523264
      %v427 = vsel %vm425, %v382, 0
      %v430 = vsel %vm425, %v383, 0
      %v433 = vsel %vm425, %v384, 0
      %v436 = vsel %vm425, %v385, 0
      %438 = vmatprep.subr.bf16.mxu0 0
      %439 = vmatpush1.bf16.msra.mxu0 0
      %440 = vmatprep.subr.bf16.mxu0 0
      %441 = vmatpush1.bf16.msra.mxu0 0
      %442 = vmatprep.subr.bf16.mxu0 0
      %443 = vmatpush1.bf16.msra.mxu0 0
      %444 = vmatprep.subr.bf16.mxu0 0
      %445 = vmatpush1.bf16.msra.mxu0 0
      %446 = vmatprep.subr.bf16.mxu0 0
      %447 = vmatpush1.bf16.msra.mxu0 %v420
      %448 = vmatprep.subr.bf16.mxu0 0
      %449 = vmatpush1.bf16.msra.mxu0 %v419
      %450 = vmatprep.subr.bf16.mxu0 0
      %451 = vmatpush1.bf16.msra.mxu0 %v418
      %452 = vmatprep.subr.bf16.mxu0 0
      %453 = vmatpush1.bf16.msra.mxu0 %v417
      %454 = vmatprep.subr.bf16.mxu0 0
      %455 = vmatpush2.bf16.msra.mxu0 0
      %456 = vmatprep.subr.bf16.mxu0 0
      %457 = vmatpush2.bf16.msra.mxu0 0
      %458 = vmatprep.subr.bf16.mxu0 0
      %459 = vmatpush2.bf16.msra.mxu0 0
      %460 = vmatprep.subr.bf16.mxu0 0
      %461 = vmatpush2.bf16.msra.mxu0 0
      %462 = vmatprep.subr.bf16.mxu0 0
      %463 = vmatpush2.bf16.msra.mxu0 0
      %464 = vmatprep.subr.bf16.mxu0 0
      %465 = vmatpush2.bf16.msra.mxu0 0
      %466 = vmatprep.subr.bf16.mxu0 0
      %467 = vmatpush2.bf16.msra.mxu0 0
      %468 = vmatprep.subr.bf16.mxu0 0
      %469 = vmatpush2.bf16.msra.mxu0 0
      %470 = vmatprep.mubr.bf16.mxu0 0
      %471 = vmatmul.mubr.bf16.gmra.mxu0 %v427
      %v472 = vpop.f32.mrf.mxu0
      %v473 = vadd.f32 %v399, %v472
      %v474 = vpop.f32.mrf.mxu0
      %v475 = vpop.f32.mrf.mxu0
      %v476 = vadd.f32 %v399, %v475
      %v477 = vpop.f32.mrf.mxu0
      %478 = vmatprep.mubr.bf16.mxu0 0
      %479 = vmatmul.mubr.bf16.gmra.mxu0 %v430
      %v480 = vpop.f32.mrf.mxu0
      %v481 = vadd.f32 %v399, %v480
      %v482 = vpop.f32.mrf.mxu0
      %v483 = vpop.f32.mrf.mxu0
      %v484 = vadd.f32 %v399, %v483
      %v485 = vpop.f32.mrf.mxu0
      %486 = vmatprep.mubr.bf16.mxu0 0
      %487 = vmatmul.mubr.bf16.gmra.mxu0 %v433
      %v488 = vpop.f32.mrf.mxu0
      %v489 = vadd.f32 %v399, %v488
      %v490 = vpop.f32.mrf.mxu0
      %v491 = vpop.f32.mrf.mxu0
      %v492 = vadd.f32 %v399, %v491
      %v493 = vpop.f32.mrf.mxu0
      %494 = vmatprep.mubr.bf16.mxu0 0
      %495 = vmatmul.mubr.bf16.gmra.mxu0 %v436
      %v496 = vpop.f32.mrf.mxu0
      %v497 = vadd.f32 %v399, %v496
      %v498 = vpop.f32.mrf.mxu0
      %v499 = vpop.f32.mrf.mxu0
      %v500 = vadd.f32 %v399, %v499
      %v501 = vpop.f32.mrf.mxu0
      %502 = vdwg.mxu0
      %v503 = vmul.f32 %v473, 0.5
      %v504 = vmul.f32 %v476, 0.5
      %v505 = vmul.f32 %v481, 0.5
      %v506 = vmul.f32 %v484, 0.5
      %v507 = vmul.f32 %v489, 0.5
      %v508 = vmul.f32 %v492, 0.5
      %v509 = vmul.f32 %v497, 0.5
      %v510 = vmul.f32 %v500, 0.5
      %v511 = vmul.f32 %v473, 0.70710677
      %v512 = vmul.f32 %v476, 0.70710677
      %v513 = vmul.f32 %v481, 0.70710677
      %v514 = vmul.f32 %v484, 0.70710677
      %v515 = vmul.f32 %v489, 0.70710677
      %v516 = vmul.f32 %v492, 0.70710677
      %v517 = vmul.f32 %v497, 0.70710677
      %v518 = vmul.f32 %v500, 0.70710677
      %vm519 = vcmp.lt.f32.partialorder %v511, 0.0
      %vm520 = vcmp.lt.f32.partialorder %v512, 0.0
      %vm521 = vcmp.lt.f32.partialorder %v513, 0.0
      %vm522 = vcmp.lt.f32.partialorder %v514, 0.0
      %vm523 = vcmp.lt.f32.partialorder %v515, 0.0
      %vm524 = vcmp.lt.f32.partialorder %v516, 0.0
      %vm525 = vcmp.lt.f32.partialorder %v517, 0.0
      %vm526 = vcmp.lt.f32.partialorder %v518, 0.0
      %v527 = vsel %vm519, -1.0, 1.0
      %v528 = vsel %vm520, -1.0, 1.0
      %v529 = vsel %vm521, -1.0, 1.0
      %v530 = vsel %vm522, -1.0, 1.0
      %v531 = vsel %vm523, -1.0, 1.0
      %v532 = vsel %vm524, -1.0, 1.0
      %v533 = vsel %vm525, -1.0, 1.0
      %v534 = vsel %vm526, -1.0, 1.0
      %v535 = vand.u32 2147483647, %v511
      %v536 = vand.u32 2147483647, %v512
      %v537 = vand.u32 2147483647, %v513
      %v538 = vand.u32 2147483647, %v514
      %v539 = vand.u32 2147483647, %v515
      %v540 = vand.u32 2147483647, %v516
      %v541 = vand.u32 2147483647, %v517
      %v542 = vand.u32 2147483647, %v518
      %v543 = vmul.f32 %v535, 0.3275911
      %v544 = vmul.f32 %v536, 0.3275911
      %v545 = vmul.f32 %v537, 0.3275911
      %v546 = vmul.f32 %v538, 0.3275911
      %v547 = vmul.f32 %v539, 0.3275911
      %v548 = vmul.f32 %v540, 0.3275911
      %v549 = vmul.f32 %v541, 0.3275911
      %v550 = vmul.f32 %v542, 0.3275911
      %v551 = vadd.f32 %v543, 1.0
      %v552 = vadd.f32 %v544, 1.0
      %v553 = vadd.f32 %v545, 1.0
      %v554 = vadd.f32 %v546, 1.0
      %v555 = vadd.f32 %v547, 1.0
      %v556 = vadd.f32 %v548, 1.0
      %v557 = vadd.f32 %v549, 1.0
      %v558 = vadd.f32 %v550, 1.0
      %v559 = vrcp.pop %v551
      %v560 = vmul.f32 1.0, %v559
      %v561 = vrcp.pop %v552
      %v562 = vmul.f32 1.0, %v561
      %v563 = vrcp.pop %v553
      %v564 = vmul.f32 1.0, %v563
      %v565 = vrcp.pop %v554
      %v566 = vmul.f32 1.0, %v565
      %v567 = vrcp.pop %v555
      %v568 = vmul.f32 1.0, %v567
      %v569 = vrcp.pop %v556
      %v570 = vmul.f32 1.0, %v569
      %v571 = vrcp.pop %v557
      %v572 = vmul.f32 1.0, %v571
      %v573 = vrcp.pop %v558
      %v574 = vmul.f32 1.0, %v573
      %v575 = vmul.f32 %v560, 1.0614054
      %v576 = vmul.f32 %v562, 1.0614054
      %v577 = vmul.f32 %v564, 1.0614054
      %v578 = vmul.f32 %v566, 1.0614054
      %v579 = vmul.f32 %v568, 1.0614054
      %v580 = vmul.f32 %v570, 1.0614054
      %v581 = vmul.f32 %v572, 1.0614054
      %v582 = vmul.f32 %v574, 1.0614054
      %v583 = vadd.f32 %v575, -1.4531521
      %v584 = vadd.f32 %v576, -1.4531521
      %v585 = vadd.f32 %v577, -1.4531521
      %v586 = vadd.f32 %v578, -1.4531521
      %v587 = vadd.f32 %v579, -1.4531521
      %v588 = vadd.f32 %v580, -1.4531521
      %v589 = vadd.f32 %v581, -1.4531521
      %v590 = vadd.f32 %v582, -1.4531521
      %v591 = vmul.f32 %v583, %v560
      %v592 = vmul.f32 %v584, %v562
      %v593 = vmul.f32 %v585, %v564
      %v594 = vmul.f32 %v586, %v566
      %v595 = vmul.f32 %v587, %v568
      %v596 = vmul.f32 %v588, %v570
      %v597 = vmul.f32 %v589, %v572
      %v598 = vmul.f32 %v590, %v574
      %v599 = vadd.f32 %v591, 1.4214138
      %v600 = vadd.f32 %v592, 1.4214138
      %v601 = vadd.f32 %v593, 1.4214138
      %v602 = vadd.f32 %v594, 1.4214138
      %v603 = vadd.f32 %v595, 1.4214138
      %v604 = vadd.f32 %v596, 1.4214138
      %v605 = vadd.f32 %v597, 1.4214138
      %v606 = vadd.f32 %v598, 1.4214138
      %v607 = vmul.f32 %v599, %v560
      %v608 = vmul.f32 %v600, %v562
      %v609 = vmul.f32 %v601, %v564
      %v610 = vmul.f32 %v602, %v566
      %v611 = vmul.f32 %v603, %v568
      %v612 = vmul.f32 %v604, %v570
      %v613 = vmul.f32 %v605, %v572
      %v614 = vmul.f32 %v606, %v574
      %v615 = vadd.f32 %v607, -0.28449672
      %v616 = vadd.f32 %v608, -0.28449672
      %v617 = vadd.f32 %v609, -0.28449672
      %v618 = vadd.f32 %v610, -0.28449672
      %v619 = vadd.f32 %v611, -0.28449672
      %v620 = vadd.f32 %v612, -0.28449672
      %v621 = vadd.f32 %v613, -0.28449672
      %v622 = vadd.f32 %v614, -0.28449672
      %v623 = vmul.f32 %v615, %v560
      %v624 = vmul.f32 %v616, %v562
      %v625 = vmul.f32 %v617, %v564
      %v626 = vmul.f32 %v618, %v566
      %v627 = vmul.f32 %v619, %v568
      %v628 = vmul.f32 %v620, %v570
      %v629 = vmul.f32 %v621, %v572
      %v630 = vmul.f32 %v622, %v574
      %v631 = vadd.f32 %v623, 0.2548296
      %v632 = vadd.f32 %v624, 0.2548296
      %v633 = vadd.f32 %v625, 0.2548296
      %v634 = vadd.f32 %v626, 0.2548296
      %v635 = vadd.f32 %v627, 0.2548296
      %v636 = vadd.f32 %v628, 0.2548296
      %v637 = vadd.f32 %v629, 0.2548296
      %v638 = vadd.f32 %v630, 0.2548296
      %v639 = vmul.f32 %v631, %v560
      %v640 = vmul.f32 %v632, %v562
      %v641 = vmul.f32 %v633, %v564
      %v642 = vmul.f32 %v634, %v566
      %v643 = vmul.f32 %v635, %v568
      %v644 = vmul.f32 %v636, %v570
      %v645 = vmul.f32 %v637, %v572
      %v646 = vmul.f32 %v638, %v574
      %v647 = vsub.f32 0.0, %v535
      %v648 = vsub.f32 0.0, %v536
      %v649 = vsub.f32 0.0, %v537
      %v650 = vsub.f32 0.0, %v538
      %v651 = vsub.f32 0.0, %v539
      %v652 = vsub.f32 0.0, %v540
      %v653 = vsub.f32 0.0, %v541
      %v654 = vsub.f32 0.0, %v542
      %v655 = vmul.f32 %v647, %v535
      %v656 = vmul.f32 %v648, %v536
      %v657 = vmul.f32 %v649, %v537
      %v658 = vmul.f32 %v650, %v538
      %v659 = vmul.f32 %v651, %v539
      %v660 = vmul.f32 %v652, %v540
      %v661 = vmul.f32 %v653, %v541
      %v662 = vmul.f32 %v654, %v542
      %v663 = vmul.f32 %v655, 1.442695
      %v664 = vpow.pop %v663
      %v665 = vmul.f32 %v656, 1.442695
      %v666 = vpow.pop %v665
      %v667 = vmul.f32 %v657, 1.442695
      %v668 = vpow.pop %v667
      %v669 = vmul.f32 %v658, 1.442695
      %v670 = vpow.pop %v669
      %v671 = vmul.f32 %v659, 1.442695
      %v672 = vpow.pop %v671
      %v673 = vmul.f32 %v660, 1.442695
      %v674 = vpow.pop %v673
      %v675 = vmul.f32 %v661, 1.442695
      %v676 = vpow.pop %v675
      %v677 = vmul.f32 %v662, 1.442695
      %v678 = vpow.pop %v677
      %v679 = vmul.f32 %v639, %v664
      %v680 = vmul.f32 %v640, %v666
      %v681 = vmul.f32 %v641, %v668
      %v682 = vmul.f32 %v642, %v670
      %v683 = vmul.f32 %v643, %v672
      %v684 = vmul.f32 %v644, %v674
      %v685 = vmul.f32 %v645, %v676
      %v686 = vmul.f32 %v646, %v678
      %v687 = vsub.f32 1.0, %v679
      %v688 = vsub.f32 1.0, %v680
      %v689 = vsub.f32 1.0, %v681
      %v690 = vsub.f32 1.0, %v682
      %v691 = vsub.f32 1.0, %v683
      %v692 = vsub.f32 1.0, %v684
      %v693 = vsub.f32 1.0, %v685
      %v694 = vsub.f32 1.0, %v686
      %v695 = vmul.f32 %v527, %v687
      %v696 = vmul.f32 %v528, %v688
      %v697 = vmul.f32 %v529, %v689
      %v698 = vmul.f32 %v530, %v690
      %v699 = vmul.f32 %v531, %v691
      %v700 = vmul.f32 %v532, %v692
      %v701 = vmul.f32 %v533, %v693
      %v702 = vmul.f32 %v534, %v694
      %v703 = vadd.f32 %v695, 1.0
      %v704 = vadd.f32 %v696, 1.0
      %v705 = vadd.f32 %v697, 1.0
      %v706 = vadd.f32 %v698, 1.0
      %v707 = vadd.f32 %v699, 1.0
      %v708 = vadd.f32 %v700, 1.0
      %v709 = vadd.f32 %v701, 1.0
      %v710 = vadd.f32 %v702, 1.0
      %v711 = vmul.f32 %v503, %v703
      %v712 = vmul.f32 %v504, %v704
      %v713 = vmul.f32 %v505, %v705
      %v714 = vmul.f32 %v506, %v706
      %v715 = vmul.f32 %v507, %v707
      %v716 = vmul.f32 %v508, %v708
      %v717 = vmul.f32 %v509, %v709
      %v718 = vmul.f32 %v510, %v710
      %v719 = vpack.c.bf16 %v712, %v711
      %v720 = vpack.c.bf16 %v714, %v713
      %v721 = vpack.c.bf16 %v716, %v715
      %v722 = vpack.c.bf16 %v718, %v717
      %v723 = vld [vmem:[%s5] sm:$0xf]
      %v724 = vld [vmem:[%s5 + $0x4] sm:$0xf]
      %v725 = vld [vmem:[%s5 + $0x8] sm:$0xf]
      %v726 = vld [vmem:[%s5 + $0xc] sm:$0xf]
      %v727 = vld [vmem:[%s5 + $0x10] sm:$0xf]
      %v728 = vld [vmem:[%s5 + $0x14] sm:$0xf]
      %v729 = vld [vmem:[%s5 + $0x18] sm:$0xf]
      %v730 = vld [vmem:[%s5 + $0x1c] sm:$0xf]
      %v731 = vld [vmem:[%s6] sm:$0x1]
      %v733 = vlaneseq
      %v734 = vshrl.u32 %v733, 7
      %v735 = vsub.s32 0, %v734
      %v736 = vrot.slane %v731, %v735
      %v746 = vunpack.c.l.b16 %v723
      %v747 = vunpack.c.l.b16 %v724
      %v748 = vunpack.c.l.b16 %v725
      %v749 = vunpack.c.l.b16 %v726
      %v750 = vunpack.c.l.b16 %v727
      %v751 = vunpack.c.l.b16 %v728
      %v752 = vunpack.c.l.b16 %v729
      %v753 = vunpack.c.l.b16 %v730
      %v754 = vpack.c.b16 %v747, %v746
      %v755 = vpack.c.b16 %v749, %v748
      %v756 = vpack.c.b16 %v751, %v750
      %v757 = vpack.c.b16 %v753, %v752
      %v763 = vsel %vm425, %v719, 0
      %v766 = vsel %vm425, %v720, 0
      %v769 = vsel %vm425, %v721, 0
      %v772 = vsel %vm425, %v722, 0
      %774 = vmatprep.subr.bf16.mxu0 0
      %775 = vmatpush1.bf16.msra.mxu0 0
      %776 = vmatprep.subr.bf16.mxu0 0
      %777 = vmatpush1.bf16.msra.mxu0 0
      %778 = vmatprep.subr.bf16.mxu0 0
      %779 = vmatpush1.bf16.msra.mxu0 0
      %780 = vmatprep.subr.bf16.mxu0 0
      %781 = vmatpush1.bf16.msra.mxu0 0
      %782 = vmatprep.subr.bf16.mxu0 0
      %783 = vmatpush1.bf16.msra.mxu0 %v757
      %784 = vmatprep.subr.bf16.mxu0 0
      %785 = vmatpush1.bf16.msra.mxu0 %v756
      %786 = vmatprep.subr.bf16.mxu0 0
      %787 = vmatpush1.bf16.msra.mxu0 %v755
      %788 = vmatprep.subr.bf16.mxu0 0
      %789 = vmatpush1.bf16.msra.mxu0 %v754
      %790 = vmatprep.subr.bf16.mxu0 0
      %791 = vmatpush2.bf16.msra.mxu0 0
      %792 = vmatprep.subr.bf16.mxu0 0
      %793 = vmatpush2.bf16.msra.mxu0 0
      %794 = vmatprep.subr.bf16.mxu0 0
      %795 = vmatpush2.bf16.msra.mxu0 0
      %796 = vmatprep.subr.bf16.mxu0 0
      %797 = vmatpush2.bf16.msra.mxu0 0
      %798 = vmatprep.subr.bf16.mxu0 0
      %799 = vmatpush2.bf16.msra.mxu0 0
      %800 = vmatprep.subr.bf16.mxu0 0
      %801 = vmatpush2.bf16.msra.mxu0 0
      %802 = vmatprep.subr.bf16.mxu0 0
      %803 = vmatpush2.bf16.msra.mxu0 0
      %804 = vmatprep.subr.bf16.mxu0 0
      %805 = vmatpush2.bf16.msra.mxu0 0
      %806 = vmatprep.mubr.bf16.mxu0 0
      %807 = vmatmul.mubr.bf16.gmra.mxu0 %v763
      %v808 = vpop.f32.mrf.mxu0
      %v809 = vadd.f32 %v736, %v808
      %v810 = vpop.f32.mrf.mxu0
      %v811 = vpop.f32.mrf.mxu0
      %v812 = vadd.f32 %v736, %v811
      %v813 = vpop.f32.mrf.mxu0
      %814 = vmatprep.mubr.bf16.mxu0 0
      %815 = vmatmul.mubr.bf16.gmra.mxu0 %v766
      %v816 = vpop.f32.mrf.mxu0
      %v817 = vadd.f32 %v736, %v816
      %v818 = vpop.f32.mrf.mxu0
      %v819 = vpop.f32.mrf.mxu0
      %v820 = vadd.f32 %v736, %v819
      %v821 = vpop.f32.mrf.mxu0
      %822 = vmatprep.mubr.bf16.mxu0 0
      %823 = vmatmul.mubr.bf16.gmra.mxu0 %v769
      %v824 = vpop.f32.mrf.mxu0
      %v825 = vadd.f32 %v736, %v824
      %v826 = vpop.f32.mrf.mxu0
      %v827 = vpop.f32.mrf.mxu0
      %v828 = vadd.f32 %v736, %v827
      %v829 = vpop.f32.mrf.mxu0
      %830 = vmatprep.mubr.bf16.mxu0 0
      %831 = vmatmul.mubr.bf16.gmra.mxu0 %v772
      %v832 = vpop.f32.mrf.mxu0
      %v833 = vadd.f32 %v736, %v832
      %v834 = vpop.f32.mrf.mxu0
      %v835 = vpop.f32.mrf.mxu0
      %v836 = vadd.f32 %v736, %v835
      %v837 = vpop.f32.mrf.mxu0
      %838 = vdwg.mxu0
      %vm839 = vcmask 31744
      %840 = vst.msk [vmem:[%s278] sm:$0xff] %vm839, %v809
      %841 = vst.msk [vmem:[%s278 + $0x8] sm:$0xff] %vm839, %v812
      %842 = vst.msk [vmem:[%s278 + $0x10] sm:$0xff] %vm839, %v817
      %843 = vst.msk [vmem:[%s278 + $0x18] sm:$0xff] %vm839, %v820
      %844 = vst.msk [vmem:[%s278 + $0x20] sm:$0xff] %vm839, %v825
      %845 = vst.msk [vmem:[%s278 + $0x28] sm:$0xff] %vm839, %v828
      %846 = vst.msk [vmem:[%s278 + $0x30] sm:$0xff] %vm839, %v833
      %847 = vst.msk [vmem:[%s278 + $0x38] sm:$0xff] %vm839, %v836
      %p848 = scmp.lt.s32.totalorder %s18, 1
      %s849 = scalar_select %p848, %s18, 1
      %s850 = smul.addr %s849, 8
      %s851 = smul.addr %s850, 8
      %s852 = scalar_lea.vmem %s7, %s851
      // Predicated region
      $region49: #{model_forward.42} parent=47 // pred_check
        %p853 = pneg %p188
      $region50: #{model_forward.42} parent=47 // pred_check_branch
        %855 = sbr.rel (%p853) target = $region52
      $region51: #{model_forward.42} parent=47 // pred_region
        _
      $region52: #{model_forward.42} parent=47 // pred_fallthru
        _
    $region48: #{model_forward.42} parent=5 // pred_fallthru
      _
    %p856 = scmp.le.s32.totalorder 2, %s13
    // Predicated region
    $region53: #{model_forward.42} parent=5 // pred_check
      %p857 = pneg %p856
    $region54: #{model_forward.42} parent=5 // pred_check_branch
      %859 = sbr.rel (%p857) target = $region56
    $region55: #{model_forward.42} parent=5 // pred_region
      %s860 = ssub.s32 %s13, 2
      // Predicated region
      $region57: #{model_forward.42} parent=55 // pred_check
        %p861 = pneg %p194
      $region58: #{model_forward.42} parent=55 // pred_check_branch
        %863 = sbr.rel (%p861) target = $region60
      $region59: #{model_forward.42} parent=55 // pred_region
        %p864 = scmp.lt.s32.totalorder %s19, 1
        %s865 = scalar_select %p864, %s19, 1
        %s866 = smul.addr %s865, 8
        %s867 = smul.addr %s866, 8
        %s868 = scalar_lea.vmem %s7, %s867
      $region60: #{model_forward.42} parent=55 // pred_fallthru
        _
    $region56: #{model_forward.42} parent=5 // pred_fallthru
      _
  $region6: #{model_forward.42} parent=0 // loop_footer
    %s17 = sadd.s32 1, %s13
  $region7: #{model_forward.42} parent=0 // loop_footer_branch
    %12 = sbr.rel target = $region3
  $region8: #{model_forward.42} parent=0 // loop_exit
    _

// kernel: model_forward.43
$region0: #{model_forward.43}
  #allocation0 [shape = 'u32[]', space=smem, size = 0x4, offset = 0x4, fixed_abs, tag = 'smem constant byte address 0x4 - core index']
  #allocation1 [shape = 'u32[144,128]{1,0:T(1,128)}', space=vmem, size = 0x12000, scoped, tag = 'internal scratch']
  %s0 = inlined_call_operand.vmem [shape: f32[2,16,32], index: 0, kind: input, shape index: {}]
  %s1 = inlined_call_operand.vmem [shape: f32[16,8], index: 1, kind: input, shape index: {}]
  %s2 = inlined_call_operand.vmem [shape: f32[2,8,32], index: 2, kind: input, shape index: {}]
  %s3 = inlined_call_operand.vmem [shape: f32[2,16,32], index: 3, kind: output, shape index: {}]
  %s4 = sld [smem:[#allocation0]]
  $region45: #{model_forward.43} parent=0
    _
  %s6 = ssub.s32 1, %s4
  %s7 = scalar_select 0, %s6, %s4
  loop: start=0, step=1, limit=4
  $region2: #{model_forward.43} parent=0 // loop_pre_header
    _
  $region3: #{model_forward.43} parent=0 // loop_header
    %s9 = sphi 0, %s13
    %p10 = scmp.ge.s32.totalorder %s9, 4
    %s19 = sphi 0, %s21
    %s22 = sphi 0, %s19
    %s23 = sphi 0, %s22
    %s39 = sphi 0, %s23
    %s43 = sphi 0, %s43
    %s45 = sphi 0, %s43
    %s46 = sphi 0, %s45
    %s60 = sphi 0, %s46
    %s66 = sphi 0, %s68
    %s69 = sphi 0, %s66
    %s70 = sphi 0, %s69
    %s86 = sphi 0, %s70
    %s92 = sphi 0, %s94
    %s95 = sphi 0, %s92
    %s96 = sphi 0, %s95
    %s112 = sphi 0, %s96
  $region4: #{model_forward.43} parent=0 // loop_header_branch
    %12 = sbr.rel (%p10) target = $region8
  $region5: #{model_forward.43} parent=0 // loop_body
    %s14 = ssub.s32 %s9, 1
    %s15 = ssub.s32 %s9, 2
    %s16 = sadd.s32 %s9, 1
    %s17 = ssub.s32 %s9, %s16
    %p18 = scmp.eq.s32.totalorder %s17, 0
    %s20 = sadd.s32 %s19, 1
    %s21 = scalar_select %p18, %s19, %s20
    %p24 = pneg %p18
    %p25 = scmp.eq.s32.totalorder %s9, 1
    %p26 = por %p24, %p25
    %p27 = scmp.ne.s32.totalorder %s19, %s22
    %p28 = scmp.eq.s32.totalorder %s9, 0
    %p29 = por %p27, %p28
    %p30 = scmp.ne.s32.totalorder %s19, %s22
    %p31 = scmp.eq.s32.totalorder %s14, 1
    %p32 = por %p30, %p31
    %p33 = scmp.ne.s32.totalorder %s22, %s23
    %p34 = scmp.eq.s32.totalorder %s14, 0
    %p35 = por %p33, %p34
    %p36 = scmp.ne.s32.totalorder %s22, %s23
    %p37 = scmp.eq.s32.totalorder %s15, 1
    %p38 = por %p36, %p37
    %p40 = scmp.ne.s32.totalorder %s23, %s39
    %p41 = scmp.eq.s32.totalorder %s15, 0
    %p42 = por %p40, %p41
    %s44 = sadd.s32 %s43, 1
    %p47 = scmp.eq.s32.totalorder %s9, 1
    %p48 = scmp.ne.s32.totalorder %s43, %s45
    %p49 = scmp.eq.s32.totalorder %s9, 0
    %p50 = por %p48, %p49
    %p51 = scmp.ne.s32.totalorder %s43, %s45
    %p52 = scmp.eq.s32.totalorder %s14, 1
    %p53 = por %p51, %p52
    %p54 = scmp.ne.s32.totalorder %s45, %s46
    %p55 = scmp.eq.s32.totalorder %s14, 0
    %p56 = por %p54, %p55
    %p57 = scmp.ne.s32.totalorder %s45, %s46
    %p58 = scmp.eq.s32.totalorder %s15, 1
    %p59 = por %p57, %p58
    %p61 = scmp.ne.s32.totalorder %s46, %s60
    %p62 = scmp.eq.s32.totalorder %s15, 0
    %p63 = por %p61, %p62
    %s64 = ssub.s32 %s9, %s16
    %p65 = scmp.eq.s32.totalorder %s64, 0
    %s67 = sadd.s32 %s66, 1
    %s68 = scalar_select %p65, %s66, %s67
    %p71 = pneg %p65
    %p72 = scmp.eq.s32.totalorder %s9, 1
    %p73 = por %p71, %p72
    %p74 = scmp.ne.s32.totalorder %s66, %s69
    %p75 = scmp.eq.s32.totalorder %s9, 0
    %p76 = por %p74, %p75
    %p77 = scmp.ne.s32.totalorder %s66, %s69
    %p78 = scmp.eq.s32.totalorder %s14, 1
    %p79 = por %p77, %p78
    %p80 = scmp.ne.s32.totalorder %s69, %s70
    %p81 = scmp.eq.s32.totalorder %s14, 0
    %p82 = por %p80, %p81
    %p83 = scmp.ne.s32.totalorder %s69, %s70
    %p84 = scmp.eq.s32.totalorder %s15, 1
    %p85 = por %p83, %p84
    %p87 = scmp.ne.s32.totalorder %s70, %s86
    %p88 = scmp.eq.s32.totalorder %s15, 0
    %p89 = por %p87, %p88
    %s90 = ssub.s32 %s9, %s16
    %p91 = scmp.eq.s32.totalorder %s90, 0
    %s93 = sadd.s32 %s92, 1
    %s94 = scalar_select %p91, %s92, %s93
    %p97 = pneg %p91
    %p98 = scmp.eq.s32.totalorder %s9, 1
    %p99 = por %p97, %p98
    %p100 = scmp.ne.s32.totalorder %s92, %s95
    %p101 = scmp.eq.s32.totalorder %s9, 0
    %p102 = por %p100, %p101
    %p103 = scmp.ne.s32.totalorder %s92, %s95
    %p104 = scmp.eq.s32.totalorder %s14, 1
    %p105 = por %p103, %p104
    %p106 = scmp.ne.s32.totalorder %s95, %s96
    %p107 = scmp.eq.s32.totalorder %s14, 0
    %p108 = por %p106, %p107
    %p109 = scmp.ne.s32.totalorder %s95, %s96
    %p110 = scmp.eq.s32.totalorder %s15, 1
    %p111 = por %p109, %p110
    %p113 = scmp.ne.s32.totalorder %s96, %s112
    %p114 = scmp.eq.s32.totalorder %s15, 0
    %p115 = por %p113, %p114
    %p116 = scmp.le.s32.totalorder 1, %s9
    %p117 = scmp.lt.s32.totalorder %s9, 3
    %p118 = pnand %p116, %p117
    %p119 = pneg %p118
    // Predicated region
    $region9: #{model_forward.43} parent=5 // pred_check
      _
    $region10: #{model_forward.43} parent=5 // pred_check_branch
      %121 = sbr.rel (%p118) target = $region12
    $region11: #{model_forward.43} parent=5 // pred_region
      %s122 = ssub.s32 %s9, 1
      // Predicated region
      $region13: #{model_forward.43} parent=11 // pred_check
        %p123 = pneg %p56
      $region14: #{model_forward.43} parent=11 // pred_check_branch
        %125 = sbr.rel (%p123) target = $region16
      $region15: #{model_forward.43} parent=11 // pred_region
        _
      $region16: #{model_forward.43} parent=11 // pred_fallthru
        _
    $region12: #{model_forward.43} parent=5 // pred_fallthru
      _
    %p126 = scmp.lt.s32.totalorder %s9, 2
    // Predicated region
    $region17: #{model_forward.43} parent=5 // pred_check
      %p127 = pneg %p126
    $region18: #{model_forward.43} parent=5 // pred_check_branch
      %129 = sbr.rel (%p127) target = $region20
    $region19: #{model_forward.43} parent=5 // pred_region
      // Predicated region
      $region21: #{model_forward.43} parent=19 // pred_check
        %p130 = pneg %p29
      $region22: #{model_forward.43} parent=19 // pred_check_branch
        %132 = sbr.rel (%p130) target = $region24
      $region23: #{model_forward.43} parent=19 // pred_region
        %p133 = scmp.lt.s32.totalorder %s9, 1
        %s134 = scalar_select %p133, %s9, 1
        %s135 = smul.addr %s134, 2
        %s136 = smul.addr %s135, 8
        %s137 = scalar_lea.vmem %s0, %s136
      $region24: #{model_forward.43} parent=19 // pred_fallthru
        _
      // Predicated region
      $region25: #{model_forward.43} parent=19 // pred_check
        %p138 = pneg %p76
      $region26: #{model_forward.43} parent=19 // pred_check_branch
        %140 = sbr.rel (%p138) target = $region28
      $region27: #{model_forward.43} parent=19 // pred_region
        %p141 = scmp.lt.s32.totalorder %s9, 1
        %s142 = scalar_select %p141, %s9, 1
        %s143 = smul.addr %s142, 8
        %s144 = scalar_lea.vmem %s2, %s143
      $region28: #{model_forward.43} parent=19 // pred_fallthru
        _
    $region20: #{model_forward.43} parent=5 // pred_fallthru
      _
    %p145 = scmp.le.s32.totalorder 1, %s9
    %p146 = scmp.lt.s32.totalorder %s9, 3
    %p147 = pnand %p145, %p146
    %p148 = pneg %p147
    // Predicated region
    $region29: #{model_forward.43} parent=5 // pred_check
      _
    $region30: #{model_forward.43} parent=5 // pred_check_branch
      %150 = sbr.rel (%p147) target = $region32
    $region31: #{model_forward.43} parent=5 // pred_region
      %s151 = ssub.s32 %s9, 1
      %p152 = scmp.lt.s32.totalorder %s14, 1
      %s153 = scalar_select %p152, %s14, 1
      %s154 = smul.addr %s153, 2
      %s155 = smul.addr %s154, 8
      %s156 = scalar_lea.vmem %s0, %s155
      %p157 = pneg %p35
      %p158 = pneg %p32
      %p159 = pneg %p56
      %p160 = pneg %p53
      %p161 = scmp.lt.s32.totalorder %s14, 1
      %s162 = scalar_select %p161, %s14, 1
      %s163 = smul.addr %s162, 8
      %s164 = scalar_lea.vmem %s2, %s163
      %p165 = pneg %p82
      %p166 = pneg %p79
      %p167 = pneg %p108
      %p168 = pneg %p105
      %p169 = scmp.lt.s32.totalorder %s14, 1
      %s170 = scalar_select %p169, %s14, 1
      %s171 = smul.addr %s170, 2
      %s172 = smul.addr %s171, 8
      %s173 = scalar_lea.vmem %s3, %s172
      %p174 = scmp.lt.s32.totalorder %s14, 1
      %s175 = scalar_select %p174, %s14, 1
      %s176 = smul.addr %s175, 2
      %s177 = smul.addr %s176, 8
      %s178 = scalar_lea.vmem %s0, %s177
      %p179 = scmp.lt.s32.totalorder %s14, 1
      %s180 = scalar_select %p179, %s14, 1
      %s181 = smul.addr %s180, 8
      %s182 = scalar_lea.vmem %s2, %s181
      %p183 = scmp.lt.s32.totalorder %s14, 1
      %s184 = scalar_select %p183, %s14, 1
      %s185 = smul.addr %s184, 2
      %s186 = smul.addr %s185, 8
      %s187 = scalar_lea.vmem %s3, %s186
      %v189 = vld [vmem:[%s1] sm:$0xff]
      %v190 = vld [vmem:[%s1 + $0x8] sm:$0xff]
      %v191 = vpack.c.bf16 %v190, %v189
      %v192 = vld [vmem:[%s182] sm:$0xff]
      %v193 = vpack.c.bf16 %v192, %v192
      %vm194 = vcmask 64512
      %v196 = vsel %vm194, %v191, 0
      %vm198 = vcmask 1043456
      %v200 = vsel %vm198, %v193, 0
      %202 = vmatprep.subr.bf16.mxu0 0
      %203 = vmatpush1.bf16.msra.mxu0 0
      %204 = vmatprep.subr.bf16.mxu0 0
      %205 = vmatpush1.bf16.msra.mxu0 0
      %206 = vmatprep.subr.bf16.mxu0 0
      %207 = vmatpush1.bf16.msra.mxu0 0
      %208 = vmatprep.subr.bf16.mxu0 0
      %209 = vmatpush1.bf16.msra.mxu0 0
      %210 = vmatprep.subr.bf16.mxu0 0
      %211 = vmatpush1.bf16.msra.mxu0 0
      %212 = vmatprep.subr.bf16.mxu0 0
      %213 = vmatpush1.bf16.msra.mxu0 0
      %214 = vmatprep.subr.bf16.mxu0 0
      %215 = vmatpush1.bf16.msra.mxu0 0
      %216 = vmatprep.subr.bf16.mxu0 0
      %217 = vmatpush1.bf16.msra.mxu0 %v200
      %218 = vmatprep.subr.bf16.mxu0 0
      %219 = vmatpush2.bf16.msra.mxu0 0
      %220 = vmatprep.subr.bf16.mxu0 0
      %221 = vmatpush2.bf16.msra.mxu0 0
      %222 = vmatprep.subr.bf16.mxu0 0
      %223 = vmatpush2.bf16.msra.mxu0 0
      %224 = vmatprep.subr.bf16.mxu0 0
      %225 = vmatpush2.bf16.msra.mxu0 0
      %226 = vmatprep.subr.bf16.mxu0 0
      %227 = vmatpush2.bf16.msra.mxu0 0
      %228 = vmatprep.subr.bf16.mxu0 0
      %229 = vmatpush2.bf16.msra.mxu0 0
      %230 = vmatprep.subr.bf16.mxu0 0
      %231 = vmatpush2.bf16.msra.mxu0 0
      %232 = vmatprep.subr.bf16.mxu0 0
      %233 = vmatpush2.bf16.msra.mxu0 0
      %234 = vmatprep.mubr.bf16.mxu0 0
      %235 = vmatmul.mubr.bf16.gmra.mxu0 %v196
      %v236 = vpop.f32.mrf.mxu0
      %v237 = vadd.f32 0.0, %v236
      %v238 = vpop.f32.mrf.mxu0
      %v239 = vpop.f32.mrf.mxu0
      %v240 = vadd.f32 0.0, %v239
      %v241 = vpop.f32.mrf.mxu0
      %242 = vdwg.mxu0
      %v243 = vld [vmem:[%s178] sm:$0xff]
      %v244 = vld [vmem:[%s178 + $0x8] sm:$0xff]
      %v245 = vsub.f32 %v243, %v237
      %v246 = vsub.f32 %v244, %v240
      %vm247 = vcmask 261120
      %248 = vst.msk [vmem:[%s187] sm:$0xff] %vm247, %v245
      %249 = vst.msk [vmem:[%s187 + $0x8] sm:$0xff] %vm247, %v246
      %p250 = scmp.lt.s32.totalorder %s14, 1
      %s251 = scalar_select %p250, %s14, 1
      %s252 = smul.addr %s251, 2
      %s253 = smul.addr %s252, 8
      %s254 = scalar_lea.vmem %s3, %s253
      // Predicated region
      $region33: #{model_forward.43} parent=31 // pred_check
        %p255 = pneg %p105
      $region34: #{model_forward.43} parent=31 // pred_check_branch
        %257 = sbr.rel (%p255) target = $region36
      $region35: #{model_forward.43} parent=31 // pred_region
        _
      $region36: #{model_forward.43} parent=31 // pred_fallthru
        _
    $region32: #{model_forward.43} parent=5 // pred_fallthru
      _
    %p258 = scmp.le.s32.totalorder 2, %s9
    // Predicated region
    $region37: #{model_forward.43} parent=5 // pred_check
      %p259 = pneg %p258
    $region38: #{model_forward.43} parent=5 // pred_check_branch
      %261 = sbr.rel (%p259) target = $region40
    $region39: #{model_forward.43} parent=5 // pred_region
      %s262 = ssub.s32 %s9, 2
      // Predicated region
      $region41: #{model_forward.43} parent=39 // pred_check
        %p263 = pneg %p111
      $region42: #{model_forward.43} parent=39 // pred_check_branch
        %265 = sbr.rel (%p263) target = $region44
      $region43: #{model_forward.43} parent=39 // pred_region
        %p266 = scmp.lt.s32.totalorder %s15, 1
        %s267 = scalar_select %p266, %s15, 1
        %s268 = smul.addr %s267, 2
        %s269 = smul.addr %s268, 8
        %s270 = scalar_lea.vmem %s3, %s269
      $region44: #{model_forward.43} parent=39 // pred_fallthru
        _
    $region40: #{model_forward.43} parent=5 // pred_fallthru
      _
  $region6: #{model_forward.43} parent=0 // loop_footer
    %s13 = sadd.s32 1, %s9
  $region7: #{model_forward.43} parent=0 // loop_footer_branch
    %8 = sbr.rel target = $region3
  $region8: #{model_forward.43} parent=0 // loop_exit
    _

// kernel: model_forward.45
$region0: #{model_forward.45}
  #allocation0 [shape = 'u32[]', space=smem, size = 0x4, offset = 0x4, fixed_abs, tag = 'smem constant byte address 0x4 - core index']
  #allocation1 [shape = 'u32[144,128]{1,0:T(1,128)}', space=vmem, size = 0x12000, scoped, tag = 'internal scratch']
  %s0 = inlined_call_operand.vmem [shape: f32[2,4,8,16], index: 0, kind: input, shape index: {}]
  %s1 = inlined_call_operand.vmem [shape: bf16[16,16], index: 1, kind: input, shape index: {}]
  %s2 = inlined_call_operand.vmem [shape: f32[1,16], index: 2, kind: input, shape index: {}]
  %s3 = inlined_call_operand.vmem [shape: f32[4,16], index: 3, kind: input, shape index: {}]
  %s4 = inlined_call_operand.vmem [shape: f32[2,8,16], index: 4, kind: output, shape index: {}]
  %s5 = sld [smem:[#allocation0]]
  $region49: #{model_forward.45} parent=0
    _
  %s7 = ssub.s32 1, %s5
  %s8 = scalar_select 0, %s7, %s5
  loop: start=0, step=1, limit=4
  $region2: #{model_forward.45} parent=0 // loop_pre_header
    _
  $region3: #{model_forward.45} parent=0 // loop_header
    %s10 = sphi 0, %s14
    %p11 = scmp.ge.s32.totalorder %s10, 4
    %s20 = sphi 0, %s22
    %s23 = sphi 0, %s20
    %s24 = sphi 0, %s23
    %s40 = sphi 0, %s24
    %s44 = sphi 0, %s44
    %s46 = sphi 0, %s44
    %s47 = sphi 0, %s46
    %s61 = sphi 0, %s47
    %s65 = sphi 0, %s65
    %s67 = sphi 0, %s65
    %s68 = sphi 0, %s67
    %s82 = sphi 0, %s68
    %s86 = sphi 0, %s86
    %s88 = sphi 0, %s86
    %s89 = sphi 0, %s88
    %s103 = sphi 0, %s89
    %s109 = sphi 0, %s111
    %s112 = sphi 0, %s109
    %s113 = sphi 0, %s112
    %s129 = sphi 0, %s113
  $region4: #{model_forward.45} parent=0 // loop_header_branch
    %13 = sbr.rel (%p11) target = $region8
  $region5: #{model_forward.45} parent=0 // loop_body
    %s15 = ssub.s32 %s10, 1
    %s16 = ssub.s32 %s10, 2
    %s17 = sadd.s32 %s10, 1
    %s18 = ssub.s32 %s10, %s17
    %p19 = scmp.eq.s32.totalorder %s18, 0
    %s21 = sadd.s32 %s20, 1
    %s22 = scalar_select %p19, %s20, %s21
    %p25 = pneg %p19
    %p26 = scmp.eq.s32.totalorder %s10, 1
    %p27 = por %p25, %p26
    %p28 = scmp.ne.s32.totalorder %s20, %s23
    %p29 = scmp.eq.s32.totalorder %s10, 0
    %p30 = por %p28, %p29
    %p31 = scmp.ne.s32.totalorder %s20, %s23
    %p32 = scmp.eq.s32.totalorder %s15, 1
    %p33 = por %p31, %p32
    %p34 = scmp.ne.s32.totalorder %s23, %s24
    %p35 = scmp.eq.s32.totalorder %s15, 0
    %p36 = por %p34, %p35
    %p37 = scmp.ne.s32.totalorder %s23, %s24
    %p38 = scmp.eq.s32.totalorder %s16, 1
    %p39 = por %p37, %p38
    %p41 = scmp.ne.s32.totalorder %s24, %s40
    %p42 = scmp.eq.s32.totalorder %s16, 0
    %p43 = por %p41, %p42
    %s45 = sadd.s32 %s44, 1
    %p48 = scmp.eq.s32.totalorder %s10, 1
    %p49 = scmp.ne.s32.totalorder %s44, %s46
    %p50 = scmp.eq.s32.totalorder %s10, 0
    %p51 = por %p49, %p50
    %p52 = scmp.ne.s32.totalorder %s44, %s46
    %p53 = scmp.eq.s32.totalorder %s15, 1
    %p54 = por %p52, %p53
    %p55 = scmp.ne.s32.totalorder %s46, %s47
    %p56 = scmp.eq.s32.totalorder %s15, 0
    %p57 = por %p55, %p56
    %p58 = scmp.ne.s32.totalorder %s46, %s47
    %p59 = scmp.eq.s32.totalorder %s16, 1
    %p60 = por %p58, %p59
    %p62 = scmp.ne.s32.totalorder %s47, %s61
    %p63 = scmp.eq.s32.totalorder %s16, 0
    %p64 = por %p62, %p63
    %s66 = sadd.s32 %s65, 1
    %p69 = scmp.eq.s32.totalorder %s10, 1
    %p70 = scmp.ne.s32.totalorder %s65, %s67
    %p71 = scmp.eq.s32.totalorder %s10, 0
    %p72 = por %p70, %p71
    %p73 = scmp.ne.s32.totalorder %s65, %s67
    %p74 = scmp.eq.s32.totalorder %s15, 1
    %p75 = por %p73, %p74
    %p76 = scmp.ne.s32.totalorder %s67, %s68
    %p77 = scmp.eq.s32.totalorder %s15, 0
    %p78 = por %p76, %p77
    %p79 = scmp.ne.s32.totalorder %s67, %s68
    %p80 = scmp.eq.s32.totalorder %s16, 1
    %p81 = por %p79, %p80
    %p83 = scmp.ne.s32.totalorder %s68, %s82
    %p84 = scmp.eq.s32.totalorder %s16, 0
    %p85 = por %p83, %p84
    %s87 = sadd.s32 %s86, 1
    %p90 = scmp.eq.s32.totalorder %s10, 1
    %p91 = scmp.ne.s32.totalorder %s86, %s88
    %p92 = scmp.eq.s32.totalorder %s10, 0
    %p93 = por %p91, %p92
    %p94 = scmp.ne.s32.totalorder %s86, %s88
    %p95 = scmp.eq.s32.totalorder %s15, 1
    %p96 = por %p94, %p95
    %p97 = scmp.ne.s32.totalorder %s88, %s89
    %p98 = scmp.eq.s32.totalorder %s15, 0
    %p99 = por %p97, %p98
    %p100 = scmp.ne.s32.totalorder %s88, %s89
    %p101 = scmp.eq.s32.totalorder %s16, 1
    %p102 = por %p100, %p101
    %p104 = scmp.ne.s32.totalorder %s89, %s103
    %p105 = scmp.eq.s32.totalorder %s16, 0
    %p106 = por %p104, %p105
    %s107 = ssub.s32 %s10, %s17
    %p108 = scmp.eq.s32.totalorder %s107, 0
    %s110 = sadd.s32 %s109, 1
    %s111 = scalar_select %p108, %s109, %s110
    %p114 = pneg %p108
    %p115 = scmp.eq.s32.totalorder %s10, 1
    %p116 = por %p114, %p115
    %p117 = scmp.ne.s32.totalorder %s109, %s112
    %p118 = scmp.eq.s32.totalorder %s10, 0
    %p119 = por %p117, %p118
    %p120 = scmp.ne.s32.totalorder %s109, %s112
    %p121 = scmp.eq.s32.totalorder %s15, 1
    %p122 = por %p120, %p121
    %p123 = scmp.ne.s32.totalorder %s112, %s113
    %p124 = scmp.eq.s32.totalorder %s15, 0
    %p125 = por %p123, %p124
    %p126 = scmp.ne.s32.totalorder %s112, %s113
    %p127 = scmp.eq.s32.totalorder %s16, 1
    %p128 = por %p126, %p127
    %p130 = scmp.ne.s32.totalorder %s113, %s129
    %p131 = scmp.eq.s32.totalorder %s16, 0
    %p132 = por %p130, %p131
    %p133 = scmp.le.s32.totalorder 1, %s10
    %p134 = scmp.lt.s32.totalorder %s10, 3
    %p135 = pnand %p133, %p134
    %p136 = pneg %p135
    // Predicated region
    $region9: #{model_forward.45} parent=5 // pred_check
      _
    $region10: #{model_forward.45} parent=5 // pred_check_branch
      %138 = sbr.rel (%p135) target = $region12
    $region11: #{model_forward.45} parent=5 // pred_region
      %s139 = ssub.s32 %s10, 1
      // Predicated region
      $region13: #{model_forward.45} parent=11 // pred_check
        %p140 = pneg %p57
      $region14: #{model_forward.45} parent=11 // pred_check_branch
        %142 = sbr.rel (%p140) target = $region16
      $region15: #{model_forward.45} parent=11 // pred_region
        _
      $region16: #{model_forward.45} parent=11 // pred_fallthru
        _
      // Predicated region
      $region17: #{model_forward.45} parent=11 // pred_check
        %p143 = pneg %p78
      $region18: #{model_forward.45} parent=11 // pred_check_branch
        %145 = sbr.rel (%p143) target = $region20
      $region19: #{model_forward.45} parent=11 // pred_region
        _
      $region20: #{model_forward.45} parent=11 // pred_fallthru
        _
      // Predicated region
      $region21: #{model_forward.45} parent=11 // pred_check
        %p146 = pneg %p99
      $region22: #{model_forward.45} parent=11 // pred_check_branch
        %148 = sbr.rel (%p146) target = $region24
      $region23: #{model_forward.45} parent=11 // pred_region
        _
      $region24: #{model_forward.45} parent=11 // pred_fallthru
        _
    $region12: #{model_forward.45} parent=5 // pred_fallthru
      _
    %p149 = scmp.lt.s32.totalorder %s10, 2
    // Predicated region
    $region25: #{model_forward.45} parent=5 // pred_check
      %p150 = pneg %p149
    $region26: #{model_forward.45} parent=5 // pred_check_branch
      %152 = sbr.rel (%p150) target = $region28
    $region27: #{model_forward.45} parent=5 // pred_region
      // Predicated region
      $region29: #{model_forward.45} parent=27 // pred_check
        %p153 = pneg %p30
      $region30: #{model_forward.45} parent=27 // pred_check_branch
        %155 = sbr.rel (%p153) target = $region32
      $region31: #{model_forward.45} parent=27 // pred_region
        %p156 = scmp.lt.s32.totalorder %s10, 1
        %s157 = scalar_select %p156, %s10, 1
        %s158 = smul.addr %s157, 4
        %s159 = smul.addr %s158, 8
        %s160 = scalar_lea.vmem %s0, %s159
      $region32: #{model_forward.45} parent=27 // pred_fallthru
        _
    $region28: #{model_forward.45} parent=5 // pred_fallthru
      _
    %p161 = scmp.le.s32.totalorder 1, %s10
    %p162 = scmp.lt.s32.totalorder %s10, 3
    %p163 = pnand %p161, %p162
    %p164 = pneg %p163
    // Predicated region
    $region33: #{model_forward.45} parent=5 // pred_check
      _
    $region34: #{model_forward.45} parent=5 // pred_check_branch
      %166 = sbr.rel (%p163) target = $region36
    $region35: #{model_forward.45} parent=5 // pred_region
      %s167 = ssub.s32 %s10, 1
      %p168 = scmp.lt.s32.totalorder %s15, 1
      %s169 = scalar_select %p168, %s15, 1
      %s170 = smul.addr %s169, 4
      %s171 = smul.addr %s170, 8
      %s172 = scalar_lea.vmem %s0, %s171
      %p173 = pneg %p36
      %p174 = pneg %p33
      %p175 = pneg %p57
      %p176 = pneg %p54
      %p177 = pneg %p78
      %p178 = pneg %p75
      %p179 = pneg %p99
      %p180 = pneg %p96
      %p181 = pneg %p125
      %p182 = pneg %p122
      %p183 = scmp.lt.s32.totalorder %s15, 1
      %s184 = scalar_select %p183, %s15, 1
      %s185 = smul.addr %s184, 8
      %s186 = scalar_lea.vmem %s4, %s185
      %p187 = scmp.lt.s32.totalorder %s15, 1
      %s188 = scalar_select %p187, %s15, 1
      %s189 = smul.addr %s188, 4
      %s190 = smul.addr %s189, 8
      %s191 = scalar_lea.vmem %s0, %s190
      %p192 = scmp.lt.s32.totalorder %s15, 1
      %s193 = scalar_select %p192, %s15, 1
      %s194 = smul.addr %s193, 8
      %s195 = scalar_lea.vmem %s4, %s194
      %v197 = vld [vmem:[%s3] sm:$0xf]
      %v198 = vld [vmem:[%s191] sm:$0xff]
      %v199 = vpack.c.bf16 %v198, %v198
      %v200 = vld [vmem:[%s1] sm:$0xf]
      %v201 = vld [vmem:[%s1 + $0x4] sm:$0xf]
      %v202 = vld [vmem:[%s2] sm:$0x1]
      %v204 = vlaneseq
      %v205 = vshrl.u32 %v204, 7
      %v206 = vsub.s32 0, %v205
      %v207 = vrot.slane %v202, %v206
      %v211 = vunpack.c.l.b16 %v200
      %v212 = vunpack.c.l.b16 %v201
      %v213 = vpack.c.b16 %v212, %v211
      %vm215 = vcmask 130048
      %v217 = vsel %vm215, %v199, 0
      %219 = vmatprep.subr.bf16.mxu0 0
      %220 = vmatpush1.bf16.msra.mxu0 0
      %221 = vmatprep.subr.bf16.mxu0 0
      %222 = vmatpush1.bf16.msra.mxu0 0
      %223 = vmatprep.subr.bf16.mxu0 0
      %224 = vmatpush1.bf16.msra.mxu0 0
      %225 = vmatprep.subr.bf16.mxu0 0
      %226 = vmatpush1.bf16.msra.mxu0 0
      %227 = vmatprep.subr.bf16.mxu0 0
      %228 = vmatpush1.bf16.msra.mxu0 0
      %229 = vmatprep.subr.bf16.mxu0 0
      %230 = vmatpush1.bf16.msra.mxu0 0
      %231 = vmatprep.subr.bf16.mxu0 0
      %232 = vmatpush1.bf16.msra.mxu0 0
      %233 = vmatprep.subr.bf16.mxu0 0
      %234 = vmatpush1.bf16.msra.mxu0 %v213
      %235 = vmatprep.subr.bf16.mxu0 0
      %236 = vmatpush2.bf16.msra.mxu0 0
      %237 = vmatprep.subr.bf16.mxu0 0
      %238 = vmatpush2.bf16.msra.mxu0 0
      %239 = vmatprep.subr.bf16.mxu0 0
      %240 = vmatpush2.bf16.msra.mxu0 0
      %241 = vmatprep.subr.bf16.mxu0 0
      %242 = vmatpush2.bf16.msra.mxu0 0
      %243 = vmatprep.subr.bf16.mxu0 0
      %244 = vmatpush2.bf16.msra.mxu0 0
      %245 = vmatprep.subr.bf16.mxu0 0
      %246 = vmatpush2.bf16.msra.mxu0 0
      %247 = vmatprep.subr.bf16.mxu0 0
      %248 = vmatpush2.bf16.msra.mxu0 0
      %249 = vmatprep.subr.bf16.mxu0 0
      %250 = vmatpush2.bf16.msra.mxu0 0
      %251 = vmatprep.mubr.bf16.mxu0 0
      %252 = vmatmul.mubr.bf16.gmra.mxu0 %v217
      %v253 = vpop.f32.mrf.mxu0
      %v254 = vadd.f32 %v207, %v253
      %v255 = vpop.f32.mrf.mxu0
      %v256 = vpop.f32.mrf.mxu0
      %v257 = vpop.f32.mrf.mxu0
      %258 = vdwg.mxu0
      %v259 = vlaneseq
      %v260 = vshrl.u32 %v259, 7
      %v261 = vsub.s32 0, %v260
      %v262 = vrot.slane %v197, %v261
      %v263 = vmul.f32 %v254, %v262
      %s264 = scalar_lea.vmem %s191, 8
      %v265 = vld [vmem:[%s264] sm:$0xff]
      %v266 = vpack.c.bf16 %v265, %v265
      %v268 = vsel %vm215, %v266, 0
      %270 = vmatprep.subr.bf16.mxu0 0
      %271 = vmatpush1.bf16.msra.mxu0 0
      %272 = vmatprep.subr.bf16.mxu0 0
      %273 = vmatpush1.bf16.msra.mxu0 0
      %274 = vmatprep.subr.bf16.mxu0 0
      %275 = vmatpush1.bf16.msra.mxu0 0
      %276 = vmatprep.subr.bf16.mxu0 0
      %277 = vmatpush1.bf16.msra.mxu0 0
      %278 = vmatprep.subr.bf16.mxu0 0
      %279 = vmatpush1.bf16.msra.mxu0 0
      %280 = vmatprep.subr.bf16.mxu0 0
      %281 = vmatpush1.bf16.msra.mxu0 0
      %282 = vmatprep.subr.bf16.mxu0 0
      %283 = vmatpush1.bf16.msra.mxu0 0
      %284 = vmatprep.subr.bf16.mxu0 0
      %285 = vmatpush1.bf16.msra.mxu0 %v213
      %286 = vmatprep.subr.bf16.mxu0 0
      %287 = vmatpush2.bf16.msra.mxu0 0
      %288 = vmatprep.subr.bf16.mxu0 0
      %289 = vmatpush2.bf16.msra.mxu0 0
      %290 = vmatprep.subr.bf16.mxu0 0
      %291 = vmatpush2.bf16.msra.mxu0 0
      %292 = vmatprep.subr.bf16.mxu0 0
      %293 = vmatpush2.bf16.msra.mxu0 0
      %294 = vmatprep.subr.bf16.mxu0 0
      %295 = vmatpush2.bf16.msra.mxu0 0
      %296 = vmatprep.subr.bf16.mxu0 0
      %297 = vmatpush2.bf16.msra.mxu0 0
      %298 = vmatprep.subr.bf16.mxu0 0
      %299 = vmatpush2.bf16.msra.mxu0 0
      %300 = vmatprep.subr.bf16.mxu0 0
      %301 = vmatpush2.bf16.msra.mxu0 0
      %302 = vmatprep.mubr.bf16.mxu0 0
      %303 = vmatmul.mubr.bf16.gmra.mxu0 %v268
      %v304 = vpop.f32.mrf.mxu0
      %v305 = vadd.f32 %v207, %v304
      %v306 = vpop.f32.mrf.mxu0
      %v307 = vpop.f32.mrf.mxu0
      %v308 = vpop.f32.mrf.mxu0
      %309 = vdwg.mxu0
      %v310 = vlaneseq
      %v311 = vshrl.u32 %v310, 7
      %v312 = vsub.s32 1, %v311
      %v313 = vrot.slane %v197, %v312
      %v314 = vmul.f32 %v305, %v313
      %v315 = vadd.f32 %v263, %v314
      %s316 = scalar_lea.vmem %s191, 16
      %v317 = vld [vmem:[%s316] sm:$0xff]
      %v318 = vpack.c.bf16 %v317, %v317
      %v320 = vsel %vm215, %v318, 0
      %322 = vmatprep.subr.bf16.mxu0 0
      %323 = vmatpush1.bf16.msra.mxu0 0
      %324 = vmatprep.subr.bf16.mxu0 0
      %325 = vmatpush1.bf16.msra.mxu0 0
      %326 = vmatprep.subr.bf16.mxu0 0
      %327 = vmatpush1.bf16.msra.mxu0 0
      %328 = vmatprep.subr.bf16.mxu0 0
      %329 = vmatpush1.bf16.msra.mxu0 0
      %330 = vmatprep.subr.bf16.mxu0 0
      %331 = vmatpush1.bf16.msra.mxu0 0
      %332 = vmatprep.subr.bf16.mxu0 0
      %333 = vmatpush1.bf16.msra.mxu0 0
      %334 = vmatprep.subr.bf16.mxu0 0
      %335 = vmatpush1.bf16.msra.mxu0 0
      %336 = vmatprep.subr.bf16.mxu0 0
      %337 = vmatpush1.bf16.msra.mxu0 %v213
      %338 = vmatprep.subr.bf16.mxu0 0
      %339 = vmatpush2.bf16.msra.mxu0 0
      %340 = vmatprep.subr.bf16.mxu0 0
      %341 = vmatpush2.bf16.msra.mxu0 0
      %342 = vmatprep.subr.bf16.mxu0 0
      %343 = vmatpush2.bf16.msra.mxu0 0
      %344 = vmatprep.subr.bf16.mxu0 0
      %345 = vmatpush2.bf16.msra.mxu0 0
      %346 = vmatprep.subr.bf16.mxu0 0
      %347 = vmatpush2.bf16.msra.mxu0 0
      %348 = vmatprep.subr.bf16.mxu0 0
      %349 = vmatpush2.bf16.msra.mxu0 0
      %350 = vmatprep.subr.bf16.mxu0 0
      %351 = vmatpush2.bf16.msra.mxu0 0
      %352 = vmatprep.subr.bf16.mxu0 0
      %353 = vmatpush2.bf16.msra.mxu0 0
      %354 = vmatprep.mubr.bf16.mxu0 0
      %355 = vmatmul.mubr.bf16.gmra.mxu0 %v320
      %v356 = vpop.f32.mrf.mxu0
      %v357 = vadd.f32 %v207, %v356
      %v358 = vpop.f32.mrf.mxu0
      %v359 = vpop.f32.mrf.mxu0
      %v360 = vpop.f32.mrf.mxu0
      %361 = vdwg.mxu0
      %v362 = vlaneseq
      %v363 = vshrl.u32 %v362, 7
      %v364 = vsub.s32 2, %v363
      %v365 = vrot.slane %v197, %v364
      %v366 = vmul.f32 %v357, %v365
      %v367 = vadd.f32 %v315, %v366
      %s368 = scalar_lea.vmem %s191, 24
      %v369 = vld [vmem:[%s368] sm:$0xff]
      %v370 = vpack.c.bf16 %v369, %v369
      %v372 = vsel %vm215, %v370, 0
      %374 = vmatprep.subr.bf16.mxu0 0
      %375 = vmatpush1.bf16.msra.mxu0 0
      %376 = vmatprep.subr.bf16.mxu0 0
      %377 = vmatpush1.bf16.msra.mxu0 0
      %378 = vmatprep.subr.bf16.mxu0 0
      %379 = vmatpush1.bf16.msra.mxu0 0
      %380 = vmatprep.subr.bf16.mxu0 0
      %381 = vmatpush1.bf16.msra.mxu0 0
      %382 = vmatprep.subr.bf16.mxu0 0
      %383 = vmatpush1.bf16.msra.mxu0 0
      %384 = vmatprep.subr.bf16.mxu0 0
      %385 = vmatpush1.bf16.msra.mxu0 0
      %386 = vmatprep.subr.bf16.mxu0 0
      %387 = vmatpush1.bf16.msra.mxu0 0
      %388 = vmatprep.subr.bf16.mxu0 0
      %389 = vmatpush1.bf16.msra.mxu0 %v213
      %390 = vmatprep.subr.bf16.mxu0 0
      %391 = vmatpush2.bf16.msra.mxu0 0
      %392 = vmatprep.subr.bf16.mxu0 0
      %393 = vmatpush2.bf16.msra.mxu0 0
      %394 = vmatprep.subr.bf16.mxu0 0
      %395 = vmatpush2.bf16.msra.mxu0 0
      %396 = vmatprep.subr.bf16.mxu0 0
      %397 = vmatpush2.bf16.msra.mxu0 0
      %398 = vmatprep.subr.bf16.mxu0 0
      %399 = vmatpush2.bf16.msra.mxu0 0
      %400 = vmatprep.subr.bf16.mxu0 0
      %401 = vmatpush2.bf16.msra.mxu0 0
      %402 = vmatprep.subr.bf16.mxu0 0
      %403 = vmatpush2.bf16.msra.mxu0 0
      %404 = vmatprep.subr.bf16.mxu0 0
      %405 = vmatpush2.bf16.msra.mxu0 0
      %406 = vmatprep.mubr.bf16.mxu0 0
      %407 = vmatmul.mubr.bf16.gmra.mxu0 %v372
      %v408 = vpop.f32.mrf.mxu0
      %v409 = vadd.f32 %v207, %v408
      %v410 = vpop.f32.mrf.mxu0
      %v411 = vpop.f32.mrf.mxu0
      %v412 = vpop.f32.mrf.mxu0
      %413 = vdwg.mxu0
      %v414 = vlaneseq
      %v415 = vshrl.u32 %v414, 7
      %v416 = vsub.s32 3, %v415
      %v417 = vrot.slane %v197, %v416
      %v418 = vmul.f32 %v409, %v417
      %v419 = vadd.f32 %v367, %v418
      %420 = vst.msk [vmem:[%s195] sm:$0xff] %vm215, %v419
      %p421 = scmp.lt.s32.totalorder %s15, 1
      %s422 = scalar_select %p421, %s15, 1
      %s423 = smul.addr %s422, 8
      %s424 = scalar_lea.vmem %s4, %s423
      // Predicated region
      $region37: #{model_forward.45} parent=35 // pred_check
        %p425 = pneg %p122
      $region38: #{model_forward.45} parent=35 // pred_check_branch
        %427 = sbr.rel (%p425) target = $region40
      $region39: #{model_forward.45} parent=35 // pred_region
        _
      $region40: #{model_forward.45} parent=35 // pred_fallthru
        _
    $region36: #{model_forward.45} parent=5 // pred_fallthru
      _
    %p428 = scmp.le.s32.totalorder 2, %s10
    // Predicated region
    $region41: #{model_forward.45} parent=5 // pred_check
      %p429 = pneg %p428
    $region42: #{model_forward.45} parent=5 // pred_check_branch
      %431 = sbr.rel (%p429) target = $region44
    $region43: #{model_forward.45} parent=5 // pred_region
      %s432 = ssub.s32 %s10, 2
      // Predicated region
      $region45: #{model_forward.45} parent=43 // pred_check
        %p433 = pneg %p128
      $region46: #{model_forward.45} parent=43 // pred_check_branch
        %435 = sbr.rel (%p433) target = $region48
      $region47: #{model_forward.45} parent=43 // pred_region
        %p436 = scmp.lt.s32.totalorder %s16, 1
        %s437 = scalar_select %p436, %s16, 1
        %s438 = smul.addr %s437, 8
        %s439 = scalar_lea.vmem %s4, %s438
      $region48: #{model_forward.45} parent=43 // pred_fallthru
        _
    $region44: #{model_forward.45} parent=5 // pred_fallthru
      _
  $region6: #{model_forward.45} parent=0 // loop_footer
    %s14 = sadd.s32 1, %s10
  $region7: #{model_forward.45} parent=0 // loop_footer_branch
    %9 = sbr.rel target = $region3
  $region8: #{model_forward.45} parent=0 // loop_exit
    _

// kernel: model_forward.44
$region0: #{model_forward.44}
  #allocation0 [shape = 'u32[]', space=smem, size = 0x4, offset = 0x4, fixed_abs, tag = 'smem constant byte address 0x4 - core index']
  #allocation1 [shape = 'u32[144,128]{1,0:T(1,128)}', space=vmem, size = 0x12000, scoped, tag = 'internal scratch']
  %s0 = inlined_call_operand.vmem [shape: f32[2,32,24], index: 0, kind: input, shape index: {}]
  %s1 = inlined_call_operand.vmem [shape: bf16[24,64], index: 1, kind: input, shape index: {}]
  %s2 = inlined_call_operand.vmem [shape: f32[1,64], index: 2, kind: input, shape index: {}]
  %s3 = inlined_call_operand.vmem [shape: bf16[64,64], index: 3, kind: input, shape index: {}]
  %s4 = inlined_call_operand.vmem [shape: f32[1,64], index: 4, kind: input, shape index: {}]
  %s5 = inlined_call_operand.vmem [shape: bf16[64,16], index: 5, kind: input, shape index: {}]
  %s6 = inlined_call_operand.vmem [shape: f32[1,16], index: 6, kind: input, shape index: {}]
  %s7 = inlined_call_operand.vmem [shape: f32[2,32,16], index: 7, kind: output, shape index: {}]
  %s8 = sld [smem:[#allocation0]]
  $region61: #{model_forward.44} parent=0
    _
  %s10 = ssub.s32 1, %s8
  %s11 = scalar_select 0, %s10, %s8
  loop: start=0, step=1, limit=4
  $region2: #{model_forward.44} parent=0 // loop_pre_header
    _
  $region3: #{model_forward.44} parent=0 // loop_header
    %s13 = sphi 0, %s17
    %p14 = scmp.ge.s32.totalorder %s13, 4
    %s23 = sphi 0, %s25
    %s26 = sphi 0, %s23
    %s27 = sphi 0, %s26
    %s43 = sphi 0, %s27
    %s47 = sphi 0, %s47
    %s49 = sphi 0, %s47
    %s50 = sphi 0, %s49
    %s64 = sphi 0, %s50
    %s68 = sphi 0, %s68
    %s70 = sphi 0, %s68
    %s71 = sphi 0, %s70
    %s85 = sphi 0, %s71
    %s89 = sphi 0, %s89
    %s91 = sphi 0, %s89
    %s92 = sphi 0, %s91
    %s106 = sphi 0, %s92
    %s110 = sphi 0, %s110
    %s112 = sphi 0, %s110
    %s113 = sphi 0, %s112
    %s127 = sphi 0, %s113
    %s131 = sphi 0, %s131
    %s133 = sphi 0, %s131
    %s134 = sphi 0, %s133
    %s148 = sphi 0, %s134
    %s152 = sphi 0, %s152
    %s154 = sphi 0, %s152
    %s155 = sphi 0, %s154
    %s169 = sphi 0, %s155
    %s175 = sphi 0, %s177
    %s178 = sphi 0, %s175
    %s179 = sphi 0, %s178
    %s195 = sphi 0, %s179
  $region4: #{model_forward.44} parent=0 // loop_header_branch
    %16 = sbr.rel (%p14) target = $region8
  $region5: #{model_forward.44} parent=0 // loop_body
    %s18 = ssub.s32 %s13, 1
    %s19 = ssub.s32 %s13, 2
    %s20 = sadd.s32 %s13, 1
    %s21 = ssub.s32 %s13, %s20
    %p22 = scmp.eq.s32.totalorder %s21, 0
    %s24 = sadd.s32 %s23, 1
    %s25 = scalar_select %p22, %s23, %s24
    %p28 = pneg %p22
    %p29 = scmp.eq.s32.totalorder %s13, 1
    %p30 = por %p28, %p29
    %p31 = scmp.ne.s32.totalorder %s23, %s26
    %p32 = scmp.eq.s32.totalorder %s13, 0
    %p33 = por %p31, %p32
    %p34 = scmp.ne.s32.totalorder %s23, %s26
    %p35 = scmp.eq.s32.totalorder %s18, 1
    %p36 = por %p34, %p35
    %p37 = scmp.ne.s32.totalorder %s26, %s27
    %p38 = scmp.eq.s32.totalorder %s18, 0
    %p39 = por %p37, %p38
    %p40 = scmp.ne.s32.totalorder %s26, %s27
    %p41 = scmp.eq.s32.totalorder %s19, 1
    %p42 = por %p40, %p41
    %p44 = scmp.ne.s32.totalorder %s27, %s43
    %p45 = scmp.eq.s32.totalorder %s19, 0
    %p46 = por %p44, %p45
    %s48 = sadd.s32 %s47, 1
    %p51 = scmp.eq.s32.totalorder %s13, 1
    %p52 = scmp.ne.s32.totalorder %s47, %s49
    %p53 = scmp.eq.s32.totalorder %s13, 0
    %p54 = por %p52, %p53
    %p55 = scmp.ne.s32.totalorder %s47, %s49
    %p56 = scmp.eq.s32.totalorder %s18, 1
    %p57 = por %p55, %p56
    %p58 = scmp.ne.s32.totalorder %s49, %s50
    %p59 = scmp.eq.s32.totalorder %s18, 0
    %p60 = por %p58, %p59
    %p61 = scmp.ne.s32.totalorder %s49, %s50
    %p62 = scmp.eq.s32.totalorder %s19, 1
    %p63 = por %p61, %p62
    %p65 = scmp.ne.s32.totalorder %s50, %s64
    %p66 = scmp.eq.s32.totalorder %s19, 0
    %p67 = por %p65, %p66
    %s69 = sadd.s32 %s68, 1
    %p72 = scmp.eq.s32.totalorder %s13, 1
    %p73 = scmp.ne.s32.totalorder %s68, %s70
    %p74 = scmp.eq.s32.totalorder %s13, 0
    %p75 = por %p73, %p74
    %p76 = scmp.ne.s32.totalorder %s68, %s70
    %p77 = scmp.eq.s32.totalorder %s18, 1
    %p78 = por %p76, %p77
    %p79 = scmp.ne.s32.totalorder %s70, %s71
    %p80 = scmp.eq.s32.totalorder %s18, 0
    %p81 = por %p79, %p80
    %p82 = scmp.ne.s32.totalorder %s70, %s71
    %p83 = scmp.eq.s32.totalorder %s19, 1
    %p84 = por %p82, %p83
    %p86 = scmp.ne.s32.totalorder %s71, %s85
    %p87 = scmp.eq.s32.totalorder %s19, 0
    %p88 = por %p86, %p87
    %s90 = sadd.s32 %s89, 1
    %p93 = scmp.eq.s32.totalorder %s13, 1
    %p94 = scmp.ne.s32.totalorder %s89, %s91
    %p95 = scmp.eq.s32.totalorder %s13, 0
    %p96 = por %p94, %p95
    %p97 = scmp.ne.s32.totalorder %s89, %s91
    %p98 = scmp.eq.s32.totalorder %s18, 1
    %p99 = por %p97, %p98
    %p100 = scmp.ne.s32.totalorder %s91, %s92
    %p101 = scmp.eq.s32.totalorder %s18, 0
    %p102 = por %p100, %p101
    %p103 = scmp.ne.s32.totalorder %s91, %s92
    %p104 = scmp.eq.s32.totalorder %s19, 1
    %p105 = por %p103, %p104
    %p107 = scmp.ne.s32.totalorder %s92, %s106
    %p108 = scmp.eq.s32.totalorder %s19, 0
    %p109 = por %p107, %p108
    %s111 = sadd.s32 %s110, 1
    %p114 = scmp.eq.s32.totalorder %s13, 1
    %p115 = scmp.ne.s32.totalorder %s110, %s112
    %p116 = scmp.eq.s32.totalorder %s13, 0
    %p117 = por %p115, %p116
    %p118 = scmp.ne.s32.totalorder %s110, %s112
    %p119 = scmp.eq.s32.totalorder %s18, 1
    %p120 = por %p118, %p119
    %p121 = scmp.ne.s32.totalorder %s112, %s113
    %p122 = scmp.eq.s32.totalorder %s18, 0
    %p123 = por %p121, %p122
    %p124 = scmp.ne.s32.totalorder %s112, %s113
    %p125 = scmp.eq.s32.totalorder %s19, 1
    %p126 = por %p124, %p125
    %p128 = scmp.ne.s32.totalorder %s113, %s127
    %p129 = scmp.eq.s32.totalorder %s19, 0
    %p130 = por %p128, %p129
    %s132 = sadd.s32 %s131, 1
    %p135 = scmp.eq.s32.totalorder %s13, 1
    %p136 = scmp.ne.s32.totalorder %s131, %s133
    %p137 = scmp.eq.s32.totalorder %s13, 0
    %p138 = por %p136, %p137
    %p139 = scmp.ne.s32.totalorder %s131, %s133
    %p140 = scmp.eq.s32.totalorder %s18, 1
    %p141 = por %p139, %p140
    %p142 = scmp.ne.s32.totalorder %s133, %s134
    %p143 = scmp.eq.s32.totalorder %s18, 0
    %p144 = por %p142, %p143
    %p145 = scmp.ne.s32.totalorder %s133, %s134
    %p146 = scmp.eq.s32.totalorder %s19, 1
    %p147 = por %p145, %p146
    %p149 = scmp.ne.s32.totalorder %s134, %s148
    %p150 = scmp.eq.s32.totalorder %s19, 0
    %p151 = por %p149, %p150
    %s153 = sadd.s32 %s152, 1
    %p156 = scmp.eq.s32.totalorder %s13, 1
    %p157 = scmp.ne.s32.totalorder %s152, %s154
    %p158 = scmp.eq.s32.totalorder %s13, 0
    %p159 = por %p157, %p158
    %p160 = scmp.ne.s32.totalorder %s152, %s154
    %p161 = scmp.eq.s32.totalorder %s18, 1
    %p162 = por %p160, %p161
    %p163 = scmp.ne.s32.totalorder %s154, %s155
    %p164 = scmp.eq.s32.totalorder %s18, 0
    %p165 = por %p163, %p164
    %p166 = scmp.ne.s32.totalorder %s154, %s155
    %p167 = scmp.eq.s32.totalorder %s19, 1
    %p168 = por %p166, %p167
    %p170 = scmp.ne.s32.totalorder %s155, %s169
    %p171 = scmp.eq.s32.totalorder %s19, 0
    %p172 = por %p170, %p171
    %s173 = ssub.s32 %s13, %s20
    %p174 = scmp.eq.s32.totalorder %s173, 0
    %s176 = sadd.s32 %s175, 1
    %s177 = scalar_select %p174, %s175, %s176
    %p180 = pneg %p174
    %p181 = scmp.eq.s32.totalorder %s13, 1
    %p182 = por %p180, %p181
    %p183 = scmp.ne.s32.totalorder %s175, %s178
    %p184 = scmp.eq.s32.totalorder %s13, 0
    %p185 = por %p183, %p184
    %p186 = scmp.ne.s32.totalorder %s175, %s178
    %p187 = scmp.eq.s32.totalorder %s18, 1
    %p188 = por %p186, %p187
    %p189 = scmp.ne.s32.totalorder %s178, %s179
    %p190 = scmp.eq.s32.totalorder %s18, 0
    %p191 = por %p189, %p190
    %p192 = scmp.ne.s32.totalorder %s178, %s179
    %p193 = scmp.eq.s32.totalorder %s19, 1
    %p194 = por %p192, %p193
    %p196 = scmp.ne.s32.totalorder %s179, %s195
    %p197 = scmp.eq.s32.totalorder %s19, 0
    %p198 = por %p196, %p197
    %p199 = scmp.le.s32.totalorder 1, %s13
    %p200 = scmp.lt.s32.totalorder %s13, 3
    %p201 = pnand %p199, %p200
    %p202 = pneg %p201
    // Predicated region
    $region9: #{model_forward.44} parent=5 // pred_check
      _
    $region10: #{model_forward.44} parent=5 // pred_check_branch
      %204 = sbr.rel (%p201) target = $region12
    $region11: #{model_forward.44} parent=5 // pred_region
      %s205 = ssub.s32 %s13, 1
      // Predicated region
      $region13: #{model_forward.44} parent=11 // pred_check
        %p206 = pneg %p60
      $region14: #{model_forward.44} parent=11 // pred_check_branch
        %208 = sbr.rel (%p206) target = $region16
      $region15: #{model_forward.44} parent=11 // pred_region
        _
      $region16: #{model_forward.44} parent=11 // pred_fallthru
        _
      // Predicated region
      $region17: #{model_forward.44} parent=11 // pred_check
        %p209 = pneg %p81
      $region18: #{model_forward.44} parent=11 // pred_check_branch
        %211 = sbr.rel (%p209) target = $region20
      $region19: #{model_forward.44} parent=11 // pred_region
        _
      $region20: #{model_forward.44} parent=11 // pred_fallthru
        _
      // Predicated region
      $region21: #{model_forward.44} parent=11 // pred_check
        %p212 = pneg %p102
      $region22: #{model_forward.44} parent=11 // pred_check_branch
        %214 = sbr.rel (%p212) target = $region24
      $region23: #{model_forward.44} parent=11 // pred_region
        _
      $region24: #{model_forward.44} parent=11 // pred_fallthru
        _
      // Predicated region
      $region25: #{model_forward.44} parent=11 // pred_check
        %p215 = pneg %p123
      $region26: #{model_forward.44} parent=11 // pred_check_branch
        %217 = sbr.rel (%p215) target = $region28
      $region27: #{model_forward.44} parent=11 // pred_region
        _
      $region28: #{model_forward.44} parent=11 // pred_fallthru
        _
      // Predicated region
      $region29: #{model_forward.44} parent=11 // pred_check
        %p218 = pneg %p144
      $region30: #{model_forward.44} parent=11 // pred_check_branch
        %220 = sbr.rel (%p218) target = $region32
      $region31: #{model_forward.44} parent=11 // pred_region
        _
      $region32: #{model_forward.44} parent=11 // pred_fallthru
        _
      // Predicated region
      $region33: #{model_forward.44} parent=11 // pred_check
        %p221 = pneg %p165
      $region34: #{model_forward.44} parent=11 // pred_check_branch
        %223 = sbr.rel (%p221) target = $region36
      $region35: #{model_forward.44} parent=11 // pred_region
        _
      $region36: #{model_forward.44} parent=11 // pred_fallthru
        _
    $region12: #{model_forward.44} parent=5 // pred_fallthru
      _
    %p224 = scmp.lt.s32.totalorder %s13, 2
    // Predicated region
    $region37: #{model_forward.44} parent=5 // pred_check
      %p225 = pneg %p224
    $region38: #{model_forward.44} parent=5 // pred_check_branch
      %227 = sbr.rel (%p225) target = $region40
    $region39: #{model_forward.44} parent=5 // pred_region
      // Predicated region
      $region41: #{model_forward.44} parent=39 // pred_check
        %p228 = pneg %p33
      $region42: #{model_forward.44} parent=39 // pred_check_branch
        %230 = sbr.rel (%p228) target = $region44
      $region43: #{model_forward.44} parent=39 // pred_region
        %p231 = scmp.lt.s32.totalorder %s13, 1
        %s232 = scalar_select %p231, %s13, 1
        %s233 = smul.addr %s232, 4
        %s234 = smul.addr %s233, 8
        %s235 = scalar_lea.vmem %s0, %s234
      $region44: #{model_forward.44} parent=39 // pred_fallthru
        _
    $region40: #{model_forward.44} parent=5 // pred_fallthru
      _
    %p236 = scmp.le.s32.totalorder 1, %s13
    %p237 = scmp.lt.s32.totalorder %s13, 3
    %p238 = pnand %p236, %p237
    %p239 = pneg %p238
    // Predicated region
    $region45: #{model_forward.44} parent=5 // pred_check
      _
    $region46: #{model_forward.44} parent=5 // pred_check_branch
      %241 = sbr.rel (%p238) target = $region48
    $region47: #{model_forward.44} parent=5 // pred_region
      %s242 = ssub.s32 %s13, 1
      %p243 = scmp.lt.s32.totalorder %s18, 1
      %s244 = scalar_select %p243, %s18, 1
      %s245 = smul.addr %s244, 4
      %s246 = smul.addr %s245, 8
      %s247 = scalar_lea.vmem %s0, %s246
      %p248 = pneg %p39
      %p249 = pneg %p36
      %p250 = pneg %p60
      %p251 = pneg %p57
      %p252 = pneg %p81
      %p253 = pneg %p78
      %p254 = pneg %p102
      %p255 = pneg %p99
      %p256 = pneg %p123
      %p257 = pneg %p120
      %p258 = pneg %p144
      %p259 = pneg %p141
      %p260 = pneg %p165
      %p261 = pneg %p162
      %p262 = pneg %p191
      %p263 = pneg %p188
      %p264 = scmp.lt.s32.totalorder %s18, 1
      %s265 = scalar_select %p264, %s18, 1
      %s266 = smul.addr %s265, 4
      %s267 = smul.addr %s266, 8
      %s268 = scalar_lea.vmem %s7, %s267
      %p269 = scmp.lt.s32.totalorder %s18, 1
      %s270 = scalar_select %p269, %s18, 1
      %s271 = smul.addr %s270, 4
      %s272 = smul.addr %s271, 8
      %s273 = scalar_lea.vmem %s0, %s272
      %p274 = scmp.lt.s32.totalorder %s18, 1
      %s275 = scalar_select %p274, %s18, 1
      %s276 = smul.addr %s275, 4
      %s277 = smul.addr %s276, 8
      %s278 = scalar_lea.vmem %s7, %s277
      %v280 = vld [vmem:[%s273] sm:$0xff]
      %v281 = vld [vmem:[%s273 + $0x8] sm:$0xff]
      %v282 = vld [vmem:[%s273 + $0x10] sm:$0xff]
      %v283 = vld [vmem:[%s273 + $0x18] sm:$0xff]
      %v284 = vpack.c.bf16 %v281, %v280
      %v285 = vpack.c.bf16 %v283, %v282
      %v286 = vld [vmem:[%s1] sm:$0xf]
      %v287 = vld [vmem:[%s1 + $0x4] sm:$0xf]
      %v288 = vld [vmem:[%s1 + $0x8] sm:$0xf]
      %v289 = vld [vmem:[%s2] sm:$0x1]
      %v291 = vlaneseq
      %v292 = vshrl.u32 %v291, 7
      %v293 = vsub.s32 0, %v292
      %v294 = vrot.slane %v289, %v293
      %v299 = vunpack.c.l.b16 %v286
      %v300 = vunpack.c.l.b16 %v287
      %v301 = vunpack.c.l.b16 %v288
      %v302 = vpack.c.b16 %v300, %v299
      %v303 = vpack.c.b16 %v301, %v301
      %vm305 = vcmask 195584
      %v307 = vsel %vm305, %v284, 0
      %v310 = vsel %vm305, %v285, 0
      %vm312 = vcmask 1043456
      %v314 = vsel %vm312, %v303, 0
      %316 = vmatprep.subr.bf16.mxu0 0
      %317 = vmatpush1.bf16.msra.mxu0 0
      %318 = vmatprep.subr.bf16.mxu0 0
      %319 = vmatpush1.bf16.msra.mxu0 0
      %320 = vmatprep.subr.bf16.mxu0 0
      %321 = vmatpush1.bf16.msra.mxu0 0
      %322 = vmatprep.subr.bf16.mxu0 0
      %323 = vmatpush1.bf16.msra.mxu0 0
      %324 = vmatprep.subr.bf16.mxu0 0
      %325 = vmatpush1.bf16.msra.mxu0 0
      %326 = vmatprep.subr.bf16.mxu0 0
      %327 = vmatpush1.bf16.msra.mxu0 0
      %328 = vmatprep.subr.bf16.mxu0 0
      %329 = vmatpush1.bf16.msra.mxu0 %v314
      %330 = vmatprep.subr.bf16.mxu0 0
      %331 = vmatpush1.bf16.msra.mxu0 %v302
      %332 = vmatprep.subr.bf16.mxu0 0
      %333 = vmatpush2.bf16.msra.mxu0 0
      %334 = vmatprep.subr.bf16.mxu0 0
      %335 = vmatpush2.bf16.msra.mxu0 0
      %336 = vmatprep.subr.bf16.mxu0 0
      %337 = vmatpush2.bf16.msra.mxu0 0
      %338 = vmatprep.subr.bf16.mxu0 0
      %339 = vmatpush2.bf16.msra.mxu0 0
      %340 = vmatprep.subr.bf16.mxu0 0
      %341 = vmatpush2.bf16.msra.mxu0 0
      %342 = vmatprep.subr.bf16.mxu0 0
      %343 = vmatpush2.bf16.msra.mxu0 0
      %344 = vmatprep.subr.bf16.mxu0 0
      %345 = vmatpush2.bf16.msra.mxu0 0
      %346 = vmatprep.subr.bf16.mxu0 0
      %347 = vmatpush2.bf16.msra.mxu0 0
      %348 = vmatprep.mubr.bf16.mxu0 0
      %349 = vmatmul.mubr.bf16.gmra.mxu0 %v307
      %v350 = vpop.f32.mrf.mxu0
      %v351 = vadd.f32 %v294, %v350
      %v352 = vpop.f32.mrf.mxu0
      %v353 = vpop.f32.mrf.mxu0
      %v354 = vadd.f32 %v294, %v353
      %v355 = vpop.f32.mrf.mxu0
      %356 = vmatprep.mubr.bf16.mxu0 0
      %357 = vmatmul.mubr.bf16.gmra.mxu0 %v310
      %v358 = vpop.f32.mrf.mxu0
      %v359 = vadd.f32 %v294, %v358
      %v360 = vpop.f32.mrf.mxu0
      %v361 = vpop.f32.mrf.mxu0
      %v362 = vadd.f32 %v294, %v361
      %v363 = vpop.f32.mrf.mxu0
      %364 = vdwg.mxu0
      %v365 = vpack.c.bf16 %v354, %v351
      %v366 = vpack.c.bf16 %v362, %v359
      %v367 = vld [vmem:[%s3] sm:$0xf]
      %v368 = vld [vmem:[%s3 + $0x4] sm:$0xf]
      %v369 = vld [vmem:[%s3 + $0x8] sm:$0xf]
      %v370 = vld [vmem:[%s3 + $0xc] sm:$0xf]
      %v371 = vld [vmem:[%s3 + $0x10] sm:$0xf]
      %v372 = vld [vmem:[%s3 + $0x14] sm:$0xf]
      %v373 = vld [vmem:[%s3 + $0x18] sm:$0xf]
      %v374 = vld [vmem:[%s3 + $0x1c] sm:$0xf]
      %v375 = vld [vmem:[%s4] sm:$0x1]
      %v377 = vlaneseq
      %v378 = vshrl.u32 %v377, 7
      %v379 = vsub.s32 0, %v378
      %v380 = vrot.slane %v375, %v379
      %v390 = vunpack.c.l.b16 %v367
      %v391 = vunpack.c.l.b16 %v368
      %v392 = vunpack.c.l.b16 %v369
      %v393 = vunpack.c.l.b16 %v370
      %v394 = vunpack.c.l.b16 %v371
      %v395 = vunpack.c.l.b16 %v372
      %v396 = vunpack.c.l.b16 %v373
      %v397 = vunpack.c.l.b16 %v374
      %v398 = vpack.c.b16 %v391, %v390
      %v399 = vpack.c.b16 %v393, %v392
      %v400 = vpack.c.b16 %v395, %v394
      %v401 = vpack.c.b16 %v397, %v396
      %vm406 = vcmask 523264
      %v408 = vsel %vm406, %v365, 0
      %v411 = vsel %vm406, %v366, 0
      %413 = vmatprep.subr.bf16.mxu0 0
      %414 = vmatpush1.bf16.msra.mxu0 0
      %415 = vmatprep.subr.bf16.mxu0 0
      %416 = vmatpush1.bf16.msra.mxu0 0
      %417 = vmatprep.subr.bf16.mxu0 0
      %418 = vmatpush1.bf16.msra.mxu0 0
      %419 = vmatprep.subr.bf16.mxu0 0
      %420 = vmatpush1.bf16.msra.mxu0 0
      %421 = vmatprep.subr.bf16.mxu0 0
      %422 = vmatpush1.bf16.msra.mxu0 %v401
      %423 = vmatprep.subr.bf16.mxu0 0
      %424 = vmatpush1.bf16.msra.mxu0 %v400
      %425 = vmatprep.subr.bf16.mxu0 0
      %426 = vmatpush1.bf16.msra.mxu0 %v399
      %427 = vmatprep.subr.bf16.mxu0 0
      %428 = vmatpush1.bf16.msra.mxu0 %v398
      %429 = vmatprep.subr.bf16.mxu0 0
      %430 = vmatpush2.bf16.msra.mxu0 0
      %431 = vmatprep.subr.bf16.mxu0 0
      %432 = vmatpush2.bf16.msra.mxu0 0
      %433 = vmatprep.subr.bf16.mxu0 0
      %434 = vmatpush2.bf16.msra.mxu0 0
      %435 = vmatprep.subr.bf16.mxu0 0
      %436 = vmatpush2.bf16.msra.mxu0 0
      %437 = vmatprep.subr.bf16.mxu0 0
      %438 = vmatpush2.bf16.msra.mxu0 0
      %439 = vmatprep.subr.bf16.mxu0 0
      %440 = vmatpush2.bf16.msra.mxu0 0
      %441 = vmatprep.subr.bf16.mxu0 0
      %442 = vmatpush2.bf16.msra.mxu0 0
      %443 = vmatprep.subr.bf16.mxu0 0
      %444 = vmatpush2.bf16.msra.mxu0 0
      %445 = vmatprep.mubr.bf16.mxu0 0
      %446 = vmatmul.mubr.bf16.gmra.mxu0 %v408
      %v447 = vpop.f32.mrf.mxu0
      %v448 = vadd.f32 %v380, %v447
      %v449 = vpop.f32.mrf.mxu0
      %v450 = vpop.f32.mrf.mxu0
      %v451 = vadd.f32 %v380, %v450
      %v452 = vpop.f32.mrf.mxu0
      %453 = vmatprep.mubr.bf16.mxu0 0
      %454 = vmatmul.mubr.bf16.gmra.mxu0 %v411
      %v455 = vpop.f32.mrf.mxu0
      %v456 = vadd.f32 %v380, %v455
      %v457 = vpop.f32.mrf.mxu0
      %v458 = vpop.f32.mrf.mxu0
      %v459 = vadd.f32 %v380, %v458
      %v460 = vpop.f32.mrf.mxu0
      %461 = vdwg.mxu0
      %v462 = vmul.f32 %v448, 0.5
      %v463 = vmul.f32 %v451, 0.5
      %v464 = vmul.f32 %v456, 0.5
      %v465 = vmul.f32 %v459, 0.5
      %v466 = vmul.f32 %v448, 0.70710677
      %v467 = vmul.f32 %v451, 0.70710677
      %v468 = vmul.f32 %v456, 0.70710677
      %v469 = vmul.f32 %v459, 0.70710677
      %vm470 = vcmp.lt.f32.partialorder %v466, 0.0
      %vm471 = vcmp.lt.f32.partialorder %v467, 0.0
      %vm472 = vcmp.lt.f32.partialorder %v468, 0.0
      %vm473 = vcmp.lt.f32.partialorder %v469, 0.0
      %v474 = vsel %vm470, -1.0, 1.0
      %v475 = vsel %vm471, -1.0, 1.0
      %v476 = vsel %vm472, -1.0, 1.0
      %v477 = vsel %vm473, -1.0, 1.0
      %v478 = vand.u32 2147483647, %v466
      %v479 = vand.u32 2147483647, %v467
      %v480 = vand.u32 2147483647, %v468
      %v481 = vand.u32 2147483647, %v469
      %v482 = vmul.f32 %v478, 0.3275911
      %v483 = vmul.f32 %v479, 0.3275911
      %v484 = vmul.f32 %v480, 0.3275911
      %v485 = vmul.f32 %v481, 0.3275911
      %v486 = vadd.f32 %v482, 1.0
      %v487 = vadd.f32 %v483, 1.0
      %v488 = vadd.f32 %v484, 1.0
      %v489 = vadd.f32 %v485, 1.0
      %v490 = vrcp.pop %v486
      %v491 = vmul.f32 1.0, %v490
      %v492 = vrcp.pop %v487
      %v493 = vmul.f32 1.0, %v492
      %v494 = vrcp.pop %v488
      %v495 = vmul.f32 1.0, %v494
      %v496 = vrcp.pop %v489
      %v497 = vmul.f32 1.0, %v496
      %v498 = vmul.f32 %v491, 1.0614054
      %v499 = vmul.f32 %v493, 1.0614054
      %v500 = vmul.f32 %v495, 1.0614054
      %v501 = vmul.f32 %v497, 1.0614054
      %v502 = vadd.f32 %v498, -1.4531521
      %v503 = vadd.f32 %v499, -1.4531521
      %v504 = vadd.f32 %v500, -1.4531521
      %v505 = vadd.f32 %v501, -1.4531521
      %v506 = vmul.f32 %v502, %v491
      %v507 = vmul.f32 %v503, %v493
      %v508 = vmul.f32 %v504, %v495
      %v509 = vmul.f32 %v505, %v497
      %v510 = vadd.f32 %v506, 1.4214138
      %v511 = vadd.f32 %v507, 1.4214138
      %v512 = vadd.f32 %v508, 1.4214138
      %v513 = vadd.f32 %v509, 1.4214138
      %v514 = vmul.f32 %v510, %v491
      %v515 = vmul.f32 %v511, %v493
      %v516 = vmul.f32 %v512, %v495
      %v517 = vmul.f32 %v513, %v497
      %v518 = vadd.f32 %v514, -0.28449672
      %v519 = vadd.f32 %v515, -0.28449672
      %v520 = vadd.f32 %v516, -0.28449672
      %v521 = vadd.f32 %v517, -0.28449672
      %v522 = vmul.f32 %v518, %v491
      %v523 = vmul.f32 %v519, %v493
      %v524 = vmul.f32 %v520, %v495
      %v525 = vmul.f32 %v521, %v497
      %v526 = vadd.f32 %v522, 0.2548296
      %v527 = vadd.f32 %v523, 0.2548296
      %v528 = vadd.f32 %v524, 0.2548296
      %v529 = vadd.f32 %v525, 0.2548296
      %v530 = vmul.f32 %v526, %v491
      %v531 = vmul.f32 %v527, %v493
      %v532 = vmul.f32 %v528, %v495
      %v533 = vmul.f32 %v529, %v497
      %v534 = vsub.f32 0.0, %v478
      %v535 = vsub.f32 0.0, %v479
      %v536 = vsub.f32 0.0, %v480
      %v537 = vsub.f32 0.0, %v481
      %v538 = vmul.f32 %v534, %v478
      %v539 = vmul.f32 %v535, %v479
      %v540 = vmul.f32 %v536, %v480
      %v541 = vmul.f32 %v537, %v481
      %v542 = vmul.f32 %v538, 1.442695
      %v543 = vpow.pop %v542
      %v544 = vmul.f32 %v539, 1.442695
      %v545 = vpow.pop %v544
      %v546 = vmul.f32 %v540, 1.442695
      %v547 = vpow.pop %v546
      %v548 = vmul.f32 %v541, 1.442695
      %v549 = vpow.pop %v548
      %v550 = vmul.f32 %v530, %v543
      %v551 = vmul.f32 %v531, %v545
      %v552 = vmul.f32 %v532, %v547
      %v553 = vmul.f32 %v533, %v549
      %v554 = vsub.f32 1.0, %v550
      %v555 = vsub.f32 1.0, %v551
      %v556 = vsub.f32 1.0, %v552
      %v557 = vsub.f32 1.0, %v553
      %v558 = vmul.f32 %v474, %v554
      %v559 = vmul.f32 %v475, %v555
      %v560 = vmul.f32 %v476, %v556
      %v561 = vmul.f32 %v477, %v557
      %v562 = vadd.f32 %v558, 1.0
      %v563 = vadd.f32 %v559, 1.0
      %v564 = vadd.f32 %v560, 1.0
      %v565 = vadd.f32 %v561, 1.0
      %v566 = vmul.f32 %v462, %v562
      %v567 = vmul.f32 %v463, %v563
      %v568 = vmul.f32 %v464, %v564
      %v569 = vmul.f32 %v465, %v565
      %v570 = vpack.c.bf16 %v567, %v566
      %v571 = vpack.c.bf16 %v569, %v568
      %v572 = vld [vmem:[%s5] sm:$0xf]
      %v573 = vld [vmem:[%s5 + $0x4] sm:$0xf]
      %v574 = vld [vmem:[%s5 + $0x8] sm:$0xf]
      %v575 = vld [vmem:[%s5 + $0xc] sm:$0xf]
      %v576 = vld [vmem:[%s5 + $0x10] sm:$0xf]
      %v577 = vld [vmem:[%s5 + $0x14] sm:$0xf]
      %v578 = vld [vmem:[%s5 + $0x18] sm:$0xf]
      %v579 = vld [vmem:[%s5 + $0x1c] sm:$0xf]
      %v580 = vld [vmem:[%s6] sm:$0x1]
      %v582 = vlaneseq
      %v583 = vshrl.u32 %v582, 7
      %v584 = vsub.s32 0, %v583
      %v585 = vrot.slane %v580, %v584
      %v595 = vunpack.c.l.b16 %v572
      %v596 = vunpack.c.l.b16 %v573
      %v597 = vunpack.c.l.b16 %v574
      %v598 = vunpack.c.l.b16 %v575
      %v599 = vunpack.c.l.b16 %v576
      %v600 = vunpack.c.l.b16 %v577
      %v601 = vunpack.c.l.b16 %v578
      %v602 = vunpack.c.l.b16 %v579
      %v603 = vpack.c.b16 %v596, %v595
      %v604 = vpack.c.b16 %v598, %v597
      %v605 = vpack.c.b16 %v600, %v599
      %v606 = vpack.c.b16 %v602, %v601
      %v612 = vsel %vm406, %v570, 0
      %v615 = vsel %vm406, %v571, 0
      %617 = vmatprep.subr.bf16.mxu0 0
      %618 = vmatpush1.bf16.msra.mxu0 0
      %619 = vmatprep.subr.bf16.mxu0 0
      %620 = vmatpush1.bf16.msra.mxu0 0
      %621 = vmatprep.subr.bf16.mxu0 0
      %622 = vmatpush1.bf16.msra.mxu0 0
      %623 = vmatprep.subr.bf16.mxu0 0
      %624 = vmatpush1.bf16.msra.mxu0 0
      %625 = vmatprep.subr.bf16.mxu0 0
      %626 = vmatpush1.bf16.msra.mxu0 %v606
      %627 = vmatprep.subr.bf16.mxu0 0
      %628 = vmatpush1.bf16.msra.mxu0 %v605
      %629 = vmatprep.subr.bf16.mxu0 0
      %630 = vmatpush1.bf16.msra.mxu0 %v604
      %631 = vmatprep.subr.bf16.mxu0 0
      %632 = vmatpush1.bf16.msra.mxu0 %v603
      %633 = vmatprep.subr.bf16.mxu0 0
      %634 = vmatpush2.bf16.msra.mxu0 0
      %635 = vmatprep.subr.bf16.mxu0 0
      %636 = vmatpush2.bf16.msra.mxu0 0
      %637 = vmatprep.subr.bf16.mxu0 0
      %638 = vmatpush2.bf16.msra.mxu0 0
      %639 = vmatprep.subr.bf16.mxu0 0
      %640 = vmatpush2.bf16.msra.mxu0 0
      %641 = vmatprep.subr.bf16.mxu0 0
      %642 = vmatpush2.bf16.msra.mxu0 0
      %643 = vmatprep.subr.bf16.mxu0 0
      %644 = vmatpush2.bf16.msra.mxu0 0
      %645 = vmatprep.subr.bf16.mxu0 0
      %646 = vmatpush2.bf16.msra.mxu0 0
      %647 = vmatprep.subr.bf16.mxu0 0
      %648 = vmatpush2.bf16.msra.mxu0 0
      %649 = vmatprep.mubr.bf16.mxu0 0
      %650 = vmatmul.mubr.bf16.gmra.mxu0 %v612
      %v651 = vpop.f32.mrf.mxu0
      %v652 = vadd.f32 %v585, %v651
      %v653 = vpop.f32.mrf.mxu0
      %v654 = vpop.f32.mrf.mxu0
      %v655 = vadd.f32 %v585, %v654
      %v656 = vpop.f32.mrf.mxu0
      %657 = vmatprep.mubr.bf16.mxu0 0
      %658 = vmatmul.mubr.bf16.gmra.mxu0 %v615
      %v659 = vpop.f32.mrf.mxu0
      %v660 = vadd.f32 %v585, %v659
      %v661 = vpop.f32.mrf.mxu0
      %v662 = vpop.f32.mrf.mxu0
      %v663 = vadd.f32 %v585, %v662
      %v664 = vpop.f32.mrf.mxu0
      %665 = vdwg.mxu0
      %vm666 = vcmask 130048
      %667 = vst.msk [vmem:[%s278] sm:$0xff] %vm666, %v652
      %668 = vst.msk [vmem:[%s278 + $0x8] sm:$0xff] %vm666, %v655
      %669 = vst.msk [vmem:[%s278 + $0x10] sm:$0xff] %vm666, %v660
      %670 = vst.msk [vmem:[%s278 + $0x18] sm:$0xff] %vm666, %v663
      %p671 = scmp.lt.s32.totalorder %s18, 1
      %s672 = scalar_select %p671, %s18, 1
      %s673 = smul.addr %s672, 4
      %s674 = smul.addr %s673, 8
      %s675 = scalar_lea.vmem %s7, %s674
      // Predicated region
      $region49: #{model_forward.44} parent=47 // pred_check
        %p676 = pneg %p188
      $region50: #{model_forward.44} parent=47 // pred_check_branch
        %678 = sbr.rel (%p676) target = $region52
      $region51: #{model_forward.44} parent=47 // pred_region
        _
      $region52: #{model_forward.44} parent=47 // pred_fallthru
        _
    $region48: #{model_forward.44} parent=5 // pred_fallthru
      _
    %p679 = scmp.le.s32.totalorder 2, %s13
    // Predicated region
    $region53: #{model_forward.44} parent=5 // pred_check
      %p680 = pneg %p679
    $region54: #{model_forward.44} parent=5 // pred_check_branch
      %682 = sbr.rel (%p680) target = $region56
    $region55: #{model_forward.44} parent=5 // pred_region
      %s683 = ssub.s32 %s13, 2
      // Predicated region
      $region57: #{model_forward.44} parent=55 // pred_check
        %p684 = pneg %p194
      $region58: #{model_forward.44} parent=55 // pred_check_branch
        %686 = sbr.rel (%p684) target = $region60
      $region59: #{model_forward.44} parent=55 // pred_region
        %p687 = scmp.lt.s32.totalorder %s19, 1
        %s688 = scalar_select %p687, %s19, 1
        %s689 = smul.addr %s688, 4
        %s690 = smul.addr %s689, 8
        %s691 = scalar_lea.vmem %s7, %s690
      $region60: #{model_forward.44} parent=55 // pred_fallthru
        _
    $region56: #{model_forward.44} parent=5 // pred_fallthru
      _
  $region6: #{model_forward.44} parent=0 // loop_footer
    %s17 = sadd.s32 1, %s13
  $region7: #{model_forward.44} parent=0 // loop_footer_branch
    %12 = sbr.rel target = $region3
  $region8: #{model_forward.44} parent=0 // loop_exit
    _

</llo_original>
